<compile_context>
chip_gen: v6e
topology: v6e:2x2x1
jax: 0.10.0
libtpu: 0.0.40
codegen_flags: <defaults>
</compile_context>

<pallas_src>
import functools

import jax
import jax.numpy as jnp
from jax.experimental import pallas as pl
from jax.experimental.pallas import tpu as pltpu

BN_EPS = 1e-5
PALLAS_MIN_ROWS = 128      # below this, launch overhead dominates -> plain jnp


def _round_up(x, m):
    return ((x + m - 1) // m) * m


def _pick_row_tile(mp):
    for t in (4096, 2048, 1024, 512, 256, 128):
        if mp % t == 0:
            return t
    return mp


# --------------------------------------------------------------------------
# Pallas kernels
# --------------------------------------------------------------------------
def _mm_stats_kernel(a_ref, b_ref, y_ref, sum_ref, ssq_ref):
    """Full-K matmul row tile with fused per-channel sum / sum-of-squares."""
    @pl.when(pl.program_id(0) == 0)
    def _():
        sum_ref[...] = jnp.zeros_like(sum_ref)
        ssq_ref[...] = jnp.zeros_like(ssq_ref)

    acc = jnp.dot(a_ref[...], b_ref[...], preferred_element_type=jnp.float32)
    y_ref[...] = acc.astype(y_ref.dtype)
    sum_ref[...] += jnp.sum(acc, axis=0, keepdims=True)
    ssq_ref[...] += jnp.sum(acc * acc, axis=0, keepdims=True)


def matmul_stats(a, b, tm):
    """a:(Mp,Kp) bf16 @ b:(Kp,Np) bf16 -> (Y bf16, col_sum f32, col_ssq f32)."""
    Mp, Kp = a.shape
    _, Np = b.shape
    return pl.pallas_call(
        _mm_stats_kernel,
        out_shape=(jax.ShapeDtypeStruct((Mp, Np), jnp.bfloat16),
                   jax.ShapeDtypeStruct((1, Np), jnp.float32),
                   jax.ShapeDtypeStruct((1, Np), jnp.float32)),
        grid_spec=pltpu.PrefetchScalarGridSpec(
            num_scalar_prefetch=0,
            grid=(Mp // tm,),
            in_specs=[pl.BlockSpec((tm, Kp), lambda i: (i, 0)),
                      pl.BlockSpec((Kp, Np), lambda i: (0, 0))],
            out_specs=(pl.BlockSpec((tm, Np), lambda i: (i, 0)),
                       pl.BlockSpec((1, Np), lambda i: (0, 0)),
                       pl.BlockSpec((1, Np), lambda i: (0, 0)))),
        compiler_params=pltpu.CompilerParams(
            dimension_semantics=("arbitrary",)),   # stats accumulate across rows
    )(a, b)


def _mm_act_kernel(a_ref, b_ref, y_ref, *, act):
    """Full-K matmul row tile with the activation fused into the epilogue."""
    acc = jnp.dot(a_ref[...], b_ref[...], preferred_element_type=jnp.float32)
    if act == "relu":
        acc = jnp.maximum(acc, 0.0)
    elif act == "tanh":
        acc = jnp.tanh(acc)
    y_ref[...] = acc.astype(y_ref.dtype)


def matmul_act(a, b, act, tm):
    Mp, Kp = a.shape
    _, Np = b.shape
    kern = functools.partial(_mm_act_kernel, act=act)
    return pl.pallas_call(
        kern,
        out_shape=jax.ShapeDtypeStruct((Mp, Np), jnp.bfloat16),
        grid_spec=pltpu.PrefetchScalarGridSpec(
            num_scalar_prefetch=0,
            grid=(Mp // tm,),
            in_specs=[pl.BlockSpec((tm, Kp), lambda i: (i, 0)),
                      pl.BlockSpec((Kp, Np), lambda i: (0, 0))],
            out_specs=pl.BlockSpec((tm, Np), lambda i: (i, 0))),
        compiler_params=pltpu.CompilerParams(
            dimension_semantics=("parallel",)),
    )(a, b)


def _ssa_kernel(y_ref, scale_ref, shift_ref, o_ref, *, act):
    z = y_ref[...].astype(jnp.float32) * scale_ref[...] + shift_ref[...]
    if act == "relu":
        z = jnp.maximum(z, 0.0)
    elif act == "tanh":
        z = jnp.tanh(z)
    o_ref[...] = z.astype(o_ref.dtype)


def scale_shift_act(y, scale, shift, act):
    """Elementwise y*scale + shift (+ activation); per-column params (1, Np)."""
    Mp, Np = y.shape
    rt = _pick_row_tile(Mp)
    kern = functools.partial(_ssa_kernel, act=act)
    return pl.pallas_call(
        kern,
        out_shape=jax.ShapeDtypeStruct((Mp, Np), jnp.bfloat16),
        grid_spec=pltpu.PrefetchScalarGridSpec(
            num_scalar_prefetch=0,
            grid=(Mp // rt,),
            in_specs=[pl.BlockSpec((rt, Np), lambda i: (i, 0)),
                      pl.BlockSpec((1, Np), lambda i: (0, 0)),
                      pl.BlockSpec((1, Np), lambda i: (0, 0))],
            out_specs=pl.BlockSpec((rt, Np), lambda i: (i, 0))),
        compiler_params=pltpu.CompilerParams(
            dimension_semantics=("parallel",)),
    )(y, scale, shift)


# --------------------------------------------------------------------------
# ConvTranspose2d(k=4, s=2, p=1) via 4-phase sub-pixel decomposition
# --------------------------------------------------------------------------
def _phase_weight_matrix(w_t):
    """torch weight (Cin, Cout, 4, 4) -> forward matmul weight (9*Cin, 4*Cout).

    Row blocks follow the 3x3 im2col tap order (dy, dx) in {-1,0,1}^2
    (channels innermost); column blocks follow output phase (ry, rx) in
    {0,1}^2.  Tap (dy, dx) feeds phase (ry, rx) through kernel element
    (kh, kw) = (ry + 1 - 2*dy, rx + 1 - 2*dx) when that index lies in [0, 4).
    """
    Cin, Cout, KH, KW = w_t.shape
    zero = jnp.zeros((Cin, Cout), w_t.dtype)
    rows = []
    for dyi in range(3):
        dy = dyi - 1
        for dxi in range(3):
            dx = dxi - 1
            cols = []
            for ry in range(2):
                for rx in range(2):
                    kh = ry + 1 - 2 * dy
                    kw = rx + 1 - 2 * dx
                    if 0 <= kh < KH and 0 <= kw < KW:
                        cols.append(w_t[:, :, kh, kw])
                    else:
                        cols.append(zero)
            rows.append(jnp.concatenate(cols, axis=1))          # (Cin, 4*Cout)
    return jnp.concatenate(rows, axis=0)                        # (9*Cin, 4*Cout)


def _im2col_3x3(x, extra_k=0):
    """3x3 im2col of x:(N,H,W,C) with zero pad 1 -> (N*H*W, 9*C + extra_k)."""
    N, H, W, C = x.shape
    xp = jnp.pad(x, ((0, 0), (1, 1), (1, 1), (0, 0)))
    cols = [xp[:, dy:dy + H, dx:dx + W, :] for dy in range(3) for dx in range(3)]
    if extra_k:
        cols.append(jnp.zeros((N, H, W, extra_k), x.dtype))     # fold K-pad in
    return jnp.concatenate(cols, axis=-1).reshape(N * H * W, 9 * C + extra_k)


def _phase_to_image(y, N, H, W, Cout):
    """(N*H*W, 4*Cout) phase-major columns -> NHWC image (N, 2H, 2W, Cout)."""
    y = y.reshape(N, H, W, 2, 2, Cout)
    return jnp.transpose(y, (0, 1, 3, 2, 4, 5)).reshape(N, 2 * H, 2 * W, Cout)


def conv_transpose4x4_s2(h, w_t, gamma, beta, act):
    """ConvTranspose2d(k=4, s=2, p=1, bias=False) [+ train-mode BN] + act."""
    N, H, W, Cin = h.shape
    Cout = w_t.shape[1]
    M, K, Ncols = N * H * W, 9 * Cin, 4 * Cout
    wmat = _phase_weight_matrix(w_t)                            # (K, Ncols) f32

    if M >= PALLAS_MIN_ROWS:
        Kp = _round_up(K, 128)
        Np = _round_up(Ncols, 128)
        tm = 512 if M >= 512 else 128
        Mp = _round_up(M, tm)
        p = _im2col_3x3(h, extra_k=Kp - K).astype(jnp.bfloat16)
        if Mp != M:
            p = jnp.pad(p, ((0, Mp - M), (0, 0)))
        wp = jnp.pad(wmat, ((0, Kp - K), (0, Np - Ncols))).astype(jnp.bfloat16)

        if gamma is not None:
            y, s, ss = matmul_stats(p, wp, tm)     # stats fused in the epilogue
            cnt = jnp.float32(4 * M)               # zero pad-rows add nothing
            csum = s[0, :Ncols].reshape(4, Cout).sum(axis=0)
            cssq = ss[0, :Ncols].reshape(4, Cout).sum(axis=0)
            mean = csum / cnt
            var = jnp.maximum(cssq / cnt - mean * mean, 0.0)     # clamp (f32)
            inv_std = jax.lax.rsqrt(var + BN_EPS)
            scale_c = gamma * inv_std
            shift_c = beta - mean * scale_c
            scale = jnp.pad(jnp.tile(scale_c, 4), (0, Np - Ncols)).reshape(1, Np)
            shift = jnp.pad(jnp.tile(shift_c, 4), (0, Np - Ncols)).reshape(1, Np)
            ya = scale_shift_act(y, scale, shift, act)
        else:
            ya = matmul_act(p, wp, act, tm)        # activation fused, no 2nd pass
        yout = ya[:M, :Ncols]
    else:
        # Tiny layer (batch=2): plain jnp in f32; launch overhead would dominate.
        p = _im2col_3x3(h).astype(jnp.float32)
        y = p @ wmat
        if gamma is not None:
            cnt = jnp.float32(4 * M)
            csum = y.sum(axis=0).reshape(4, Cout).sum(axis=0)
            cssq = (y * y).sum(axis=0).reshape(4, Cout).sum(axis=0)
            mean = csum / cnt
            var = jnp.maximum(cssq / cnt - mean * mean, 0.0)
            inv_std = jax.lax.rsqrt(var + BN_EPS)
            scale_c = gamma * inv_std
            shift_c = beta - mean * scale_c
            y = y * jnp.tile(scale_c, 4) + jnp.tile(shift_c, 4)
        if act == "relu":
            y = jnp.maximum(y, 0.0)
        elif act == "tanh":
            y = jnp.tanh(y)
        yout = y
    return _phase_to_image(yout, N, H, W, Cout)


# --------------------------------------------------------------------------
# Full forward pass
# --------------------------------------------------------------------------
def _bn_relu_nhwc(y, gamma, beta):
    mean = jnp.mean(y, axis=(0, 1, 2))
    var = jnp.maximum(jnp.mean(y * y, axis=(0, 1, 2)) - mean * mean, 0.0)
    scale = gamma * jax.lax.rsqrt(var + BN_EPS)
    return jnp.maximum((y - mean) * scale + beta, 0.0)


def generator_forward(x, params):
    x2 = x.reshape(-1, 110).astype(jnp.float32)
    N = x2.shape[0]

    # fc1 (M = batch): plain jnp -- a pallas_call costs more than the math here.
    h = x2 @ params["fc_w"].T + params["fc_b"]                       # (N, 384)

    # transConv1: k=4, s=1, p=0 on a 1x1 input == a single matmul to a 4x4 map.
    w1 = params["tc1_w"]                                             # (384,192,4,4)
    wr = jnp.transpose(w1, (0, 2, 3, 1)).reshape(384, 16 * 192)
    y1 = (h @ wr).reshape(N, 4, 4, 192)
    h = _bn_relu_nhwc(y1, params["bn1_g"], params["bn1_b"])          # NHWC f32

    # transConv2..6: k=4, s=2, p=1 via the 4-phase decomposition.
    for i in range(2, 7):
        w = params[f"tc{i}_w"]
        if i < 6:
            h = conv_transpose4x4_s2(h, w, params[f"bn{i}_g"],
                                     params[f"bn{i}_b"], act="relu")
        else:
            h = conv_transpose4x4_s2(h, w, None, None, act="tanh")

    return jnp.transpose(h, (0, 3, 1, 2)).astype(jnp.float32)        # NCHW f32


# --------------------------------------------------------------------------
# Deterministic parameter init (synthetic weights, torch shapes)
# --------------------------------------------------------------------------
def init_params(key):
    ks = jax.random.split(key, 18)

    def nrm(k, shape, scale=0.02):
        return scale * jax.random.normal(k, shape, jnp.float32)

    p = {
        "fc_w": nrm(ks[0], (384, 110)),
        "fc_b": nrm(ks[1], (384,)),
    }
    chans = [384, 192, 96, 48, 24, 12, 3]
    for i in range(6):
        cin, cout = chans[i], chans[i + 1]
        p[f"tc{i + 1}_w"] = nrm(ks[2 + i], (cin, cout, 4, 4))
        if i < 5:
            p[f"bn{i + 1}_g"] = 1.0 + nrm(ks[8 + i], (cout,))
            p[f"bn{i + 1}_b"] = nrm(ks[13 + i], (cout,))
    return p


if __name__ == "__main__":
    key = jax.random.PRNGKey(0)
    params = init_params(key)
    x = jax.random.normal(jax.random.fold_in(key, 999), (2, 110, 1, 1),
                          dtype=jnp.float32)

    fwd = jax.jit(generator_forward)
    out = fwd(x, params)
    out = jax.block_until_ready(out)

    assert out.shape == (2, 3, 128, 128), out.shape
    assert bool(jnp.all(jnp.isfinite(out)))
    assert bool(jnp.all(jnp.abs(out) <= 1.0 + 1e-5))   # tanh range
    print("KERNEL_OK")
</pallas_src>

<mosaic_0001>
module attributes {stable_mosaic.version = 11 : i64} {
  func.func @_mm_stats_kernel(%arg0: i32, %arg1: memref<128x896xbf16, #tpu.memory_space<vmem>>, %arg2: memref<896x256xbf16, #tpu.memory_space<vmem>>, %arg3: memref<128x256xbf16, #tpu.memory_space<vmem>>, %arg4: memref<1x256xf32, #tpu.memory_space<vmem>>, %arg5: memref<1x256xf32, #tpu.memory_space<vmem>>) attributes {dimension_semantics = [#tpu.dimension_semantics<arbitrary>], iteration_bounds = array<i64: 1>, scalar_prefetch = 0 : i64, scratch_operands = 0 : i64, tpu.core_type = #tpu.core_type<tc>, window_params = [{transform_indices = @transform_0, window_bounds = array<i64: 128, 896>}, {pipeline_mode = #tpu.pipeline_mode<synchronous>, transform_indices = @transform_1, window_bounds = array<i64: 896, 256>}, {transform_indices = @transform_2, window_bounds = array<i64: 128, 256>}, {pipeline_mode = #tpu.pipeline_mode<synchronous>, transform_indices = @transform_3, window_bounds = array<i64: 1, 256>}, {pipeline_mode = #tpu.pipeline_mode<synchronous>, transform_indices = @transform_4, window_bounds = array<i64: 1, 256>}]} {
    %c0_i32 = arith.constant 0 : i32
    %0 = arith.cmpi eq, %arg0, %c0_i32 : i32
    %1 = arith.extui %0 : i1 to i32
    %c0_i32_0 = arith.constant 0 : i32
    %2 = arith.cmpi ne, %1, %c0_i32_0 : i32
    scf.if %2 {
      %cst_16 = arith.constant 0.000000e+00 : f32
      %19 = vector.broadcast %cst_16 : f32 to vector<1x256xf32>
      %c0_17 = arith.constant 0 : index
      %c0_18 = arith.constant 0 : index
      %20 = vector.load %arg4[%c0_17, %c0_18] : memref<1x256xf32, #tpu.memory_space<vmem>>, vector<1x256xf32>
      tpu.vector_store %arg4[%c0_17, %c0_18], %19 {strides = array<i32>} : memref<1x256xf32, #tpu.memory_space<vmem>>, vector<1x256xf32>,
      %cst_19 = arith.constant 0.000000e+00 : f32
      %21 = vector.broadcast %cst_19 : f32 to vector<1x256xf32>
      %c0_20 = arith.constant 0 : index
      %c0_21 = arith.constant 0 : index
      %22 = vector.load %arg5[%c0_20, %c0_21] : memref<1x256xf32, #tpu.memory_space<vmem>>, vector<1x256xf32>
      tpu.vector_store %arg5[%c0_20, %c0_21], %21 {strides = array<i32>} : memref<1x256xf32, #tpu.memory_space<vmem>>, vector<1x256xf32>,
    } else {
    }
    %c0 = arith.constant 0 : index
    %c0_1 = arith.constant 0 : index
    %3 = vector.load %arg1[%c0, %c0_1] : memref<128x896xbf16, #tpu.memory_space<vmem>>, vector<128x896xbf16>
    %c0_2 = arith.constant 0 : index
    %c0_3 = arith.constant 0 : index
    %4 = vector.load %arg2[%c0_2, %c0_3] : memref<896x256xbf16, #tpu.memory_space<vmem>>, vector<896x256xbf16>
    %cst = arith.constant dense<0.000000e+00> : vector<128x256xf32>
    %5 = tpu.matmul %3, %4, %cst {dimension_numbers = #tpu.dot_dimension_numbers<[1], [0], [0], [1], [0, 0, 1, 1], [], []>} : vector<128x896xbf16>, vector<896x256xbf16>, vector<128x256xf32> -> vector<128x256xf32>
    %6 = arith.truncf %5 : vector<128x256xf32> to vector<128x256xbf16>
    %c0_4 = arith.constant 0 : index
    %c0_5 = arith.constant 0 : index
    %7 = vector.load %arg3[%c0_4, %c0_5] : memref<128x256xbf16, #tpu.memory_space<vmem>>, vector<128x256xbf16>
    tpu.vector_store %arg3[%c0_4, %c0_5], %6 {strides = array<i32>} : memref<128x256xbf16, #tpu.memory_space<vmem>>, vector<128x256xbf16>,
    %c0_6 = arith.constant 0 : index
    %c0_7 = arith.constant 0 : index
    %8 = vector.load %arg4[%c0_6, %c0_7] : memref<1x256xf32, #tpu.memory_space<vmem>>, vector<1x256xf32>
    %cst_8 = arith.constant dense<0.000000e+00> : vector<256xf32>
    %9 = vector.multi_reduction <add>, %5, %cst_8 [0] : vector<128x256xf32> to vector<256xf32>
    %10 = vector.shape_cast %9 : vector<256xf32> to vector<1x256xf32>
    %11 = arith.addf %8, %10 : vector<1x256xf32>
    %c0_9 = arith.constant 0 : index
    %c0_10 = arith.constant 0 : index
    %12 = vector.load %arg4[%c0_9, %c0_10] : memref<1x256xf32, #tpu.memory_space<vmem>>, vector<1x256xf32>
    tpu.vector_store %arg4[%c0_9, %c0_10], %11 {strides = array<i32>} : memref<1x256xf32, #tpu.memory_space<vmem>>, vector<1x256xf32>,
    %c0_11 = arith.constant 0 : index
    %c0_12 = arith.constant 0 : index
    %13 = vector.load %arg5[%c0_11, %c0_12] : memref<1x256xf32, #tpu.memory_space<vmem>>, vector<1x256xf32>
    %14 = arith.mulf %5, %5 : vector<128x256xf32>
    %cst_13 = arith.constant dense<0.000000e+00> : vector<256xf32>
    %15 = vector.multi_reduction <add>, %14, %cst_13 [0] : vector<128x256xf32> to vector<256xf32>
    %16 = vector.shape_cast %15 : vector<256xf32> to vector<1x256xf32>
    %17 = arith.addf %13, %16 : vector<1x256xf32>
    %c0_14 = arith.constant 0 : index
    %c0_15 = arith.constant 0 : index
    %18 = vector.load %arg5[%c0_14, %c0_15] : memref<1x256xf32, #tpu.memory_space<vmem>>, vector<1x256xf32>
    tpu.vector_store %arg5[%c0_14, %c0_15], %17 {strides = array<i32>} : memref<1x256xf32, #tpu.memory_space<vmem>>, vector<1x256xf32>,
    return
  }
  func.func @transform_0(%arg0: i32) -> (i32, i32) {
    %c0_i32 = arith.constant 0 : i32
    %c0_i32_0 = arith.constant 0 : i32
    return %arg0, %c0_i32 : i32, i32
  }
  func.func @transform_1(%arg0: i32) -> (i32, i32) {
    %c0_i32 = arith.constant 0 : i32
    %c0_i32_0 = arith.constant 0 : i32
    %c0_i32_1 = arith.constant 0 : i32
    return %c0_i32, %c0_i32_0 : i32, i32
  }
  func.func @transform_2(%arg0: i32) -> (i32, i32) {
    %c0_i32 = arith.constant 0 : i32
    %c0_i32_0 = arith.constant 0 : i32
    return %arg0, %c0_i32 : i32, i32
  }
  func.func @transform_3(%arg0: i32) -> (i32, i32) {
    %c0_i32 = arith.constant 0 : i32
    %c0_i32_0 = arith.constant 0 : i32
    %c0_i32_1 = arith.constant 0 : i32
    return %c0_i32, %c0_i32_0 : i32, i32
  }
  func.func @transform_4(%arg0: i32) -> (i32, i32) {
    %c0_i32 = arith.constant 0 : i32
    %c0_i32_0 = arith.constant 0 : i32
    %c0_i32_1 = arith.constant 0 : i32
    return %c0_i32, %c0_i32_0 : i32, i32
  }
}

module attributes {stable_mosaic.version = 11 : i64} {
  func.func @_ssa_kernel(%arg0: i32, %arg1: memref<128x256xbf16, #tpu.memory_space<vmem>>, %arg2: memref<1x256xf32, #tpu.memory_space<vmem>>, %arg3: memref<1x256xf32, #tpu.memory_space<vmem>>, %arg4: memref<128x256xbf16, #tpu.memory_space<vmem>>) attributes {dimension_semantics = [#tpu.dimension_semantics<parallel>], iteration_bounds = array<i64: 1>, scalar_prefetch = 0 : i64, scratch_operands = 0 : i64, tpu.core_type = #tpu.core_type<tc>, window_params = [{transform_indices = @transform_0, window_bounds = array<i64: 128, 256>}, {pipeline_mode = #tpu.pipeline_mode<synchronous>, transform_indices = @transform_1, window_bounds = array<i64: 1, 256>}, {pipeline_mode = #tpu.pipeline_mode<synchronous>, transform_indices = @transform_2, window_bounds = array<i64: 1, 256>}, {transform_indices = @transform_3, window_bounds = array<i64: 128, 256>}]} {
    %c0 = arith.constant 0 : index
    %c0_0 = arith.constant 0 : index
    %0 = vector.load %arg1[%c0, %c0_0] : memref<128x256xbf16, #tpu.memory_space<vmem>>, vector<128x256xbf16>
    %1 = arith.extf %0 : vector<128x256xbf16> to vector<128x256xf32>
    %c0_1 = arith.constant 0 : index
    %c0_2 = arith.constant 0 : index
    %2 = vector.load %arg2[%c0_1, %c0_2] : memref<1x256xf32, #tpu.memory_space<vmem>>, vector<1x256xf32>
    %3 = vector.broadcast %2 : vector<1x256xf32> to vector<128x256xf32>
    %4 = arith.mulf %1, %3 : vector<128x256xf32>
    %c0_3 = arith.constant 0 : index
    %c0_4 = arith.constant 0 : index
    %5 = vector.load %arg3[%c0_3, %c0_4] : memref<1x256xf32, #tpu.memory_space<vmem>>, vector<1x256xf32>
    %6 = vector.broadcast %5 : vector<1x256xf32> to vector<128x256xf32>
    %7 = arith.addf %4, %6 : vector<128x256xf32>
    %cst = arith.constant 0.000000e+00 : f32
    %8 = vector.broadcast %cst : f32 to vector<128x256xf32>
    %9 = arith.maximumf %7, %8 : vector<128x256xf32>
    %10 = arith.truncf %9 : vector<128x256xf32> to vector<128x256xbf16>
    %c0_5 = arith.constant 0 : index
    %c0_6 = arith.constant 0 : index
    %11 = vector.load %arg4[%c0_5, %c0_6] : memref<128x256xbf16, #tpu.memory_space<vmem>>, vector<128x256xbf16>
    tpu.vector_store %arg4[%c0_5, %c0_6], %10 {strides = array<i32>} : memref<128x256xbf16, #tpu.memory_space<vmem>>, vector<128x256xbf16>,
    return
  }
  func.func @transform_0(%arg0: i32) -> (i32, i32) {
    %c0_i32 = arith.constant 0 : i32
    %c0_i32_0 = arith.constant 0 : i32
    return %arg0, %c0_i32 : i32, i32
  }
  func.func @transform_1(%arg0: i32) -> (i32, i32) {
    %c0_i32 = arith.constant 0 : i32
    %c0_i32_0 = arith.constant 0 : i32
    %c0_i32_1 = arith.constant 0 : i32
    return %c0_i32, %c0_i32_0 : i32, i32
  }
  func.func @transform_2(%arg0: i32) -> (i32, i32) {
    %c0_i32 = arith.constant 0 : i32
    %c0_i32_0 = arith.constant 0 : i32
    %c0_i32_1 = arith.constant 0 : i32
    return %c0_i32, %c0_i32_0 : i32, i32
  }
  func.func @transform_3(%arg0: i32) -> (i32, i32) {
    %c0_i32 = arith.constant 0 : i32
    %c0_i32_0 = arith.constant 0 : i32
    return %arg0, %c0_i32 : i32, i32
  }
}

module attributes {stable_mosaic.version = 11 : i64} {
  func.func @_mm_stats_kernel(%arg0: i32, %arg1: memref<512x512xbf16, #tpu.memory_space<vmem>>, %arg2: memref<512x128xbf16, #tpu.memory_space<vmem>>, %arg3: memref<512x128xbf16, #tpu.memory_space<vmem>>, %arg4: memref<1x128xf32, #tpu.memory_space<vmem>>, %arg5: memref<1x128xf32, #tpu.memory_space<vmem>>) attributes {dimension_semantics = [#tpu.dimension_semantics<arbitrary>], iteration_bounds = array<i64: 1>, scalar_prefetch = 0 : i64, scratch_operands = 0 : i64, tpu.core_type = #tpu.core_type<tc>, window_params = [{transform_indices = @transform_0, window_bounds = array<i64: 512, 512>}, {pipeline_mode = #tpu.pipeline_mode<synchronous>, transform_indices = @transform_1, window_bounds = array<i64: 512, 128>}, {transform_indices = @transform_2, window_bounds = array<i64: 512, 128>}, {pipeline_mode = #tpu.pipeline_mode<synchronous>, transform_indices = @transform_3, window_bounds = array<i64: 1, 128>}, {pipeline_mode = #tpu.pipeline_mode<synchronous>, transform_indices = @transform_4, window_bounds = array<i64: 1, 128>}]} {
    %c0_i32 = arith.constant 0 : i32
    %0 = arith.cmpi eq, %arg0, %c0_i32 : i32
    %1 = arith.extui %0 : i1 to i32
    %c0_i32_0 = arith.constant 0 : i32
    %2 = arith.cmpi ne, %1, %c0_i32_0 : i32
    scf.if %2 {
      %cst_16 = arith.constant 0.000000e+00 : f32
      %19 = vector.broadcast %cst_16 : f32 to vector<1x128xf32>
      %c0_17 = arith.constant 0 : index
      %c0_18 = arith.constant 0 : index
      %20 = vector.load %arg4[%c0_17, %c0_18] : memref<1x128xf32, #tpu.memory_space<vmem>>, vector<1x128xf32>
      tpu.vector_store %arg4[%c0_17, %c0_18], %19 {strides = array<i32>} : memref<1x128xf32, #tpu.memory_space<vmem>>, vector<1x128xf32>,
      %cst_19 = arith.constant 0.000000e+00 : f32
      %21 = vector.broadcast %cst_19 : f32 to vector<1x128xf32>
      %c0_20 = arith.constant 0 : index
      %c0_21 = arith.constant 0 : index
      %22 = vector.load %arg5[%c0_20, %c0_21] : memref<1x128xf32, #tpu.memory_space<vmem>>, vector<1x128xf32>
      tpu.vector_store %arg5[%c0_20, %c0_21], %21 {strides = array<i32>} : memref<1x128xf32, #tpu.memory_space<vmem>>, vector<1x128xf32>,
    } else {
    }
    %c0 = arith.constant 0 : index
    %c0_1 = arith.constant 0 : index
    %3 = vector.load %arg1[%c0, %c0_1] : memref<512x512xbf16, #tpu.memory_space<vmem>>, vector<512x512xbf16>
    %c0_2 = arith.constant 0 : index
    %c0_3 = arith.constant 0 : index
    %4 = vector.load %arg2[%c0_2, %c0_3] : memref<512x128xbf16, #tpu.memory_space<vmem>>, vector<512x128xbf16>
    %cst = arith.constant dense<0.000000e+00> : vector<512x128xf32>
    %5 = tpu.matmul %3, %4, %cst {dimension_numbers = #tpu.dot_dimension_numbers<[1], [0], [0], [1], [0, 0, 1, 1], [], []>} : vector<512x512xbf16>, vector<512x128xbf16>, vector<512x128xf32> -> vector<512x128xf32>
    %6 = arith.truncf %5 : vector<512x128xf32> to vector<512x128xbf16>
    %c0_4 = arith.constant 0 : index
    %c0_5 = arith.constant 0 : index
    %7 = vector.load %arg3[%c0_4, %c0_5] : memref<512x128xbf16, #tpu.memory_space<vmem>>, vector<512x128xbf16>
    tpu.vector_store %arg3[%c0_4, %c0_5], %6 {strides = array<i32>} : memref<512x128xbf16, #tpu.memory_space<vmem>>, vector<512x128xbf16>,
    %c0_6 = arith.constant 0 : index
    %c0_7 = arith.constant 0 : index
    %8 = vector.load %arg4[%c0_6, %c0_7] : memref<1x128xf32, #tpu.memory_space<vmem>>, vector<1x128xf32>
    %cst_8 = arith.constant dense<0.000000e+00> : vector<128xf32>
    %9 = vector.multi_reduction <add>, %5, %cst_8 [0] : vector<512x128xf32> to vector<128xf32>
    %10 = vector.shape_cast %9 : vector<128xf32> to vector<1x128xf32>
    %11 = arith.addf %8, %10 : vector<1x128xf32>
    %c0_9 = arith.constant 0 : index
    %c0_10 = arith.constant 0 : index
    %12 = vector.load %arg4[%c0_9, %c0_10] : memref<1x128xf32, #tpu.memory_space<vmem>>, vector<1x128xf32>
    tpu.vector_store %arg4[%c0_9, %c0_10], %11 {strides = array<i32>} : memref<1x128xf32, #tpu.memory_space<vmem>>, vector<1x128xf32>,
    %c0_11 = arith.constant 0 : index
    %c0_12 = arith.constant 0 : index
    %13 = vector.load %arg5[%c0_11, %c0_12] : memref<1x128xf32, #tpu.memory_space<vmem>>, vector<1x128xf32>
    %14 = arith.mulf %5, %5 : vector<512x128xf32>
    %cst_13 = arith.constant dense<0.000000e+00> : vector<128xf32>
    %15 = vector.multi_reduction <add>, %14, %cst_13 [0] : vector<512x128xf32> to vector<128xf32>
    %16 = vector.shape_cast %15 : vector<128xf32> to vector<1x128xf32>
    %17 = arith.addf %13, %16 : vector<1x128xf32>
    %c0_14 = arith.constant 0 : index
    %c0_15 = arith.constant 0 : index
    %18 = vector.load %arg5[%c0_14, %c0_15] : memref<1x128xf32, #tpu.memory_space<vmem>>, vector<1x128xf32>
    tpu.vector_store %arg5[%c0_14, %c0_15], %17 {strides = array<i32>} : memref<1x128xf32, #tpu.memory_space<vmem>>, vector<1x128xf32>,
    return
  }
  func.func @transform_0(%arg0: i32) -> (i32, i32) {
    %c0_i32 = arith.constant 0 : i32
    %c0_i32_0 = arith.constant 0 : i32
    return %arg0, %c0_i32 : i32, i32
  }
  func.func @transform_1(%arg0: i32) -> (i32, i32) {
    %c0_i32 = arith.constant 0 : i32
    %c0_i32_0 = arith.constant 0 : i32
    %c0_i32_1 = arith.constant 0 : i32
    return %c0_i32, %c0_i32_0 : i32, i32
  }
  func.func @transform_2(%arg0: i32) -> (i32, i32) {
    %c0_i32 = arith.constant 0 : i32
    %c0_i32_0 = arith.constant 0 : i32
    return %arg0, %c0_i32 : i32, i32
  }
  func.func @transform_3(%arg0: i32) -> (i32, i32) {
    %c0_i32 = arith.constant 0 : i32
    %c0_i32_0 = arith.constant 0 : i32
    %c0_i32_1 = arith.constant 0 : i32
    return %c0_i32, %c0_i32_0 : i32, i32
  }
  func.func @transform_4(%arg0: i32) -> (i32, i32) {
    %c0_i32 = arith.constant 0 : i32
    %c0_i32_0 = arith.constant 0 : i32
    %c0_i32_1 = arith.constant 0 : i32
    return %c0_i32, %c0_i32_0 : i32, i32
  }
}

module attributes {stable_mosaic.version = 11 : i64} {
  func.func @_ssa_kernel(%arg0: i32, %arg1: memref<512x128xbf16, #tpu.memory_space<vmem>>, %arg2: memref<1x128xf32, #tpu.memory_space<vmem>>, %arg3: memref<1x128xf32, #tpu.memory_space<vmem>>, %arg4: memref<512x128xbf16, #tpu.memory_space<vmem>>) attributes {dimension_semantics = [#tpu.dimension_semantics<parallel>], iteration_bounds = array<i64: 1>, scalar_prefetch = 0 : i64, scratch_operands = 0 : i64, tpu.core_type = #tpu.core_type<tc>, window_params = [{transform_indices = @transform_0, window_bounds = array<i64: 512, 128>}, {pipeline_mode = #tpu.pipeline_mode<synchronous>, transform_indices = @transform_1, window_bounds = array<i64: 1, 128>}, {pipeline_mode = #tpu.pipeline_mode<synchronous>, transform_indices = @transform_2, window_bounds = array<i64: 1, 128>}, {transform_indices = @transform_3, window_bounds = array<i64: 512, 128>}]} {
    %c0 = arith.constant 0 : index
    %c0_0 = arith.constant 0 : index
    %0 = vector.load %arg1[%c0, %c0_0] : memref<512x128xbf16, #tpu.memory_space<vmem>>, vector<512x128xbf16>
    %1 = arith.extf %0 : vector<512x128xbf16> to vector<512x128xf32>
    %c0_1 = arith.constant 0 : index
    %c0_2 = arith.constant 0 : index
    %2 = vector.load %arg2[%c0_1, %c0_2] : memref<1x128xf32, #tpu.memory_space<vmem>>, vector<1x128xf32>
    %3 = vector.broadcast %2 : vector<1x128xf32> to vector<512x128xf32>
    %4 = arith.mulf %1, %3 : vector<512x128xf32>
    %c0_3 = arith.constant 0 : index
    %c0_4 = arith.constant 0 : index
    %5 = vector.load %arg3[%c0_3, %c0_4] : memref<1x128xf32, #tpu.memory_space<vmem>>, vector<1x128xf32>
    %6 = vector.broadcast %5 : vector<1x128xf32> to vector<512x128xf32>
    %7 = arith.addf %4, %6 : vector<512x128xf32>
    %cst = arith.constant 0.000000e+00 : f32
    %8 = vector.broadcast %cst : f32 to vector<512x128xf32>
    %9 = arith.maximumf %7, %8 : vector<512x128xf32>
    %10 = arith.truncf %9 : vector<512x128xf32> to vector<512x128xbf16>
    %c0_5 = arith.constant 0 : index
    %c0_6 = arith.constant 0 : index
    %11 = vector.load %arg4[%c0_5, %c0_6] : memref<512x128xbf16, #tpu.memory_space<vmem>>, vector<512x128xbf16>
    tpu.vector_store %arg4[%c0_5, %c0_6], %10 {strides = array<i32>} : memref<512x128xbf16, #tpu.memory_space<vmem>>, vector<512x128xbf16>,
    return
  }
  func.func @transform_0(%arg0: i32) -> (i32, i32) {
    %c0_i32 = arith.constant 0 : i32
    %c0_i32_0 = arith.constant 0 : i32
    return %arg0, %c0_i32 : i32, i32
  }
  func.func @transform_1(%arg0: i32) -> (i32, i32) {
    %c0_i32 = arith.constant 0 : i32
    %c0_i32_0 = arith.constant 0 : i32
    %c0_i32_1 = arith.constant 0 : i32
    return %c0_i32, %c0_i32_0 : i32, i32
  }
  func.func @transform_2(%arg0: i32) -> (i32, i32) {
    %c0_i32 = arith.constant 0 : i32
    %c0_i32_0 = arith.constant 0 : i32
    %c0_i32_1 = arith.constant 0 : i32
    return %c0_i32, %c0_i32_0 : i32, i32
  }
  func.func @transform_3(%arg0: i32) -> (i32, i32) {
    %c0_i32 = arith.constant 0 : i32
    %c0_i32_0 = arith.constant 0 : i32
    return %arg0, %c0_i32 : i32, i32
  }
}

module attributes {stable_mosaic.version = 11 : i64} {
  func.func @_mm_stats_kernel(%arg0: i32, %arg1: memref<512x256xbf16, #tpu.memory_space<vmem>>, %arg2: memref<256x128xbf16, #tpu.memory_space<vmem>>, %arg3: memref<512x128xbf16, #tpu.memory_space<vmem>>, %arg4: memref<1x128xf32, #tpu.memory_space<vmem>>, %arg5: memref<1x128xf32, #tpu.memory_space<vmem>>) attributes {dimension_semantics = [#tpu.dimension_semantics<arbitrary>], iteration_bounds = array<i64: 4>, scalar_prefetch = 0 : i64, scratch_operands = 0 : i64, tpu.core_type = #tpu.core_type<tc>, window_params = [{transform_indices = @transform_0, window_bounds = array<i64: 512, 256>}, {pipeline_mode = #tpu.pipeline_mode<synchronous>, transform_indices = @transform_1, window_bounds = array<i64: 256, 128>}, {transform_indices = @transform_2, window_bounds = array<i64: 512, 128>}, {pipeline_mode = #tpu.pipeline_mode<synchronous>, transform_indices = @transform_3, window_bounds = array<i64: 1, 128>}, {pipeline_mode = #tpu.pipeline_mode<synchronous>, transform_indices = @transform_4, window_bounds = array<i64: 1, 128>}]} {
    %c0_i32 = arith.constant 0 : i32
    %0 = arith.cmpi eq, %arg0, %c0_i32 : i32
    %1 = arith.extui %0 : i1 to i32
    %c0_i32_0 = arith.constant 0 : i32
    %2 = arith.cmpi ne, %1, %c0_i32_0 : i32
    scf.if %2 {
      %cst_16 = arith.constant 0.000000e+00 : f32
      %19 = vector.broadcast %cst_16 : f32 to vector<1x128xf32>
      %c0_17 = arith.constant 0 : index
      %c0_18 = arith.constant 0 : index
      %20 = vector.load %arg4[%c0_17, %c0_18] : memref<1x128xf32, #tpu.memory_space<vmem>>, vector<1x128xf32>
      tpu.vector_store %arg4[%c0_17, %c0_18], %19 {strides = array<i32>} : memref<1x128xf32, #tpu.memory_space<vmem>>, vector<1x128xf32>,
      %cst_19 = arith.constant 0.000000e+00 : f32
      %21 = vector.broadcast %cst_19 : f32 to vector<1x128xf32>
      %c0_20 = arith.constant 0 : index
      %c0_21 = arith.constant 0 : index
      %22 = vector.load %arg5[%c0_20, %c0_21] : memref<1x128xf32, #tpu.memory_space<vmem>>, vector<1x128xf32>
      tpu.vector_store %arg5[%c0_20, %c0_21], %21 {strides = array<i32>} : memref<1x128xf32, #tpu.memory_space<vmem>>, vector<1x128xf32>,
    } else {
    }
    %c0 = arith.constant 0 : index
    %c0_1 = arith.constant 0 : index
    %3 = vector.load %arg1[%c0, %c0_1] : memref<512x256xbf16, #tpu.memory_space<vmem>>, vector<512x256xbf16>
    %c0_2 = arith.constant 0 : index
    %c0_3 = arith.constant 0 : index
    %4 = vector.load %arg2[%c0_2, %c0_3] : memref<256x128xbf16, #tpu.memory_space<vmem>>, vector<256x128xbf16>
    %cst = arith.constant dense<0.000000e+00> : vector<512x128xf32>
    %5 = tpu.matmul %3, %4, %cst {dimension_numbers = #tpu.dot_dimension_numbers<[1], [0], [0], [1], [0, 0, 1, 1], [], []>} : vector<512x256xbf16>, vector<256x128xbf16>, vector<512x128xf32> -> vector<512x128xf32>
    %6 = arith.truncf %5 : vector<512x128xf32> to vector<512x128xbf16>
    %c0_4 = arith.constant 0 : index
    %c0_5 = arith.constant 0 : index
    %7 = vector.load %arg3[%c0_4, %c0_5] : memref<512x128xbf16, #tpu.memory_space<vmem>>, vector<512x128xbf16>
    tpu.vector_store %arg3[%c0_4, %c0_5], %6 {strides = array<i32>} : memref<512x128xbf16, #tpu.memory_space<vmem>>, vector<512x128xbf16>,
    %c0_6 = arith.constant 0 : index
    %c0_7 = arith.constant 0 : index
    %8 = vector.load %arg4[%c0_6, %c0_7] : memref<1x128xf32, #tpu.memory_space<vmem>>, vector<1x128xf32>
    %cst_8 = arith.constant dense<0.000000e+00> : vector<128xf32>
    %9 = vector.multi_reduction <add>, %5, %cst_8 [0] : vector<512x128xf32> to vector<128xf32>
    %10 = vector.shape_cast %9 : vector<128xf32> to vector<1x128xf32>
    %11 = arith.addf %8, %10 : vector<1x128xf32>
    %c0_9 = arith.constant 0 : index
    %c0_10 = arith.constant 0 : index
    %12 = vector.load %arg4[%c0_9, %c0_10] : memref<1x128xf32, #tpu.memory_space<vmem>>, vector<1x128xf32>
    tpu.vector_store %arg4[%c0_9, %c0_10], %11 {strides = array<i32>} : memref<1x128xf32, #tpu.memory_space<vmem>>, vector<1x128xf32>,
    %c0_11 = arith.constant 0 : index
    %c0_12 = arith.constant 0 : index
    %13 = vector.load %arg5[%c0_11, %c0_12] : memref<1x128xf32, #tpu.memory_space<vmem>>, vector<1x128xf32>
    %14 = arith.mulf %5, %5 : vector<512x128xf32>
    %cst_13 = arith.constant dense<0.000000e+00> : vector<128xf32>
    %15 = vector.multi_reduction <add>, %14, %cst_13 [0] : vector<512x128xf32> to vector<128xf32>
    %16 = vector.shape_cast %15 : vector<128xf32> to vector<1x128xf32>
    %17 = arith.addf %13, %16 : vector<1x128xf32>
    %c0_14 = arith.constant 0 : index
    %c0_15 = arith.constant 0 : index
    %18 = vector.load %arg5[%c0_14, %c0_15] : memref<1x128xf32, #tpu.memory_space<vmem>>, vector<1x128xf32>
    tpu.vector_store %arg5[%c0_14, %c0_15], %17 {strides = array<i32>} : memref<1x128xf32, #tpu.memory_space<vmem>>, vector<1x128xf32>,
    return
  }
  func.func @transform_0(%arg0: i32) -> (i32, i32) {
    %c0_i32 = arith.constant 0 : i32
    %c0_i32_0 = arith.constant 0 : i32
    return %arg0, %c0_i32 : i32, i32
  }
  func.func @transform_1(%arg0: i32) -> (i32, i32) {
    %c0_i32 = arith.constant 0 : i32
    %c0_i32_0 = arith.constant 0 : i32
    %c0_i32_1 = arith.constant 0 : i32
    return %c0_i32, %c0_i32_0 : i32, i32
  }
  func.func @transform_2(%arg0: i32) -> (i32, i32) {
    %c0_i32 = arith.constant 0 : i32
    %c0_i32_0 = arith.constant 0 : i32
    return %arg0, %c0_i32 : i32, i32
  }
  func.func @transform_3(%arg0: i32) -> (i32, i32) {
    %c0_i32 = arith.constant 0 : i32
    %c0_i32_0 = arith.constant 0 : i32
    %c0_i32_1 = arith.constant 0 : i32
    return %c0_i32, %c0_i32_0 : i32, i32
  }
  func.func @transform_4(%arg0: i32) -> (i32, i32) {
    %c0_i32 = arith.constant 0 : i32
    %c0_i32_0 = arith.constant 0 : i32
    %c0_i32_1 = arith.constant 0 : i32
    return %c0_i32, %c0_i32_0 : i32, i32
  }
}

module attributes {stable_mosaic.version = 11 : i64} {
  func.func @_ssa_kernel(%arg0: i32, %arg1: memref<2048x128xbf16, #tpu.memory_space<vmem>>, %arg2: memref<1x128xf32, #tpu.memory_space<vmem>>, %arg3: memref<1x128xf32, #tpu.memory_space<vmem>>, %arg4: memref<2048x128xbf16, #tpu.memory_space<vmem>>) attributes {dimension_semantics = [#tpu.dimension_semantics<parallel>], iteration_bounds = array<i64: 1>, scalar_prefetch = 0 : i64, scratch_operands = 0 : i64, tpu.core_type = #tpu.core_type<tc>, window_params = [{transform_indices = @transform_0, window_bounds = array<i64: 2048, 128>}, {pipeline_mode = #tpu.pipeline_mode<synchronous>, transform_indices = @transform_1, window_bounds = array<i64: 1, 128>}, {pipeline_mode = #tpu.pipeline_mode<synchronous>, transform_indices = @transform_2, window_bounds = array<i64: 1, 128>}, {transform_indices = @transform_3, window_bounds = array<i64: 2048, 128>}]} {
    %c0 = arith.constant 0 : index
    %c0_0 = arith.constant 0 : index
    %0 = vector.load %arg1[%c0, %c0_0] : memref<2048x128xbf16, #tpu.memory_space<vmem>>, vector<2048x128xbf16>
    %1 = arith.extf %0 : vector<2048x128xbf16> to vector<2048x128xf32>
    %c0_1 = arith.constant 0 : index
    %c0_2 = arith.constant 0 : index
    %2 = vector.load %arg2[%c0_1, %c0_2] : memref<1x128xf32, #tpu.memory_space<vmem>>, vector<1x128xf32>
    %3 = vector.broadcast %2 : vector<1x128xf32> to vector<2048x128xf32>
    %4 = arith.mulf %1, %3 : vector<2048x128xf32>
    %c0_3 = arith.constant 0 : index
    %c0_4 = arith.constant 0 : index
    %5 = vector.load %arg3[%c0_3, %c0_4] : memref<1x128xf32, #tpu.memory_space<vmem>>, vector<1x128xf32>
    %6 = vector.broadcast %5 : vector<1x128xf32> to vector<2048x128xf32>
    %7 = arith.addf %4, %6 : vector<2048x128xf32>
    %cst = arith.constant 0.000000e+00 : f32
    %8 = vector.broadcast %cst : f32 to vector<2048x128xf32>
    %9 = arith.maximumf %7, %8 : vector<2048x128xf32>
    %10 = arith.truncf %9 : vector<2048x128xf32> to vector<2048x128xbf16>
    %c0_5 = arith.constant 0 : index
    %c0_6 = arith.constant 0 : index
    %11 = vector.load %arg4[%c0_5, %c0_6] : memref<2048x128xbf16, #tpu.memory_space<vmem>>, vector<2048x128xbf16>
    tpu.vector_store %arg4[%c0_5, %c0_6], %10 {strides = array<i32>} : memref<2048x128xbf16, #tpu.memory_space<vmem>>, vector<2048x128xbf16>,
    return
  }
  func.func @transform_0(%arg0: i32) -> (i32, i32) {
    %c0_i32 = arith.constant 0 : i32
    %c0_i32_0 = arith.constant 0 : i32
    return %arg0, %c0_i32 : i32, i32
  }
  func.func @transform_1(%arg0: i32) -> (i32, i32) {
    %c0_i32 = arith.constant 0 : i32
    %c0_i32_0 = arith.constant 0 : i32
    %c0_i32_1 = arith.constant 0 : i32
    return %c0_i32, %c0_i32_0 : i32, i32
  }
  func.func @transform_2(%arg0: i32) -> (i32, i32) {
    %c0_i32 = arith.constant 0 : i32
    %c0_i32_0 = arith.constant 0 : i32
    %c0_i32_1 = arith.constant 0 : i32
    return %c0_i32, %c0_i32_0 : i32, i32
  }
  func.func @transform_3(%arg0: i32) -> (i32, i32) {
    %c0_i32 = arith.constant 0 : i32
    %c0_i32_0 = arith.constant 0 : i32
    return %arg0, %c0_i32 : i32, i32
  }
}

module attributes {stable_mosaic.version = 11 : i64} {
  func.func @_mm_act_kernel(%arg0: i32, %arg1: memref<512x128xbf16, #tpu.memory_space<vmem>>, %arg2: memref<128x128xbf16, #tpu.memory_space<vmem>>, %arg3: memref<512x128xbf16, #tpu.memory_space<vmem>>) attributes {dimension_semantics = [#tpu.dimension_semantics<parallel>], iteration_bounds = array<i64: 16>, scalar_prefetch = 0 : i64, scratch_operands = 0 : i64, tpu.core_type = #tpu.core_type<tc>, window_params = [{transform_indices = @transform_0, window_bounds = array<i64: 512, 128>}, {pipeline_mode = #tpu.pipeline_mode<synchronous>, transform_indices = @transform_1, window_bounds = array<i64: 128, 128>}, {transform_indices = @transform_2, window_bounds = array<i64: 512, 128>}]} {
    %c0 = arith.constant 0 : index
    %c0_0 = arith.constant 0 : index
    %0 = vector.load %arg1[%c0, %c0_0] : memref<512x128xbf16, #tpu.memory_space<vmem>>, vector<512x128xbf16>
    %c0_1 = arith.constant 0 : index
    %c0_2 = arith.constant 0 : index
    %1 = vector.load %arg2[%c0_1, %c0_2] : memref<128x128xbf16, #tpu.memory_space<vmem>>, vector<128x128xbf16>
    %cst = arith.constant dense<0.000000e+00> : vector<512x128xf32>
    %2 = tpu.matmul %0, %1, %cst {dimension_numbers = #tpu.dot_dimension_numbers<[1], [0], [0], [1], [0, 0, 1, 1], [], []>} : vector<512x128xbf16>, vector<128x128xbf16>, vector<512x128xf32> -> vector<512x128xf32>
    %3 = math.tanh %2 : vector<512x128xf32>
    %4 = arith.truncf %3 : vector<512x128xf32> to vector<512x128xbf16>
    %c0_3 = arith.constant 0 : index
    %c0_4 = arith.constant 0 : index
    %5 = vector.load %arg3[%c0_3, %c0_4] : memref<512x128xbf16, #tpu.memory_space<vmem>>, vector<512x128xbf16>
    tpu.vector_store %arg3[%c0_3, %c0_4], %4 {strides = array<i32>} : memref<512x128xbf16, #tpu.memory_space<vmem>>, vector<512x128xbf16>,
    return
  }
  func.func @transform_0(%arg0: i32) -> (i32, i32) {
    %c0_i32 = arith.constant 0 : i32
    %c0_i32_0 = arith.constant 0 : i32
    return %arg0, %c0_i32 : i32, i32
  }
  func.func @transform_1(%arg0: i32) -> (i32, i32) {
    %c0_i32 = arith.constant 0 : i32
    %c0_i32_0 = arith.constant 0 : i32
    %c0_i32_1 = arith.constant 0 : i32
    return %c0_i32, %c0_i32_0 : i32, i32
  }
  func.func @transform_2(%arg0: i32) -> (i32, i32) {
    %c0_i32 = arith.constant 0 : i32
    %c0_i32_0 = arith.constant 0 : i32
    return %arg0, %c0_i32 : i32, i32
  }
}

</mosaic_0001>

<llo_original>
// kernel: tile.48
$region0: #{tile.48}
  #allocation0 [shape = 's32[1]{0}', space=sflag, size = 0x4, scoped, tag = 'scoped memory for tile.48']
  %s0 = inlined_call_operand.vmem [shape: f32[96], index: 0, kind: input, shape index: {}]
  %s1 = inlined_call_operand.vmem [shape: f32[4,96], index: 1, kind: output, shape index: {}]
  // Predicated region
  $region2: #{tile.48} parent=0 // pred_check
    _
  $region3: #{tile.48} parent=0 // pred_check_branch
    %3 = sbr.rel (0) target = $region5
  $region4: #{tile.48} parent=0 // pred_region
    _
  $region5: #{tile.48} parent=0 // pred_fallthru
    _
  %v4 = vld [vmem:[%s0] ss:$0 sm:$0xff]
  %5 = vst [vmem:[%s1] sm:$0xf] %v4

// kernel: squeeze.119
$region0: #{squeeze.119}
  %s0 = inlined_call_operand.vmem [shape: f32[192], index: 0, kind: input, shape index: {}]
  %s1 = inlined_call_operand.vmem [shape: f32[4,48], index: 1, kind: output, shape index: {}]
  $region1: #{squeeze.119} parent=0
    #allocation0 [shape = 'u8[4096]{0}', space=vmem, size = 0x1000, scoped, tag = 'scoped mem for output reshape']
    #allocation1 [shape = 'u8[4096]{0}', space=vmem, size = 0x1000, scoped, tag = 'scoped mem for input reshape']
    %s3 = sshll.u32 1, 2
    %s4 = ssub.s32 %s3, 1
    %v5 = vld [vmem:[%s0] sm:%s4]
    %6 = vst [vmem:[#allocation1] sm:%s4] %v5
    %v7 = vld [vmem:[#allocation1] sm:$0x1]
    %vm8 = vcmask 392192
    %9 = vst.msk [vmem:[#allocation0] sm:$0x1] %vm8, %v7
    %s10 = scalar_lea.vmem [#allocation1], 1
    %v11 = vld [vmem:[%s10] sm:$0x1]
    %12 = vrot.lane.b32.xlu0 %v11, 112
    %v13 = vpop.permute.xlu0 %12
    %vm14 = vcmask 392192
    %s15 = scalar_lea.vmem [#allocation0], 3
    %16 = vst.msk [vmem:[%s15] sm:$0x1] %vm14, %v13
    %v17 = vld [vmem:[#allocation1] sm:$0x1]
    %18 = vrot.lane.b32.xlu0 %v17, 80
    %v19 = vpop.permute.xlu0 %18
    %vm20 = vcmask 392192
    %s21 = scalar_lea.vmem [#allocation0], 1
    %22 = vst.msk [vmem:[%s21] sm:$0x1] %vm20, %v19
    %v23 = vld [vmem:[#allocation1] sm:$0x1]
    %s24 = scalar_lea.vmem [#allocation1], 1
    %v25 = vld [vmem:[%s24] sm:$0x1]
    %vm26 = vcmask 785408
    %v27 = vsel %vm26, %v25, %v23
    %28 = vrot.lane.b32.xlu0 %v27, 32
    %v29 = vpop.permute.xlu0 %28
    %vm30 = vcmask 261120
    %s31 = scalar_lea.vmem [#allocation0], 2
    %32 = vst.msk [vmem:[%s31] sm:$0x1] %vm30, %v29
    %vm33 = vcmask 392448
    %s34 = scalar_lea.vmem [#allocation0], 2
    %35 = vst.msk [vmem:[%s34] sm:$0x1] %vm33, %v29
    %s37 = sshll.u32 1, 4
    %s38 = ssub.s32 %s37, 1
    %v40 = vld [vmem:[#allocation0] sm:%s38]
    %s41 = sshll.u32 1, 4
    %s42 = ssub.s32 %s41, 1
    %43 = vst [vmem:[%s1] sm:%s42] %v40

// kernel: tile.58
$region0: #{tile.58}
  #allocation0 [shape = 's32[1]{0}', space=sflag, size = 0x4, scoped, tag = 'scoped memory for tile.58']
  %s0 = inlined_call_operand.vmem [shape: f32[48], index: 0, kind: input, shape index: {}]
  %s1 = inlined_call_operand.vmem [shape: f32[4,48], index: 1, kind: output, shape index: {}]
  // Predicated region
  $region2: #{tile.58} parent=0 // pred_check
    _
  $region3: #{tile.58} parent=0 // pred_check_branch
    %3 = sbr.rel (0) target = $region5
  $region4: #{tile.58} parent=0 // pred_region
    _
  $region5: #{tile.58} parent=0 // pred_fallthru
    _
  %v4 = vld [vmem:[%s0] ss:$0 sm:$0xff]
  %5 = vst [vmem:[%s1] sm:$0xf] %v4

// kernel: tile.59
$region0: #{tile.59}
  %s0 = inlined_call_operand.vmem [shape: f32[4,48], index: 0, kind: input, shape index: {}]
  %s1 = inlined_call_operand.vmem [shape: f32[192], index: 1, kind: output, shape index: {}]
  $region1: #{tile.59} parent=0
    #allocation0 [shape = 'u8[4096]{0}', space=vmem, size = 0x1000, scoped, tag = 'scoped mem for output reshape']
    #allocation1 [shape = 'u8[4096]{0}', space=vmem, size = 0x1000, scoped, tag = 'scoped mem for input reshape']
    %s3 = sshll.u32 1, 4
    %s4 = ssub.s32 %s3, 1
    %v5 = vld [vmem:[%s0] sm:%s4]
    %6 = vst [vmem:[#allocation1] sm:%s4] %v5
    %v7 = vld [vmem:[#allocation1] sm:$0x1]
    %vm8 = vcmask 392192
    %9 = vst.msk [vmem:[#allocation0] sm:$0x1] %vm8, %v7
    %s10 = scalar_lea.vmem [#allocation1], 2
    %v11 = vld [vmem:[%s10] sm:$0x1]
    %s12 = scalar_lea.vmem [#allocation1], 2
    %v13 = vld [vmem:[%s12] sm:$0x1]
    %vm14 = vcmask 261120
    %v15 = vsel %vm14, %v13, %v11
    %16 = vrot.lane.b32.xlu0 %v15, 96
    %v17 = vpop.permute.xlu0 %16
    %vm18 = vcmask 130048
    %s19 = scalar_lea.vmem [#allocation0], 1
    %20 = vst.msk [vmem:[%s19] sm:$0x1] %vm18, %v17
    %vm21 = vcmask 1048320
    %22 = vst.msk [vmem:[#allocation0] sm:$0x1] %vm21, %v17
    %s23 = scalar_lea.vmem [#allocation1], 1
    %v24 = vld [vmem:[%s23] sm:$0x1]
    %25 = vrot.lane.b32.xlu0 %v24, 48
    %v26 = vpop.permute.xlu0 %25
    %vm27 = vcmask 785792
    %28 = vst.msk [vmem:[#allocation0] sm:$0x1] %vm27, %v26
    %s29 = scalar_lea.vmem [#allocation1], 3
    %v30 = vld [vmem:[%s29] sm:$0x1]
    %31 = vrot.lane.b32.xlu0 %v30, 16
    %v32 = vpop.permute.xlu0 %31
    %vm33 = vcmask 523392
    %s34 = scalar_lea.vmem [#allocation0], 1
    %35 = vst.msk [vmem:[%s34] sm:$0x1] %vm33, %v32
    %s37 = sshll.u32 1, 2
    %s38 = ssub.s32 %s37, 1
    %v40 = vld [vmem:[#allocation0] sm:%s38]
    %s41 = sshll.u32 1, 2
    %s42 = ssub.s32 %s41, 1
    %43 = vst [vmem:[%s1] sm:%s42] %v40

// kernel: generator_forward.7
$region0: #{generator_forward.7}
  #allocation0 [shape = 'u32[]', space=smem, size = 0x4, offset = 0x4, fixed_abs, tag = 'smem constant byte address 0x4 - core index']
  #allocation1 [shape = 'u32[144,128]{1,0:T(1,128)}', space=vmem, size = 0x12000, scoped, tag = 'internal scratch']
  %s0 = inlined_call_operand.vmem [shape: bf16[128,896], index: 0, kind: input, shape index: {}]
  %s1 = inlined_call_operand.vmem [shape: bf16[896,256], index: 1, kind: input, shape index: {}]
  %s2 = inlined_call_operand.vmem [shape: bf16[128,256], index: 2, kind: output, shape index: {0}]
  %s3 = inlined_call_operand.vmem [shape: f32[1,256], index: 3, kind: output, shape index: {1}]
  %s4 = inlined_call_operand.vmem [shape: f32[1,256], index: 4, kind: output, shape index: {2}]
  %5 = xla_tuple %s2, %s3, %s4
  %s6 = sld [smem:[#allocation0]]
  $region38: #{generator_forward.7} parent=0
    _
  %s8 = ssub.s32 1, %s6
  %s9 = scalar_select 0, %s8, %s6
  // Predicated region
  $region2: #{generator_forward.7} parent=0 // pred_check
    _
  $region3: #{generator_forward.7} parent=0 // pred_check_branch
    %11 = sbr.rel (0) target = $region5
  $region4: #{generator_forward.7} parent=0 // pred_region
    _
  $region5: #{generator_forward.7} parent=0 // pred_fallthru
    _
  // Predicated region
  $region6: #{generator_forward.7} parent=0 // pred_check
    _
  $region7: #{generator_forward.7} parent=0 // pred_check_branch
    %13 = sbr.rel (0) target = $region9
  $region8: #{generator_forward.7} parent=0 // pred_region
    _
  $region9: #{generator_forward.7} parent=0 // pred_fallthru
    _
  %p15 = scmp.eq.s32.totalorder 0, 0
  // Predicated region
  $region10: #{generator_forward.7} parent=0 // pred_check
    %p16 = pneg %p15
  $region11: #{generator_forward.7} parent=0 // pred_check_branch
    %18 = sbr.rel (%p16) target = $region13
  $region12: #{generator_forward.7} parent=0 // pred_region
    %v19 = vlaneseq
    %vm20 = vcmp.ge.s32.totalorder %v19, 0
    %vm21 = vcmp.lt.s32.totalorder %v19, 256
    %vm22 = vmand %vm20, %vm21
    %23 = vst.msk [vmem:[%s3] sm:$0x3] %vm22, 0.0
    %24 = vst.msk [vmem:[%s4] sm:$0x3] %vm22, 0.0
  $region13: #{generator_forward.7} parent=0 // pred_fallthru
    _
  %v25 = vld [vmem:[%s0] sm:$0xff]
  %v26 = vld [vmem:[%s0 + $0x8] sm:$0xff]
  %v27 = vld [vmem:[%s0 + $0x10] sm:$0xff]
  %v28 = vld [vmem:[%s0 + $0x18] sm:$0xf]
  %v29 = vld [vmem:[%s0 + $0x1c] sm:$0xff]
  %v30 = vld [vmem:[%s0 + $0x24] sm:$0xff]
  %v31 = vld [vmem:[%s0 + $0x2c] sm:$0xff]
  %v32 = vld [vmem:[%s0 + $0x34] sm:$0xf]
  %v33 = vld [vmem:[%s0 + $0x38] sm:$0xff]
  %v34 = vld [vmem:[%s0 + $0x40] sm:$0xff]
  %v35 = vld [vmem:[%s0 + $0x48] sm:$0xff]
  %v36 = vld [vmem:[%s0 + $0x50] sm:$0xf]
  %v37 = vld [vmem:[%s0 + $0x54] sm:$0xff]
  %v38 = vld [vmem:[%s0 + $0x5c] sm:$0xff]
  %v39 = vld [vmem:[%s0 + $0x64] sm:$0xff]
  %v40 = vld [vmem:[%s0 + $0x6c] sm:$0xf]
  %v41 = vld [vmem:[%s0 + $0x70] sm:$0xff]
  %v42 = vld [vmem:[%s0 + $0x78] sm:$0xff]
  %v43 = vld [vmem:[%s0 + $0x80] sm:$0xff]
  %v44 = vld [vmem:[%s0 + $0x88] sm:$0xf]
  %v45 = vld [vmem:[%s0 + $0x8c] sm:$0xff]
  %v46 = vld [vmem:[%s0 + $0x94] sm:$0xff]
  %v47 = vld [vmem:[%s0 + $0x9c] sm:$0xff]
  %v48 = vld [vmem:[%s0 + $0xa4] sm:$0xf]
  %v49 = vld [vmem:[%s0 + $0xa8] sm:$0xff]
  %v50 = vld [vmem:[%s0 + $0xb0] sm:$0xff]
  %v51 = vld [vmem:[%s0 + $0xb8] sm:$0xff]
  %v52 = vld [vmem:[%s0 + $0xc0] sm:$0xf]
  %v53 = vld [vmem:[%s0 + $0xc4] sm:$0xff]
  %v54 = vld [vmem:[%s0 + $0xcc] sm:$0xff]
  %v55 = vld [vmem:[%s0 + $0xd4] sm:$0xff]
  %v56 = vld [vmem:[%s0 + $0xdc] sm:$0xf]
  %v57 = vld [vmem:[%s0 + $0xe0] sm:$0xff]
  %v58 = vld [vmem:[%s0 + $0xe8] sm:$0xff]
  %v59 = vld [vmem:[%s0 + $0xf0] sm:$0xff]
  %v60 = vld [vmem:[%s0 + $0xf8] sm:$0xf]
  %v61 = vld [vmem:[%s0 + $0xfc] sm:$0xff]
  %v62 = vld [vmem:[%s0 + $0x104] sm:$0xff]
  %v63 = vld [vmem:[%s0 + $0x10c] sm:$0xff]
  %v64 = vld [vmem:[%s0 + $0x114] sm:$0xf]
  %v65 = vld [vmem:[%s0 + $0x118] sm:$0xff]
  %v66 = vld [vmem:[%s0 + $0x120] sm:$0xff]
  %v67 = vld [vmem:[%s0 + $0x128] sm:$0xff]
  %v68 = vld [vmem:[%s0 + $0x130] sm:$0xf]
  %v69 = vld [vmem:[%s0 + $0x134] sm:$0xff]
  %v70 = vld [vmem:[%s0 + $0x13c] sm:$0xff]
  %v71 = vld [vmem:[%s0 + $0x144] sm:$0xff]
  %v72 = vld [vmem:[%s0 + $0x14c] sm:$0xf]
  %v73 = vld [vmem:[%s0 + $0x150] sm:$0xff]
  %v74 = vld [vmem:[%s0 + $0x158] sm:$0xff]
  %v75 = vld [vmem:[%s0 + $0x160] sm:$0xff]
  %v76 = vld [vmem:[%s0 + $0x168] sm:$0xf]
  %v77 = vld [vmem:[%s0 + $0x16c] sm:$0xff]
  %v78 = vld [vmem:[%s0 + $0x174] sm:$0xff]
  %v79 = vld [vmem:[%s0 + $0x17c] sm:$0xff]
  %v80 = vld [vmem:[%s0 + $0x184] sm:$0xf]
  %v81 = vld [vmem:[%s0 + $0x188] sm:$0xff]
  %v82 = vld [vmem:[%s0 + $0x190] sm:$0xff]
  %v83 = vld [vmem:[%s0 + $0x198] sm:$0xff]
  %v84 = vld [vmem:[%s0 + $0x1a0] sm:$0xf]
  %v85 = vld [vmem:[%s0 + $0x1a4] sm:$0xff]
  %v86 = vld [vmem:[%s0 + $0x1ac] sm:$0xff]
  %v87 = vld [vmem:[%s0 + $0x1b4] sm:$0xff]
  %v88 = vld [vmem:[%s0 + $0x1bc] sm:$0xf]
  %v89 = vld [vmem:[%s1] sm:$0xff]
  %v90 = vld [vmem:[%s1 + $0x8] sm:$0xff]
  %v91 = vld [vmem:[%s1 + $0x10] sm:$0xff]
  %v92 = vld [vmem:[%s1 + $0x18] sm:$0xff]
  %v93 = vld [vmem:[%s1 + $0x20] sm:$0xff]
  %v94 = vld [vmem:[%s1 + $0x28] sm:$0xff]
  %v95 = vld [vmem:[%s1 + $0x30] sm:$0xff]
  %v96 = vld [vmem:[%s1 + $0x38] sm:$0xff]
  %v97 = vld [vmem:[%s1 + $0x40] sm:$0xff]
  %v98 = vld [vmem:[%s1 + $0x48] sm:$0xff]
  %v99 = vld [vmem:[%s1 + $0x50] sm:$0xff]
  %v100 = vld [vmem:[%s1 + $0x58] sm:$0xff]
  %v101 = vld [vmem:[%s1 + $0x60] sm:$0xff]
  %v102 = vld [vmem:[%s1 + $0x68] sm:$0xff]
  %v103 = vld [vmem:[%s1 + $0x70] sm:$0xff]
  %v104 = vld [vmem:[%s1 + $0x78] sm:$0xff]
  %v105 = vld [vmem:[%s1 + $0x80] sm:$0xff]
  %v106 = vld [vmem:[%s1 + $0x88] sm:$0xff]
  %v107 = vld [vmem:[%s1 + $0x90] sm:$0xff]
  %v108 = vld [vmem:[%s1 + $0x98] sm:$0xff]
  %v109 = vld [vmem:[%s1 + $0xa0] sm:$0xff]
  %v110 = vld [vmem:[%s1 + $0xa8] sm:$0xff]
  %v111 = vld [vmem:[%s1 + $0xb0] sm:$0xff]
  %v112 = vld [vmem:[%s1 + $0xb8] sm:$0xff]
  %v113 = vld [vmem:[%s1 + $0xc0] sm:$0xff]
  %v114 = vld [vmem:[%s1 + $0xc8] sm:$0xff]
  %v115 = vld [vmem:[%s1 + $0xd0] sm:$0xff]
  %v116 = vld [vmem:[%s1 + $0xd8] sm:$0xff]
  %v117 = vld [vmem:[%s1 + $0xe0] sm:$0xff]
  %v118 = vld [vmem:[%s1 + $0xe8] sm:$0xff]
  %v119 = vld [vmem:[%s1 + $0xf0] sm:$0xff]
  %v120 = vld [vmem:[%s1 + $0xf8] sm:$0xff]
  %v121 = vld [vmem:[%s1 + $0x100] sm:$0xff]
  %v122 = vld [vmem:[%s1 + $0x108] sm:$0xff]
  %v123 = vld [vmem:[%s1 + $0x110] sm:$0xff]
  %v124 = vld [vmem:[%s1 + $0x118] sm:$0xff]
  %v125 = vld [vmem:[%s1 + $0x120] sm:$0xff]
  %v126 = vld [vmem:[%s1 + $0x128] sm:$0xff]
  %v127 = vld [vmem:[%s1 + $0x130] sm:$0xff]
  %v128 = vld [vmem:[%s1 + $0x138] sm:$0xff]
  %v129 = vld [vmem:[%s1 + $0x140] sm:$0xff]
  %v130 = vld [vmem:[%s1 + $0x148] sm:$0xff]
  %v131 = vld [vmem:[%s1 + $0x150] sm:$0xff]
  %v132 = vld [vmem:[%s1 + $0x158] sm:$0xff]
  %v133 = vld [vmem:[%s1 + $0x160] sm:$0xff]
  %v134 = vld [vmem:[%s1 + $0x168] sm:$0xff]
  %v135 = vld [vmem:[%s1 + $0x170] sm:$0xff]
  %v136 = vld [vmem:[%s1 + $0x178] sm:$0xff]
  %v137 = vld [vmem:[%s1 + $0x180] sm:$0xff]
  %v138 = vld [vmem:[%s1 + $0x188] sm:$0xff]
  %v139 = vld [vmem:[%s1 + $0x190] sm:$0xff]
  %v140 = vld [vmem:[%s1 + $0x198] sm:$0xff]
  %v141 = vld [vmem:[%s1 + $0x1a0] sm:$0xff]
  %v142 = vld [vmem:[%s1 + $0x1a8] sm:$0xff]
  %v143 = vld [vmem:[%s1 + $0x1b0] sm:$0xff]
  %v144 = vld [vmem:[%s1 + $0x1b8] sm:$0xff]
  %v145 = vld [vmem:[%s1 + $0x1c0] sm:$0xff]
  %v146 = vld [vmem:[%s1 + $0x1c8] sm:$0xff]
  %v147 = vld [vmem:[%s1 + $0x1d0] sm:$0xff]
  %v148 = vld [vmem:[%s1 + $0x1d8] sm:$0xff]
  %v149 = vld [vmem:[%s1 + $0x1e0] sm:$0xff]
  %v150 = vld [vmem:[%s1 + $0x1e8] sm:$0xff]
  %v151 = vld [vmem:[%s1 + $0x1f0] sm:$0xff]
  %v152 = vld [vmem:[%s1 + $0x1f8] sm:$0xff]
  %v153 = vld [vmem:[%s1 + $0x200] sm:$0xff]
  %v154 = vld [vmem:[%s1 + $0x208] sm:$0xff]
  %v155 = vld [vmem:[%s1 + $0x210] sm:$0xff]
  %v156 = vld [vmem:[%s1 + $0x218] sm:$0xff]
  %v157 = vld [vmem:[%s1 + $0x220] sm:$0xff]
  %v158 = vld [vmem:[%s1 + $0x228] sm:$0xff]
  %v159 = vld [vmem:[%s1 + $0x230] sm:$0xff]
  %v160 = vld [vmem:[%s1 + $0x238] sm:$0xff]
  %v161 = vld [vmem:[%s1 + $0x240] sm:$0xff]
  %v162 = vld [vmem:[%s1 + $0x248] sm:$0xff]
  %v163 = vld [vmem:[%s1 + $0x250] sm:$0xff]
  %v164 = vld [vmem:[%s1 + $0x258] sm:$0xff]
  %v165 = vld [vmem:[%s1 + $0x260] sm:$0xff]
  %v166 = vld [vmem:[%s1 + $0x268] sm:$0xff]
  %v167 = vld [vmem:[%s1 + $0x270] sm:$0xff]
  %v168 = vld [vmem:[%s1 + $0x278] sm:$0xff]
  %v169 = vld [vmem:[%s1 + $0x280] sm:$0xff]
  %v170 = vld [vmem:[%s1 + $0x288] sm:$0xff]
  %v171 = vld [vmem:[%s1 + $0x290] sm:$0xff]
  %v172 = vld [vmem:[%s1 + $0x298] sm:$0xff]
  %v173 = vld [vmem:[%s1 + $0x2a0] sm:$0xff]
  %v174 = vld [vmem:[%s1 + $0x2a8] sm:$0xff]
  %v175 = vld [vmem:[%s1 + $0x2b0] sm:$0xff]
  %v176 = vld [vmem:[%s1 + $0x2b8] sm:$0xff]
  %v177 = vld [vmem:[%s1 + $0x2c0] sm:$0xff]
  %v178 = vld [vmem:[%s1 + $0x2c8] sm:$0xff]
  %v179 = vld [vmem:[%s1 + $0x2d0] sm:$0xff]
  %v180 = vld [vmem:[%s1 + $0x2d8] sm:$0xff]
  %v181 = vld [vmem:[%s1 + $0x2e0] sm:$0xff]
  %v182 = vld [vmem:[%s1 + $0x2e8] sm:$0xff]
  %v183 = vld [vmem:[%s1 + $0x2f0] sm:$0xff]
  %v184 = vld [vmem:[%s1 + $0x2f8] sm:$0xff]
  %v185 = vld [vmem:[%s1 + $0x300] sm:$0xff]
  %v186 = vld [vmem:[%s1 + $0x308] sm:$0xff]
  %v187 = vld [vmem:[%s1 + $0x310] sm:$0xff]
  %v188 = vld [vmem:[%s1 + $0x318] sm:$0xff]
  %v189 = vld [vmem:[%s1 + $0x320] sm:$0xff]
  %v190 = vld [vmem:[%s1 + $0x328] sm:$0xff]
  %v191 = vld [vmem:[%s1 + $0x330] sm:$0xff]
  %v192 = vld [vmem:[%s1 + $0x338] sm:$0xff]
  %v193 = vld [vmem:[%s1 + $0x340] sm:$0xff]
  %v194 = vld [vmem:[%s1 + $0x348] sm:$0xff]
  %v195 = vld [vmem:[%s1 + $0x350] sm:$0xff]
  %v196 = vld [vmem:[%s1 + $0x358] sm:$0xff]
  %v197 = vld [vmem:[%s1 + $0x360] sm:$0xff]
  %v198 = vld [vmem:[%s1 + $0x368] sm:$0xff]
  %v199 = vld [vmem:[%s1 + $0x370] sm:$0xff]
  %v200 = vld [vmem:[%s1 + $0x378] sm:$0xff]
  %v265 = vunpack.c.l.b16 %v25
  %v266 = vunpack.c.h.b16 %v25
  %v267 = vunpack.c.l.b16 %v26
  %v268 = vunpack.c.h.b16 %v26
  %v269 = vunpack.c.l.b16 %v27
  %v270 = vunpack.c.h.b16 %v27
  %v271 = vunpack.c.l.b16 %v28
  %v272 = vunpack.c.l.b16 %v29
  %v273 = vunpack.c.h.b16 %v29
  %v274 = vunpack.c.l.b16 %v30
  %v275 = vunpack.c.h.b16 %v30
  %v276 = vunpack.c.l.b16 %v31
  %v277 = vunpack.c.h.b16 %v31
  %v278 = vunpack.c.l.b16 %v32
  %v279 = vunpack.c.l.b16 %v33
  %v280 = vunpack.c.h.b16 %v33
  %v281 = vunpack.c.l.b16 %v34
  %v282 = vunpack.c.h.b16 %v34
  %v283 = vunpack.c.l.b16 %v35
  %v284 = vunpack.c.h.b16 %v35
  %v285 = vunpack.c.l.b16 %v36
  %v286 = vunpack.c.l.b16 %v37
  %v287 = vunpack.c.h.b16 %v37
  %v288 = vunpack.c.l.b16 %v38
  %v289 = vunpack.c.h.b16 %v38
  %v290 = vunpack.c.l.b16 %v39
  %v291 = vunpack.c.h.b16 %v39
  %v292 = vunpack.c.l.b16 %v40
  %v293 = vunpack.c.l.b16 %v41
  %v294 = vunpack.c.h.b16 %v41
  %v295 = vunpack.c.l.b16 %v42
  %v296 = vunpack.c.h.b16 %v42
  %v297 = vunpack.c.l.b16 %v43
  %v298 = vunpack.c.h.b16 %v43
  %v299 = vunpack.c.l.b16 %v44
  %v300 = vunpack.c.l.b16 %v45
  %v301 = vunpack.c.h.b16 %v45
  %v302 = vunpack.c.l.b16 %v46
  %v303 = vunpack.c.h.b16 %v46
  %v304 = vunpack.c.l.b16 %v47
  %v305 = vunpack.c.h.b16 %v47
  %v306 = vunpack.c.l.b16 %v48
  %v307 = vunpack.c.l.b16 %v49
  %v308 = vunpack.c.h.b16 %v49
  %v309 = vunpack.c.l.b16 %v50
  %v310 = vunpack.c.h.b16 %v50
  %v311 = vunpack.c.l.b16 %v51
  %v312 = vunpack.c.h.b16 %v51
  %v313 = vunpack.c.l.b16 %v52
  %v314 = vunpack.c.l.b16 %v53
  %v315 = vunpack.c.h.b16 %v53
  %v316 = vunpack.c.l.b16 %v54
  %v317 = vunpack.c.h.b16 %v54
  %v318 = vunpack.c.l.b16 %v55
  %v319 = vunpack.c.h.b16 %v55
  %v320 = vunpack.c.l.b16 %v56
  %v321 = vunpack.c.l.b16 %v57
  %v322 = vunpack.c.h.b16 %v57
  %v323 = vunpack.c.l.b16 %v58
  %v324 = vunpack.c.h.b16 %v58
  %v325 = vunpack.c.l.b16 %v59
  %v326 = vunpack.c.h.b16 %v59
  %v327 = vunpack.c.l.b16 %v60
  %v328 = vunpack.c.l.b16 %v61
  %v329 = vunpack.c.h.b16 %v61
  %v330 = vunpack.c.l.b16 %v62
  %v331 = vunpack.c.h.b16 %v62
  %v332 = vunpack.c.l.b16 %v63
  %v333 = vunpack.c.h.b16 %v63
  %v334 = vunpack.c.l.b16 %v64
  %v335 = vunpack.c.l.b16 %v65
  %v336 = vunpack.c.h.b16 %v65
  %v337 = vunpack.c.l.b16 %v66
  %v338 = vunpack.c.h.b16 %v66
  %v339 = vunpack.c.l.b16 %v67
  %v340 = vunpack.c.h.b16 %v67
  %v341 = vunpack.c.l.b16 %v68
  %v342 = vunpack.c.l.b16 %v69
  %v343 = vunpack.c.h.b16 %v69
  %v344 = vunpack.c.l.b16 %v70
  %v345 = vunpack.c.h.b16 %v70
  %v346 = vunpack.c.l.b16 %v71
  %v347 = vunpack.c.h.b16 %v71
  %v348 = vunpack.c.l.b16 %v72
  %v349 = vunpack.c.l.b16 %v73
  %v350 = vunpack.c.h.b16 %v73
  %v351 = vunpack.c.l.b16 %v74
  %v352 = vunpack.c.h.b16 %v74
  %v353 = vunpack.c.l.b16 %v75
  %v354 = vunpack.c.h.b16 %v75
  %v355 = vunpack.c.l.b16 %v76
  %v356 = vunpack.c.l.b16 %v77
  %v357 = vunpack.c.h.b16 %v77
  %v358 = vunpack.c.l.b16 %v78
  %v359 = vunpack.c.h.b16 %v78
  %v360 = vunpack.c.l.b16 %v79
  %v361 = vunpack.c.h.b16 %v79
  %v362 = vunpack.c.l.b16 %v80
  %v363 = vunpack.c.l.b16 %v81
  %v364 = vunpack.c.h.b16 %v81
  %v365 = vunpack.c.l.b16 %v82
  %v366 = vunpack.c.h.b16 %v82
  %v367 = vunpack.c.l.b16 %v83
  %v368 = vunpack.c.h.b16 %v83
  %v369 = vunpack.c.l.b16 %v84
  %v370 = vunpack.c.l.b16 %v85
  %v371 = vunpack.c.h.b16 %v85
  %v372 = vunpack.c.l.b16 %v86
  %v373 = vunpack.c.h.b16 %v86
  %v374 = vunpack.c.l.b16 %v87
  %v375 = vunpack.c.h.b16 %v87
  %v376 = vunpack.c.l.b16 %v88
  %v377 = vpack.c.b16 %v272, %v265
  %v378 = vpack.c.b16 %v273, %v266
  %v379 = vpack.c.b16 %v274, %v267
  %v380 = vpack.c.b16 %v275, %v268
  %v381 = vpack.c.b16 %v276, %v269
  %v382 = vpack.c.b16 %v277, %v270
  %v383 = vpack.c.b16 %v278, %v271
  %v384 = vpack.c.b16 %v286, %v279
  %v385 = vpack.c.b16 %v287, %v280
  %v386 = vpack.c.b16 %v288, %v281
  %v387 = vpack.c.b16 %v289, %v282
  %v388 = vpack.c.b16 %v290, %v283
  %v389 = vpack.c.b16 %v291, %v284
  %v390 = vpack.c.b16 %v292, %v285
  %v391 = vpack.c.b16 %v300, %v293
  %v392 = vpack.c.b16 %v301, %v294
  %v393 = vpack.c.b16 %v302, %v295
  %v394 = vpack.c.b16 %v303, %v296
  %v395 = vpack.c.b16 %v304, %v297
  %v396 = vpack.c.b16 %v305, %v298
  %v397 = vpack.c.b16 %v306, %v299
  %v398 = vpack.c.b16 %v314, %v307
  %v399 = vpack.c.b16 %v315, %v308
  %v400 = vpack.c.b16 %v316, %v309
  %v401 = vpack.c.b16 %v317, %v310
  %v402 = vpack.c.b16 %v318, %v311
  %v403 = vpack.c.b16 %v319, %v312
  %v404 = vpack.c.b16 %v320, %v313
  %v405 = vpack.c.b16 %v328, %v321
  %v406 = vpack.c.b16 %v329, %v322
  %v407 = vpack.c.b16 %v330, %v323
  %v408 = vpack.c.b16 %v331, %v324
  %v409 = vpack.c.b16 %v332, %v325
  %v410 = vpack.c.b16 %v333, %v326
  %v411 = vpack.c.b16 %v334, %v327
  %v412 = vpack.c.b16 %v342, %v335
  %v413 = vpack.c.b16 %v343, %v336
  %v414 = vpack.c.b16 %v344, %v337
  %v415 = vpack.c.b16 %v345, %v338
  %v416 = vpack.c.b16 %v346, %v339
  %v417 = vpack.c.b16 %v347, %v340
  %v418 = vpack.c.b16 %v348, %v341
  %v419 = vpack.c.b16 %v356, %v349
  %v420 = vpack.c.b16 %v357, %v350
  %v421 = vpack.c.b16 %v358, %v351
  %v422 = vpack.c.b16 %v359, %v352
  %v423 = vpack.c.b16 %v360, %v353
  %v424 = vpack.c.b16 %v361, %v354
  %v425 = vpack.c.b16 %v362, %v355
  %v426 = vpack.c.b16 %v370, %v363
  %v427 = vpack.c.b16 %v371, %v364
  %v428 = vpack.c.b16 %v372, %v365
  %v429 = vpack.c.b16 %v373, %v366
  %v430 = vpack.c.b16 %v374, %v367
  %v431 = vpack.c.b16 %v375, %v368
  %v432 = vpack.c.b16 %v376, %v369
  %v601 = vunpack.c.l.b16 %v89
  %v602 = vunpack.c.h.b16 %v89
  %v603 = vunpack.c.l.b16 %v90
  %v604 = vunpack.c.h.b16 %v90
  %v605 = vunpack.c.l.b16 %v91
  %v606 = vunpack.c.h.b16 %v91
  %v607 = vunpack.c.l.b16 %v92
  %v608 = vunpack.c.h.b16 %v92
  %v609 = vunpack.c.l.b16 %v93
  %v610 = vunpack.c.h.b16 %v93
  %v611 = vunpack.c.l.b16 %v94
  %v612 = vunpack.c.h.b16 %v94
  %v613 = vunpack.c.l.b16 %v95
  %v614 = vunpack.c.h.b16 %v95
  %v615 = vunpack.c.l.b16 %v96
  %v616 = vunpack.c.h.b16 %v96
  %v617 = vunpack.c.l.b16 %v97
  %v618 = vunpack.c.h.b16 %v97
  %v619 = vunpack.c.l.b16 %v98
  %v620 = vunpack.c.h.b16 %v98
  %v621 = vunpack.c.l.b16 %v99
  %v622 = vunpack.c.h.b16 %v99
  %v623 = vunpack.c.l.b16 %v100
  %v624 = vunpack.c.h.b16 %v100
  %v625 = vunpack.c.l.b16 %v101
  %v626 = vunpack.c.h.b16 %v101
  %v627 = vunpack.c.l.b16 %v102
  %v628 = vunpack.c.h.b16 %v102
  %v629 = vunpack.c.l.b16 %v103
  %v630 = vunpack.c.h.b16 %v103
  %v631 = vunpack.c.l.b16 %v104
  %v632 = vunpack.c.h.b16 %v104
  %v633 = vunpack.c.l.b16 %v105
  %v634 = vunpack.c.h.b16 %v105
  %v635 = vunpack.c.l.b16 %v106
  %v636 = vunpack.c.h.b16 %v106
  %v637 = vunpack.c.l.b16 %v107
  %v638 = vunpack.c.h.b16 %v107
  %v639 = vunpack.c.l.b16 %v108
  %v640 = vunpack.c.h.b16 %v108
  %v641 = vunpack.c.l.b16 %v109
  %v642 = vunpack.c.h.b16 %v109
  %v643 = vunpack.c.l.b16 %v110
  %v644 = vunpack.c.h.b16 %v110
  %v645 = vunpack.c.l.b16 %v111
  %v646 = vunpack.c.h.b16 %v111
  %v647 = vunpack.c.l.b16 %v112
  %v648 = vunpack.c.h.b16 %v112
  %v649 = vunpack.c.l.b16 %v113
  %v650 = vunpack.c.h.b16 %v113
  %v651 = vunpack.c.l.b16 %v114
  %v652 = vunpack.c.h.b16 %v114
  %v653 = vunpack.c.l.b16 %v115
  %v654 = vunpack.c.h.b16 %v115
  %v655 = vunpack.c.l.b16 %v116
  %v656 = vunpack.c.h.b16 %v116
  %v657 = vunpack.c.l.b16 %v117
  %v658 = vunpack.c.h.b16 %v117
  %v659 = vunpack.c.l.b16 %v118
  %v660 = vunpack.c.h.b16 %v118
  %v661 = vunpack.c.l.b16 %v119
  %v662 = vunpack.c.h.b16 %v119
  %v663 = vunpack.c.l.b16 %v120
  %v664 = vunpack.c.h.b16 %v120
  %v665 = vunpack.c.l.b16 %v121
  %v666 = vunpack.c.h.b16 %v121
  %v667 = vunpack.c.l.b16 %v122
  %v668 = vunpack.c.h.b16 %v122
  %v669 = vunpack.c.l.b16 %v123
  %v670 = vunpack.c.h.b16 %v123
  %v671 = vunpack.c.l.b16 %v124
  %v672 = vunpack.c.h.b16 %v124
  %v673 = vunpack.c.l.b16 %v125
  %v674 = vunpack.c.h.b16 %v125
  %v675 = vunpack.c.l.b16 %v126
  %v676 = vunpack.c.h.b16 %v126
  %v677 = vunpack.c.l.b16 %v127
  %v678 = vunpack.c.h.b16 %v127
  %v679 = vunpack.c.l.b16 %v128
  %v680 = vunpack.c.h.b16 %v128
  %v681 = vunpack.c.l.b16 %v129
  %v682 = vunpack.c.h.b16 %v129
  %v683 = vunpack.c.l.b16 %v130
  %v684 = vunpack.c.h.b16 %v130
  %v685 = vunpack.c.l.b16 %v131
  %v686 = vunpack.c.h.b16 %v131
  %v687 = vunpack.c.l.b16 %v132
  %v688 = vunpack.c.h.b16 %v132
  %v689 = vunpack.c.l.b16 %v133
  %v690 = vunpack.c.h.b16 %v133
  %v691 = vunpack.c.l.b16 %v134
  %v692 = vunpack.c.h.b16 %v134
  %v693 = vunpack.c.l.b16 %v135
  %v694 = vunpack.c.h.b16 %v135
  %v695 = vunpack.c.l.b16 %v136
  %v696 = vunpack.c.h.b16 %v136
  %v697 = vunpack.c.l.b16 %v137
  %v698 = vunpack.c.h.b16 %v137
  %v699 = vunpack.c.l.b16 %v138
  %v700 = vunpack.c.h.b16 %v138
  %v701 = vunpack.c.l.b16 %v139
  %v702 = vunpack.c.h.b16 %v139
  %v703 = vunpack.c.l.b16 %v140
  %v704 = vunpack.c.h.b16 %v140
  %v705 = vunpack.c.l.b16 %v141
  %v706 = vunpack.c.h.b16 %v141
  %v707 = vunpack.c.l.b16 %v142
  %v708 = vunpack.c.h.b16 %v142
  %v709 = vunpack.c.l.b16 %v143
  %v710 = vunpack.c.h.b16 %v143
  %v711 = vunpack.c.l.b16 %v144
  %v712 = vunpack.c.h.b16 %v144
  %v713 = vunpack.c.l.b16 %v145
  %v714 = vunpack.c.h.b16 %v145
  %v715 = vunpack.c.l.b16 %v146
  %v716 = vunpack.c.h.b16 %v146
  %v717 = vunpack.c.l.b16 %v147
  %v718 = vunpack.c.h.b16 %v147
  %v719 = vunpack.c.l.b16 %v148
  %v720 = vunpack.c.h.b16 %v148
  %v721 = vunpack.c.l.b16 %v149
  %v722 = vunpack.c.h.b16 %v149
  %v723 = vunpack.c.l.b16 %v150
  %v724 = vunpack.c.h.b16 %v150
  %v725 = vunpack.c.l.b16 %v151
  %v726 = vunpack.c.h.b16 %v151
  %v727 = vunpack.c.l.b16 %v152
  %v728 = vunpack.c.h.b16 %v152
  %v729 = vunpack.c.l.b16 %v153
  %v730 = vunpack.c.h.b16 %v153
  %v731 = vunpack.c.l.b16 %v154
  %v732 = vunpack.c.h.b16 %v154
  %v733 = vunpack.c.l.b16 %v155
  %v734 = vunpack.c.h.b16 %v155
  %v735 = vunpack.c.l.b16 %v156
  %v736 = vunpack.c.h.b16 %v156
  %v737 = vunpack.c.l.b16 %v157
  %v738 = vunpack.c.h.b16 %v157
  %v739 = vunpack.c.l.b16 %v158
  %v740 = vunpack.c.h.b16 %v158
  %v741 = vunpack.c.l.b16 %v159
  %v742 = vunpack.c.h.b16 %v159
  %v743 = vunpack.c.l.b16 %v160
  %v744 = vunpack.c.h.b16 %v160
  %v745 = vunpack.c.l.b16 %v161
  %v746 = vunpack.c.h.b16 %v161
  %v747 = vunpack.c.l.b16 %v162
  %v748 = vunpack.c.h.b16 %v162
  %v749 = vunpack.c.l.b16 %v163
  %v750 = vunpack.c.h.b16 %v163
  %v751 = vunpack.c.l.b16 %v164
  %v752 = vunpack.c.h.b16 %v164
  %v753 = vunpack.c.l.b16 %v165
  %v754 = vunpack.c.h.b16 %v165
  %v755 = vunpack.c.l.b16 %v166
  %v756 = vunpack.c.h.b16 %v166
  %v757 = vunpack.c.l.b16 %v167
  %v758 = vunpack.c.h.b16 %v167
  %v759 = vunpack.c.l.b16 %v168
  %v760 = vunpack.c.h.b16 %v168
  %v761 = vunpack.c.l.b16 %v169
  %v762 = vunpack.c.h.b16 %v169
  %v763 = vunpack.c.l.b16 %v170
  %v764 = vunpack.c.h.b16 %v170
  %v765 = vunpack.c.l.b16 %v171
  %v766 = vunpack.c.h.b16 %v171
  %v767 = vunpack.c.l.b16 %v172
  %v768 = vunpack.c.h.b16 %v172
  %v769 = vunpack.c.l.b16 %v173
  %v770 = vunpack.c.h.b16 %v173
  %v771 = vunpack.c.l.b16 %v174
  %v772 = vunpack.c.h.b16 %v174
  %v773 = vunpack.c.l.b16 %v175
  %v774 = vunpack.c.h.b16 %v175
  %v775 = vunpack.c.l.b16 %v176
  %v776 = vunpack.c.h.b16 %v176
  %v777 = vunpack.c.l.b16 %v177
  %v778 = vunpack.c.h.b16 %v177
  %v779 = vunpack.c.l.b16 %v178
  %v780 = vunpack.c.h.b16 %v178
  %v781 = vunpack.c.l.b16 %v179
  %v782 = vunpack.c.h.b16 %v179
  %v783 = vunpack.c.l.b16 %v180
  %v784 = vunpack.c.h.b16 %v180
  %v785 = vunpack.c.l.b16 %v181
  %v786 = vunpack.c.h.b16 %v181
  %v787 = vunpack.c.l.b16 %v182
  %v788 = vunpack.c.h.b16 %v182
  %v789 = vunpack.c.l.b16 %v183
  %v790 = vunpack.c.h.b16 %v183
  %v791 = vunpack.c.l.b16 %v184
  %v792 = vunpack.c.h.b16 %v184
  %v793 = vunpack.c.l.b16 %v185
  %v794 = vunpack.c.h.b16 %v185
  %v795 = vunpack.c.l.b16 %v186
  %v796 = vunpack.c.h.b16 %v186
  %v797 = vunpack.c.l.b16 %v187
  %v798 = vunpack.c.h.b16 %v187
  %v799 = vunpack.c.l.b16 %v188
  %v800 = vunpack.c.h.b16 %v188
  %v801 = vunpack.c.l.b16 %v189
  %v802 = vunpack.c.h.b16 %v189
  %v803 = vunpack.c.l.b16 %v190
  %v804 = vunpack.c.h.b16 %v190
  %v805 = vunpack.c.l.b16 %v191
  %v806 = vunpack.c.h.b16 %v191
  %v807 = vunpack.c.l.b16 %v192
  %v808 = vunpack.c.h.b16 %v192
  %v809 = vunpack.c.l.b16 %v193
  %v810 = vunpack.c.h.b16 %v193
  %v811 = vunpack.c.l.b16 %v194
  %v812 = vunpack.c.h.b16 %v194
  %v813 = vunpack.c.l.b16 %v195
  %v814 = vunpack.c.h.b16 %v195
  %v815 = vunpack.c.l.b16 %v196
  %v816 = vunpack.c.h.b16 %v196
  %v817 = vunpack.c.l.b16 %v197
  %v818 = vunpack.c.h.b16 %v197
  %v819 = vunpack.c.l.b16 %v198
  %v820 = vunpack.c.h.b16 %v198
  %v821 = vunpack.c.l.b16 %v199
  %v822 = vunpack.c.h.b16 %v199
  %v823 = vunpack.c.l.b16 %v200
  %v824 = vunpack.c.h.b16 %v200
  %v825 = vpack.c.b16 %v603, %v601
  %v826 = vpack.c.b16 %v604, %v602
  %v827 = vpack.c.b16 %v607, %v605
  %v828 = vpack.c.b16 %v608, %v606
  %v829 = vpack.c.b16 %v611, %v609
  %v830 = vpack.c.b16 %v612, %v610
  %v831 = vpack.c.b16 %v615, %v613
  %v832 = vpack.c.b16 %v616, %v614
  %v833 = vpack.c.b16 %v619, %v617
  %v834 = vpack.c.b16 %v620, %v618
  %v835 = vpack.c.b16 %v623, %v621
  %v836 = vpack.c.b16 %v624, %v622
  %v837 = vpack.c.b16 %v627, %v625
  %v838 = vpack.c.b16 %v628, %v626
  %v839 = vpack.c.b16 %v631, %v629
  %v840 = vpack.c.b16 %v632, %v630
  %v841 = vpack.c.b16 %v635, %v633
  %v842 = vpack.c.b16 %v636, %v634
  %v843 = vpack.c.b16 %v639, %v637
  %v844 = vpack.c.b16 %v640, %v638
  %v845 = vpack.c.b16 %v643, %v641
  %v846 = vpack.c.b16 %v644, %v642
  %v847 = vpack.c.b16 %v647, %v645
  %v848 = vpack.c.b16 %v648, %v646
  %v849 = vpack.c.b16 %v651, %v649
  %v850 = vpack.c.b16 %v652, %v650
  %v851 = vpack.c.b16 %v655, %v653
  %v852 = vpack.c.b16 %v656, %v654
  %v853 = vpack.c.b16 %v659, %v657
  %v854 = vpack.c.b16 %v660, %v658
  %v855 = vpack.c.b16 %v663, %v661
  %v856 = vpack.c.b16 %v664, %v662
  %v857 = vpack.c.b16 %v667, %v665
  %v858 = vpack.c.b16 %v668, %v666
  %v859 = vpack.c.b16 %v671, %v669
  %v860 = vpack.c.b16 %v672, %v670
  %v861 = vpack.c.b16 %v675, %v673
  %v862 = vpack.c.b16 %v676, %v674
  %v863 = vpack.c.b16 %v679, %v677
  %v864 = vpack.c.b16 %v680, %v678
  %v865 = vpack.c.b16 %v683, %v681
  %v866 = vpack.c.b16 %v684, %v682
  %v867 = vpack.c.b16 %v687, %v685
  %v868 = vpack.c.b16 %v688, %v686
  %v869 = vpack.c.b16 %v691, %v689
  %v870 = vpack.c.b16 %v692, %v690
  %v871 = vpack.c.b16 %v695, %v693
  %v872 = vpack.c.b16 %v696, %v694
  %v873 = vpack.c.b16 %v699, %v697
  %v874 = vpack.c.b16 %v700, %v698
  %v875 = vpack.c.b16 %v703, %v701
  %v876 = vpack.c.b16 %v704, %v702
  %v877 = vpack.c.b16 %v707, %v705
  %v878 = vpack.c.b16 %v708, %v706
  %v879 = vpack.c.b16 %v711, %v709
  %v880 = vpack.c.b16 %v712, %v710
  %v881 = vpack.c.b16 %v715, %v713
  %v882 = vpack.c.b16 %v716, %v714
  %v883 = vpack.c.b16 %v719, %v717
  %v884 = vpack.c.b16 %v720, %v718
  %v885 = vpack.c.b16 %v723, %v721
  %v886 = vpack.c.b16 %v724, %v722
  %v887 = vpack.c.b16 %v727, %v725
  %v888 = vpack.c.b16 %v728, %v726
  %v889 = vpack.c.b16 %v731, %v729
  %v890 = vpack.c.b16 %v732, %v730
  %v891 = vpack.c.b16 %v735, %v733
  %v892 = vpack.c.b16 %v736, %v734
  %v893 = vpack.c.b16 %v739, %v737
  %v894 = vpack.c.b16 %v740, %v738
  %v895 = vpack.c.b16 %v743, %v741
  %v896 = vpack.c.b16 %v744, %v742
  %v897 = vpack.c.b16 %v747, %v745
  %v898 = vpack.c.b16 %v748, %v746
  %v899 = vpack.c.b16 %v751, %v749
  %v900 = vpack.c.b16 %v752, %v750
  %v901 = vpack.c.b16 %v755, %v753
  %v902 = vpack.c.b16 %v756, %v754
  %v903 = vpack.c.b16 %v759, %v757
  %v904 = vpack.c.b16 %v760, %v758
  %v905 = vpack.c.b16 %v763, %v761
  %v906 = vpack.c.b16 %v764, %v762
  %v907 = vpack.c.b16 %v767, %v765
  %v908 = vpack.c.b16 %v768, %v766
  %v909 = vpack.c.b16 %v771, %v769
  %v910 = vpack.c.b16 %v772, %v770
  %v911 = vpack.c.b16 %v775, %v773
  %v912 = vpack.c.b16 %v776, %v774
  %v913 = vpack.c.b16 %v779, %v777
  %v914 = vpack.c.b16 %v780, %v778
  %v915 = vpack.c.b16 %v783, %v781
  %v916 = vpack.c.b16 %v784, %v782
  %v917 = vpack.c.b16 %v787, %v785
  %v918 = vpack.c.b16 %v788, %v786
  %v919 = vpack.c.b16 %v791, %v789
  %v920 = vpack.c.b16 %v792, %v790
  %v921 = vpack.c.b16 %v795, %v793
  %v922 = vpack.c.b16 %v796, %v794
  %v923 = vpack.c.b16 %v799, %v797
  %v924 = vpack.c.b16 %v800, %v798
  %v925 = vpack.c.b16 %v803, %v801
  %v926 = vpack.c.b16 %v804, %v802
  %v927 = vpack.c.b16 %v807, %v805
  %v928 = vpack.c.b16 %v808, %v806
  %v929 = vpack.c.b16 %v811, %v809
  %v930 = vpack.c.b16 %v812, %v810
  %v931 = vpack.c.b16 %v815, %v813
  %v932 = vpack.c.b16 %v816, %v814
  %v933 = vpack.c.b16 %v819, %v817
  %v934 = vpack.c.b16 %v820, %v818
  %v935 = vpack.c.b16 %v823, %v821
  %v936 = vpack.c.b16 %v824, %v822
  %1049 = vmatprep.subr.bf16.mxu0 %v840
  %1050 = vmatpush1.bf16.msra.mxu0 %v839
  %1051 = vmatprep.subr.bf16.mxu0 %v838
  %1052 = vmatpush1.bf16.msra.mxu0 %v837
  %1053 = vmatprep.subr.bf16.mxu0 %v836
  %1054 = vmatpush1.bf16.msra.mxu0 %v835
  %1055 = vmatprep.subr.bf16.mxu0 %v834
  %1056 = vmatpush1.bf16.msra.mxu0 %v833
  %1057 = vmatprep.subr.bf16.mxu0 %v832
  %1058 = vmatpush1.bf16.msra.mxu0 %v831
  %1059 = vmatprep.subr.bf16.mxu0 %v830
  %1060 = vmatpush1.bf16.msra.mxu0 %v829
  %1061 = vmatprep.subr.bf16.mxu0 %v828
  %1062 = vmatpush1.bf16.msra.mxu0 %v827
  %1063 = vmatprep.subr.bf16.mxu0 %v826
  %1064 = vmatpush1.bf16.msra.mxu0 %v825
  %1065 = vmatprep.subr.bf16.mxu0 %v856
  %1066 = vmatpush2.bf16.msra.mxu0 %v855
  %1067 = vmatprep.subr.bf16.mxu0 %v854
  %1068 = vmatpush2.bf16.msra.mxu0 %v853
  %1069 = vmatprep.subr.bf16.mxu0 %v852
  %1070 = vmatpush2.bf16.msra.mxu0 %v851
  %1071 = vmatprep.subr.bf16.mxu0 %v850
  %1072 = vmatpush2.bf16.msra.mxu0 %v849
  %1073 = vmatprep.subr.bf16.mxu0 %v848
  %1074 = vmatpush2.bf16.msra.mxu0 %v847
  %1075 = vmatprep.subr.bf16.mxu0 %v846
  %1076 = vmatpush2.bf16.msra.mxu0 %v845
  %1077 = vmatprep.subr.bf16.mxu0 %v844
  %1078 = vmatpush2.bf16.msra.mxu0 %v843
  %1079 = vmatprep.subr.bf16.mxu0 %v842
  %1080 = vmatpush2.bf16.msra.mxu0 %v841
  %1081 = vmatprep.mubr.bf16.mxu0 %v378
  %1082 = vmatmul.mubr.bf16.gmra.mxu0 %v377
  %v1083 = vpop.f32.mrf.mxu0
  %v1084 = vadd.f32 0.0, %v1083
  %v1085 = vpop.f32.mrf.mxu0
  %v1086 = vadd.f32 0.0, %v1085
  %v1087 = vpop.f32.mrf.mxu0
  %v1088 = vadd.f32 0.0, %v1087
  %v1089 = vpop.f32.mrf.mxu0
  %v1090 = vadd.f32 0.0, %v1089
  %1091 = vmatprep.mubr.bf16.mxu0 %v385
  %1092 = vmatmul.mubr.bf16.gmra.mxu0 %v384
  %v1093 = vpop.f32.mrf.mxu0
  %v1094 = vadd.f32 0.0, %v1093
  %v1095 = vpop.f32.mrf.mxu0
  %v1096 = vadd.f32 0.0, %v1095
  %v1097 = vpop.f32.mrf.mxu0
  %v1098 = vadd.f32 0.0, %v1097
  %v1099 = vpop.f32.mrf.mxu0
  %v1100 = vadd.f32 0.0, %v1099
  %1101 = vmatprep.mubr.bf16.mxu0 %v392
  %1102 = vmatmul.mubr.bf16.gmra.mxu0 %v391
  %v1103 = vpop.f32.mrf.mxu0
  %v1104 = vadd.f32 0.0, %v1103
  %v1105 = vpop.f32.mrf.mxu0
  %v1106 = vadd.f32 0.0, %v1105
  %v1107 = vpop.f32.mrf.mxu0
  %v1108 = vadd.f32 0.0, %v1107
  %v1109 = vpop.f32.mrf.mxu0
  %v1110 = vadd.f32 0.0, %v1109
  %1111 = vmatprep.mubr.bf16.mxu0 %v399
  %1112 = vmatmul.mubr.bf16.gmra.mxu0 %v398
  %v1113 = vpop.f32.mrf.mxu0
  %v1114 = vadd.f32 0.0, %v1113
  %v1115 = vpop.f32.mrf.mxu0
  %v1116 = vadd.f32 0.0, %v1115
  %v1117 = vpop.f32.mrf.mxu0
  %v1118 = vadd.f32 0.0, %v1117
  %v1119 = vpop.f32.mrf.mxu0
  %v1120 = vadd.f32 0.0, %v1119
  %1121 = vmatprep.mubr.bf16.mxu0 %v406
  %1122 = vmatmul.mubr.bf16.gmra.mxu0 %v405
  %v1123 = vpop.f32.mrf.mxu0
  %v1124 = vadd.f32 0.0, %v1123
  %v1125 = vpop.f32.mrf.mxu0
  %v1126 = vadd.f32 0.0, %v1125
  %v1127 = vpop.f32.mrf.mxu0
  %v1128 = vadd.f32 0.0, %v1127
  %v1129 = vpop.f32.mrf.mxu0
  %v1130 = vadd.f32 0.0, %v1129
  %1131 = vmatprep.mubr.bf16.mxu0 %v413
  %1132 = vmatmul.mubr.bf16.gmra.mxu0 %v412
  %v1133 = vpop.f32.mrf.mxu0
  %v1134 = vadd.f32 0.0, %v1133
  %v1135 = vpop.f32.mrf.mxu0
  %v1136 = vadd.f32 0.0, %v1135
  %v1137 = vpop.f32.mrf.mxu0
  %v1138 = vadd.f32 0.0, %v1137
  %v1139 = vpop.f32.mrf.mxu0
  %v1140 = vadd.f32 0.0, %v1139
  %1141 = vmatprep.mubr.bf16.mxu0 %v420
  %1142 = vmatmul.mubr.bf16.gmra.mxu0 %v419
  %v1143 = vpop.f32.mrf.mxu0
  %v1144 = vadd.f32 0.0, %v1143
  %v1145 = vpop.f32.mrf.mxu0
  %v1146 = vadd.f32 0.0, %v1145
  %v1147 = vpop.f32.mrf.mxu0
  %v1148 = vadd.f32 0.0, %v1147
  %v1149 = vpop.f32.mrf.mxu0
  %v1150 = vadd.f32 0.0, %v1149
  %1151 = vmatprep.mubr.bf16.mxu0 %v427
  %1152 = vmatmul.mubr.bf16.gmra.mxu0 %v426
  %v1153 = vpop.f32.mrf.mxu0
  %v1154 = vadd.f32 0.0, %v1153
  %v1155 = vpop.f32.mrf.mxu0
  %v1156 = vadd.f32 0.0, %v1155
  %v1157 = vpop.f32.mrf.mxu0
  %v1158 = vadd.f32 0.0, %v1157
  %v1159 = vpop.f32.mrf.mxu0
  %v1160 = vadd.f32 0.0, %v1159
  %1161 = vdwg.mxu0
  %1162 = vmatprep.subr.bf16.mxu0 %v872
  %1163 = vmatpush1.bf16.msra.mxu0 %v871
  %1164 = vmatprep.subr.bf16.mxu0 %v870
  %1165 = vmatpush1.bf16.msra.mxu0 %v869
  %1166 = vmatprep.subr.bf16.mxu0 %v868
  %1167 = vmatpush1.bf16.msra.mxu0 %v867
  %1168 = vmatprep.subr.bf16.mxu0 %v866
  %1169 = vmatpush1.bf16.msra.mxu0 %v865
  %1170 = vmatprep.subr.bf16.mxu0 %v864
  %1171 = vmatpush1.bf16.msra.mxu0 %v863
  %1172 = vmatprep.subr.bf16.mxu0 %v862
  %1173 = vmatpush1.bf16.msra.mxu0 %v861
  %1174 = vmatprep.subr.bf16.mxu0 %v860
  %1175 = vmatpush1.bf16.msra.mxu0 %v859
  %1176 = vmatprep.subr.bf16.mxu0 %v858
  %1177 = vmatpush1.bf16.msra.mxu0 %v857
  %1178 = vmatprep.subr.bf16.mxu0 %v888
  %1179 = vmatpush2.bf16.msra.mxu0 %v887
  %1180 = vmatprep.subr.bf16.mxu0 %v886
  %1181 = vmatpush2.bf16.msra.mxu0 %v885
  %1182 = vmatprep.subr.bf16.mxu0 %v884
  %1183 = vmatpush2.bf16.msra.mxu0 %v883
  %1184 = vmatprep.subr.bf16.mxu0 %v882
  %1185 = vmatpush2.bf16.msra.mxu0 %v881
  %1186 = vmatprep.subr.bf16.mxu0 %v880
  %1187 = vmatpush2.bf16.msra.mxu0 %v879
  %1188 = vmatprep.subr.bf16.mxu0 %v878
  %1189 = vmatpush2.bf16.msra.mxu0 %v877
  %1190 = vmatprep.subr.bf16.mxu0 %v876
  %1191 = vmatpush2.bf16.msra.mxu0 %v875
  %1192 = vmatprep.subr.bf16.mxu0 %v874
  %1193 = vmatpush2.bf16.msra.mxu0 %v873
  %1194 = vmatprep.mubr.bf16.mxu0 %v380
  %1195 = vmatmul.mubr.bf16.gmra.mxu0 %v379
  %v1196 = vpop.f32.mrf.mxu0
  %v1197 = vadd.f32 %v1084, %v1196
  %v1198 = vpop.f32.mrf.mxu0
  %v1199 = vadd.f32 %v1086, %v1198
  %v1200 = vpop.f32.mrf.mxu0
  %v1201 = vadd.f32 %v1088, %v1200
  %v1202 = vpop.f32.mrf.mxu0
  %v1203 = vadd.f32 %v1090, %v1202
  %1204 = vmatprep.mubr.bf16.mxu0 %v387
  %1205 = vmatmul.mubr.bf16.gmra.mxu0 %v386
  %v1206 = vpop.f32.mrf.mxu0
  %v1207 = vadd.f32 %v1094, %v1206
  %v1208 = vpop.f32.mrf.mxu0
  %v1209 = vadd.f32 %v1096, %v1208
  %v1210 = vpop.f32.mrf.mxu0
  %v1211 = vadd.f32 %v1098, %v1210
  %v1212 = vpop.f32.mrf.mxu0
  %v1213 = vadd.f32 %v1100, %v1212
  %1214 = vmatprep.mubr.bf16.mxu0 %v394
  %1215 = vmatmul.mubr.bf16.gmra.mxu0 %v393
  %v1216 = vpop.f32.mrf.mxu0
  %v1217 = vadd.f32 %v1104, %v1216
  %v1218 = vpop.f32.mrf.mxu0
  %v1219 = vadd.f32 %v1106, %v1218
  %v1220 = vpop.f32.mrf.mxu0
  %v1221 = vadd.f32 %v1108, %v1220
  %v1222 = vpop.f32.mrf.mxu0
  %v1223 = vadd.f32 %v1110, %v1222
  %1224 = vmatprep.mubr.bf16.mxu0 %v401
  %1225 = vmatmul.mubr.bf16.gmra.mxu0 %v400
  %v1226 = vpop.f32.mrf.mxu0
  %v1227 = vadd.f32 %v1114, %v1226
  %v1228 = vpop.f32.mrf.mxu0
  %v1229 = vadd.f32 %v1116, %v1228
  %v1230 = vpop.f32.mrf.mxu0
  %v1231 = vadd.f32 %v1118, %v1230
  %v1232 = vpop.f32.mrf.mxu0
  %v1233 = vadd.f32 %v1120, %v1232
  %1234 = vmatprep.mubr.bf16.mxu0 %v408
  %1235 = vmatmul.mubr.bf16.gmra.mxu0 %v407
  %v1236 = vpop.f32.mrf.mxu0
  %v1237 = vadd.f32 %v1124, %v1236
  %v1238 = vpop.f32.mrf.mxu0
  %v1239 = vadd.f32 %v1126, %v1238
  %v1240 = vpop.f32.mrf.mxu0
  %v1241 = vadd.f32 %v1128, %v1240
  %v1242 = vpop.f32.mrf.mxu0
  %v1243 = vadd.f32 %v1130, %v1242
  %1244 = vmatprep.mubr.bf16.mxu0 %v415
  %1245 = vmatmul.mubr.bf16.gmra.mxu0 %v414
  %v1246 = vpop.f32.mrf.mxu0
  %v1247 = vadd.f32 %v1134, %v1246
  %v1248 = vpop.f32.mrf.mxu0
  %v1249 = vadd.f32 %v1136, %v1248
  %v1250 = vpop.f32.mrf.mxu0
  %v1251 = vadd.f32 %v1138, %v1250
  %v1252 = vpop.f32.mrf.mxu0
  %v1253 = vadd.f32 %v1140, %v1252
  %1254 = vmatprep.mubr.bf16.mxu0 %v422
  %1255 = vmatmul.mubr.bf16.gmra.mxu0 %v421
  %v1256 = vpop.f32.mrf.mxu0
  %v1257 = vadd.f32 %v1144, %v1256
  %v1258 = vpop.f32.mrf.mxu0
  %v1259 = vadd.f32 %v1146, %v1258
  %v1260 = vpop.f32.mrf.mxu0
  %v1261 = vadd.f32 %v1148, %v1260
  %v1262 = vpop.f32.mrf.mxu0
  %v1263 = vadd.f32 %v1150, %v1262
  %1264 = vmatprep.mubr.bf16.mxu0 %v429
  %1265 = vmatmul.mubr.bf16.gmra.mxu0 %v428
  %v1266 = vpop.f32.mrf.mxu0
  %v1267 = vadd.f32 %v1154, %v1266
  %v1268 = vpop.f32.mrf.mxu0
  %v1269 = vadd.f32 %v1156, %v1268
  %v1270 = vpop.f32.mrf.mxu0
  %v1271 = vadd.f32 %v1158, %v1270
  %v1272 = vpop.f32.mrf.mxu0
  %v1273 = vadd.f32 %v1160, %v1272
  %1274 = vdwg.mxu0
  %1275 = vmatprep.subr.bf16.mxu0 %v904
  %1276 = vmatpush1.bf16.msra.mxu0 %v903
  %1277 = vmatprep.subr.bf16.mxu0 %v902
  %1278 = vmatpush1.bf16.msra.mxu0 %v901
  %1279 = vmatprep.subr.bf16.mxu0 %v900
  %1280 = vmatpush1.bf16.msra.mxu0 %v899
  %1281 = vmatprep.subr.bf16.mxu0 %v898
  %1282 = vmatpush1.bf16.msra.mxu0 %v897
  %1283 = vmatprep.subr.bf16.mxu0 %v896
  %1284 = vmatpush1.bf16.msra.mxu0 %v895
  %1285 = vmatprep.subr.bf16.mxu0 %v894
  %1286 = vmatpush1.bf16.msra.mxu0 %v893
  %1287 = vmatprep.subr.bf16.mxu0 %v892
  %1288 = vmatpush1.bf16.msra.mxu0 %v891
  %1289 = vmatprep.subr.bf16.mxu0 %v890
  %1290 = vmatpush1.bf16.msra.mxu0 %v889
  %1291 = vmatprep.subr.bf16.mxu0 %v920
  %1292 = vmatpush2.bf16.msra.mxu0 %v919
  %1293 = vmatprep.subr.bf16.mxu0 %v918
  %1294 = vmatpush2.bf16.msra.mxu0 %v917
  %1295 = vmatprep.subr.bf16.mxu0 %v916
  %1296 = vmatpush2.bf16.msra.mxu0 %v915
  %1297 = vmatprep.subr.bf16.mxu0 %v914
  %1298 = vmatpush2.bf16.msra.mxu0 %v913
  %1299 = vmatprep.subr.bf16.mxu0 %v912
  %1300 = vmatpush2.bf16.msra.mxu0 %v911
  %1301 = vmatprep.subr.bf16.mxu0 %v910
  %1302 = vmatpush2.bf16.msra.mxu0 %v909
  %1303 = vmatprep.subr.bf16.mxu0 %v908
  %1304 = vmatpush2.bf16.msra.mxu0 %v907
  %1305 = vmatprep.subr.bf16.mxu0 %v906
  %1306 = vmatpush2.bf16.msra.mxu0 %v905
  %1307 = vmatprep.mubr.bf16.mxu0 %v382
  %1308 = vmatmul.mubr.bf16.gmra.mxu0 %v381
  %v1309 = vpop.f32.mrf.mxu0
  %v1310 = vadd.f32 %v1197, %v1309
  %v1311 = vpop.f32.mrf.mxu0
  %v1312 = vadd.f32 %v1199, %v1311
  %v1313 = vpop.f32.mrf.mxu0
  %v1314 = vadd.f32 %v1201, %v1313
  %v1315 = vpop.f32.mrf.mxu0
  %v1316 = vadd.f32 %v1203, %v1315
  %1317 = vmatprep.mubr.bf16.mxu0 %v389
  %1318 = vmatmul.mubr.bf16.gmra.mxu0 %v388
  %v1319 = vpop.f32.mrf.mxu0
  %v1320 = vadd.f32 %v1207, %v1319
  %v1321 = vpop.f32.mrf.mxu0
  %v1322 = vadd.f32 %v1209, %v1321
  %v1323 = vpop.f32.mrf.mxu0
  %v1324 = vadd.f32 %v1211, %v1323
  %v1325 = vpop.f32.mrf.mxu0
  %v1326 = vadd.f32 %v1213, %v1325
  %1327 = vmatprep.mubr.bf16.mxu0 %v396
  %1328 = vmatmul.mubr.bf16.gmra.mxu0 %v395
  %v1329 = vpop.f32.mrf.mxu0
  %v1330 = vadd.f32 %v1217, %v1329
  %v1331 = vpop.f32.mrf.mxu0
  %v1332 = vadd.f32 %v1219, %v1331
  %v1333 = vpop.f32.mrf.mxu0
  %v1334 = vadd.f32 %v1221, %v1333
  %v1335 = vpop.f32.mrf.mxu0
  %v1336 = vadd.f32 %v1223, %v1335
  %1337 = vmatprep.mubr.bf16.mxu0 %v403
  %1338 = vmatmul.mubr.bf16.gmra.mxu0 %v402
  %v1339 = vpop.f32.mrf.mxu0
  %v1340 = vadd.f32 %v1227, %v1339
  %v1341 = vpop.f32.mrf.mxu0
  %v1342 = vadd.f32 %v1229, %v1341
  %v1343 = vpop.f32.mrf.mxu0
  %v1344 = vadd.f32 %v1231, %v1343
  %v1345 = vpop.f32.mrf.mxu0
  %v1346 = vadd.f32 %v1233, %v1345
  %1347 = vmatprep.mubr.bf16.mxu0 %v410
  %1348 = vmatmul.mubr.bf16.gmra.mxu0 %v409
  %v1349 = vpop.f32.mrf.mxu0
  %v1350 = vadd.f32 %v1237, %v1349
  %v1351 = vpop.f32.mrf.mxu0
  %v1352 = vadd.f32 %v1239, %v1351
  %v1353 = vpop.f32.mrf.mxu0
  %v1354 = vadd.f32 %v1241, %v1353
  %v1355 = vpop.f32.mrf.mxu0
  %v1356 = vadd.f32 %v1243, %v1355
  %1357 = vmatprep.mubr.bf16.mxu0 %v417
  %1358 = vmatmul.mubr.bf16.gmra.mxu0 %v416
  %v1359 = vpop.f32.mrf.mxu0
  %v1360 = vadd.f32 %v1247, %v1359
  %v1361 = vpop.f32.mrf.mxu0
  %v1362 = vadd.f32 %v1249, %v1361
  %v1363 = vpop.f32.mrf.mxu0
  %v1364 = vadd.f32 %v1251, %v1363
  %v1365 = vpop.f32.mrf.mxu0
  %v1366 = vadd.f32 %v1253, %v1365
  %1367 = vmatprep.mubr.bf16.mxu0 %v424
  %1368 = vmatmul.mubr.bf16.gmra.mxu0 %v423
  %v1369 = vpop.f32.mrf.mxu0
  %v1370 = vadd.f32 %v1257, %v1369
  %v1371 = vpop.f32.mrf.mxu0
  %v1372 = vadd.f32 %v1259, %v1371
  %v1373 = vpop.f32.mrf.mxu0
  %v1374 = vadd.f32 %v1261, %v1373
  %v1375 = vpop.f32.mrf.mxu0
  %v1376 = vadd.f32 %v1263, %v1375
  %1377 = vmatprep.mubr.bf16.mxu0 %v431
  %1378 = vmatmul.mubr.bf16.gmra.mxu0 %v430
  %v1379 = vpop.f32.mrf.mxu0
  %v1380 = vadd.f32 %v1267, %v1379
  %v1381 = vpop.f32.mrf.mxu0
  %v1382 = vadd.f32 %v1269, %v1381
  %v1383 = vpop.f32.mrf.mxu0
  %v1384 = vadd.f32 %v1271, %v1383
  %v1385 = vpop.f32.mrf.mxu0
  %v1386 = vadd.f32 %v1273, %v1385
  %1387 = vdwg.mxu0
  %1388 = vmatprep.subr.bf16.mxu0 %v936
  %1389 = vmatpush1.bf16.msra.mxu0 %v935
  %1390 = vmatprep.subr.bf16.mxu0 %v934
  %1391 = vmatpush1.bf16.msra.mxu0 %v933
  %1392 = vmatprep.subr.bf16.mxu0 %v932
  %1393 = vmatpush1.bf16.msra.mxu0 %v931
  %1394 = vmatprep.subr.bf16.mxu0 %v930
  %1395 = vmatpush1.bf16.msra.mxu0 %v929
  %1396 = vmatprep.subr.bf16.mxu0 %v928
  %1397 = vmatpush1.bf16.msra.mxu0 %v927
  %1398 = vmatprep.subr.bf16.mxu0 %v926
  %1399 = vmatpush1.bf16.msra.mxu0 %v925
  %1400 = vmatprep.subr.bf16.mxu0 %v924
  %1401 = vmatpush1.bf16.msra.mxu0 %v923
  %1402 = vmatprep.subr.bf16.mxu0 %v922
  %1403 = vmatpush1.bf16.msra.mxu0 %v921
  %1404 = vmatprep.subr.bf16.mxu0 0
  %1405 = vmatpush2.bf16.msra.mxu0 0
  %1406 = vmatprep.subr.bf16.mxu0 0
  %1407 = vmatpush2.bf16.msra.mxu0 0
  %1408 = vmatprep.subr.bf16.mxu0 0
  %1409 = vmatpush2.bf16.msra.mxu0 0
  %1410 = vmatprep.subr.bf16.mxu0 0
  %1411 = vmatpush2.bf16.msra.mxu0 0
  %1412 = vmatprep.subr.bf16.mxu0 0
  %1413 = vmatpush2.bf16.msra.mxu0 0
  %1414 = vmatprep.subr.bf16.mxu0 0
  %1415 = vmatpush2.bf16.msra.mxu0 0
  %1416 = vmatprep.subr.bf16.mxu0 0
  %1417 = vmatpush2.bf16.msra.mxu0 0
  %1418 = vmatprep.subr.bf16.mxu0 0
  %1419 = vmatpush2.bf16.msra.mxu0 0
  %1420 = vmatprep.mubr.bf16.mxu0 0
  %1421 = vmatmul.mubr.bf16.gmra.mxu0 %v383
  %v1422 = vpop.f32.mrf.mxu0
  %v1423 = vadd.f32 %v1310, %v1422
  %v1424 = vpop.f32.mrf.mxu0
  %v1425 = vadd.f32 %v1312, %v1424
  %v1426 = vpop.f32.mrf.mxu0
  %v1427 = vadd.f32 %v1314, %v1426
  %v1428 = vpop.f32.mrf.mxu0
  %v1429 = vadd.f32 %v1316, %v1428
  %1430 = vmatprep.mubr.bf16.mxu0 0
  %1431 = vmatmul.mubr.bf16.gmra.mxu0 %v390
  %v1432 = vpop.f32.mrf.mxu0
  %v1433 = vadd.f32 %v1320, %v1432
  %v1434 = vpop.f32.mrf.mxu0
  %v1435 = vadd.f32 %v1322, %v1434
  %v1436 = vpop.f32.mrf.mxu0
  %v1437 = vadd.f32 %v1324, %v1436
  %v1438 = vpop.f32.mrf.mxu0
  %v1439 = vadd.f32 %v1326, %v1438
  %1440 = vmatprep.mubr.bf16.mxu0 0
  %1441 = vmatmul.mubr.bf16.gmra.mxu0 %v397
  %v1442 = vpop.f32.mrf.mxu0
  %v1443 = vadd.f32 %v1330, %v1442
  %v1444 = vpop.f32.mrf.mxu0
  %v1445 = vadd.f32 %v1332, %v1444
  %v1446 = vpop.f32.mrf.mxu0
  %v1447 = vadd.f32 %v1334, %v1446
  %v1448 = vpop.f32.mrf.mxu0
  %v1449 = vadd.f32 %v1336, %v1448
  %1450 = vmatprep.mubr.bf16.mxu0 0
  %1451 = vmatmul.mubr.bf16.gmra.mxu0 %v404
  %v1452 = vpop.f32.mrf.mxu0
  %v1453 = vadd.f32 %v1340, %v1452
  %v1454 = vpop.f32.mrf.mxu0
  %v1455 = vadd.f32 %v1342, %v1454
  %v1456 = vpop.f32.mrf.mxu0
  %v1457 = vadd.f32 %v1344, %v1456
  %v1458 = vpop.f32.mrf.mxu0
  %v1459 = vadd.f32 %v1346, %v1458
  %1460 = vmatprep.mubr.bf16.mxu0 0
  %1461 = vmatmul.mubr.bf16.gmra.mxu0 %v411
  %v1462 = vpop.f32.mrf.mxu0
  %v1463 = vadd.f32 %v1350, %v1462
  %v1464 = vpop.f32.mrf.mxu0
  %v1465 = vadd.f32 %v1352, %v1464
  %v1466 = vpop.f32.mrf.mxu0
  %v1467 = vadd.f32 %v1354, %v1466
  %v1468 = vpop.f32.mrf.mxu0
  %v1469 = vadd.f32 %v1356, %v1468
  %1470 = vmatprep.mubr.bf16.mxu0 0
  %1471 = vmatmul.mubr.bf16.gmra.mxu0 %v418
  %v1472 = vpop.f32.mrf.mxu0
  %v1473 = vadd.f32 %v1360, %v1472
  %v1474 = vpop.f32.mrf.mxu0
  %v1475 = vadd.f32 %v1362, %v1474
  %v1476 = vpop.f32.mrf.mxu0
  %v1477 = vadd.f32 %v1364, %v1476
  %v1478 = vpop.f32.mrf.mxu0
  %v1479 = vadd.f32 %v1366, %v1478
  %1480 = vmatprep.mubr.bf16.mxu0 0
  %1481 = vmatmul.mubr.bf16.gmra.mxu0 %v425
  %v1482 = vpop.f32.mrf.mxu0
  %v1483 = vadd.f32 %v1370, %v1482
  %v1484 = vpop.f32.mrf.mxu0
  %v1485 = vadd.f32 %v1372, %v1484
  %v1486 = vpop.f32.mrf.mxu0
  %v1487 = vadd.f32 %v1374, %v1486
  %v1488 = vpop.f32.mrf.mxu0
  %v1489 = vadd.f32 %v1376, %v1488
  %1490 = vmatprep.mubr.bf16.mxu0 0
  %1491 = vmatmul.mubr.bf16.gmra.mxu0 %v432
  %v1492 = vpop.f32.mrf.mxu0
  %v1493 = vadd.f32 %v1380, %v1492
  %v1494 = vpop.f32.mrf.mxu0
  %v1495 = vadd.f32 %v1382, %v1494
  %v1496 = vpop.f32.mrf.mxu0
  %v1497 = vadd.f32 %v1384, %v1496
  %v1498 = vpop.f32.mrf.mxu0
  %v1499 = vadd.f32 %v1386, %v1498
  %1500 = vdwg.mxu0
  %v1501 = vpack.c.bf16 %v1427, %v1423
  %v1502 = vpack.c.bf16 %v1429, %v1425
  %v1503 = vpack.c.bf16 %v1437, %v1433
  %v1504 = vpack.c.bf16 %v1439, %v1435
  %v1505 = vpack.c.bf16 %v1447, %v1443
  %v1506 = vpack.c.bf16 %v1449, %v1445
  %v1507 = vpack.c.bf16 %v1457, %v1453
  %v1508 = vpack.c.bf16 %v1459, %v1455
  %v1509 = vpack.c.bf16 %v1467, %v1463
  %v1510 = vpack.c.bf16 %v1469, %v1465
  %v1511 = vpack.c.bf16 %v1477, %v1473
  %v1512 = vpack.c.bf16 %v1479, %v1475
  %v1513 = vpack.c.bf16 %v1487, %v1483
  %v1514 = vpack.c.bf16 %v1489, %v1485
  %v1515 = vpack.c.bf16 %v1497, %v1493
  %v1516 = vpack.c.bf16 %v1499, %v1495
  %v1533 = vunpack.c.l.b16 %v1501
  %v1534 = vunpack.c.l.b16 %v1502
  %v1535 = vunpack.c.h.b16 %v1501
  %v1536 = vunpack.c.h.b16 %v1502
  %v1537 = vunpack.c.l.b16 %v1503
  %v1538 = vunpack.c.l.b16 %v1504
  %v1539 = vunpack.c.h.b16 %v1503
  %v1540 = vunpack.c.h.b16 %v1504
  %v1541 = vunpack.c.l.b16 %v1505
  %v1542 = vunpack.c.l.b16 %v1506
  %v1543 = vunpack.c.h.b16 %v1505
  %v1544 = vunpack.c.h.b16 %v1506
  %v1545 = vunpack.c.l.b16 %v1507
  %v1546 = vunpack.c.l.b16 %v1508
  %v1547 = vunpack.c.h.b16 %v1507
  %v1548 = vunpack.c.h.b16 %v1508
  %v1549 = vunpack.c.l.b16 %v1509
  %v1550 = vunpack.c.l.b16 %v1510
  %v1551 = vunpack.c.h.b16 %v1509
  %v1552 = vunpack.c.h.b16 %v1510
  %v1553 = vunpack.c.l.b16 %v1511
  %v1554 = vunpack.c.l.b16 %v1512
  %v1555 = vunpack.c.h.b16 %v1511
  %v1556 = vunpack.c.h.b16 %v1512
  %v1557 = vunpack.c.l.b16 %v1513
  %v1558 = vunpack.c.l.b16 %v1514
  %v1559 = vunpack.c.h.b16 %v1513
  %v1560 = vunpack.c.h.b16 %v1514
  %v1561 = vunpack.c.l.b16 %v1515
  %v1562 = vunpack.c.l.b16 %v1516
  %v1563 = vunpack.c.h.b16 %v1515
  %v1564 = vunpack.c.h.b16 %v1516
  %v1565 = vpack.c.b16 %v1534, %v1533
  %v1566 = vpack.c.b16 %v1536, %v1535
  %v1567 = vpack.c.b16 %v1538, %v1537
  %v1568 = vpack.c.b16 %v1540, %v1539
  %v1569 = vpack.c.b16 %v1542, %v1541
  %v1570 = vpack.c.b16 %v1544, %v1543
  %v1571 = vpack.c.b16 %v1546, %v1545
  %v1572 = vpack.c.b16 %v1548, %v1547
  %v1573 = vpack.c.b16 %v1550, %v1549
  %v1574 = vpack.c.b16 %v1552, %v1551
  %v1575 = vpack.c.b16 %v1554, %v1553
  %v1576 = vpack.c.b16 %v1556, %v1555
  %v1577 = vpack.c.b16 %v1558, %v1557
  %v1578 = vpack.c.b16 %v1560, %v1559
  %v1579 = vpack.c.b16 %v1562, %v1561
  %v1580 = vpack.c.b16 %v1564, %v1563
  %1597 = vst [vmem:[%s2] sm:$0xff] %v1565
  %1598 = vst [vmem:[%s2 + $0x8] sm:$0xff] %v1566
  %1599 = vst [vmem:[%s2 + $0x10] sm:$0xff] %v1567
  %1600 = vst [vmem:[%s2 + $0x18] sm:$0xff] %v1568
  %1601 = vst [vmem:[%s2 + $0x20] sm:$0xff] %v1569
  %1602 = vst [vmem:[%s2 + $0x28] sm:$0xff] %v1570
  %1603 = vst [vmem:[%s2 + $0x30] sm:$0xff] %v1571
  %1604 = vst [vmem:[%s2 + $0x38] sm:$0xff] %v1572
  %1605 = vst [vmem:[%s2 + $0x40] sm:$0xff] %v1573
  %1606 = vst [vmem:[%s2 + $0x48] sm:$0xff] %v1574
  %1607 = vst [vmem:[%s2 + $0x50] sm:$0xff] %v1575
  %1608 = vst [vmem:[%s2 + $0x58] sm:$0xff] %v1576
  %1609 = vst [vmem:[%s2 + $0x60] sm:$0xff] %v1577
  %1610 = vst [vmem:[%s2 + $0x68] sm:$0xff] %v1578
  %1611 = vst [vmem:[%s2 + $0x70] sm:$0xff] %v1579
  %1612 = vst [vmem:[%s2 + $0x78] sm:$0xff] %v1580
  %v1613 = vld [vmem:[%s3] sm:$0x3]
  %v1614 = vadd.f32 %v1423, %v1427
  %v1615 = vadd.f32 %v1614, %v1433
  %v1616 = vadd.f32 %v1615, %v1437
  %v1617 = vadd.f32 %v1616, %v1443
  %v1618 = vadd.f32 %v1617, %v1447
  %v1619 = vadd.f32 %v1618, %v1453
  %v1620 = vadd.f32 %v1619, %v1457
  %v1621 = vadd.f32 %v1620, %v1463
  %v1622 = vadd.f32 %v1621, %v1467
  %v1623 = vadd.f32 %v1622, %v1473
  %v1624 = vadd.f32 %v1623, %v1477
  %v1625 = vadd.f32 %v1624, %v1483
  %v1626 = vadd.f32 %v1625, %v1487
  %v1627 = vadd.f32 %v1626, %v1493
  %v1628 = vadd.f32 %v1627, %v1497
  %v1629 = vrot.slane %v1628, 4
  %v1630 = vadd.f32 %v1628, %v1629
  %v1631 = vrot.slane %v1630, 2
  %v1632 = vadd.f32 %v1630, %v1631
  %v1633 = vrot.slane %v1632, 1
  %v1634 = vadd.f32 %v1632, %v1633
  %v1635 = vadd.f32 %v1425, %v1429
  %v1636 = vadd.f32 %v1635, %v1435
  %v1637 = vadd.f32 %v1636, %v1439
  %v1638 = vadd.f32 %v1637, %v1445
  %v1639 = vadd.f32 %v1638, %v1449
  %v1640 = vadd.f32 %v1639, %v1455
  %v1641 = vadd.f32 %v1640, %v1459
  %v1642 = vadd.f32 %v1641, %v1465
  %v1643 = vadd.f32 %v1642, %v1469
  %v1644 = vadd.f32 %v1643, %v1475
  %v1645 = vadd.f32 %v1644, %v1479
  %v1646 = vadd.f32 %v1645, %v1485
  %v1647 = vadd.f32 %v1646, %v1489
  %v1648 = vadd.f32 %v1647, %v1495
  %v1649 = vadd.f32 %v1648, %v1499
  %v1650 = vrot.slane %v1649, 4
  %v1651 = vadd.f32 %v1649, %v1650
  %v1652 = vrot.slane %v1651, 2
  %v1653 = vadd.f32 %v1651, %v1652
  %v1654 = vrot.slane %v1653, 1
  %v1655 = vadd.f32 %v1653, %v1654
  %v1658 = vcombine.low %v1634, %v1655
  %v1660 = vunpack.c.l.s4 1966171168
  %v1661 = vunpack.c.0.s8 %v1660
  %v1662 = vlaneseq
  %v1663 = vshrl.u32 %v1662, 7
  %v1664 = vsub.s32 %v1661, %v1663
  %v1665 = vrot.slane %v1658, %v1664
  %v1667 = vunpack.c.l.s4 1966171168
  %v1668 = vunpack.c.0.s8 %v1667
  %v1669 = vlaneseq
  %v1670 = vshrl.u32 %v1669, 7
  %v1671 = vsub.s32 %v1668, %v1670
  %v1672 = vrot.slane %v1665, %v1671
  %v1674 = vadd.f32 %v1613, %v1672
  %v1675 = vlaneseq
  %vm1676 = vcmp.ge.s32.totalorder %v1675, 0
  %vm1677 = vcmp.lt.s32.totalorder %v1675, 256
  %vm1678 = vmand %vm1676, %vm1677
  %1679 = vst.msk [vmem:[%s3] sm:$0x3] %vm1678, %v1674
  %v1680 = vld [vmem:[%s4] sm:$0x3]
  %v1681 = vmul.f32 %v1423, %v1423
  %v1682 = vmul.f32 %v1425, %v1425
  %v1683 = vmul.f32 %v1427, %v1427
  %v1684 = vmul.f32 %v1429, %v1429
  %v1685 = vmul.f32 %v1433, %v1433
  %v1686 = vmul.f32 %v1435, %v1435
  %v1687 = vmul.f32 %v1437, %v1437
  %v1688 = vmul.f32 %v1439, %v1439
  %v1689 = vmul.f32 %v1443, %v1443
  %v1690 = vmul.f32 %v1445, %v1445
  %v1691 = vmul.f32 %v1447, %v1447
  %v1692 = vmul.f32 %v1449, %v1449
  %v1693 = vmul.f32 %v1453, %v1453
  %v1694 = vmul.f32 %v1455, %v1455
  %v1695 = vmul.f32 %v1457, %v1457
  %v1696 = vmul.f32 %v1459, %v1459
  %v1697 = vmul.f32 %v1463, %v1463
  %v1698 = vmul.f32 %v1465, %v1465
  %v1699 = vmul.f32 %v1467, %v1467
  %v1700 = vmul.f32 %v1469, %v1469
  %v1701 = vmul.f32 %v1473, %v1473
  %v1702 = vmul.f32 %v1475, %v1475
  %v1703 = vmul.f32 %v1477, %v1477
  %v1704 = vmul.f32 %v1479, %v1479
  %v1705 = vmul.f32 %v1483, %v1483
  %v1706 = vmul.f32 %v1485, %v1485
  %v1707 = vmul.f32 %v1487, %v1487
  %v1708 = vmul.f32 %v1489, %v1489
  %v1709 = vmul.f32 %v1493, %v1493
  %v1710 = vmul.f32 %v1495, %v1495
  %v1711 = vmul.f32 %v1497, %v1497
  %v1712 = vmul.f32 %v1499, %v1499
  %v1713 = vadd.f32 %v1681, %v1683
  %v1714 = vadd.f32 %v1713, %v1685
  %v1715 = vadd.f32 %v1714, %v1687
  %v1716 = vadd.f32 %v1715, %v1689
  %v1717 = vadd.f32 %v1716, %v1691
  %v1718 = vadd.f32 %v1717, %v1693
  %v1719 = vadd.f32 %v1718, %v1695
  %v1720 = vadd.f32 %v1719, %v1697
  %v1721 = vadd.f32 %v1720, %v1699
  %v1722 = vadd.f32 %v1721, %v1701
  %v1723 = vadd.f32 %v1722, %v1703
  %v1724 = vadd.f32 %v1723, %v1705
  %v1725 = vadd.f32 %v1724, %v1707
  %v1726 = vadd.f32 %v1725, %v1709
  %v1727 = vadd.f32 %v1726, %v1711
  %v1728 = vrot.slane %v1727, 4
  %v1729 = vadd.f32 %v1727, %v1728
  %v1730 = vrot.slane %v1729, 2
  %v1731 = vadd.f32 %v1729, %v1730
  %v1732 = vrot.slane %v1731, 1
  %v1733 = vadd.f32 %v1731, %v1732
  %v1734 = vadd.f32 %v1682, %v1684
  %v1735 = vadd.f32 %v1734, %v1686
  %v1736 = vadd.f32 %v1735, %v1688
  %v1737 = vadd.f32 %v1736, %v1690
  %v1738 = vadd.f32 %v1737, %v1692
  %v1739 = vadd.f32 %v1738, %v1694
  %v1740 = vadd.f32 %v1739, %v1696
  %v1741 = vadd.f32 %v1740, %v1698
  %v1742 = vadd.f32 %v1741, %v1700
  %v1743 = vadd.f32 %v1742, %v1702
  %v1744 = vadd.f32 %v1743, %v1704
  %v1745 = vadd.f32 %v1744, %v1706
  %v1746 = vadd.f32 %v1745, %v1708
  %v1747 = vadd.f32 %v1746, %v1710
  %v1748 = vadd.f32 %v1747, %v1712
  %v1749 = vrot.slane %v1748, 4
  %v1750 = vadd.f32 %v1748, %v1749
  %v1751 = vrot.slane %v1750, 2
  %v1752 = vadd.f32 %v1750, %v1751
  %v1753 = vrot.slane %v1752, 1
  %v1754 = vadd.f32 %v1752, %v1753
  %v1757 = vcombine.low %v1733, %v1754
  %v1759 = vunpack.c.l.s4 1966171168
  %v1760 = vunpack.c.0.s8 %v1759
  %v1761 = vlaneseq
  %v1762 = vshrl.u32 %v1761, 7
  %v1763 = vsub.s32 %v1760, %v1762
  %v1764 = vrot.slane %v1757, %v1763
  %v1766 = vunpack.c.l.s4 1966171168
  %v1767 = vunpack.c.0.s8 %v1766
  %v1768 = vlaneseq
  %v1769 = vshrl.u32 %v1768, 7
  %v1770 = vsub.s32 %v1767, %v1769
  %v1771 = vrot.slane %v1764, %v1770
  %v1773 = vadd.f32 %v1680, %v1771
  %1774 = vst.msk [vmem:[%s4] sm:$0x3] %vm1678, %v1773
  // Predicated region
  $region14: #{generator_forward.7} parent=0 // pred_check
    _
  $region15: #{generator_forward.7} parent=0 // pred_check_branch
    %1776 = sbr.rel (0) target = $region17
  $region16: #{generator_forward.7} parent=0 // pred_region
    _
  $region17: #{generator_forward.7} parent=0 // pred_fallthru
    _
  // Predicated region
  $region18: #{generator_forward.7} parent=0 // pred_check
    _
  $region19: #{generator_forward.7} parent=0 // pred_check_branch
    %1778 = sbr.rel (0) target = $region21
  $region20: #{generator_forward.7} parent=0 // pred_region
    _
  $region21: #{generator_forward.7} parent=0 // pred_fallthru
    _
  // Predicated region
  $region22: #{generator_forward.7} parent=0 // pred_check
    _
  $region23: #{generator_forward.7} parent=0 // pred_check_branch
    %1780 = sbr.rel (0) target = $region25
  $region24: #{generator_forward.7} parent=0 // pred_region
    _
  $region25: #{generator_forward.7} parent=0 // pred_fallthru
    _
  // Predicated region
  $region26: #{generator_forward.7} parent=0 // pred_check
    _
  $region27: #{generator_forward.7} parent=0 // pred_check_branch
    %1782 = sbr.rel (0) target = $region29
  $region28: #{generator_forward.7} parent=0 // pred_region
    _
  $region29: #{generator_forward.7} parent=0 // pred_fallthru
    _
  // Predicated region
  $region30: #{generator_forward.7} parent=0 // pred_check
    _
  $region31: #{generator_forward.7} parent=0 // pred_check_branch
    %1784 = sbr.rel (0) target = $region33
  $region32: #{generator_forward.7} parent=0 // pred_region
    _
  $region33: #{generator_forward.7} parent=0 // pred_fallthru
    _
  // Predicated region
  $region34: #{generator_forward.7} parent=0 // pred_check
    _
  $region35: #{generator_forward.7} parent=0 // pred_check_branch
    %1786 = sbr.rel (0) target = $region37
  $region36: #{generator_forward.7} parent=0 // pred_region
    _
  $region37: #{generator_forward.7} parent=0 // pred_fallthru
    _

// kernel: generator_forward.8
$region0: #{generator_forward.8}
  #allocation0 [shape = 'u32[]', space=smem, size = 0x4, offset = 0x4, fixed_abs, tag = 'smem constant byte address 0x4 - core index']
  #allocation1 [shape = 'u32[144,128]{1,0:T(1,128)}', space=vmem, size = 0x12000, scoped, tag = 'internal scratch']
  %s0 = inlined_call_operand.vmem [shape: bf16[128,256], index: 0, kind: input, shape index: {}]
  %s1 = inlined_call_operand.vmem [shape: f32[1,256], index: 1, kind: input, shape index: {}]
  %s2 = inlined_call_operand.vmem [shape: f32[1,256], index: 2, kind: input, shape index: {}]
  %s3 = inlined_call_operand.vmem [shape: bf16[128,256], index: 3, kind: output, shape index: {}]
  %s4 = sld [smem:[#allocation0]]
  $region22: #{generator_forward.8} parent=0
    _
  %s6 = ssub.s32 1, %s4
  %s7 = scalar_select 0, %s6, %s4
  // Predicated region
  $region2: #{generator_forward.8} parent=0 // pred_check
    _
  $region3: #{generator_forward.8} parent=0 // pred_check_branch
    %9 = sbr.rel (0) target = $region5
  $region4: #{generator_forward.8} parent=0 // pred_region
    _
  $region5: #{generator_forward.8} parent=0 // pred_fallthru
    _
  // Predicated region
  $region6: #{generator_forward.8} parent=0 // pred_check
    _
  $region7: #{generator_forward.8} parent=0 // pred_check_branch
    %11 = sbr.rel (0) target = $region9
  $region8: #{generator_forward.8} parent=0 // pred_region
    _
  $region9: #{generator_forward.8} parent=0 // pred_fallthru
    _
  // Predicated region
  $region10: #{generator_forward.8} parent=0 // pred_check
    _
  $region11: #{generator_forward.8} parent=0 // pred_check_branch
    %13 = sbr.rel (0) target = $region13
  $region12: #{generator_forward.8} parent=0 // pred_region
    _
  $region13: #{generator_forward.8} parent=0 // pred_fallthru
    _
  %v14 = vld [vmem:[%s0] sm:$0xff]
  %v15 = vld [vmem:[%s0 + $0x8] sm:$0xff]
  %v16 = vld [vmem:[%s0 + $0x10] sm:$0xff]
  %v17 = vld [vmem:[%s0 + $0x18] sm:$0xff]
  %v18 = vld [vmem:[%s0 + $0x20] sm:$0xff]
  %v19 = vld [vmem:[%s0 + $0x28] sm:$0xff]
  %v20 = vld [vmem:[%s0 + $0x30] sm:$0xff]
  %v21 = vld [vmem:[%s0 + $0x38] sm:$0xff]
  %v22 = vld [vmem:[%s0 + $0x40] sm:$0xff]
  %v23 = vld [vmem:[%s0 + $0x48] sm:$0xff]
  %v24 = vld [vmem:[%s0 + $0x50] sm:$0xff]
  %v25 = vld [vmem:[%s0 + $0x58] sm:$0xff]
  %v26 = vld [vmem:[%s0 + $0x60] sm:$0xff]
  %v27 = vld [vmem:[%s0 + $0x68] sm:$0xff]
  %v28 = vld [vmem:[%s0 + $0x70] sm:$0xff]
  %v29 = vld [vmem:[%s0 + $0x78] sm:$0xff]
  %v30 = vunpack.c.l.bf16 %v14
  %v31 = vunpack.c.h.bf16 %v14
  %v32 = vunpack.c.l.bf16 %v15
  %v33 = vunpack.c.h.bf16 %v15
  %v34 = vunpack.c.l.bf16 %v16
  %v35 = vunpack.c.h.bf16 %v16
  %v36 = vunpack.c.l.bf16 %v17
  %v37 = vunpack.c.h.bf16 %v17
  %v38 = vunpack.c.l.bf16 %v18
  %v39 = vunpack.c.h.bf16 %v18
  %v40 = vunpack.c.l.bf16 %v19
  %v41 = vunpack.c.h.bf16 %v19
  %v42 = vunpack.c.l.bf16 %v20
  %v43 = vunpack.c.h.bf16 %v20
  %v44 = vunpack.c.l.bf16 %v21
  %v45 = vunpack.c.h.bf16 %v21
  %v46 = vunpack.c.l.bf16 %v22
  %v47 = vunpack.c.h.bf16 %v22
  %v48 = vunpack.c.l.bf16 %v23
  %v49 = vunpack.c.h.bf16 %v23
  %v50 = vunpack.c.l.bf16 %v24
  %v51 = vunpack.c.h.bf16 %v24
  %v52 = vunpack.c.l.bf16 %v25
  %v53 = vunpack.c.h.bf16 %v25
  %v54 = vunpack.c.l.bf16 %v26
  %v55 = vunpack.c.h.bf16 %v26
  %v56 = vunpack.c.l.bf16 %v27
  %v57 = vunpack.c.h.bf16 %v27
  %v58 = vunpack.c.l.bf16 %v28
  %v59 = vunpack.c.h.bf16 %v28
  %v60 = vunpack.c.l.bf16 %v29
  %v61 = vunpack.c.h.bf16 %v29
  %v62 = vld [vmem:[%s1] sm:$0x3]
  %v64 = vlaneseq
  %v65 = vshrl.u32 %v64, 7
  %v66 = vsub.s32 0, %v65
  %v67 = vrot.slane %v62, %v66
  %v68 = vlaneseq
  %v69 = vshrl.u32 %v68, 7
  %v70 = vsub.s32 1, %v69
  %v71 = vrot.slane %v62, %v70
  %v74 = vmul.f32 %v30, %v67
  %v75 = vmul.f32 %v31, %v71
  %v76 = vmul.f32 %v32, %v67
  %v77 = vmul.f32 %v33, %v71
  %v78 = vmul.f32 %v34, %v67
  %v79 = vmul.f32 %v35, %v71
  %v80 = vmul.f32 %v36, %v67
  %v81 = vmul.f32 %v37, %v71
  %v82 = vmul.f32 %v38, %v67
  %v83 = vmul.f32 %v39, %v71
  %v84 = vmul.f32 %v40, %v67
  %v85 = vmul.f32 %v41, %v71
  %v86 = vmul.f32 %v42, %v67
  %v87 = vmul.f32 %v43, %v71
  %v88 = vmul.f32 %v44, %v67
  %v89 = vmul.f32 %v45, %v71
  %v90 = vmul.f32 %v46, %v67
  %v91 = vmul.f32 %v47, %v71
  %v92 = vmul.f32 %v48, %v67
  %v93 = vmul.f32 %v49, %v71
  %v94 = vmul.f32 %v50, %v67
  %v95 = vmul.f32 %v51, %v71
  %v96 = vmul.f32 %v52, %v67
  %v97 = vmul.f32 %v53, %v71
  %v98 = vmul.f32 %v54, %v67
  %v99 = vmul.f32 %v55, %v71
  %v100 = vmul.f32 %v56, %v67
  %v101 = vmul.f32 %v57, %v71
  %v102 = vmul.f32 %v58, %v67
  %v103 = vmul.f32 %v59, %v71
  %v104 = vmul.f32 %v60, %v67
  %v105 = vmul.f32 %v61, %v71
  %v106 = vld [vmem:[%s2] sm:$0x3]
  %v108 = vlaneseq
  %v109 = vshrl.u32 %v108, 7
  %v110 = vsub.s32 0, %v109
  %v111 = vrot.slane %v106, %v110
  %v112 = vlaneseq
  %v113 = vshrl.u32 %v112, 7
  %v114 = vsub.s32 1, %v113
  %v115 = vrot.slane %v106, %v114
  %v118 = vadd.f32 %v74, %v111
  %v119 = vadd.f32 %v75, %v115
  %v120 = vadd.f32 %v76, %v111
  %v121 = vadd.f32 %v77, %v115
  %v122 = vadd.f32 %v78, %v111
  %v123 = vadd.f32 %v79, %v115
  %v124 = vadd.f32 %v80, %v111
  %v125 = vadd.f32 %v81, %v115
  %v126 = vadd.f32 %v82, %v111
  %v127 = vadd.f32 %v83, %v115
  %v128 = vadd.f32 %v84, %v111
  %v129 = vadd.f32 %v85, %v115
  %v130 = vadd.f32 %v86, %v111
  %v131 = vadd.f32 %v87, %v115
  %v132 = vadd.f32 %v88, %v111
  %v133 = vadd.f32 %v89, %v115
  %v134 = vadd.f32 %v90, %v111
  %v135 = vadd.f32 %v91, %v115
  %v136 = vadd.f32 %v92, %v111
  %v137 = vadd.f32 %v93, %v115
  %v138 = vadd.f32 %v94, %v111
  %v139 = vadd.f32 %v95, %v115
  %v140 = vadd.f32 %v96, %v111
  %v141 = vadd.f32 %v97, %v115
  %v142 = vadd.f32 %v98, %v111
  %v143 = vadd.f32 %v99, %v115
  %v144 = vadd.f32 %v100, %v111
  %v145 = vadd.f32 %v101, %v115
  %v146 = vadd.f32 %v102, %v111
  %v147 = vadd.f32 %v103, %v115
  %v148 = vadd.f32 %v104, %v111
  %v149 = vadd.f32 %v105, %v115
  %v150 = vmax.f32 %v118, 0.0
  %v151 = vmax.f32 %v119, 0.0
  %v152 = vmax.f32 %v120, 0.0
  %v153 = vmax.f32 %v121, 0.0
  %v154 = vmax.f32 %v122, 0.0
  %v155 = vmax.f32 %v123, 0.0
  %v156 = vmax.f32 %v124, 0.0
  %v157 = vmax.f32 %v125, 0.0
  %v158 = vmax.f32 %v126, 0.0
  %v159 = vmax.f32 %v127, 0.0
  %v160 = vmax.f32 %v128, 0.0
  %v161 = vmax.f32 %v129, 0.0
  %v162 = vmax.f32 %v130, 0.0
  %v163 = vmax.f32 %v131, 0.0
  %v164 = vmax.f32 %v132, 0.0
  %v165 = vmax.f32 %v133, 0.0
  %v166 = vmax.f32 %v134, 0.0
  %v167 = vmax.f32 %v135, 0.0
  %v168 = vmax.f32 %v136, 0.0
  %v169 = vmax.f32 %v137, 0.0
  %v170 = vmax.f32 %v138, 0.0
  %v171 = vmax.f32 %v139, 0.0
  %v172 = vmax.f32 %v140, 0.0
  %v173 = vmax.f32 %v141, 0.0
  %v174 = vmax.f32 %v142, 0.0
  %v175 = vmax.f32 %v143, 0.0
  %v176 = vmax.f32 %v144, 0.0
  %v177 = vmax.f32 %v145, 0.0
  %v178 = vmax.f32 %v146, 0.0
  %v179 = vmax.f32 %v147, 0.0
  %v180 = vmax.f32 %v148, 0.0
  %v181 = vmax.f32 %v149, 0.0
  %v182 = vpack.c.bf16 %v152, %v150
  %v183 = vpack.c.bf16 %v153, %v151
  %v184 = vpack.c.bf16 %v156, %v154
  %v185 = vpack.c.bf16 %v157, %v155
  %v186 = vpack.c.bf16 %v160, %v158
  %v187 = vpack.c.bf16 %v161, %v159
  %v188 = vpack.c.bf16 %v164, %v162
  %v189 = vpack.c.bf16 %v165, %v163
  %v190 = vpack.c.bf16 %v168, %v166
  %v191 = vpack.c.bf16 %v169, %v167
  %v192 = vpack.c.bf16 %v172, %v170
  %v193 = vpack.c.bf16 %v173, %v171
  %v194 = vpack.c.bf16 %v176, %v174
  %v195 = vpack.c.bf16 %v177, %v175
  %v196 = vpack.c.bf16 %v180, %v178
  %v197 = vpack.c.bf16 %v181, %v179
  %v214 = vunpack.c.l.b16 %v182
  %v215 = vunpack.c.l.b16 %v183
  %v216 = vunpack.c.h.b16 %v182
  %v217 = vunpack.c.h.b16 %v183
  %v218 = vunpack.c.l.b16 %v184
  %v219 = vunpack.c.l.b16 %v185
  %v220 = vunpack.c.h.b16 %v184
  %v221 = vunpack.c.h.b16 %v185
  %v222 = vunpack.c.l.b16 %v186
  %v223 = vunpack.c.l.b16 %v187
  %v224 = vunpack.c.h.b16 %v186
  %v225 = vunpack.c.h.b16 %v187
  %v226 = vunpack.c.l.b16 %v188
  %v227 = vunpack.c.l.b16 %v189
  %v228 = vunpack.c.h.b16 %v188
  %v229 = vunpack.c.h.b16 %v189
  %v230 = vunpack.c.l.b16 %v190
  %v231 = vunpack.c.l.b16 %v191
  %v232 = vunpack.c.h.b16 %v190
  %v233 = vunpack.c.h.b16 %v191
  %v234 = vunpack.c.l.b16 %v192
  %v235 = vunpack.c.l.b16 %v193
  %v236 = vunpack.c.h.b16 %v192
  %v237 = vunpack.c.h.b16 %v193
  %v238 = vunpack.c.l.b16 %v194
  %v239 = vunpack.c.l.b16 %v195
  %v240 = vunpack.c.h.b16 %v194
  %v241 = vunpack.c.h.b16 %v195
  %v242 = vunpack.c.l.b16 %v196
  %v243 = vunpack.c.l.b16 %v197
  %v244 = vunpack.c.h.b16 %v196
  %v245 = vunpack.c.h.b16 %v197
  %v246 = vpack.c.b16 %v215, %v214
  %v247 = vpack.c.b16 %v217, %v216
  %v248 = vpack.c.b16 %v219, %v218
  %v249 = vpack.c.b16 %v221, %v220
  %v250 = vpack.c.b16 %v223, %v222
  %v251 = vpack.c.b16 %v225, %v224
  %v252 = vpack.c.b16 %v227, %v226
  %v253 = vpack.c.b16 %v229, %v228
  %v254 = vpack.c.b16 %v231, %v230
  %v255 = vpack.c.b16 %v233, %v232
  %v256 = vpack.c.b16 %v235, %v234
  %v257 = vpack.c.b16 %v237, %v236
  %v258 = vpack.c.b16 %v239, %v238
  %v259 = vpack.c.b16 %v241, %v240
  %v260 = vpack.c.b16 %v243, %v242
  %v261 = vpack.c.b16 %v245, %v244
  %278 = vst [vmem:[%s3] sm:$0xff] %v246
  %279 = vst [vmem:[%s3 + $0x8] sm:$0xff] %v247
  %280 = vst [vmem:[%s3 + $0x10] sm:$0xff] %v248
  %281 = vst [vmem:[%s3 + $0x18] sm:$0xff] %v249
  %282 = vst [vmem:[%s3 + $0x20] sm:$0xff] %v250
  %283 = vst [vmem:[%s3 + $0x28] sm:$0xff] %v251
  %284 = vst [vmem:[%s3 + $0x30] sm:$0xff] %v252
  %285 = vst [vmem:[%s3 + $0x38] sm:$0xff] %v253
  %286 = vst [vmem:[%s3 + $0x40] sm:$0xff] %v254
  %287 = vst [vmem:[%s3 + $0x48] sm:$0xff] %v255
  %288 = vst [vmem:[%s3 + $0x50] sm:$0xff] %v256
  %289 = vst [vmem:[%s3 + $0x58] sm:$0xff] %v257
  %290 = vst [vmem:[%s3 + $0x60] sm:$0xff] %v258
  %291 = vst [vmem:[%s3 + $0x68] sm:$0xff] %v259
  %292 = vst [vmem:[%s3 + $0x70] sm:$0xff] %v260
  %293 = vst [vmem:[%s3 + $0x78] sm:$0xff] %v261
  // Predicated region
  $region14: #{generator_forward.8} parent=0 // pred_check
    _
  $region15: #{generator_forward.8} parent=0 // pred_check_branch
    %295 = sbr.rel (0) target = $region17
  $region16: #{generator_forward.8} parent=0 // pred_region
    _
  $region17: #{generator_forward.8} parent=0 // pred_fallthru
    _
  // Predicated region
  $region18: #{generator_forward.8} parent=0 // pred_check
    _
  $region19: #{generator_forward.8} parent=0 // pred_check_branch
    %297 = sbr.rel (0) target = $region21
  $region20: #{generator_forward.8} parent=0 // pred_region
    _
  $region21: #{generator_forward.8} parent=0 // pred_fallthru
    _

// kernel: squeeze.136
$region0: #{squeeze.136}
  %s0 = inlined_call_operand.vmem [shape: f32[96], index: 0, kind: input, shape index: {}]
  %s1 = inlined_call_operand.vmem [shape: f32[4,24], index: 1, kind: output, shape index: {}]
  $region1: #{squeeze.136} parent=0
    #allocation0 [shape = 'u8[4096]{0}', space=vmem, size = 0x1000, scoped, tag = 'scoped mem for output reshape']
    #allocation1 [shape = 'u8[4096]{0}', space=vmem, size = 0x1000, scoped, tag = 'scoped mem for input reshape']
    %s3 = sshll.u32 1, 1
    %s4 = ssub.s32 %s3, 1
    %v5 = vld [vmem:[%s0] sm:%s4]
    %6 = vst [vmem:[#allocation1] sm:%s4] %v5
    %v7 = vld [vmem:[#allocation1] sm:$0x1]
    %vm8 = vcmask 195584
    %9 = vst.msk [vmem:[#allocation0] sm:$0x1] %vm8, %v7
    %v10 = vld [vmem:[#allocation1] sm:$0x1]
    %11 = vrot.lane.b32.xlu0 %v10, 104
    %v12 = vpop.permute.xlu0 %11
    %vm13 = vcmask 195584
    %s14 = scalar_lea.vmem [#allocation0], 1
    %15 = vst.msk [vmem:[%s14] sm:$0x1] %vm13, %v12
    %v16 = vld [vmem:[#allocation1] sm:$0x1]
    %17 = vrot.lane.b32.xlu0 %v16, 80
    %v18 = vpop.permute.xlu0 %17
    %vm19 = vcmask 195584
    %s20 = scalar_lea.vmem [#allocation0], 2
    %21 = vst.msk [vmem:[%s20] sm:$0x1] %vm19, %v18
    %v22 = vld [vmem:[#allocation1] sm:$0x1]
    %23 = vrot.lane.b32.xlu0 %v22, 56
    %v24 = vpop.permute.xlu0 %23
    %vm25 = vcmask 195584
    %s26 = scalar_lea.vmem [#allocation0], 3
    %27 = vst.msk [vmem:[%s26] sm:$0x1] %vm25, %v24
    %s29 = sshll.u32 1, 4
    %s30 = ssub.s32 %s29, 1
    %v32 = vld [vmem:[#allocation0] sm:%s30]
    %s33 = sshll.u32 1, 4
    %s34 = ssub.s32 %s33, 1
    %35 = vst [vmem:[%s1] sm:%s34] %v32

// kernel: tile.68
$region0: #{tile.68}
  #allocation0 [shape = 's32[1]{0}', space=sflag, size = 0x4, scoped, tag = 'scoped memory for tile.68']
  %s0 = inlined_call_operand.vmem [shape: f32[24], index: 0, kind: input, shape index: {}]
  %s1 = inlined_call_operand.vmem [shape: f32[4,24], index: 1, kind: output, shape index: {}]
  // Predicated region
  $region2: #{tile.68} parent=0 // pred_check
    _
  $region3: #{tile.68} parent=0 // pred_check_branch
    %3 = sbr.rel (0) target = $region5
  $region4: #{tile.68} parent=0 // pred_region
    _
  $region5: #{tile.68} parent=0 // pred_fallthru
    _
  %v4 = vld [vmem:[%s0] ss:$0 sm:$0xff]
  %5 = vst [vmem:[%s1] sm:$0xf] %v4

// kernel: generator_forward.9
$region0: #{generator_forward.9}
  #allocation0 [shape = 'u32[]', space=smem, size = 0x4, offset = 0x4, fixed_abs, tag = 'smem constant byte address 0x4 - core index']
  #allocation1 [shape = 'u32[144,128]{1,0:T(1,128)}', space=vmem, size = 0x12000, scoped, tag = 'internal scratch']
  %s0 = inlined_call_operand.vmem [shape: bf16[512,512], index: 0, kind: input, shape index: {}]
  %s1 = inlined_call_operand.vmem [shape: bf16[512,128], index: 1, kind: input, shape index: {}]
  %s2 = inlined_call_operand.vmem [shape: bf16[512,128], index: 2, kind: output, shape index: {0}]
  %s3 = inlined_call_operand.vmem [shape: f32[1,128], index: 3, kind: output, shape index: {1}]
  %s4 = inlined_call_operand.vmem [shape: f32[1,128], index: 4, kind: output, shape index: {2}]
  %5 = xla_tuple %s2, %s3, %s4
  %s6 = sld [smem:[#allocation0]]
  $region38: #{generator_forward.9} parent=0
    _
  %s8 = ssub.s32 1, %s6
  %s9 = scalar_select 0, %s8, %s6
  // Predicated region
  $region2: #{generator_forward.9} parent=0 // pred_check
    _
  $region3: #{generator_forward.9} parent=0 // pred_check_branch
    %11 = sbr.rel (0) target = $region5
  $region4: #{generator_forward.9} parent=0 // pred_region
    _
  $region5: #{generator_forward.9} parent=0 // pred_fallthru
    _
  // Predicated region
  $region6: #{generator_forward.9} parent=0 // pred_check
    _
  $region7: #{generator_forward.9} parent=0 // pred_check_branch
    %13 = sbr.rel (0) target = $region9
  $region8: #{generator_forward.9} parent=0 // pred_region
    _
  $region9: #{generator_forward.9} parent=0 // pred_fallthru
    _
  %p15 = scmp.eq.s32.totalorder 0, 0
  // Predicated region
  $region10: #{generator_forward.9} parent=0 // pred_check
    %p16 = pneg %p15
  $region11: #{generator_forward.9} parent=0 // pred_check_branch
    %18 = sbr.rel (%p16) target = $region13
  $region12: #{generator_forward.9} parent=0 // pred_region
    %19 = vst [vmem:[%s3] sm:$0x1] 0.0
    %20 = vst [vmem:[%s4] sm:$0x1] 0.0
  $region13: #{generator_forward.9} parent=0 // pred_fallthru
    _
  %v21 = vld [vmem:[%s0] sm:$0xff]
  %v22 = vld [vmem:[%s0 + $0x8] sm:$0xff]
  %v23 = vld [vmem:[%s0 + $0x10] sm:$0xff]
  %v24 = vld [vmem:[%s0 + $0x18] sm:$0xff]
  %v25 = vld [vmem:[%s0 + $0x20] sm:$0xff]
  %v26 = vld [vmem:[%s0 + $0x28] sm:$0xff]
  %v27 = vld [vmem:[%s0 + $0x30] sm:$0xff]
  %v28 = vld [vmem:[%s0 + $0x38] sm:$0xff]
  %v29 = vld [vmem:[%s0 + $0x40] sm:$0xff]
  %v30 = vld [vmem:[%s0 + $0x48] sm:$0xff]
  %v31 = vld [vmem:[%s0 + $0x50] sm:$0xff]
  %v32 = vld [vmem:[%s0 + $0x58] sm:$0xff]
  %v33 = vld [vmem:[%s0 + $0x60] sm:$0xff]
  %v34 = vld [vmem:[%s0 + $0x68] sm:$0xff]
  %v35 = vld [vmem:[%s0 + $0x70] sm:$0xff]
  %v36 = vld [vmem:[%s0 + $0x78] sm:$0xff]
  %v37 = vld [vmem:[%s0 + $0x80] sm:$0xff]
  %v38 = vld [vmem:[%s0 + $0x88] sm:$0xff]
  %v39 = vld [vmem:[%s0 + $0x90] sm:$0xff]
  %v40 = vld [vmem:[%s0 + $0x98] sm:$0xff]
  %v41 = vld [vmem:[%s0 + $0xa0] sm:$0xff]
  %v42 = vld [vmem:[%s0 + $0xa8] sm:$0xff]
  %v43 = vld [vmem:[%s0 + $0xb0] sm:$0xff]
  %v44 = vld [vmem:[%s0 + $0xb8] sm:$0xff]
  %v45 = vld [vmem:[%s0 + $0xc0] sm:$0xff]
  %v46 = vld [vmem:[%s0 + $0xc8] sm:$0xff]
  %v47 = vld [vmem:[%s0 + $0xd0] sm:$0xff]
  %v48 = vld [vmem:[%s0 + $0xd8] sm:$0xff]
  %v49 = vld [vmem:[%s0 + $0xe0] sm:$0xff]
  %v50 = vld [vmem:[%s0 + $0xe8] sm:$0xff]
  %v51 = vld [vmem:[%s0 + $0xf0] sm:$0xff]
  %v52 = vld [vmem:[%s0 + $0xf8] sm:$0xff]
  %v53 = vld [vmem:[%s0 + $0x100] sm:$0xff]
  %v54 = vld [vmem:[%s0 + $0x108] sm:$0xff]
  %v55 = vld [vmem:[%s0 + $0x110] sm:$0xff]
  %v56 = vld [vmem:[%s0 + $0x118] sm:$0xff]
  %v57 = vld [vmem:[%s0 + $0x120] sm:$0xff]
  %v58 = vld [vmem:[%s0 + $0x128] sm:$0xff]
  %v59 = vld [vmem:[%s0 + $0x130] sm:$0xff]
  %v60 = vld [vmem:[%s0 + $0x138] sm:$0xff]
  %v61 = vld [vmem:[%s0 + $0x140] sm:$0xff]
  %v62 = vld [vmem:[%s0 + $0x148] sm:$0xff]
  %v63 = vld [vmem:[%s0 + $0x150] sm:$0xff]
  %v64 = vld [vmem:[%s0 + $0x158] sm:$0xff]
  %v65 = vld [vmem:[%s0 + $0x160] sm:$0xff]
  %v66 = vld [vmem:[%s0 + $0x168] sm:$0xff]
  %v67 = vld [vmem:[%s0 + $0x170] sm:$0xff]
  %v68 = vld [vmem:[%s0 + $0x178] sm:$0xff]
  %v69 = vld [vmem:[%s0 + $0x180] sm:$0xff]
  %v70 = vld [vmem:[%s0 + $0x188] sm:$0xff]
  %v71 = vld [vmem:[%s0 + $0x190] sm:$0xff]
  %v72 = vld [vmem:[%s0 + $0x198] sm:$0xff]
  %v73 = vld [vmem:[%s0 + $0x1a0] sm:$0xff]
  %v74 = vld [vmem:[%s0 + $0x1a8] sm:$0xff]
  %v75 = vld [vmem:[%s0 + $0x1b0] sm:$0xff]
  %v76 = vld [vmem:[%s0 + $0x1b8] sm:$0xff]
  %v77 = vld [vmem:[%s0 + $0x1c0] sm:$0xff]
  %v78 = vld [vmem:[%s0 + $0x1c8] sm:$0xff]
  %v79 = vld [vmem:[%s0 + $0x1d0] sm:$0xff]
  %v80 = vld [vmem:[%s0 + $0x1d8] sm:$0xff]
  %v81 = vld [vmem:[%s0 + $0x1e0] sm:$0xff]
  %v82 = vld [vmem:[%s0 + $0x1e8] sm:$0xff]
  %v83 = vld [vmem:[%s0 + $0x1f0] sm:$0xff]
  %v84 = vld [vmem:[%s0 + $0x1f8] sm:$0xff]
  %v85 = vld [vmem:[%s0 + $0x200] sm:$0xff]
  %v86 = vld [vmem:[%s0 + $0x208] sm:$0xff]
  %v87 = vld [vmem:[%s0 + $0x210] sm:$0xff]
  %v88 = vld [vmem:[%s0 + $0x218] sm:$0xff]
  %v89 = vld [vmem:[%s0 + $0x220] sm:$0xff]
  %v90 = vld [vmem:[%s0 + $0x228] sm:$0xff]
  %v91 = vld [vmem:[%s0 + $0x230] sm:$0xff]
  %v92 = vld [vmem:[%s0 + $0x238] sm:$0xff]
  %v93 = vld [vmem:[%s0 + $0x240] sm:$0xff]
  %v94 = vld [vmem:[%s0 + $0x248] sm:$0xff]
  %v95 = vld [vmem:[%s0 + $0x250] sm:$0xff]
  %v96 = vld [vmem:[%s0 + $0x258] sm:$0xff]
  %v97 = vld [vmem:[%s0 + $0x260] sm:$0xff]
  %v98 = vld [vmem:[%s0 + $0x268] sm:$0xff]
  %v99 = vld [vmem:[%s0 + $0x270] sm:$0xff]
  %v100 = vld [vmem:[%s0 + $0x278] sm:$0xff]
  %v101 = vld [vmem:[%s0 + $0x280] sm:$0xff]
  %v102 = vld [vmem:[%s0 + $0x288] sm:$0xff]
  %v103 = vld [vmem:[%s0 + $0x290] sm:$0xff]
  %v104 = vld [vmem:[%s0 + $0x298] sm:$0xff]
  %v105 = vld [vmem:[%s0 + $0x2a0] sm:$0xff]
  %v106 = vld [vmem:[%s0 + $0x2a8] sm:$0xff]
  %v107 = vld [vmem:[%s0 + $0x2b0] sm:$0xff]
  %v108 = vld [vmem:[%s0 + $0x2b8] sm:$0xff]
  %v109 = vld [vmem:[%s0 + $0x2c0] sm:$0xff]
  %v110 = vld [vmem:[%s0 + $0x2c8] sm:$0xff]
  %v111 = vld [vmem:[%s0 + $0x2d0] sm:$0xff]
  %v112 = vld [vmem:[%s0 + $0x2d8] sm:$0xff]
  %v113 = vld [vmem:[%s0 + $0x2e0] sm:$0xff]
  %v114 = vld [vmem:[%s0 + $0x2e8] sm:$0xff]
  %v115 = vld [vmem:[%s0 + $0x2f0] sm:$0xff]
  %v116 = vld [vmem:[%s0 + $0x2f8] sm:$0xff]
  %v117 = vld [vmem:[%s0 + $0x300] sm:$0xff]
  %v118 = vld [vmem:[%s0 + $0x308] sm:$0xff]
  %v119 = vld [vmem:[%s0 + $0x310] sm:$0xff]
  %v120 = vld [vmem:[%s0 + $0x318] sm:$0xff]
  %v121 = vld [vmem:[%s0 + $0x320] sm:$0xff]
  %v122 = vld [vmem:[%s0 + $0x328] sm:$0xff]
  %v123 = vld [vmem:[%s0 + $0x330] sm:$0xff]
  %v124 = vld [vmem:[%s0 + $0x338] sm:$0xff]
  %v125 = vld [vmem:[%s0 + $0x340] sm:$0xff]
  %v126 = vld [vmem:[%s0 + $0x348] sm:$0xff]
  %v127 = vld [vmem:[%s0 + $0x350] sm:$0xff]
  %v128 = vld [vmem:[%s0 + $0x358] sm:$0xff]
  %v129 = vld [vmem:[%s0 + $0x360] sm:$0xff]
  %v130 = vld [vmem:[%s0 + $0x368] sm:$0xff]
  %v131 = vld [vmem:[%s0 + $0x370] sm:$0xff]
  %v132 = vld [vmem:[%s0 + $0x378] sm:$0xff]
  %v133 = vld [vmem:[%s0 + $0x380] sm:$0xff]
  %v134 = vld [vmem:[%s0 + $0x388] sm:$0xff]
  %v135 = vld [vmem:[%s0 + $0x390] sm:$0xff]
  %v136 = vld [vmem:[%s0 + $0x398] sm:$0xff]
  %v137 = vld [vmem:[%s0 + $0x3a0] sm:$0xff]
  %v138 = vld [vmem:[%s0 + $0x3a8] sm:$0xff]
  %v139 = vld [vmem:[%s0 + $0x3b0] sm:$0xff]
  %v140 = vld [vmem:[%s0 + $0x3b8] sm:$0xff]
  %v141 = vld [vmem:[%s0 + $0x3c0] sm:$0xff]
  %v142 = vld [vmem:[%s0 + $0x3c8] sm:$0xff]
  %v143 = vld [vmem:[%s0 + $0x3d0] sm:$0xff]
  %v144 = vld [vmem:[%s0 + $0x3d8] sm:$0xff]
  %v145 = vld [vmem:[%s0 + $0x3e0] sm:$0xff]
  %v146 = vld [vmem:[%s0 + $0x3e8] sm:$0xff]
  %v147 = vld [vmem:[%s0 + $0x3f0] sm:$0xff]
  %v148 = vld [vmem:[%s0 + $0x3f8] sm:$0xff]
  %v149 = vld [vmem:[%s1] sm:$0xf]
  %v150 = vld [vmem:[%s1 + $0x4] sm:$0xf]
  %v151 = vld [vmem:[%s1 + $0x8] sm:$0xf]
  %v152 = vld [vmem:[%s1 + $0xc] sm:$0xf]
  %v153 = vld [vmem:[%s1 + $0x10] sm:$0xf]
  %v154 = vld [vmem:[%s1 + $0x14] sm:$0xf]
  %v155 = vld [vmem:[%s1 + $0x18] sm:$0xf]
  %v156 = vld [vmem:[%s1 + $0x1c] sm:$0xf]
  %v157 = vld [vmem:[%s1 + $0x20] sm:$0xf]
  %v158 = vld [vmem:[%s1 + $0x24] sm:$0xf]
  %v159 = vld [vmem:[%s1 + $0x28] sm:$0xf]
  %v160 = vld [vmem:[%s1 + $0x2c] sm:$0xf]
  %v161 = vld [vmem:[%s1 + $0x30] sm:$0xf]
  %v162 = vld [vmem:[%s1 + $0x34] sm:$0xf]
  %v163 = vld [vmem:[%s1 + $0x38] sm:$0xf]
  %v164 = vld [vmem:[%s1 + $0x3c] sm:$0xf]
  %v165 = vld [vmem:[%s1 + $0x40] sm:$0xf]
  %v166 = vld [vmem:[%s1 + $0x44] sm:$0xf]
  %v167 = vld [vmem:[%s1 + $0x48] sm:$0xf]
  %v168 = vld [vmem:[%s1 + $0x4c] sm:$0xf]
  %v169 = vld [vmem:[%s1 + $0x50] sm:$0xf]
  %v170 = vld [vmem:[%s1 + $0x54] sm:$0xf]
  %v171 = vld [vmem:[%s1 + $0x58] sm:$0xf]
  %v172 = vld [vmem:[%s1 + $0x5c] sm:$0xf]
  %v173 = vld [vmem:[%s1 + $0x60] sm:$0xf]
  %v174 = vld [vmem:[%s1 + $0x64] sm:$0xf]
  %v175 = vld [vmem:[%s1 + $0x68] sm:$0xf]
  %v176 = vld [vmem:[%s1 + $0x6c] sm:$0xf]
  %v177 = vld [vmem:[%s1 + $0x70] sm:$0xf]
  %v178 = vld [vmem:[%s1 + $0x74] sm:$0xf]
  %v179 = vld [vmem:[%s1 + $0x78] sm:$0xf]
  %v180 = vld [vmem:[%s1 + $0x7c] sm:$0xf]
  %v181 = vld [vmem:[%s1 + $0x80] sm:$0xf]
  %v182 = vld [vmem:[%s1 + $0x84] sm:$0xf]
  %v183 = vld [vmem:[%s1 + $0x88] sm:$0xf]
  %v184 = vld [vmem:[%s1 + $0x8c] sm:$0xf]
  %v185 = vld [vmem:[%s1 + $0x90] sm:$0xf]
  %v186 = vld [vmem:[%s1 + $0x94] sm:$0xf]
  %v187 = vld [vmem:[%s1 + $0x98] sm:$0xf]
  %v188 = vld [vmem:[%s1 + $0x9c] sm:$0xf]
  %v189 = vld [vmem:[%s1 + $0xa0] sm:$0xf]
  %v190 = vld [vmem:[%s1 + $0xa4] sm:$0xf]
  %v191 = vld [vmem:[%s1 + $0xa8] sm:$0xf]
  %v192 = vld [vmem:[%s1 + $0xac] sm:$0xf]
  %v193 = vld [vmem:[%s1 + $0xb0] sm:$0xf]
  %v194 = vld [vmem:[%s1 + $0xb4] sm:$0xf]
  %v195 = vld [vmem:[%s1 + $0xb8] sm:$0xf]
  %v196 = vld [vmem:[%s1 + $0xbc] sm:$0xf]
  %v197 = vld [vmem:[%s1 + $0xc0] sm:$0xf]
  %v198 = vld [vmem:[%s1 + $0xc4] sm:$0xf]
  %v199 = vld [vmem:[%s1 + $0xc8] sm:$0xf]
  %v200 = vld [vmem:[%s1 + $0xcc] sm:$0xf]
  %v201 = vld [vmem:[%s1 + $0xd0] sm:$0xf]
  %v202 = vld [vmem:[%s1 + $0xd4] sm:$0xf]
  %v203 = vld [vmem:[%s1 + $0xd8] sm:$0xf]
  %v204 = vld [vmem:[%s1 + $0xdc] sm:$0xf]
  %v205 = vld [vmem:[%s1 + $0xe0] sm:$0xf]
  %v206 = vld [vmem:[%s1 + $0xe4] sm:$0xf]
  %v207 = vld [vmem:[%s1 + $0xe8] sm:$0xf]
  %v208 = vld [vmem:[%s1 + $0xec] sm:$0xf]
  %v209 = vld [vmem:[%s1 + $0xf0] sm:$0xf]
  %v210 = vld [vmem:[%s1 + $0xf4] sm:$0xf]
  %v211 = vld [vmem:[%s1 + $0xf8] sm:$0xf]
  %v212 = vld [vmem:[%s1 + $0xfc] sm:$0xf]
  %v341 = vunpack.c.l.b16 %v21
  %v342 = vunpack.c.h.b16 %v21
  %v343 = vunpack.c.l.b16 %v22
  %v344 = vunpack.c.h.b16 %v22
  %v345 = vunpack.c.l.b16 %v23
  %v346 = vunpack.c.h.b16 %v23
  %v347 = vunpack.c.l.b16 %v24
  %v348 = vunpack.c.h.b16 %v24
  %v349 = vunpack.c.l.b16 %v25
  %v350 = vunpack.c.h.b16 %v25
  %v351 = vunpack.c.l.b16 %v26
  %v352 = vunpack.c.h.b16 %v26
  %v353 = vunpack.c.l.b16 %v27
  %v354 = vunpack.c.h.b16 %v27
  %v355 = vunpack.c.l.b16 %v28
  %v356 = vunpack.c.h.b16 %v28
  %v357 = vunpack.c.l.b16 %v29
  %v358 = vunpack.c.h.b16 %v29
  %v359 = vunpack.c.l.b16 %v30
  %v360 = vunpack.c.h.b16 %v30
  %v361 = vunpack.c.l.b16 %v31
  %v362 = vunpack.c.h.b16 %v31
  %v363 = vunpack.c.l.b16 %v32
  %v364 = vunpack.c.h.b16 %v32
  %v365 = vunpack.c.l.b16 %v33
  %v366 = vunpack.c.h.b16 %v33
  %v367 = vunpack.c.l.b16 %v34
  %v368 = vunpack.c.h.b16 %v34
  %v369 = vunpack.c.l.b16 %v35
  %v370 = vunpack.c.h.b16 %v35
  %v371 = vunpack.c.l.b16 %v36
  %v372 = vunpack.c.h.b16 %v36
  %v373 = vunpack.c.l.b16 %v37
  %v374 = vunpack.c.h.b16 %v37
  %v375 = vunpack.c.l.b16 %v38
  %v376 = vunpack.c.h.b16 %v38
  %v377 = vunpack.c.l.b16 %v39
  %v378 = vunpack.c.h.b16 %v39
  %v379 = vunpack.c.l.b16 %v40
  %v380 = vunpack.c.h.b16 %v40
  %v381 = vunpack.c.l.b16 %v41
  %v382 = vunpack.c.h.b16 %v41
  %v383 = vunpack.c.l.b16 %v42
  %v384 = vunpack.c.h.b16 %v42
  %v385 = vunpack.c.l.b16 %v43
  %v386 = vunpack.c.h.b16 %v43
  %v387 = vunpack.c.l.b16 %v44
  %v388 = vunpack.c.h.b16 %v44
  %v389 = vunpack.c.l.b16 %v45
  %v390 = vunpack.c.h.b16 %v45
  %v391 = vunpack.c.l.b16 %v46
  %v392 = vunpack.c.h.b16 %v46
  %v393 = vunpack.c.l.b16 %v47
  %v394 = vunpack.c.h.b16 %v47
  %v395 = vunpack.c.l.b16 %v48
  %v396 = vunpack.c.h.b16 %v48
  %v397 = vunpack.c.l.b16 %v49
  %v398 = vunpack.c.h.b16 %v49
  %v399 = vunpack.c.l.b16 %v50
  %v400 = vunpack.c.h.b16 %v50
  %v401 = vunpack.c.l.b16 %v51
  %v402 = vunpack.c.h.b16 %v51
  %v403 = vunpack.c.l.b16 %v52
  %v404 = vunpack.c.h.b16 %v52
  %v405 = vunpack.c.l.b16 %v53
  %v406 = vunpack.c.h.b16 %v53
  %v407 = vunpack.c.l.b16 %v54
  %v408 = vunpack.c.h.b16 %v54
  %v409 = vunpack.c.l.b16 %v55
  %v410 = vunpack.c.h.b16 %v55
  %v411 = vunpack.c.l.b16 %v56
  %v412 = vunpack.c.h.b16 %v56
  %v413 = vunpack.c.l.b16 %v57
  %v414 = vunpack.c.h.b16 %v57
  %v415 = vunpack.c.l.b16 %v58
  %v416 = vunpack.c.h.b16 %v58
  %v417 = vunpack.c.l.b16 %v59
  %v418 = vunpack.c.h.b16 %v59
  %v419 = vunpack.c.l.b16 %v60
  %v420 = vunpack.c.h.b16 %v60
  %v421 = vunpack.c.l.b16 %v61
  %v422 = vunpack.c.h.b16 %v61
  %v423 = vunpack.c.l.b16 %v62
  %v424 = vunpack.c.h.b16 %v62
  %v425 = vunpack.c.l.b16 %v63
  %v426 = vunpack.c.h.b16 %v63
  %v427 = vunpack.c.l.b16 %v64
  %v428 = vunpack.c.h.b16 %v64
  %v429 = vunpack.c.l.b16 %v65
  %v430 = vunpack.c.h.b16 %v65
  %v431 = vunpack.c.l.b16 %v66
  %v432 = vunpack.c.h.b16 %v66
  %v433 = vunpack.c.l.b16 %v67
  %v434 = vunpack.c.h.b16 %v67
  %v435 = vunpack.c.l.b16 %v68
  %v436 = vunpack.c.h.b16 %v68
  %v437 = vunpack.c.l.b16 %v69
  %v438 = vunpack.c.h.b16 %v69
  %v439 = vunpack.c.l.b16 %v70
  %v440 = vunpack.c.h.b16 %v70
  %v441 = vunpack.c.l.b16 %v71
  %v442 = vunpack.c.h.b16 %v71
  %v443 = vunpack.c.l.b16 %v72
  %v444 = vunpack.c.h.b16 %v72
  %v445 = vunpack.c.l.b16 %v73
  %v446 = vunpack.c.h.b16 %v73
  %v447 = vunpack.c.l.b16 %v74
  %v448 = vunpack.c.h.b16 %v74
  %v449 = vunpack.c.l.b16 %v75
  %v450 = vunpack.c.h.b16 %v75
  %v451 = vunpack.c.l.b16 %v76
  %v452 = vunpack.c.h.b16 %v76
  %v453 = vunpack.c.l.b16 %v77
  %v454 = vunpack.c.h.b16 %v77
  %v455 = vunpack.c.l.b16 %v78
  %v456 = vunpack.c.h.b16 %v78
  %v457 = vunpack.c.l.b16 %v79
  %v458 = vunpack.c.h.b16 %v79
  %v459 = vunpack.c.l.b16 %v80
  %v460 = vunpack.c.h.b16 %v80
  %v461 = vunpack.c.l.b16 %v81
  %v462 = vunpack.c.h.b16 %v81
  %v463 = vunpack.c.l.b16 %v82
  %v464 = vunpack.c.h.b16 %v82
  %v465 = vunpack.c.l.b16 %v83
  %v466 = vunpack.c.h.b16 %v83
  %v467 = vunpack.c.l.b16 %v84
  %v468 = vunpack.c.h.b16 %v84
  %v469 = vunpack.c.l.b16 %v85
  %v470 = vunpack.c.h.b16 %v85
  %v471 = vunpack.c.l.b16 %v86
  %v472 = vunpack.c.h.b16 %v86
  %v473 = vunpack.c.l.b16 %v87
  %v474 = vunpack.c.h.b16 %v87
  %v475 = vunpack.c.l.b16 %v88
  %v476 = vunpack.c.h.b16 %v88
  %v477 = vunpack.c.l.b16 %v89
  %v478 = vunpack.c.h.b16 %v89
  %v479 = vunpack.c.l.b16 %v90
  %v480 = vunpack.c.h.b16 %v90
  %v481 = vunpack.c.l.b16 %v91
  %v482 = vunpack.c.h.b16 %v91
  %v483 = vunpack.c.l.b16 %v92
  %v484 = vunpack.c.h.b16 %v92
  %v485 = vunpack.c.l.b16 %v93
  %v486 = vunpack.c.h.b16 %v93
  %v487 = vunpack.c.l.b16 %v94
  %v488 = vunpack.c.h.b16 %v94
  %v489 = vunpack.c.l.b16 %v95
  %v490 = vunpack.c.h.b16 %v95
  %v491 = vunpack.c.l.b16 %v96
  %v492 = vunpack.c.h.b16 %v96
  %v493 = vunpack.c.l.b16 %v97
  %v494 = vunpack.c.h.b16 %v97
  %v495 = vunpack.c.l.b16 %v98
  %v496 = vunpack.c.h.b16 %v98
  %v497 = vunpack.c.l.b16 %v99
  %v498 = vunpack.c.h.b16 %v99
  %v499 = vunpack.c.l.b16 %v100
  %v500 = vunpack.c.h.b16 %v100
  %v501 = vunpack.c.l.b16 %v101
  %v502 = vunpack.c.h.b16 %v101
  %v503 = vunpack.c.l.b16 %v102
  %v504 = vunpack.c.h.b16 %v102
  %v505 = vunpack.c.l.b16 %v103
  %v506 = vunpack.c.h.b16 %v103
  %v507 = vunpack.c.l.b16 %v104
  %v508 = vunpack.c.h.b16 %v104
  %v509 = vunpack.c.l.b16 %v105
  %v510 = vunpack.c.h.b16 %v105
  %v511 = vunpack.c.l.b16 %v106
  %v512 = vunpack.c.h.b16 %v106
  %v513 = vunpack.c.l.b16 %v107
  %v514 = vunpack.c.h.b16 %v107
  %v515 = vunpack.c.l.b16 %v108
  %v516 = vunpack.c.h.b16 %v108
  %v517 = vunpack.c.l.b16 %v109
  %v518 = vunpack.c.h.b16 %v109
  %v519 = vunpack.c.l.b16 %v110
  %v520 = vunpack.c.h.b16 %v110
  %v521 = vunpack.c.l.b16 %v111
  %v522 = vunpack.c.h.b16 %v111
  %v523 = vunpack.c.l.b16 %v112
  %v524 = vunpack.c.h.b16 %v112
  %v525 = vunpack.c.l.b16 %v113
  %v526 = vunpack.c.h.b16 %v113
  %v527 = vunpack.c.l.b16 %v114
  %v528 = vunpack.c.h.b16 %v114
  %v529 = vunpack.c.l.b16 %v115
  %v530 = vunpack.c.h.b16 %v115
  %v531 = vunpack.c.l.b16 %v116
  %v532 = vunpack.c.h.b16 %v116
  %v533 = vunpack.c.l.b16 %v117
  %v534 = vunpack.c.h.b16 %v117
  %v535 = vunpack.c.l.b16 %v118
  %v536 = vunpack.c.h.b16 %v118
  %v537 = vunpack.c.l.b16 %v119
  %v538 = vunpack.c.h.b16 %v119
  %v539 = vunpack.c.l.b16 %v120
  %v540 = vunpack.c.h.b16 %v120
  %v541 = vunpack.c.l.b16 %v121
  %v542 = vunpack.c.h.b16 %v121
  %v543 = vunpack.c.l.b16 %v122
  %v544 = vunpack.c.h.b16 %v122
  %v545 = vunpack.c.l.b16 %v123
  %v546 = vunpack.c.h.b16 %v123
  %v547 = vunpack.c.l.b16 %v124
  %v548 = vunpack.c.h.b16 %v124
  %v549 = vunpack.c.l.b16 %v125
  %v550 = vunpack.c.h.b16 %v125
  %v551 = vunpack.c.l.b16 %v126
  %v552 = vunpack.c.h.b16 %v126
  %v553 = vunpack.c.l.b16 %v127
  %v554 = vunpack.c.h.b16 %v127
  %v555 = vunpack.c.l.b16 %v128
  %v556 = vunpack.c.h.b16 %v128
  %v557 = vunpack.c.l.b16 %v129
  %v558 = vunpack.c.h.b16 %v129
  %v559 = vunpack.c.l.b16 %v130
  %v560 = vunpack.c.h.b16 %v130
  %v561 = vunpack.c.l.b16 %v131
  %v562 = vunpack.c.h.b16 %v131
  %v563 = vunpack.c.l.b16 %v132
  %v564 = vunpack.c.h.b16 %v132
  %v565 = vunpack.c.l.b16 %v133
  %v566 = vunpack.c.h.b16 %v133
  %v567 = vunpack.c.l.b16 %v134
  %v568 = vunpack.c.h.b16 %v134
  %v569 = vunpack.c.l.b16 %v135
  %v570 = vunpack.c.h.b16 %v135
  %v571 = vunpack.c.l.b16 %v136
  %v572 = vunpack.c.h.b16 %v136
  %v573 = vunpack.c.l.b16 %v137
  %v574 = vunpack.c.h.b16 %v137
  %v575 = vunpack.c.l.b16 %v138
  %v576 = vunpack.c.h.b16 %v138
  %v577 = vunpack.c.l.b16 %v139
  %v578 = vunpack.c.h.b16 %v139
  %v579 = vunpack.c.l.b16 %v140
  %v580 = vunpack.c.h.b16 %v140
  %v581 = vunpack.c.l.b16 %v141
  %v582 = vunpack.c.h.b16 %v141
  %v583 = vunpack.c.l.b16 %v142
  %v584 = vunpack.c.h.b16 %v142
  %v585 = vunpack.c.l.b16 %v143
  %v586 = vunpack.c.h.b16 %v143
  %v587 = vunpack.c.l.b16 %v144
  %v588 = vunpack.c.h.b16 %v144
  %v589 = vunpack.c.l.b16 %v145
  %v590 = vunpack.c.h.b16 %v145
  %v591 = vunpack.c.l.b16 %v146
  %v592 = vunpack.c.h.b16 %v146
  %v593 = vunpack.c.l.b16 %v147
  %v594 = vunpack.c.h.b16 %v147
  %v595 = vunpack.c.l.b16 %v148
  %v596 = vunpack.c.h.b16 %v148
  %v597 = vpack.c.b16 %v345, %v341
  %v598 = vpack.c.b16 %v346, %v342
  %v599 = vpack.c.b16 %v347, %v343
  %v600 = vpack.c.b16 %v348, %v344
  %v601 = vpack.c.b16 %v353, %v349
  %v602 = vpack.c.b16 %v354, %v350
  %v603 = vpack.c.b16 %v355, %v351
  %v604 = vpack.c.b16 %v356, %v352
  %v605 = vpack.c.b16 %v361, %v357
  %v606 = vpack.c.b16 %v362, %v358
  %v607 = vpack.c.b16 %v363, %v359
  %v608 = vpack.c.b16 %v364, %v360
  %v609 = vpack.c.b16 %v369, %v365
  %v610 = vpack.c.b16 %v370, %v366
  %v611 = vpack.c.b16 %v371, %v367
  %v612 = vpack.c.b16 %v372, %v368
  %v613 = vpack.c.b16 %v377, %v373
  %v614 = vpack.c.b16 %v378, %v374
  %v615 = vpack.c.b16 %v379, %v375
  %v616 = vpack.c.b16 %v380, %v376
  %v617 = vpack.c.b16 %v385, %v381
  %v618 = vpack.c.b16 %v386, %v382
  %v619 = vpack.c.b16 %v387, %v383
  %v620 = vpack.c.b16 %v388, %v384
  %v621 = vpack.c.b16 %v393, %v389
  %v622 = vpack.c.b16 %v394, %v390
  %v623 = vpack.c.b16 %v395, %v391
  %v624 = vpack.c.b16 %v396, %v392
  %v625 = vpack.c.b16 %v401, %v397
  %v626 = vpack.c.b16 %v402, %v398
  %v627 = vpack.c.b16 %v403, %v399
  %v628 = vpack.c.b16 %v404, %v400
  %v629 = vpack.c.b16 %v409, %v405
  %v630 = vpack.c.b16 %v410, %v406
  %v631 = vpack.c.b16 %v411, %v407
  %v632 = vpack.c.b16 %v412, %v408
  %v633 = vpack.c.b16 %v417, %v413
  %v634 = vpack.c.b16 %v418, %v414
  %v635 = vpack.c.b16 %v419, %v415
  %v636 = vpack.c.b16 %v420, %v416
  %v637 = vpack.c.b16 %v425, %v421
  %v638 = vpack.c.b16 %v426, %v422
  %v639 = vpack.c.b16 %v427, %v423
  %v640 = vpack.c.b16 %v428, %v424
  %v641 = vpack.c.b16 %v433, %v429
  %v642 = vpack.c.b16 %v434, %v430
  %v643 = vpack.c.b16 %v435, %v431
  %v644 = vpack.c.b16 %v436, %v432
  %v645 = vpack.c.b16 %v441, %v437
  %v646 = vpack.c.b16 %v442, %v438
  %v647 = vpack.c.b16 %v443, %v439
  %v648 = vpack.c.b16 %v444, %v440
  %v649 = vpack.c.b16 %v449, %v445
  %v650 = vpack.c.b16 %v450, %v446
  %v651 = vpack.c.b16 %v451, %v447
  %v652 = vpack.c.b16 %v452, %v448
  %v653 = vpack.c.b16 %v457, %v453
  %v654 = vpack.c.b16 %v458, %v454
  %v655 = vpack.c.b16 %v459, %v455
  %v656 = vpack.c.b16 %v460, %v456
  %v657 = vpack.c.b16 %v465, %v461
  %v658 = vpack.c.b16 %v466, %v462
  %v659 = vpack.c.b16 %v467, %v463
  %v660 = vpack.c.b16 %v468, %v464
  %v661 = vpack.c.b16 %v473, %v469
  %v662 = vpack.c.b16 %v474, %v470
  %v663 = vpack.c.b16 %v475, %v471
  %v664 = vpack.c.b16 %v476, %v472
  %v665 = vpack.c.b16 %v481, %v477
  %v666 = vpack.c.b16 %v482, %v478
  %v667 = vpack.c.b16 %v483, %v479
  %v668 = vpack.c.b16 %v484, %v480
  %v669 = vpack.c.b16 %v489, %v485
  %v670 = vpack.c.b16 %v490, %v486
  %v671 = vpack.c.b16 %v491, %v487
  %v672 = vpack.c.b16 %v492, %v488
  %v673 = vpack.c.b16 %v497, %v493
  %v674 = vpack.c.b16 %v498, %v494
  %v675 = vpack.c.b16 %v499, %v495
  %v676 = vpack.c.b16 %v500, %v496
  %v677 = vpack.c.b16 %v505, %v501
  %v678 = vpack.c.b16 %v506, %v502
  %v679 = vpack.c.b16 %v507, %v503
  %v680 = vpack.c.b16 %v508, %v504
  %v681 = vpack.c.b16 %v513, %v509
  %v682 = vpack.c.b16 %v514, %v510
  %v683 = vpack.c.b16 %v515, %v511
  %v684 = vpack.c.b16 %v516, %v512
  %v685 = vpack.c.b16 %v521, %v517
  %v686 = vpack.c.b16 %v522, %v518
  %v687 = vpack.c.b16 %v523, %v519
  %v688 = vpack.c.b16 %v524, %v520
  %v689 = vpack.c.b16 %v529, %v525
  %v690 = vpack.c.b16 %v530, %v526
  %v691 = vpack.c.b16 %v531, %v527
  %v692 = vpack.c.b16 %v532, %v528
  %v693 = vpack.c.b16 %v537, %v533
  %v694 = vpack.c.b16 %v538, %v534
  %v695 = vpack.c.b16 %v539, %v535
  %v696 = vpack.c.b16 %v540, %v536
  %v697 = vpack.c.b16 %v545, %v541
  %v698 = vpack.c.b16 %v546, %v542
  %v699 = vpack.c.b16 %v547, %v543
  %v700 = vpack.c.b16 %v548, %v544
  %v701 = vpack.c.b16 %v553, %v549
  %v702 = vpack.c.b16 %v554, %v550
  %v703 = vpack.c.b16 %v555, %v551
  %v704 = vpack.c.b16 %v556, %v552
  %v705 = vpack.c.b16 %v561, %v557
  %v706 = vpack.c.b16 %v562, %v558
  %v707 = vpack.c.b16 %v563, %v559
  %v708 = vpack.c.b16 %v564, %v560
  %v709 = vpack.c.b16 %v569, %v565
  %v710 = vpack.c.b16 %v570, %v566
  %v711 = vpack.c.b16 %v571, %v567
  %v712 = vpack.c.b16 %v572, %v568
  %v713 = vpack.c.b16 %v577, %v573
  %v714 = vpack.c.b16 %v578, %v574
  %v715 = vpack.c.b16 %v579, %v575
  %v716 = vpack.c.b16 %v580, %v576
  %v717 = vpack.c.b16 %v585, %v581
  %v718 = vpack.c.b16 %v586, %v582
  %v719 = vpack.c.b16 %v587, %v583
  %v720 = vpack.c.b16 %v588, %v584
  %v721 = vpack.c.b16 %v593, %v589
  %v722 = vpack.c.b16 %v594, %v590
  %v723 = vpack.c.b16 %v595, %v591
  %v724 = vpack.c.b16 %v596, %v592
  %v917 = vunpack.c.l.b16 %v149
  %v918 = vunpack.c.l.b16 %v150
  %v919 = vunpack.c.l.b16 %v151
  %v920 = vunpack.c.l.b16 %v152
  %v921 = vunpack.c.l.b16 %v153
  %v922 = vunpack.c.l.b16 %v154
  %v923 = vunpack.c.l.b16 %v155
  %v924 = vunpack.c.l.b16 %v156
  %v925 = vunpack.c.l.b16 %v157
  %v926 = vunpack.c.l.b16 %v158
  %v927 = vunpack.c.l.b16 %v159
  %v928 = vunpack.c.l.b16 %v160
  %v929 = vunpack.c.l.b16 %v161
  %v930 = vunpack.c.l.b16 %v162
  %v931 = vunpack.c.l.b16 %v163
  %v932 = vunpack.c.l.b16 %v164
  %v933 = vunpack.c.l.b16 %v165
  %v934 = vunpack.c.l.b16 %v166
  %v935 = vunpack.c.l.b16 %v167
  %v936 = vunpack.c.l.b16 %v168
  %v937 = vunpack.c.l.b16 %v169
  %v938 = vunpack.c.l.b16 %v170
  %v939 = vunpack.c.l.b16 %v171
  %v940 = vunpack.c.l.b16 %v172
  %v941 = vunpack.c.l.b16 %v173
  %v942 = vunpack.c.l.b16 %v174
  %v943 = vunpack.c.l.b16 %v175
  %v944 = vunpack.c.l.b16 %v176
  %v945 = vunpack.c.l.b16 %v177
  %v946 = vunpack.c.l.b16 %v178
  %v947 = vunpack.c.l.b16 %v179
  %v948 = vunpack.c.l.b16 %v180
  %v949 = vunpack.c.l.b16 %v181
  %v950 = vunpack.c.l.b16 %v182
  %v951 = vunpack.c.l.b16 %v183
  %v952 = vunpack.c.l.b16 %v184
  %v953 = vunpack.c.l.b16 %v185
  %v954 = vunpack.c.l.b16 %v186
  %v955 = vunpack.c.l.b16 %v187
  %v956 = vunpack.c.l.b16 %v188
  %v957 = vunpack.c.l.b16 %v189
  %v958 = vunpack.c.l.b16 %v190
  %v959 = vunpack.c.l.b16 %v191
  %v960 = vunpack.c.l.b16 %v192
  %v961 = vunpack.c.l.b16 %v193
  %v962 = vunpack.c.l.b16 %v194
  %v963 = vunpack.c.l.b16 %v195
  %v964 = vunpack.c.l.b16 %v196
  %v965 = vunpack.c.l.b16 %v197
  %v966 = vunpack.c.l.b16 %v198
  %v967 = vunpack.c.l.b16 %v199
  %v968 = vunpack.c.l.b16 %v200
  %v969 = vunpack.c.l.b16 %v201
  %v970 = vunpack.c.l.b16 %v202
  %v971 = vunpack.c.l.b16 %v203
  %v972 = vunpack.c.l.b16 %v204
  %v973 = vunpack.c.l.b16 %v205
  %v974 = vunpack.c.l.b16 %v206
  %v975 = vunpack.c.l.b16 %v207
  %v976 = vunpack.c.l.b16 %v208
  %v977 = vunpack.c.l.b16 %v209
  %v978 = vunpack.c.l.b16 %v210
  %v979 = vunpack.c.l.b16 %v211
  %v980 = vunpack.c.l.b16 %v212
  %v981 = vpack.c.b16 %v918, %v917
  %v982 = vpack.c.b16 %v920, %v919
  %v983 = vpack.c.b16 %v922, %v921
  %v984 = vpack.c.b16 %v924, %v923
  %v985 = vpack.c.b16 %v926, %v925
  %v986 = vpack.c.b16 %v928, %v927
  %v987 = vpack.c.b16 %v930, %v929
  %v988 = vpack.c.b16 %v932, %v931
  %v989 = vpack.c.b16 %v934, %v933
  %v990 = vpack.c.b16 %v936, %v935
  %v991 = vpack.c.b16 %v938, %v937
  %v992 = vpack.c.b16 %v940, %v939
  %v993 = vpack.c.b16 %v942, %v941
  %v994 = vpack.c.b16 %v944, %v943
  %v995 = vpack.c.b16 %v946, %v945
  %v996 = vpack.c.b16 %v948, %v947
  %v997 = vpack.c.b16 %v950, %v949
  %v998 = vpack.c.b16 %v952, %v951
  %v999 = vpack.c.b16 %v954, %v953
  %v1000 = vpack.c.b16 %v956, %v955
  %v1001 = vpack.c.b16 %v958, %v957
  %v1002 = vpack.c.b16 %v960, %v959
  %v1003 = vpack.c.b16 %v962, %v961
  %v1004 = vpack.c.b16 %v964, %v963
  %v1005 = vpack.c.b16 %v966, %v965
  %v1006 = vpack.c.b16 %v968, %v967
  %v1007 = vpack.c.b16 %v970, %v969
  %v1008 = vpack.c.b16 %v972, %v971
  %v1009 = vpack.c.b16 %v974, %v973
  %v1010 = vpack.c.b16 %v976, %v975
  %v1011 = vpack.c.b16 %v978, %v977
  %v1012 = vpack.c.b16 %v980, %v979
  %1045 = vmatprep.subr.bf16.mxu0 0
  %1046 = vmatpush1.bf16.msra.mxu0 %v988
  %1047 = vmatprep.subr.bf16.mxu0 0
  %1048 = vmatpush1.bf16.msra.mxu0 %v987
  %1049 = vmatprep.subr.bf16.mxu0 0
  %1050 = vmatpush1.bf16.msra.mxu0 %v986
  %1051 = vmatprep.subr.bf16.mxu0 0
  %1052 = vmatpush1.bf16.msra.mxu0 %v985
  %1053 = vmatprep.subr.bf16.mxu0 0
  %1054 = vmatpush1.bf16.msra.mxu0 %v984
  %1055 = vmatprep.subr.bf16.mxu0 0
  %1056 = vmatpush1.bf16.msra.mxu0 %v983
  %1057 = vmatprep.subr.bf16.mxu0 0
  %1058 = vmatpush1.bf16.msra.mxu0 %v982
  %1059 = vmatprep.subr.bf16.mxu0 0
  %1060 = vmatpush1.bf16.msra.mxu0 %v981
  %1061 = vmatprep.subr.bf16.mxu0 0
  %1062 = vmatpush2.bf16.msra.mxu0 %v996
  %1063 = vmatprep.subr.bf16.mxu0 0
  %1064 = vmatpush2.bf16.msra.mxu0 %v995
  %1065 = vmatprep.subr.bf16.mxu0 0
  %1066 = vmatpush2.bf16.msra.mxu0 %v994
  %1067 = vmatprep.subr.bf16.mxu0 0
  %1068 = vmatpush2.bf16.msra.mxu0 %v993
  %1069 = vmatprep.subr.bf16.mxu0 0
  %1070 = vmatpush2.bf16.msra.mxu0 %v992
  %1071 = vmatprep.subr.bf16.mxu0 0
  %1072 = vmatpush2.bf16.msra.mxu0 %v991
  %1073 = vmatprep.subr.bf16.mxu0 0
  %1074 = vmatpush2.bf16.msra.mxu0 %v990
  %1075 = vmatprep.subr.bf16.mxu0 0
  %1076 = vmatpush2.bf16.msra.mxu0 %v989
  %1077 = vmatprep.mubr.bf16.mxu0 %v598
  %1078 = vmatmul.mubr.bf16.gmra.mxu0 %v597
  %v1079 = vpop.f32.mrf.mxu0
  %v1080 = vadd.f32 0.0, %v1079
  %v1081 = vpop.f32.mrf.mxu0
  %v1082 = vpop.f32.mrf.mxu0
  %v1083 = vadd.f32 0.0, %v1082
  %v1084 = vpop.f32.mrf.mxu0
  %1085 = vmatprep.mubr.bf16.mxu0 %v602
  %1086 = vmatmul.mubr.bf16.gmra.mxu0 %v601
  %v1087 = vpop.f32.mrf.mxu0
  %v1088 = vadd.f32 0.0, %v1087
  %v1089 = vpop.f32.mrf.mxu0
  %v1090 = vpop.f32.mrf.mxu0
  %v1091 = vadd.f32 0.0, %v1090
  %v1092 = vpop.f32.mrf.mxu0
  %1093 = vmatprep.mubr.bf16.mxu0 %v606
  %1094 = vmatmul.mubr.bf16.gmra.mxu0 %v605
  %v1095 = vpop.f32.mrf.mxu0
  %v1096 = vadd.f32 0.0, %v1095
  %v1097 = vpop.f32.mrf.mxu0
  %v1098 = vpop.f32.mrf.mxu0
  %v1099 = vadd.f32 0.0, %v1098
  %v1100 = vpop.f32.mrf.mxu0
  %1101 = vmatprep.mubr.bf16.mxu0 %v610
  %1102 = vmatmul.mubr.bf16.gmra.mxu0 %v609
  %v1103 = vpop.f32.mrf.mxu0
  %v1104 = vadd.f32 0.0, %v1103
  %v1105 = vpop.f32.mrf.mxu0
  %v1106 = vpop.f32.mrf.mxu0
  %v1107 = vadd.f32 0.0, %v1106
  %v1108 = vpop.f32.mrf.mxu0
  %1109 = vmatprep.mubr.bf16.mxu0 %v614
  %1110 = vmatmul.mubr.bf16.gmra.mxu0 %v613
  %v1111 = vpop.f32.mrf.mxu0
  %v1112 = vadd.f32 0.0, %v1111
  %v1113 = vpop.f32.mrf.mxu0
  %v1114 = vpop.f32.mrf.mxu0
  %v1115 = vadd.f32 0.0, %v1114
  %v1116 = vpop.f32.mrf.mxu0
  %1117 = vmatprep.mubr.bf16.mxu0 %v618
  %1118 = vmatmul.mubr.bf16.gmra.mxu0 %v617
  %v1119 = vpop.f32.mrf.mxu0
  %v1120 = vadd.f32 0.0, %v1119
  %v1121 = vpop.f32.mrf.mxu0
  %v1122 = vpop.f32.mrf.mxu0
  %v1123 = vadd.f32 0.0, %v1122
  %v1124 = vpop.f32.mrf.mxu0
  %1125 = vmatprep.mubr.bf16.mxu0 %v622
  %1126 = vmatmul.mubr.bf16.gmra.mxu0 %v621
  %v1127 = vpop.f32.mrf.mxu0
  %v1128 = vadd.f32 0.0, %v1127
  %v1129 = vpop.f32.mrf.mxu0
  %v1130 = vpop.f32.mrf.mxu0
  %v1131 = vadd.f32 0.0, %v1130
  %v1132 = vpop.f32.mrf.mxu0
  %1133 = vmatprep.mubr.bf16.mxu0 %v626
  %1134 = vmatmul.mubr.bf16.gmra.mxu0 %v625
  %v1135 = vpop.f32.mrf.mxu0
  %v1136 = vadd.f32 0.0, %v1135
  %v1137 = vpop.f32.mrf.mxu0
  %v1138 = vpop.f32.mrf.mxu0
  %v1139 = vadd.f32 0.0, %v1138
  %v1140 = vpop.f32.mrf.mxu0
  %1141 = vmatprep.mubr.bf16.mxu0 %v630
  %1142 = vmatmul.mubr.bf16.gmra.mxu0 %v629
  %v1143 = vpop.f32.mrf.mxu0
  %v1144 = vadd.f32 0.0, %v1143
  %v1145 = vpop.f32.mrf.mxu0
  %v1146 = vpop.f32.mrf.mxu0
  %v1147 = vadd.f32 0.0, %v1146
  %v1148 = vpop.f32.mrf.mxu0
  %1149 = vmatprep.mubr.bf16.mxu0 %v634
  %1150 = vmatmul.mubr.bf16.gmra.mxu0 %v633
  %v1151 = vpop.f32.mrf.mxu0
  %v1152 = vadd.f32 0.0, %v1151
  %v1153 = vpop.f32.mrf.mxu0
  %v1154 = vpop.f32.mrf.mxu0
  %v1155 = vadd.f32 0.0, %v1154
  %v1156 = vpop.f32.mrf.mxu0
  %1157 = vmatprep.mubr.bf16.mxu0 %v638
  %1158 = vmatmul.mubr.bf16.gmra.mxu0 %v637
  %v1159 = vpop.f32.mrf.mxu0
  %v1160 = vadd.f32 0.0, %v1159
  %v1161 = vpop.f32.mrf.mxu0
  %v1162 = vpop.f32.mrf.mxu0
  %v1163 = vadd.f32 0.0, %v1162
  %v1164 = vpop.f32.mrf.mxu0
  %1165 = vmatprep.mubr.bf16.mxu0 %v642
  %1166 = vmatmul.mubr.bf16.gmra.mxu0 %v641
  %v1167 = vpop.f32.mrf.mxu0
  %v1168 = vadd.f32 0.0, %v1167
  %v1169 = vpop.f32.mrf.mxu0
  %v1170 = vpop.f32.mrf.mxu0
  %v1171 = vadd.f32 0.0, %v1170
  %v1172 = vpop.f32.mrf.mxu0
  %1173 = vmatprep.mubr.bf16.mxu0 %v646
  %1174 = vmatmul.mubr.bf16.gmra.mxu0 %v645
  %v1175 = vpop.f32.mrf.mxu0
  %v1176 = vadd.f32 0.0, %v1175
  %v1177 = vpop.f32.mrf.mxu0
  %v1178 = vpop.f32.mrf.mxu0
  %v1179 = vadd.f32 0.0, %v1178
  %v1180 = vpop.f32.mrf.mxu0
  %1181 = vmatprep.mubr.bf16.mxu0 %v650
  %1182 = vmatmul.mubr.bf16.gmra.mxu0 %v649
  %v1183 = vpop.f32.mrf.mxu0
  %v1184 = vadd.f32 0.0, %v1183
  %v1185 = vpop.f32.mrf.mxu0
  %v1186 = vpop.f32.mrf.mxu0
  %v1187 = vadd.f32 0.0, %v1186
  %v1188 = vpop.f32.mrf.mxu0
  %1189 = vmatprep.mubr.bf16.mxu0 %v654
  %1190 = vmatmul.mubr.bf16.gmra.mxu0 %v653
  %v1191 = vpop.f32.mrf.mxu0
  %v1192 = vadd.f32 0.0, %v1191
  %v1193 = vpop.f32.mrf.mxu0
  %v1194 = vpop.f32.mrf.mxu0
  %v1195 = vadd.f32 0.0, %v1194
  %v1196 = vpop.f32.mrf.mxu0
  %1197 = vmatprep.mubr.bf16.mxu0 %v658
  %1198 = vmatmul.mubr.bf16.gmra.mxu0 %v657
  %v1199 = vpop.f32.mrf.mxu0
  %v1200 = vadd.f32 0.0, %v1199
  %v1201 = vpop.f32.mrf.mxu0
  %v1202 = vpop.f32.mrf.mxu0
  %v1203 = vadd.f32 0.0, %v1202
  %v1204 = vpop.f32.mrf.mxu0
  %1205 = vmatprep.mubr.bf16.mxu0 %v662
  %1206 = vmatmul.mubr.bf16.gmra.mxu0 %v661
  %v1207 = vpop.f32.mrf.mxu0
  %v1208 = vadd.f32 0.0, %v1207
  %v1209 = vpop.f32.mrf.mxu0
  %v1210 = vpop.f32.mrf.mxu0
  %v1211 = vadd.f32 0.0, %v1210
  %v1212 = vpop.f32.mrf.mxu0
  %1213 = vmatprep.mubr.bf16.mxu0 %v666
  %1214 = vmatmul.mubr.bf16.gmra.mxu0 %v665
  %v1215 = vpop.f32.mrf.mxu0
  %v1216 = vadd.f32 0.0, %v1215
  %v1217 = vpop.f32.mrf.mxu0
  %v1218 = vpop.f32.mrf.mxu0
  %v1219 = vadd.f32 0.0, %v1218
  %v1220 = vpop.f32.mrf.mxu0
  %1221 = vmatprep.mubr.bf16.mxu0 %v670
  %1222 = vmatmul.mubr.bf16.gmra.mxu0 %v669
  %v1223 = vpop.f32.mrf.mxu0
  %v1224 = vadd.f32 0.0, %v1223
  %v1225 = vpop.f32.mrf.mxu0
  %v1226 = vpop.f32.mrf.mxu0
  %v1227 = vadd.f32 0.0, %v1226
  %v1228 = vpop.f32.mrf.mxu0
  %1229 = vmatprep.mubr.bf16.mxu0 %v674
  %1230 = vmatmul.mubr.bf16.gmra.mxu0 %v673
  %v1231 = vpop.f32.mrf.mxu0
  %v1232 = vadd.f32 0.0, %v1231
  %v1233 = vpop.f32.mrf.mxu0
  %v1234 = vpop.f32.mrf.mxu0
  %v1235 = vadd.f32 0.0, %v1234
  %v1236 = vpop.f32.mrf.mxu0
  %1237 = vmatprep.mubr.bf16.mxu0 %v678
  %1238 = vmatmul.mubr.bf16.gmra.mxu0 %v677
  %v1239 = vpop.f32.mrf.mxu0
  %v1240 = vadd.f32 0.0, %v1239
  %v1241 = vpop.f32.mrf.mxu0
  %v1242 = vpop.f32.mrf.mxu0
  %v1243 = vadd.f32 0.0, %v1242
  %v1244 = vpop.f32.mrf.mxu0
  %1245 = vmatprep.mubr.bf16.mxu0 %v682
  %1246 = vmatmul.mubr.bf16.gmra.mxu0 %v681
  %v1247 = vpop.f32.mrf.mxu0
  %v1248 = vadd.f32 0.0, %v1247
  %v1249 = vpop.f32.mrf.mxu0
  %v1250 = vpop.f32.mrf.mxu0
  %v1251 = vadd.f32 0.0, %v1250
  %v1252 = vpop.f32.mrf.mxu0
  %1253 = vmatprep.mubr.bf16.mxu0 %v686
  %1254 = vmatmul.mubr.bf16.gmra.mxu0 %v685
  %v1255 = vpop.f32.mrf.mxu0
  %v1256 = vadd.f32 0.0, %v1255
  %v1257 = vpop.f32.mrf.mxu0
  %v1258 = vpop.f32.mrf.mxu0
  %v1259 = vadd.f32 0.0, %v1258
  %v1260 = vpop.f32.mrf.mxu0
  %1261 = vmatprep.mubr.bf16.mxu0 %v690
  %1262 = vmatmul.mubr.bf16.gmra.mxu0 %v689
  %v1263 = vpop.f32.mrf.mxu0
  %v1264 = vadd.f32 0.0, %v1263
  %v1265 = vpop.f32.mrf.mxu0
  %v1266 = vpop.f32.mrf.mxu0
  %v1267 = vadd.f32 0.0, %v1266
  %v1268 = vpop.f32.mrf.mxu0
  %1269 = vmatprep.mubr.bf16.mxu0 %v694
  %1270 = vmatmul.mubr.bf16.gmra.mxu0 %v693
  %v1271 = vpop.f32.mrf.mxu0
  %v1272 = vadd.f32 0.0, %v1271
  %v1273 = vpop.f32.mrf.mxu0
  %v1274 = vpop.f32.mrf.mxu0
  %v1275 = vadd.f32 0.0, %v1274
  %v1276 = vpop.f32.mrf.mxu0
  %1277 = vmatprep.mubr.bf16.mxu0 %v698
  %1278 = vmatmul.mubr.bf16.gmra.mxu0 %v697
  %v1279 = vpop.f32.mrf.mxu0
  %v1280 = vadd.f32 0.0, %v1279
  %v1281 = vpop.f32.mrf.mxu0
  %v1282 = vpop.f32.mrf.mxu0
  %v1283 = vadd.f32 0.0, %v1282
  %v1284 = vpop.f32.mrf.mxu0
  %1285 = vmatprep.mubr.bf16.mxu0 %v702
  %1286 = vmatmul.mubr.bf16.gmra.mxu0 %v701
  %v1287 = vpop.f32.mrf.mxu0
  %v1288 = vadd.f32 0.0, %v1287
  %v1289 = vpop.f32.mrf.mxu0
  %v1290 = vpop.f32.mrf.mxu0
  %v1291 = vadd.f32 0.0, %v1290
  %v1292 = vpop.f32.mrf.mxu0
  %1293 = vmatprep.mubr.bf16.mxu0 %v706
  %1294 = vmatmul.mubr.bf16.gmra.mxu0 %v705
  %v1295 = vpop.f32.mrf.mxu0
  %v1296 = vadd.f32 0.0, %v1295
  %v1297 = vpop.f32.mrf.mxu0
  %v1298 = vpop.f32.mrf.mxu0
  %v1299 = vadd.f32 0.0, %v1298
  %v1300 = vpop.f32.mrf.mxu0
  %1301 = vmatprep.mubr.bf16.mxu0 %v710
  %1302 = vmatmul.mubr.bf16.gmra.mxu0 %v709
  %v1303 = vpop.f32.mrf.mxu0
  %v1304 = vadd.f32 0.0, %v1303
  %v1305 = vpop.f32.mrf.mxu0
  %v1306 = vpop.f32.mrf.mxu0
  %v1307 = vadd.f32 0.0, %v1306
  %v1308 = vpop.f32.mrf.mxu0
  %1309 = vmatprep.mubr.bf16.mxu0 %v714
  %1310 = vmatmul.mubr.bf16.gmra.mxu0 %v713
  %v1311 = vpop.f32.mrf.mxu0
  %v1312 = vadd.f32 0.0, %v1311
  %v1313 = vpop.f32.mrf.mxu0
  %v1314 = vpop.f32.mrf.mxu0
  %v1315 = vadd.f32 0.0, %v1314
  %v1316 = vpop.f32.mrf.mxu0
  %1317 = vmatprep.mubr.bf16.mxu0 %v718
  %1318 = vmatmul.mubr.bf16.gmra.mxu0 %v717
  %v1319 = vpop.f32.mrf.mxu0
  %v1320 = vadd.f32 0.0, %v1319
  %v1321 = vpop.f32.mrf.mxu0
  %v1322 = vpop.f32.mrf.mxu0
  %v1323 = vadd.f32 0.0, %v1322
  %v1324 = vpop.f32.mrf.mxu0
  %1325 = vmatprep.mubr.bf16.mxu0 %v722
  %1326 = vmatmul.mubr.bf16.gmra.mxu0 %v721
  %v1327 = vpop.f32.mrf.mxu0
  %v1328 = vadd.f32 0.0, %v1327
  %v1329 = vpop.f32.mrf.mxu0
  %v1330 = vpop.f32.mrf.mxu0
  %v1331 = vadd.f32 0.0, %v1330
  %v1332 = vpop.f32.mrf.mxu0
  %1333 = vdwg.mxu0
  %1334 = vmatprep.subr.bf16.mxu0 0
  %1335 = vmatpush1.bf16.msra.mxu0 %v1004
  %1336 = vmatprep.subr.bf16.mxu0 0
  %1337 = vmatpush1.bf16.msra.mxu0 %v1003
  %1338 = vmatprep.subr.bf16.mxu0 0
  %1339 = vmatpush1.bf16.msra.mxu0 %v1002
  %1340 = vmatprep.subr.bf16.mxu0 0
  %1341 = vmatpush1.bf16.msra.mxu0 %v1001
  %1342 = vmatprep.subr.bf16.mxu0 0
  %1343 = vmatpush1.bf16.msra.mxu0 %v1000
  %1344 = vmatprep.subr.bf16.mxu0 0
  %1345 = vmatpush1.bf16.msra.mxu0 %v999
  %1346 = vmatprep.subr.bf16.mxu0 0
  %1347 = vmatpush1.bf16.msra.mxu0 %v998
  %1348 = vmatprep.subr.bf16.mxu0 0
  %1349 = vmatpush1.bf16.msra.mxu0 %v997
  %1350 = vmatprep.subr.bf16.mxu0 0
  %1351 = vmatpush2.bf16.msra.mxu0 %v1012
  %1352 = vmatprep.subr.bf16.mxu0 0
  %1353 = vmatpush2.bf16.msra.mxu0 %v1011
  %1354 = vmatprep.subr.bf16.mxu0 0
  %1355 = vmatpush2.bf16.msra.mxu0 %v1010
  %1356 = vmatprep.subr.bf16.mxu0 0
  %1357 = vmatpush2.bf16.msra.mxu0 %v1009
  %1358 = vmatprep.subr.bf16.mxu0 0
  %1359 = vmatpush2.bf16.msra.mxu0 %v1008
  %1360 = vmatprep.subr.bf16.mxu0 0
  %1361 = vmatpush2.bf16.msra.mxu0 %v1007
  %1362 = vmatprep.subr.bf16.mxu0 0
  %1363 = vmatpush2.bf16.msra.mxu0 %v1006
  %1364 = vmatprep.subr.bf16.mxu0 0
  %1365 = vmatpush2.bf16.msra.mxu0 %v1005
  %1366 = vmatprep.mubr.bf16.mxu0 %v600
  %1367 = vmatmul.mubr.bf16.gmra.mxu0 %v599
  %v1368 = vpop.f32.mrf.mxu0
  %v1369 = vadd.f32 %v1080, %v1368
  %v1370 = vpop.f32.mrf.mxu0
  %v1371 = vpop.f32.mrf.mxu0
  %v1372 = vadd.f32 %v1083, %v1371
  %v1373 = vpop.f32.mrf.mxu0
  %1374 = vmatprep.mubr.bf16.mxu0 %v604
  %1375 = vmatmul.mubr.bf16.gmra.mxu0 %v603
  %v1376 = vpop.f32.mrf.mxu0
  %v1377 = vadd.f32 %v1088, %v1376
  %v1378 = vpop.f32.mrf.mxu0
  %v1379 = vpop.f32.mrf.mxu0
  %v1380 = vadd.f32 %v1091, %v1379
  %v1381 = vpop.f32.mrf.mxu0
  %1382 = vmatprep.mubr.bf16.mxu0 %v608
  %1383 = vmatmul.mubr.bf16.gmra.mxu0 %v607
  %v1384 = vpop.f32.mrf.mxu0
  %v1385 = vadd.f32 %v1096, %v1384
  %v1386 = vpop.f32.mrf.mxu0
  %v1387 = vpop.f32.mrf.mxu0
  %v1388 = vadd.f32 %v1099, %v1387
  %v1389 = vpop.f32.mrf.mxu0
  %1390 = vmatprep.mubr.bf16.mxu0 %v612
  %1391 = vmatmul.mubr.bf16.gmra.mxu0 %v611
  %v1392 = vpop.f32.mrf.mxu0
  %v1393 = vadd.f32 %v1104, %v1392
  %v1394 = vpop.f32.mrf.mxu0
  %v1395 = vpop.f32.mrf.mxu0
  %v1396 = vadd.f32 %v1107, %v1395
  %v1397 = vpop.f32.mrf.mxu0
  %1398 = vmatprep.mubr.bf16.mxu0 %v616
  %1399 = vmatmul.mubr.bf16.gmra.mxu0 %v615
  %v1400 = vpop.f32.mrf.mxu0
  %v1401 = vadd.f32 %v1112, %v1400
  %v1402 = vpop.f32.mrf.mxu0
  %v1403 = vpop.f32.mrf.mxu0
  %v1404 = vadd.f32 %v1115, %v1403
  %v1405 = vpop.f32.mrf.mxu0
  %1406 = vmatprep.mubr.bf16.mxu0 %v620
  %1407 = vmatmul.mubr.bf16.gmra.mxu0 %v619
  %v1408 = vpop.f32.mrf.mxu0
  %v1409 = vadd.f32 %v1120, %v1408
  %v1410 = vpop.f32.mrf.mxu0
  %v1411 = vpop.f32.mrf.mxu0
  %v1412 = vadd.f32 %v1123, %v1411
  %v1413 = vpop.f32.mrf.mxu0
  %1414 = vmatprep.mubr.bf16.mxu0 %v624
  %1415 = vmatmul.mubr.bf16.gmra.mxu0 %v623
  %v1416 = vpop.f32.mrf.mxu0
  %v1417 = vadd.f32 %v1128, %v1416
  %v1418 = vpop.f32.mrf.mxu0
  %v1419 = vpop.f32.mrf.mxu0
  %v1420 = vadd.f32 %v1131, %v1419
  %v1421 = vpop.f32.mrf.mxu0
  %1422 = vmatprep.mubr.bf16.mxu0 %v628
  %1423 = vmatmul.mubr.bf16.gmra.mxu0 %v627
  %v1424 = vpop.f32.mrf.mxu0
  %v1425 = vadd.f32 %v1136, %v1424
  %v1426 = vpop.f32.mrf.mxu0
  %v1427 = vpop.f32.mrf.mxu0
  %v1428 = vadd.f32 %v1139, %v1427
  %v1429 = vpop.f32.mrf.mxu0
  %1430 = vmatprep.mubr.bf16.mxu0 %v632
  %1431 = vmatmul.mubr.bf16.gmra.mxu0 %v631
  %v1432 = vpop.f32.mrf.mxu0
  %v1433 = vadd.f32 %v1144, %v1432
  %v1434 = vpop.f32.mrf.mxu0
  %v1435 = vpop.f32.mrf.mxu0
  %v1436 = vadd.f32 %v1147, %v1435
  %v1437 = vpop.f32.mrf.mxu0
  %1438 = vmatprep.mubr.bf16.mxu0 %v636
  %1439 = vmatmul.mubr.bf16.gmra.mxu0 %v635
  %v1440 = vpop.f32.mrf.mxu0
  %v1441 = vadd.f32 %v1152, %v1440
  %v1442 = vpop.f32.mrf.mxu0
  %v1443 = vpop.f32.mrf.mxu0
  %v1444 = vadd.f32 %v1155, %v1443
  %v1445 = vpop.f32.mrf.mxu0
  %1446 = vmatprep.mubr.bf16.mxu0 %v640
  %1447 = vmatmul.mubr.bf16.gmra.mxu0 %v639
  %v1448 = vpop.f32.mrf.mxu0
  %v1449 = vadd.f32 %v1160, %v1448
  %v1450 = vpop.f32.mrf.mxu0
  %v1451 = vpop.f32.mrf.mxu0
  %v1452 = vadd.f32 %v1163, %v1451
  %v1453 = vpop.f32.mrf.mxu0
  %1454 = vmatprep.mubr.bf16.mxu0 %v644
  %1455 = vmatmul.mubr.bf16.gmra.mxu0 %v643
  %v1456 = vpop.f32.mrf.mxu0
  %v1457 = vadd.f32 %v1168, %v1456
  %v1458 = vpop.f32.mrf.mxu0
  %v1459 = vpop.f32.mrf.mxu0
  %v1460 = vadd.f32 %v1171, %v1459
  %v1461 = vpop.f32.mrf.mxu0
  %1462 = vmatprep.mubr.bf16.mxu0 %v648
  %1463 = vmatmul.mubr.bf16.gmra.mxu0 %v647
  %v1464 = vpop.f32.mrf.mxu0
  %v1465 = vadd.f32 %v1176, %v1464
  %v1466 = vpop.f32.mrf.mxu0
  %v1467 = vpop.f32.mrf.mxu0
  %v1468 = vadd.f32 %v1179, %v1467
  %v1469 = vpop.f32.mrf.mxu0
  %1470 = vmatprep.mubr.bf16.mxu0 %v652
  %1471 = vmatmul.mubr.bf16.gmra.mxu0 %v651
  %v1472 = vpop.f32.mrf.mxu0
  %v1473 = vadd.f32 %v1184, %v1472
  %v1474 = vpop.f32.mrf.mxu0
  %v1475 = vpop.f32.mrf.mxu0
  %v1476 = vadd.f32 %v1187, %v1475
  %v1477 = vpop.f32.mrf.mxu0
  %1478 = vmatprep.mubr.bf16.mxu0 %v656
  %1479 = vmatmul.mubr.bf16.gmra.mxu0 %v655
  %v1480 = vpop.f32.mrf.mxu0
  %v1481 = vadd.f32 %v1192, %v1480
  %v1482 = vpop.f32.mrf.mxu0
  %v1483 = vpop.f32.mrf.mxu0
  %v1484 = vadd.f32 %v1195, %v1483
  %v1485 = vpop.f32.mrf.mxu0
  %1486 = vmatprep.mubr.bf16.mxu0 %v660
  %1487 = vmatmul.mubr.bf16.gmra.mxu0 %v659
  %v1488 = vpop.f32.mrf.mxu0
  %v1489 = vadd.f32 %v1200, %v1488
  %v1490 = vpop.f32.mrf.mxu0
  %v1491 = vpop.f32.mrf.mxu0
  %v1492 = vadd.f32 %v1203, %v1491
  %v1493 = vpop.f32.mrf.mxu0
  %1494 = vmatprep.mubr.bf16.mxu0 %v664
  %1495 = vmatmul.mubr.bf16.gmra.mxu0 %v663
  %v1496 = vpop.f32.mrf.mxu0
  %v1497 = vadd.f32 %v1208, %v1496
  %v1498 = vpop.f32.mrf.mxu0
  %v1499 = vpop.f32.mrf.mxu0
  %v1500 = vadd.f32 %v1211, %v1499
  %v1501 = vpop.f32.mrf.mxu0
  %1502 = vmatprep.mubr.bf16.mxu0 %v668
  %1503 = vmatmul.mubr.bf16.gmra.mxu0 %v667
  %v1504 = vpop.f32.mrf.mxu0
  %v1505 = vadd.f32 %v1216, %v1504
  %v1506 = vpop.f32.mrf.mxu0
  %v1507 = vpop.f32.mrf.mxu0
  %v1508 = vadd.f32 %v1219, %v1507
  %v1509 = vpop.f32.mrf.mxu0
  %1510 = vmatprep.mubr.bf16.mxu0 %v672
  %1511 = vmatmul.mubr.bf16.gmra.mxu0 %v671
  %v1512 = vpop.f32.mrf.mxu0
  %v1513 = vadd.f32 %v1224, %v1512
  %v1514 = vpop.f32.mrf.mxu0
  %v1515 = vpop.f32.mrf.mxu0
  %v1516 = vadd.f32 %v1227, %v1515
  %v1517 = vpop.f32.mrf.mxu0
  %1518 = vmatprep.mubr.bf16.mxu0 %v676
  %1519 = vmatmul.mubr.bf16.gmra.mxu0 %v675
  %v1520 = vpop.f32.mrf.mxu0
  %v1521 = vadd.f32 %v1232, %v1520
  %v1522 = vpop.f32.mrf.mxu0
  %v1523 = vpop.f32.mrf.mxu0
  %v1524 = vadd.f32 %v1235, %v1523
  %v1525 = vpop.f32.mrf.mxu0
  %1526 = vmatprep.mubr.bf16.mxu0 %v680
  %1527 = vmatmul.mubr.bf16.gmra.mxu0 %v679
  %v1528 = vpop.f32.mrf.mxu0
  %v1529 = vadd.f32 %v1240, %v1528
  %v1530 = vpop.f32.mrf.mxu0
  %v1531 = vpop.f32.mrf.mxu0
  %v1532 = vadd.f32 %v1243, %v1531
  %v1533 = vpop.f32.mrf.mxu0
  %1534 = vmatprep.mubr.bf16.mxu0 %v684
  %1535 = vmatmul.mubr.bf16.gmra.mxu0 %v683
  %v1536 = vpop.f32.mrf.mxu0
  %v1537 = vadd.f32 %v1248, %v1536
  %v1538 = vpop.f32.mrf.mxu0
  %v1539 = vpop.f32.mrf.mxu0
  %v1540 = vadd.f32 %v1251, %v1539
  %v1541 = vpop.f32.mrf.mxu0
  %1542 = vmatprep.mubr.bf16.mxu0 %v688
  %1543 = vmatmul.mubr.bf16.gmra.mxu0 %v687
  %v1544 = vpop.f32.mrf.mxu0
  %v1545 = vadd.f32 %v1256, %v1544
  %v1546 = vpop.f32.mrf.mxu0
  %v1547 = vpop.f32.mrf.mxu0
  %v1548 = vadd.f32 %v1259, %v1547
  %v1549 = vpop.f32.mrf.mxu0
  %1550 = vmatprep.mubr.bf16.mxu0 %v692
  %1551 = vmatmul.mubr.bf16.gmra.mxu0 %v691
  %v1552 = vpop.f32.mrf.mxu0
  %v1553 = vadd.f32 %v1264, %v1552
  %v1554 = vpop.f32.mrf.mxu0
  %v1555 = vpop.f32.mrf.mxu0
  %v1556 = vadd.f32 %v1267, %v1555
  %v1557 = vpop.f32.mrf.mxu0
  %1558 = vmatprep.mubr.bf16.mxu0 %v696
  %1559 = vmatmul.mubr.bf16.gmra.mxu0 %v695
  %v1560 = vpop.f32.mrf.mxu0
  %v1561 = vadd.f32 %v1272, %v1560
  %v1562 = vpop.f32.mrf.mxu0
  %v1563 = vpop.f32.mrf.mxu0
  %v1564 = vadd.f32 %v1275, %v1563
  %v1565 = vpop.f32.mrf.mxu0
  %1566 = vmatprep.mubr.bf16.mxu0 %v700
  %1567 = vmatmul.mubr.bf16.gmra.mxu0 %v699
  %v1568 = vpop.f32.mrf.mxu0
  %v1569 = vadd.f32 %v1280, %v1568
  %v1570 = vpop.f32.mrf.mxu0
  %v1571 = vpop.f32.mrf.mxu0
  %v1572 = vadd.f32 %v1283, %v1571
  %v1573 = vpop.f32.mrf.mxu0
  %1574 = vmatprep.mubr.bf16.mxu0 %v704
  %1575 = vmatmul.mubr.bf16.gmra.mxu0 %v703
  %v1576 = vpop.f32.mrf.mxu0
  %v1577 = vadd.f32 %v1288, %v1576
  %v1578 = vpop.f32.mrf.mxu0
  %v1579 = vpop.f32.mrf.mxu0
  %v1580 = vadd.f32 %v1291, %v1579
  %v1581 = vpop.f32.mrf.mxu0
  %1582 = vmatprep.mubr.bf16.mxu0 %v708
  %1583 = vmatmul.mubr.bf16.gmra.mxu0 %v707
  %v1584 = vpop.f32.mrf.mxu0
  %v1585 = vadd.f32 %v1296, %v1584
  %v1586 = vpop.f32.mrf.mxu0
  %v1587 = vpop.f32.mrf.mxu0
  %v1588 = vadd.f32 %v1299, %v1587
  %v1589 = vpop.f32.mrf.mxu0
  %1590 = vmatprep.mubr.bf16.mxu0 %v712
  %1591 = vmatmul.mubr.bf16.gmra.mxu0 %v711
  %v1592 = vpop.f32.mrf.mxu0
  %v1593 = vadd.f32 %v1304, %v1592
  %v1594 = vpop.f32.mrf.mxu0
  %v1595 = vpop.f32.mrf.mxu0
  %v1596 = vadd.f32 %v1307, %v1595
  %v1597 = vpop.f32.mrf.mxu0
  %1598 = vmatprep.mubr.bf16.mxu0 %v716
  %1599 = vmatmul.mubr.bf16.gmra.mxu0 %v715
  %v1600 = vpop.f32.mrf.mxu0
  %v1601 = vadd.f32 %v1312, %v1600
  %v1602 = vpop.f32.mrf.mxu0
  %v1603 = vpop.f32.mrf.mxu0
  %v1604 = vadd.f32 %v1315, %v1603
  %v1605 = vpop.f32.mrf.mxu0
  %1606 = vmatprep.mubr.bf16.mxu0 %v720
  %1607 = vmatmul.mubr.bf16.gmra.mxu0 %v719
  %v1608 = vpop.f32.mrf.mxu0
  %v1609 = vadd.f32 %v1320, %v1608
  %v1610 = vpop.f32.mrf.mxu0
  %v1611 = vpop.f32.mrf.mxu0
  %v1612 = vadd.f32 %v1323, %v1611
  %v1613 = vpop.f32.mrf.mxu0
  %1614 = vmatprep.mubr.bf16.mxu0 %v724
  %1615 = vmatmul.mubr.bf16.gmra.mxu0 %v723
  %v1616 = vpop.f32.mrf.mxu0
  %v1617 = vadd.f32 %v1328, %v1616
  %v1618 = vpop.f32.mrf.mxu0
  %v1619 = vpop.f32.mrf.mxu0
  %v1620 = vadd.f32 %v1331, %v1619
  %v1621 = vpop.f32.mrf.mxu0
  %1622 = vdwg.mxu0
  %v1623 = vpack.c.bf16 %v1372, %v1369
  %v1624 = vpack.c.bf16 %v1380, %v1377
  %v1625 = vpack.c.bf16 %v1388, %v1385
  %v1626 = vpack.c.bf16 %v1396, %v1393
  %v1627 = vpack.c.bf16 %v1404, %v1401
  %v1628 = vpack.c.bf16 %v1412, %v1409
  %v1629 = vpack.c.bf16 %v1420, %v1417
  %v1630 = vpack.c.bf16 %v1428, %v1425
  %v1631 = vpack.c.bf16 %v1436, %v1433
  %v1632 = vpack.c.bf16 %v1444, %v1441
  %v1633 = vpack.c.bf16 %v1452, %v1449
  %v1634 = vpack.c.bf16 %v1460, %v1457
  %v1635 = vpack.c.bf16 %v1468, %v1465
  %v1636 = vpack.c.bf16 %v1476, %v1473
  %v1637 = vpack.c.bf16 %v1484, %v1481
  %v1638 = vpack.c.bf16 %v1492, %v1489
  %v1639 = vpack.c.bf16 %v1500, %v1497
  %v1640 = vpack.c.bf16 %v1508, %v1505
  %v1641 = vpack.c.bf16 %v1516, %v1513
  %v1642 = vpack.c.bf16 %v1524, %v1521
  %v1643 = vpack.c.bf16 %v1532, %v1529
  %v1644 = vpack.c.bf16 %v1540, %v1537
  %v1645 = vpack.c.bf16 %v1548, %v1545
  %v1646 = vpack.c.bf16 %v1556, %v1553
  %v1647 = vpack.c.bf16 %v1564, %v1561
  %v1648 = vpack.c.bf16 %v1572, %v1569
  %v1649 = vpack.c.bf16 %v1580, %v1577
  %v1650 = vpack.c.bf16 %v1588, %v1585
  %v1651 = vpack.c.bf16 %v1596, %v1593
  %v1652 = vpack.c.bf16 %v1604, %v1601
  %v1653 = vpack.c.bf16 %v1612, %v1609
  %v1654 = vpack.c.bf16 %v1620, %v1617
  %v1687 = vunpack.c.l.b16 %v1623
  %v1688 = vunpack.c.h.b16 %v1623
  %v1689 = vunpack.c.l.b16 %v1624
  %v1690 = vunpack.c.h.b16 %v1624
  %v1691 = vunpack.c.l.b16 %v1625
  %v1692 = vunpack.c.h.b16 %v1625
  %v1693 = vunpack.c.l.b16 %v1626
  %v1694 = vunpack.c.h.b16 %v1626
  %v1695 = vunpack.c.l.b16 %v1627
  %v1696 = vunpack.c.h.b16 %v1627
  %v1697 = vunpack.c.l.b16 %v1628
  %v1698 = vunpack.c.h.b16 %v1628
  %v1699 = vunpack.c.l.b16 %v1629
  %v1700 = vunpack.c.h.b16 %v1629
  %v1701 = vunpack.c.l.b16 %v1630
  %v1702 = vunpack.c.h.b16 %v1630
  %v1703 = vunpack.c.l.b16 %v1631
  %v1704 = vunpack.c.h.b16 %v1631
  %v1705 = vunpack.c.l.b16 %v1632
  %v1706 = vunpack.c.h.b16 %v1632
  %v1707 = vunpack.c.l.b16 %v1633
  %v1708 = vunpack.c.h.b16 %v1633
  %v1709 = vunpack.c.l.b16 %v1634
  %v1710 = vunpack.c.h.b16 %v1634
  %v1711 = vunpack.c.l.b16 %v1635
  %v1712 = vunpack.c.h.b16 %v1635
  %v1713 = vunpack.c.l.b16 %v1636
  %v1714 = vunpack.c.h.b16 %v1636
  %v1715 = vunpack.c.l.b16 %v1637
  %v1716 = vunpack.c.h.b16 %v1637
  %v1717 = vunpack.c.l.b16 %v1638
  %v1718 = vunpack.c.h.b16 %v1638
  %v1719 = vunpack.c.l.b16 %v1639
  %v1720 = vunpack.c.h.b16 %v1639
  %v1721 = vunpack.c.l.b16 %v1640
  %v1722 = vunpack.c.h.b16 %v1640
  %v1723 = vunpack.c.l.b16 %v1641
  %v1724 = vunpack.c.h.b16 %v1641
  %v1725 = vunpack.c.l.b16 %v1642
  %v1726 = vunpack.c.h.b16 %v1642
  %v1727 = vunpack.c.l.b16 %v1643
  %v1728 = vunpack.c.h.b16 %v1643
  %v1729 = vunpack.c.l.b16 %v1644
  %v1730 = vunpack.c.h.b16 %v1644
  %v1731 = vunpack.c.l.b16 %v1645
  %v1732 = vunpack.c.h.b16 %v1645
  %v1733 = vunpack.c.l.b16 %v1646
  %v1734 = vunpack.c.h.b16 %v1646
  %v1735 = vunpack.c.l.b16 %v1647
  %v1736 = vunpack.c.h.b16 %v1647
  %v1737 = vunpack.c.l.b16 %v1648
  %v1738 = vunpack.c.h.b16 %v1648
  %v1739 = vunpack.c.l.b16 %v1649
  %v1740 = vunpack.c.h.b16 %v1649
  %v1741 = vunpack.c.l.b16 %v1650
  %v1742 = vunpack.c.h.b16 %v1650
  %v1743 = vunpack.c.l.b16 %v1651
  %v1744 = vunpack.c.h.b16 %v1651
  %v1745 = vunpack.c.l.b16 %v1652
  %v1746 = vunpack.c.h.b16 %v1652
  %v1747 = vunpack.c.l.b16 %v1653
  %v1748 = vunpack.c.h.b16 %v1653
  %v1749 = vunpack.c.l.b16 %v1654
  %v1750 = vunpack.c.h.b16 %v1654
  %v1751 = vpack.c.b16 %v1687, %v1687
  %v1752 = vpack.c.b16 %v1688, %v1688
  %v1753 = vpack.c.b16 %v1689, %v1689
  %v1754 = vpack.c.b16 %v1690, %v1690
  %v1755 = vpack.c.b16 %v1691, %v1691
  %v1756 = vpack.c.b16 %v1692, %v1692
  %v1757 = vpack.c.b16 %v1693, %v1693
  %v1758 = vpack.c.b16 %v1694, %v1694
  %v1759 = vpack.c.b16 %v1695, %v1695
  %v1760 = vpack.c.b16 %v1696, %v1696
  %v1761 = vpack.c.b16 %v1697, %v1697
  %v1762 = vpack.c.b16 %v1698, %v1698
  %v1763 = vpack.c.b16 %v1699, %v1699
  %v1764 = vpack.c.b16 %v1700, %v1700
  %v1765 = vpack.c.b16 %v1701, %v1701
  %v1766 = vpack.c.b16 %v1702, %v1702
  %v1767 = vpack.c.b16 %v1703, %v1703
  %v1768 = vpack.c.b16 %v1704, %v1704
  %v1769 = vpack.c.b16 %v1705, %v1705
  %v1770 = vpack.c.b16 %v1706, %v1706
  %v1771 = vpack.c.b16 %v1707, %v1707
  %v1772 = vpack.c.b16 %v1708, %v1708
  %v1773 = vpack.c.b16 %v1709, %v1709
  %v1774 = vpack.c.b16 %v1710, %v1710
  %v1775 = vpack.c.b16 %v1711, %v1711
  %v1776 = vpack.c.b16 %v1712, %v1712
  %v1777 = vpack.c.b16 %v1713, %v1713
  %v1778 = vpack.c.b16 %v1714, %v1714
  %v1779 = vpack.c.b16 %v1715, %v1715
  %v1780 = vpack.c.b16 %v1716, %v1716
  %v1781 = vpack.c.b16 %v1717, %v1717
  %v1782 = vpack.c.b16 %v1718, %v1718
  %v1783 = vpack.c.b16 %v1719, %v1719
  %v1784 = vpack.c.b16 %v1720, %v1720
  %v1785 = vpack.c.b16 %v1721, %v1721
  %v1786 = vpack.c.b16 %v1722, %v1722
  %v1787 = vpack.c.b16 %v1723, %v1723
  %v1788 = vpack.c.b16 %v1724, %v1724
  %v1789 = vpack.c.b16 %v1725, %v1725
  %v1790 = vpack.c.b16 %v1726, %v1726
  %v1791 = vpack.c.b16 %v1727, %v1727
  %v1792 = vpack.c.b16 %v1728, %v1728
  %v1793 = vpack.c.b16 %v1729, %v1729
  %v1794 = vpack.c.b16 %v1730, %v1730
  %v1795 = vpack.c.b16 %v1731, %v1731
  %v1796 = vpack.c.b16 %v1732, %v1732
  %v1797 = vpack.c.b16 %v1733, %v1733
  %v1798 = vpack.c.b16 %v1734, %v1734
  %v1799 = vpack.c.b16 %v1735, %v1735
  %v1800 = vpack.c.b16 %v1736, %v1736
  %v1801 = vpack.c.b16 %v1737, %v1737
  %v1802 = vpack.c.b16 %v1738, %v1738
  %v1803 = vpack.c.b16 %v1739, %v1739
  %v1804 = vpack.c.b16 %v1740, %v1740
  %v1805 = vpack.c.b16 %v1741, %v1741
  %v1806 = vpack.c.b16 %v1742, %v1742
  %v1807 = vpack.c.b16 %v1743, %v1743
  %v1808 = vpack.c.b16 %v1744, %v1744
  %v1809 = vpack.c.b16 %v1745, %v1745
  %v1810 = vpack.c.b16 %v1746, %v1746
  %v1811 = vpack.c.b16 %v1747, %v1747
  %v1812 = vpack.c.b16 %v1748, %v1748
  %v1813 = vpack.c.b16 %v1749, %v1749
  %v1814 = vpack.c.b16 %v1750, %v1750
  %1879 = vst [vmem:[%s2] sm:$0xf] %v1751
  %1880 = vst [vmem:[%s2 + $0x4] sm:$0xf] %v1752
  %1881 = vst [vmem:[%s2 + $0x8] sm:$0xf] %v1753
  %1882 = vst [vmem:[%s2 + $0xc] sm:$0xf] %v1754
  %1883 = vst [vmem:[%s2 + $0x10] sm:$0xf] %v1755
  %1884 = vst [vmem:[%s2 + $0x14] sm:$0xf] %v1756
  %1885 = vst [vmem:[%s2 + $0x18] sm:$0xf] %v1757
  %1886 = vst [vmem:[%s2 + $0x1c] sm:$0xf] %v1758
  %1887 = vst [vmem:[%s2 + $0x20] sm:$0xf] %v1759
  %1888 = vst [vmem:[%s2 + $0x24] sm:$0xf] %v1760
  %1889 = vst [vmem:[%s2 + $0x28] sm:$0xf] %v1761
  %1890 = vst [vmem:[%s2 + $0x2c] sm:$0xf] %v1762
  %1891 = vst [vmem:[%s2 + $0x30] sm:$0xf] %v1763
  %1892 = vst [vmem:[%s2 + $0x34] sm:$0xf] %v1764
  %1893 = vst [vmem:[%s2 + $0x38] sm:$0xf] %v1765
  %1894 = vst [vmem:[%s2 + $0x3c] sm:$0xf] %v1766
  %1895 = vst [vmem:[%s2 + $0x40] sm:$0xf] %v1767
  %1896 = vst [vmem:[%s2 + $0x44] sm:$0xf] %v1768
  %1897 = vst [vmem:[%s2 + $0x48] sm:$0xf] %v1769
  %1898 = vst [vmem:[%s2 + $0x4c] sm:$0xf] %v1770
  %1899 = vst [vmem:[%s2 + $0x50] sm:$0xf] %v1771
  %1900 = vst [vmem:[%s2 + $0x54] sm:$0xf] %v1772
  %1901 = vst [vmem:[%s2 + $0x58] sm:$0xf] %v1773
  %1902 = vst [vmem:[%s2 + $0x5c] sm:$0xf] %v1774
  %1903 = vst [vmem:[%s2 + $0x60] sm:$0xf] %v1775
  %1904 = vst [vmem:[%s2 + $0x64] sm:$0xf] %v1776
  %1905 = vst [vmem:[%s2 + $0x68] sm:$0xf] %v1777
  %1906 = vst [vmem:[%s2 + $0x6c] sm:$0xf] %v1778
  %1907 = vst [vmem:[%s2 + $0x70] sm:$0xf] %v1779
  %1908 = vst [vmem:[%s2 + $0x74] sm:$0xf] %v1780
  %1909 = vst [vmem:[%s2 + $0x78] sm:$0xf] %v1781
  %1910 = vst [vmem:[%s2 + $0x7c] sm:$0xf] %v1782
  %1911 = vst [vmem:[%s2 + $0x80] sm:$0xf] %v1783
  %1912 = vst [vmem:[%s2 + $0x84] sm:$0xf] %v1784
  %1913 = vst [vmem:[%s2 + $0x88] sm:$0xf] %v1785
  %1914 = vst [vmem:[%s2 + $0x8c] sm:$0xf] %v1786
  %1915 = vst [vmem:[%s2 + $0x90] sm:$0xf] %v1787
  %1916 = vst [vmem:[%s2 + $0x94] sm:$0xf] %v1788
  %1917 = vst [vmem:[%s2 + $0x98] sm:$0xf] %v1789
  %1918 = vst [vmem:[%s2 + $0x9c] sm:$0xf] %v1790
  %1919 = vst [vmem:[%s2 + $0xa0] sm:$0xf] %v1791
  %1920 = vst [vmem:[%s2 + $0xa4] sm:$0xf] %v1792
  %1921 = vst [vmem:[%s2 + $0xa8] sm:$0xf] %v1793
  %1922 = vst [vmem:[%s2 + $0xac] sm:$0xf] %v1794
  %1923 = vst [vmem:[%s2 + $0xb0] sm:$0xf] %v1795
  %1924 = vst [vmem:[%s2 + $0xb4] sm:$0xf] %v1796
  %1925 = vst [vmem:[%s2 + $0xb8] sm:$0xf] %v1797
  %1926 = vst [vmem:[%s2 + $0xbc] sm:$0xf] %v1798
  %1927 = vst [vmem:[%s2 + $0xc0] sm:$0xf] %v1799
  %1928 = vst [vmem:[%s2 + $0xc4] sm:$0xf] %v1800
  %1929 = vst [vmem:[%s2 + $0xc8] sm:$0xf] %v1801
  %1930 = vst [vmem:[%s2 + $0xcc] sm:$0xf] %v1802
  %1931 = vst [vmem:[%s2 + $0xd0] sm:$0xf] %v1803
  %1932 = vst [vmem:[%s2 + $0xd4] sm:$0xf] %v1804
  %1933 = vst [vmem:[%s2 + $0xd8] sm:$0xf] %v1805
  %1934 = vst [vmem:[%s2 + $0xdc] sm:$0xf] %v1806
  %1935 = vst [vmem:[%s2 + $0xe0] sm:$0xf] %v1807
  %1936 = vst [vmem:[%s2 + $0xe4] sm:$0xf] %v1808
  %1937 = vst [vmem:[%s2 + $0xe8] sm:$0xf] %v1809
  %1938 = vst [vmem:[%s2 + $0xec] sm:$0xf] %v1810
  %1939 = vst [vmem:[%s2 + $0xf0] sm:$0xf] %v1811
  %1940 = vst [vmem:[%s2 + $0xf4] sm:$0xf] %v1812
  %1941 = vst [vmem:[%s2 + $0xf8] sm:$0xf] %v1813
  %1942 = vst [vmem:[%s2 + $0xfc] sm:$0xf] %v1814
  %v1943 = vld [vmem:[%s3] sm:$0x1]
  %v1944 = vadd.f32 %v1369, %v1372
  %v1945 = vadd.f32 %v1944, %v1377
  %v1946 = vadd.f32 %v1945, %v1380
  %v1947 = vadd.f32 %v1946, %v1385
  %v1948 = vadd.f32 %v1947, %v1388
  %v1949 = vadd.f32 %v1948, %v1393
  %v1950 = vadd.f32 %v1949, %v1396
  %v1951 = vadd.f32 %v1950, %v1401
  %v1952 = vadd.f32 %v1951, %v1404
  %v1953 = vadd.f32 %v1952, %v1409
  %v1954 = vadd.f32 %v1953, %v1412
  %v1955 = vadd.f32 %v1954, %v1417
  %v1956 = vadd.f32 %v1955, %v1420
  %v1957 = vadd.f32 %v1956, %v1425
  %v1958 = vadd.f32 %v1957, %v1428
  %v1959 = vadd.f32 %v1958, %v1433
  %v1960 = vadd.f32 %v1959, %v1436
  %v1961 = vadd.f32 %v1960, %v1441
  %v1962 = vadd.f32 %v1961, %v1444
  %v1963 = vadd.f32 %v1962, %v1449
  %v1964 = vadd.f32 %v1963, %v1452
  %v1965 = vadd.f32 %v1964, %v1457
  %v1966 = vadd.f32 %v1965, %v1460
  %v1967 = vadd.f32 %v1966, %v1465
  %v1968 = vadd.f32 %v1967, %v1468
  %v1969 = vadd.f32 %v1968, %v1473
  %v1970 = vadd.f32 %v1969, %v1476
  %v1971 = vadd.f32 %v1970, %v1481
  %v1972 = vadd.f32 %v1971, %v1484
  %v1973 = vadd.f32 %v1972, %v1489
  %v1974 = vadd.f32 %v1973, %v1492
  %v1975 = vadd.f32 %v1974, %v1497
  %v1976 = vadd.f32 %v1975, %v1500
  %v1977 = vadd.f32 %v1976, %v1505
  %v1978 = vadd.f32 %v1977, %v1508
  %v1979 = vadd.f32 %v1978, %v1513
  %v1980 = vadd.f32 %v1979, %v1516
  %v1981 = vadd.f32 %v1980, %v1521
  %v1982 = vadd.f32 %v1981, %v1524
  %v1983 = vadd.f32 %v1982, %v1529
  %v1984 = vadd.f32 %v1983, %v1532
  %v1985 = vadd.f32 %v1984, %v1537
  %v1986 = vadd.f32 %v1985, %v1540
  %v1987 = vadd.f32 %v1986, %v1545
  %v1988 = vadd.f32 %v1987, %v1548
  %v1989 = vadd.f32 %v1988, %v1553
  %v1990 = vadd.f32 %v1989, %v1556
  %v1991 = vadd.f32 %v1990, %v1561
  %v1992 = vadd.f32 %v1991, %v1564
  %v1993 = vadd.f32 %v1992, %v1569
  %v1994 = vadd.f32 %v1993, %v1572
  %v1995 = vadd.f32 %v1994, %v1577
  %v1996 = vadd.f32 %v1995, %v1580
  %v1997 = vadd.f32 %v1996, %v1585
  %v1998 = vadd.f32 %v1997, %v1588
  %v1999 = vadd.f32 %v1998, %v1593
  %v2000 = vadd.f32 %v1999, %v1596
  %v2001 = vadd.f32 %v2000, %v1601
  %v2002 = vadd.f32 %v2001, %v1604
  %v2003 = vadd.f32 %v2002, %v1609
  %v2004 = vadd.f32 %v2003, %v1612
  %v2005 = vadd.f32 %v2004, %v1617
  %v2006 = vadd.f32 %v2005, %v1620
  %v2007 = vrot.slane %v2006, 4
  %v2008 = vadd.f32 %v2006, %v2007
  %v2009 = vrot.slane %v2008, 2
  %v2010 = vadd.f32 %v2008, %v2009
  %v2011 = vrot.slane %v2010, 1
  %v2012 = vadd.f32 %v2010, %v2011
  %v2013 = vadd.f32 %v1943, %v2012
  %2014 = vst [vmem:[%s3] sm:$0x1] %v2013
  %v2015 = vld [vmem:[%s4] sm:$0x1]
  %v2016 = vmul.f32 %v1369, %v1369
  %v2017 = vmul.f32 %v1372, %v1372
  %v2018 = vmul.f32 %v1377, %v1377
  %v2019 = vmul.f32 %v1380, %v1380
  %v2020 = vmul.f32 %v1385, %v1385
  %v2021 = vmul.f32 %v1388, %v1388
  %v2022 = vmul.f32 %v1393, %v1393
  %v2023 = vmul.f32 %v1396, %v1396
  %v2024 = vmul.f32 %v1401, %v1401
  %v2025 = vmul.f32 %v1404, %v1404
  %v2026 = vmul.f32 %v1409, %v1409
  %v2027 = vmul.f32 %v1412, %v1412
  %v2028 = vmul.f32 %v1417, %v1417
  %v2029 = vmul.f32 %v1420, %v1420
  %v2030 = vmul.f32 %v1425, %v1425
  %v2031 = vmul.f32 %v1428, %v1428
  %v2032 = vmul.f32 %v1433, %v1433
  %v2033 = vmul.f32 %v1436, %v1436
  %v2034 = vmul.f32 %v1441, %v1441
  %v2035 = vmul.f32 %v1444, %v1444
  %v2036 = vmul.f32 %v1449, %v1449
  %v2037 = vmul.f32 %v1452, %v1452
  %v2038 = vmul.f32 %v1457, %v1457
  %v2039 = vmul.f32 %v1460, %v1460
  %v2040 = vmul.f32 %v1465, %v1465
  %v2041 = vmul.f32 %v1468, %v1468
  %v2042 = vmul.f32 %v1473, %v1473
  %v2043 = vmul.f32 %v1476, %v1476
  %v2044 = vmul.f32 %v1481, %v1481
  %v2045 = vmul.f32 %v1484, %v1484
  %v2046 = vmul.f32 %v1489, %v1489
  %v2047 = vmul.f32 %v1492, %v1492
  %v2048 = vmul.f32 %v1497, %v1497
  %v2049 = vmul.f32 %v1500, %v1500
  %v2050 = vmul.f32 %v1505, %v1505
  %v2051 = vmul.f32 %v1508, %v1508
  %v2052 = vmul.f32 %v1513, %v1513
  %v2053 = vmul.f32 %v1516, %v1516
  %v2054 = vmul.f32 %v1521, %v1521
  %v2055 = vmul.f32 %v1524, %v1524
  %v2056 = vmul.f32 %v1529, %v1529
  %v2057 = vmul.f32 %v1532, %v1532
  %v2058 = vmul.f32 %v1537, %v1537
  %v2059 = vmul.f32 %v1540, %v1540
  %v2060 = vmul.f32 %v1545, %v1545
  %v2061 = vmul.f32 %v1548, %v1548
  %v2062 = vmul.f32 %v1553, %v1553
  %v2063 = vmul.f32 %v1556, %v1556
  %v2064 = vmul.f32 %v1561, %v1561
  %v2065 = vmul.f32 %v1564, %v1564
  %v2066 = vmul.f32 %v1569, %v1569
  %v2067 = vmul.f32 %v1572, %v1572
  %v2068 = vmul.f32 %v1577, %v1577
  %v2069 = vmul.f32 %v1580, %v1580
  %v2070 = vmul.f32 %v1585, %v1585
  %v2071 = vmul.f32 %v1588, %v1588
  %v2072 = vmul.f32 %v1593, %v1593
  %v2073 = vmul.f32 %v1596, %v1596
  %v2074 = vmul.f32 %v1601, %v1601
  %v2075 = vmul.f32 %v1604, %v1604
  %v2076 = vmul.f32 %v1609, %v1609
  %v2077 = vmul.f32 %v1612, %v1612
  %v2078 = vmul.f32 %v1617, %v1617
  %v2079 = vmul.f32 %v1620, %v1620
  %v2080 = vadd.f32 %v2016, %v2017
  %v2081 = vadd.f32 %v2080, %v2018
  %v2082 = vadd.f32 %v2081, %v2019
  %v2083 = vadd.f32 %v2082, %v2020
  %v2084 = vadd.f32 %v2083, %v2021
  %v2085 = vadd.f32 %v2084, %v2022
  %v2086 = vadd.f32 %v2085, %v2023
  %v2087 = vadd.f32 %v2086, %v2024
  %v2088 = vadd.f32 %v2087, %v2025
  %v2089 = vadd.f32 %v2088, %v2026
  %v2090 = vadd.f32 %v2089, %v2027
  %v2091 = vadd.f32 %v2090, %v2028
  %v2092 = vadd.f32 %v2091, %v2029
  %v2093 = vadd.f32 %v2092, %v2030
  %v2094 = vadd.f32 %v2093, %v2031
  %v2095 = vadd.f32 %v2094, %v2032
  %v2096 = vadd.f32 %v2095, %v2033
  %v2097 = vadd.f32 %v2096, %v2034
  %v2098 = vadd.f32 %v2097, %v2035
  %v2099 = vadd.f32 %v2098, %v2036
  %v2100 = vadd.f32 %v2099, %v2037
  %v2101 = vadd.f32 %v2100, %v2038
  %v2102 = vadd.f32 %v2101, %v2039
  %v2103 = vadd.f32 %v2102, %v2040
  %v2104 = vadd.f32 %v2103, %v2041
  %v2105 = vadd.f32 %v2104, %v2042
  %v2106 = vadd.f32 %v2105, %v2043
  %v2107 = vadd.f32 %v2106, %v2044
  %v2108 = vadd.f32 %v2107, %v2045
  %v2109 = vadd.f32 %v2108, %v2046
  %v2110 = vadd.f32 %v2109, %v2047
  %v2111 = vadd.f32 %v2110, %v2048
  %v2112 = vadd.f32 %v2111, %v2049
  %v2113 = vadd.f32 %v2112, %v2050
  %v2114 = vadd.f32 %v2113, %v2051
  %v2115 = vadd.f32 %v2114, %v2052
  %v2116 = vadd.f32 %v2115, %v2053
  %v2117 = vadd.f32 %v2116, %v2054
  %v2118 = vadd.f32 %v2117, %v2055
  %v2119 = vadd.f32 %v2118, %v2056
  %v2120 = vadd.f32 %v2119, %v2057
  %v2121 = vadd.f32 %v2120, %v2058
  %v2122 = vadd.f32 %v2121, %v2059
  %v2123 = vadd.f32 %v2122, %v2060
  %v2124 = vadd.f32 %v2123, %v2061
  %v2125 = vadd.f32 %v2124, %v2062
  %v2126 = vadd.f32 %v2125, %v2063
  %v2127 = vadd.f32 %v2126, %v2064
  %v2128 = vadd.f32 %v2127, %v2065
  %v2129 = vadd.f32 %v2128, %v2066
  %v2130 = vadd.f32 %v2129, %v2067
  %v2131 = vadd.f32 %v2130, %v2068
  %v2132 = vadd.f32 %v2131, %v2069
  %v2133 = vadd.f32 %v2132, %v2070
  %v2134 = vadd.f32 %v2133, %v2071
  %v2135 = vadd.f32 %v2134, %v2072
  %v2136 = vadd.f32 %v2135, %v2073
  %v2137 = vadd.f32 %v2136, %v2074
  %v2138 = vadd.f32 %v2137, %v2075
  %v2139 = vadd.f32 %v2138, %v2076
  %v2140 = vadd.f32 %v2139, %v2077
  %v2141 = vadd.f32 %v2140, %v2078
  %v2142 = vadd.f32 %v2141, %v2079
  %v2143 = vrot.slane %v2142, 4
  %v2144 = vadd.f32 %v2142, %v2143
  %v2145 = vrot.slane %v2144, 2
  %v2146 = vadd.f32 %v2144, %v2145
  %v2147 = vrot.slane %v2146, 1
  %v2148 = vadd.f32 %v2146, %v2147
  %v2149 = vadd.f32 %v2015, %v2148
  %2150 = vst [vmem:[%s4] sm:$0x1] %v2149
  // Predicated region
  $region14: #{generator_forward.9} parent=0 // pred_check
    _
  $region15: #{generator_forward.9} parent=0 // pred_check_branch
    %2152 = sbr.rel (0) target = $region17
  $region16: #{generator_forward.9} parent=0 // pred_region
    _
  $region17: #{generator_forward.9} parent=0 // pred_fallthru
    _
  // Predicated region
  $region18: #{generator_forward.9} parent=0 // pred_check
    _
  $region19: #{generator_forward.9} parent=0 // pred_check_branch
    %2154 = sbr.rel (0) target = $region21
  $region20: #{generator_forward.9} parent=0 // pred_region
    _
  $region21: #{generator_forward.9} parent=0 // pred_fallthru
    _
  // Predicated region
  $region22: #{generator_forward.9} parent=0 // pred_check
    _
  $region23: #{generator_forward.9} parent=0 // pred_check_branch
    %2156 = sbr.rel (0) target = $region25
  $region24: #{generator_forward.9} parent=0 // pred_region
    _
  $region25: #{generator_forward.9} parent=0 // pred_fallthru
    _
  // Predicated region
  $region26: #{generator_forward.9} parent=0 // pred_check
    _
  $region27: #{generator_forward.9} parent=0 // pred_check_branch
    %2158 = sbr.rel (0) target = $region29
  $region28: #{generator_forward.9} parent=0 // pred_region
    _
  $region29: #{generator_forward.9} parent=0 // pred_fallthru
    _
  // Predicated region
  $region30: #{generator_forward.9} parent=0 // pred_check
    _
  $region31: #{generator_forward.9} parent=0 // pred_check_branch
    %2160 = sbr.rel (0) target = $region33
  $region32: #{generator_forward.9} parent=0 // pred_region
    _
  $region33: #{generator_forward.9} parent=0 // pred_fallthru
    _
  // Predicated region
  $region34: #{generator_forward.9} parent=0 // pred_check
    _
  $region35: #{generator_forward.9} parent=0 // pred_check_branch
    %2162 = sbr.rel (0) target = $region37
  $region36: #{generator_forward.9} parent=0 // pred_region
    _
  $region37: #{generator_forward.9} parent=0 // pred_fallthru
    _

// kernel: tile.69
$region0: #{tile.69}
  %s0 = inlined_call_operand.vmem [shape: f32[4,24], index: 0, kind: input, shape index: {}]
  %s1 = inlined_call_operand.vmem [shape: f32[96], index: 1, kind: output, shape index: {}]
  $region1: #{tile.69} parent=0
    #allocation0 [shape = 'u8[4096]{0}', space=vmem, size = 0x1000, scoped, tag = 'scoped mem for output reshape']
    #allocation1 [shape = 'u8[4096]{0}', space=vmem, size = 0x1000, scoped, tag = 'scoped mem for input reshape']
    %s3 = sshll.u32 1, 4
    %s4 = ssub.s32 %s3, 1
    %v5 = vld [vmem:[%s0] sm:%s4]
    %6 = vst [vmem:[#allocation1] sm:%s4] %v5
    %v7 = vld [vmem:[#allocation1] sm:$0x1]
    %vm8 = vcmask 195584
    %9 = vst.msk [vmem:[#allocation0] sm:$0x1] %vm8, %v7
    %s10 = scalar_lea.vmem [#allocation1], 3
    %v11 = vld [vmem:[%s10] sm:$0x1]
    %12 = vrot.lane.b32.xlu0 %v11, 72
    %v13 = vpop.permute.xlu0 %12
    %vm14 = vcmask 785984
    %15 = vst.msk [vmem:[#allocation0] sm:$0x1] %vm14, %v13
    %s16 = scalar_lea.vmem [#allocation1], 2
    %v17 = vld [vmem:[%s16] sm:$0x1]
    %18 = vrot.lane.b32.xlu0 %v17, 48
    %v19 = vpop.permute.xlu0 %18
    %vm20 = vcmask 589184
    %21 = vst.msk [vmem:[#allocation0] sm:$0x1] %vm20, %v19
    %s22 = scalar_lea.vmem [#allocation1], 1
    %v23 = vld [vmem:[%s22] sm:$0x1]
    %24 = vrot.lane.b32.xlu0 %v23, 24
    %v25 = vpop.permute.xlu0 %24
    %vm26 = vcmask 392384
    %27 = vst.msk [vmem:[#allocation0] sm:$0x1] %vm26, %v25
    %s29 = sshll.u32 1, 1
    %s30 = ssub.s32 %s29, 1
    %v32 = vld [vmem:[#allocation0] sm:%s30]
    %s33 = sshll.u32 1, 1
    %s34 = ssub.s32 %s33, 1
    %35 = vst [vmem:[%s1] sm:%s34] %v32

// kernel: generator_forward.10
$region0: #{generator_forward.10}
  #allocation0 [shape = 'u32[]', space=smem, size = 0x4, offset = 0x4, fixed_abs, tag = 'smem constant byte address 0x4 - core index']
  #allocation1 [shape = 'u32[144,128]{1,0:T(1,128)}', space=vmem, size = 0x12000, scoped, tag = 'internal scratch']
  %s0 = inlined_call_operand.vmem [shape: bf16[512,128], index: 0, kind: input, shape index: {}]
  %s1 = inlined_call_operand.vmem [shape: f32[1,128], index: 1, kind: input, shape index: {}]
  %s2 = inlined_call_operand.vmem [shape: f32[1,128], index: 2, kind: input, shape index: {}]
  %s3 = inlined_call_operand.vmem [shape: bf16[512,128], index: 3, kind: output, shape index: {}]
  %s4 = sld [smem:[#allocation0]]
  $region22: #{generator_forward.10} parent=0
    _
  %s6 = ssub.s32 1, %s4
  %s7 = scalar_select 0, %s6, %s4
  // Predicated region
  $region2: #{generator_forward.10} parent=0 // pred_check
    _
  $region3: #{generator_forward.10} parent=0 // pred_check_branch
    %9 = sbr.rel (0) target = $region5
  $region4: #{generator_forward.10} parent=0 // pred_region
    _
  $region5: #{generator_forward.10} parent=0 // pred_fallthru
    _
  // Predicated region
  $region6: #{generator_forward.10} parent=0 // pred_check
    _
  $region7: #{generator_forward.10} parent=0 // pred_check_branch
    %11 = sbr.rel (0) target = $region9
  $region8: #{generator_forward.10} parent=0 // pred_region
    _
  $region9: #{generator_forward.10} parent=0 // pred_fallthru
    _
  // Predicated region
  $region10: #{generator_forward.10} parent=0 // pred_check
    _
  $region11: #{generator_forward.10} parent=0 // pred_check_branch
    %13 = sbr.rel (0) target = $region13
  $region12: #{generator_forward.10} parent=0 // pred_region
    _
  $region13: #{generator_forward.10} parent=0 // pred_fallthru
    _
  %v14 = vld [vmem:[%s0] sm:$0xf]
  %v15 = vld [vmem:[%s0 + $0x4] sm:$0xf]
  %v16 = vld [vmem:[%s0 + $0x8] sm:$0xf]
  %v17 = vld [vmem:[%s0 + $0xc] sm:$0xf]
  %v18 = vld [vmem:[%s0 + $0x10] sm:$0xf]
  %v19 = vld [vmem:[%s0 + $0x14] sm:$0xf]
  %v20 = vld [vmem:[%s0 + $0x18] sm:$0xf]
  %v21 = vld [vmem:[%s0 + $0x1c] sm:$0xf]
  %v22 = vld [vmem:[%s0 + $0x20] sm:$0xf]
  %v23 = vld [vmem:[%s0 + $0x24] sm:$0xf]
  %v24 = vld [vmem:[%s0 + $0x28] sm:$0xf]
  %v25 = vld [vmem:[%s0 + $0x2c] sm:$0xf]
  %v26 = vld [vmem:[%s0 + $0x30] sm:$0xf]
  %v27 = vld [vmem:[%s0 + $0x34] sm:$0xf]
  %v28 = vld [vmem:[%s0 + $0x38] sm:$0xf]
  %v29 = vld [vmem:[%s0 + $0x3c] sm:$0xf]
  %v30 = vld [vmem:[%s0 + $0x40] sm:$0xf]
  %v31 = vld [vmem:[%s0 + $0x44] sm:$0xf]
  %v32 = vld [vmem:[%s0 + $0x48] sm:$0xf]
  %v33 = vld [vmem:[%s0 + $0x4c] sm:$0xf]
  %v34 = vld [vmem:[%s0 + $0x50] sm:$0xf]
  %v35 = vld [vmem:[%s0 + $0x54] sm:$0xf]
  %v36 = vld [vmem:[%s0 + $0x58] sm:$0xf]
  %v37 = vld [vmem:[%s0 + $0x5c] sm:$0xf]
  %v38 = vld [vmem:[%s0 + $0x60] sm:$0xf]
  %v39 = vld [vmem:[%s0 + $0x64] sm:$0xf]
  %v40 = vld [vmem:[%s0 + $0x68] sm:$0xf]
  %v41 = vld [vmem:[%s0 + $0x6c] sm:$0xf]
  %v42 = vld [vmem:[%s0 + $0x70] sm:$0xf]
  %v43 = vld [vmem:[%s0 + $0x74] sm:$0xf]
  %v44 = vld [vmem:[%s0 + $0x78] sm:$0xf]
  %v45 = vld [vmem:[%s0 + $0x7c] sm:$0xf]
  %v46 = vld [vmem:[%s0 + $0x80] sm:$0xf]
  %v47 = vld [vmem:[%s0 + $0x84] sm:$0xf]
  %v48 = vld [vmem:[%s0 + $0x88] sm:$0xf]
  %v49 = vld [vmem:[%s0 + $0x8c] sm:$0xf]
  %v50 = vld [vmem:[%s0 + $0x90] sm:$0xf]
  %v51 = vld [vmem:[%s0 + $0x94] sm:$0xf]
  %v52 = vld [vmem:[%s0 + $0x98] sm:$0xf]
  %v53 = vld [vmem:[%s0 + $0x9c] sm:$0xf]
  %v54 = vld [vmem:[%s0 + $0xa0] sm:$0xf]
  %v55 = vld [vmem:[%s0 + $0xa4] sm:$0xf]
  %v56 = vld [vmem:[%s0 + $0xa8] sm:$0xf]
  %v57 = vld [vmem:[%s0 + $0xac] sm:$0xf]
  %v58 = vld [vmem:[%s0 + $0xb0] sm:$0xf]
  %v59 = vld [vmem:[%s0 + $0xb4] sm:$0xf]
  %v60 = vld [vmem:[%s0 + $0xb8] sm:$0xf]
  %v61 = vld [vmem:[%s0 + $0xbc] sm:$0xf]
  %v62 = vld [vmem:[%s0 + $0xc0] sm:$0xf]
  %v63 = vld [vmem:[%s0 + $0xc4] sm:$0xf]
  %v64 = vld [vmem:[%s0 + $0xc8] sm:$0xf]
  %v65 = vld [vmem:[%s0 + $0xcc] sm:$0xf]
  %v66 = vld [vmem:[%s0 + $0xd0] sm:$0xf]
  %v67 = vld [vmem:[%s0 + $0xd4] sm:$0xf]
  %v68 = vld [vmem:[%s0 + $0xd8] sm:$0xf]
  %v69 = vld [vmem:[%s0 + $0xdc] sm:$0xf]
  %v70 = vld [vmem:[%s0 + $0xe0] sm:$0xf]
  %v71 = vld [vmem:[%s0 + $0xe4] sm:$0xf]
  %v72 = vld [vmem:[%s0 + $0xe8] sm:$0xf]
  %v73 = vld [vmem:[%s0 + $0xec] sm:$0xf]
  %v74 = vld [vmem:[%s0 + $0xf0] sm:$0xf]
  %v75 = vld [vmem:[%s0 + $0xf4] sm:$0xf]
  %v76 = vld [vmem:[%s0 + $0xf8] sm:$0xf]
  %v77 = vld [vmem:[%s0 + $0xfc] sm:$0xf]
  %v78 = vunpack.c.l.bf16 %v14
  %v79 = vunpack.c.l.bf16 %v15
  %v80 = vunpack.c.l.bf16 %v16
  %v81 = vunpack.c.l.bf16 %v17
  %v82 = vunpack.c.l.bf16 %v18
  %v83 = vunpack.c.l.bf16 %v19
  %v84 = vunpack.c.l.bf16 %v20
  %v85 = vunpack.c.l.bf16 %v21
  %v86 = vunpack.c.l.bf16 %v22
  %v87 = vunpack.c.l.bf16 %v23
  %v88 = vunpack.c.l.bf16 %v24
  %v89 = vunpack.c.l.bf16 %v25
  %v90 = vunpack.c.l.bf16 %v26
  %v91 = vunpack.c.l.bf16 %v27
  %v92 = vunpack.c.l.bf16 %v28
  %v93 = vunpack.c.l.bf16 %v29
  %v94 = vunpack.c.l.bf16 %v30
  %v95 = vunpack.c.l.bf16 %v31
  %v96 = vunpack.c.l.bf16 %v32
  %v97 = vunpack.c.l.bf16 %v33
  %v98 = vunpack.c.l.bf16 %v34
  %v99 = vunpack.c.l.bf16 %v35
  %v100 = vunpack.c.l.bf16 %v36
  %v101 = vunpack.c.l.bf16 %v37
  %v102 = vunpack.c.l.bf16 %v38
  %v103 = vunpack.c.l.bf16 %v39
  %v104 = vunpack.c.l.bf16 %v40
  %v105 = vunpack.c.l.bf16 %v41
  %v106 = vunpack.c.l.bf16 %v42
  %v107 = vunpack.c.l.bf16 %v43
  %v108 = vunpack.c.l.bf16 %v44
  %v109 = vunpack.c.l.bf16 %v45
  %v110 = vunpack.c.l.bf16 %v46
  %v111 = vunpack.c.l.bf16 %v47
  %v112 = vunpack.c.l.bf16 %v48
  %v113 = vunpack.c.l.bf16 %v49
  %v114 = vunpack.c.l.bf16 %v50
  %v115 = vunpack.c.l.bf16 %v51
  %v116 = vunpack.c.l.bf16 %v52
  %v117 = vunpack.c.l.bf16 %v53
  %v118 = vunpack.c.l.bf16 %v54
  %v119 = vunpack.c.l.bf16 %v55
  %v120 = vunpack.c.l.bf16 %v56
  %v121 = vunpack.c.l.bf16 %v57
  %v122 = vunpack.c.l.bf16 %v58
  %v123 = vunpack.c.l.bf16 %v59
  %v124 = vunpack.c.l.bf16 %v60
  %v125 = vunpack.c.l.bf16 %v61
  %v126 = vunpack.c.l.bf16 %v62
  %v127 = vunpack.c.l.bf16 %v63
  %v128 = vunpack.c.l.bf16 %v64
  %v129 = vunpack.c.l.bf16 %v65
  %v130 = vunpack.c.l.bf16 %v66
  %v131 = vunpack.c.l.bf16 %v67
  %v132 = vunpack.c.l.bf16 %v68
  %v133 = vunpack.c.l.bf16 %v69
  %v134 = vunpack.c.l.bf16 %v70
  %v135 = vunpack.c.l.bf16 %v71
  %v136 = vunpack.c.l.bf16 %v72
  %v137 = vunpack.c.l.bf16 %v73
  %v138 = vunpack.c.l.bf16 %v74
  %v139 = vunpack.c.l.bf16 %v75
  %v140 = vunpack.c.l.bf16 %v76
  %v141 = vunpack.c.l.bf16 %v77
  %v142 = vld [vmem:[%s1] sm:$0x1]
  %v144 = vlaneseq
  %v145 = vshrl.u32 %v144, 7
  %v146 = vsub.s32 0, %v145
  %v147 = vrot.slane %v142, %v146
  %v149 = vmul.f32 %v78, %v147
  %v150 = vmul.f32 %v79, %v147
  %v151 = vmul.f32 %v80, %v147
  %v152 = vmul.f32 %v81, %v147
  %v153 = vmul.f32 %v82, %v147
  %v154 = vmul.f32 %v83, %v147
  %v155 = vmul.f32 %v84, %v147
  %v156 = vmul.f32 %v85, %v147
  %v157 = vmul.f32 %v86, %v147
  %v158 = vmul.f32 %v87, %v147
  %v159 = vmul.f32 %v88, %v147
  %v160 = vmul.f32 %v89, %v147
  %v161 = vmul.f32 %v90, %v147
  %v162 = vmul.f32 %v91, %v147
  %v163 = vmul.f32 %v92, %v147
  %v164 = vmul.f32 %v93, %v147
  %v165 = vmul.f32 %v94, %v147
  %v166 = vmul.f32 %v95, %v147
  %v167 = vmul.f32 %v96, %v147
  %v168 = vmul.f32 %v97, %v147
  %v169 = vmul.f32 %v98, %v147
  %v170 = vmul.f32 %v99, %v147
  %v171 = vmul.f32 %v100, %v147
  %v172 = vmul.f32 %v101, %v147
  %v173 = vmul.f32 %v102, %v147
  %v174 = vmul.f32 %v103, %v147
  %v175 = vmul.f32 %v104, %v147
  %v176 = vmul.f32 %v105, %v147
  %v177 = vmul.f32 %v106, %v147
  %v178 = vmul.f32 %v107, %v147
  %v179 = vmul.f32 %v108, %v147
  %v180 = vmul.f32 %v109, %v147
  %v181 = vmul.f32 %v110, %v147
  %v182 = vmul.f32 %v111, %v147
  %v183 = vmul.f32 %v112, %v147
  %v184 = vmul.f32 %v113, %v147
  %v185 = vmul.f32 %v114, %v147
  %v186 = vmul.f32 %v115, %v147
  %v187 = vmul.f32 %v116, %v147
  %v188 = vmul.f32 %v117, %v147
  %v189 = vmul.f32 %v118, %v147
  %v190 = vmul.f32 %v119, %v147
  %v191 = vmul.f32 %v120, %v147
  %v192 = vmul.f32 %v121, %v147
  %v193 = vmul.f32 %v122, %v147
  %v194 = vmul.f32 %v123, %v147
  %v195 = vmul.f32 %v124, %v147
  %v196 = vmul.f32 %v125, %v147
  %v197 = vmul.f32 %v126, %v147
  %v198 = vmul.f32 %v127, %v147
  %v199 = vmul.f32 %v128, %v147
  %v200 = vmul.f32 %v129, %v147
  %v201 = vmul.f32 %v130, %v147
  %v202 = vmul.f32 %v131, %v147
  %v203 = vmul.f32 %v132, %v147
  %v204 = vmul.f32 %v133, %v147
  %v205 = vmul.f32 %v134, %v147
  %v206 = vmul.f32 %v135, %v147
  %v207 = vmul.f32 %v136, %v147
  %v208 = vmul.f32 %v137, %v147
  %v209 = vmul.f32 %v138, %v147
  %v210 = vmul.f32 %v139, %v147
  %v211 = vmul.f32 %v140, %v147
  %v212 = vmul.f32 %v141, %v147
  %v213 = vld [vmem:[%s2] sm:$0x1]
  %v215 = vlaneseq
  %v216 = vshrl.u32 %v215, 7
  %v217 = vsub.s32 0, %v216
  %v218 = vrot.slane %v213, %v217
  %v220 = vadd.f32 %v149, %v218
  %v221 = vadd.f32 %v150, %v218
  %v222 = vadd.f32 %v151, %v218
  %v223 = vadd.f32 %v152, %v218
  %v224 = vadd.f32 %v153, %v218
  %v225 = vadd.f32 %v154, %v218
  %v226 = vadd.f32 %v155, %v218
  %v227 = vadd.f32 %v156, %v218
  %v228 = vadd.f32 %v157, %v218
  %v229 = vadd.f32 %v158, %v218
  %v230 = vadd.f32 %v159, %v218
  %v231 = vadd.f32 %v160, %v218
  %v232 = vadd.f32 %v161, %v218
  %v233 = vadd.f32 %v162, %v218
  %v234 = vadd.f32 %v163, %v218
  %v235 = vadd.f32 %v164, %v218
  %v236 = vadd.f32 %v165, %v218
  %v237 = vadd.f32 %v166, %v218
  %v238 = vadd.f32 %v167, %v218
  %v239 = vadd.f32 %v168, %v218
  %v240 = vadd.f32 %v169, %v218
  %v241 = vadd.f32 %v170, %v218
  %v242 = vadd.f32 %v171, %v218
  %v243 = vadd.f32 %v172, %v218
  %v244 = vadd.f32 %v173, %v218
  %v245 = vadd.f32 %v174, %v218
  %v246 = vadd.f32 %v175, %v218
  %v247 = vadd.f32 %v176, %v218
  %v248 = vadd.f32 %v177, %v218
  %v249 = vadd.f32 %v178, %v218
  %v250 = vadd.f32 %v179, %v218
  %v251 = vadd.f32 %v180, %v218
  %v252 = vadd.f32 %v181, %v218
  %v253 = vadd.f32 %v182, %v218
  %v254 = vadd.f32 %v183, %v218
  %v255 = vadd.f32 %v184, %v218
  %v256 = vadd.f32 %v185, %v218
  %v257 = vadd.f32 %v186, %v218
  %v258 = vadd.f32 %v187, %v218
  %v259 = vadd.f32 %v188, %v218
  %v260 = vadd.f32 %v189, %v218
  %v261 = vadd.f32 %v190, %v218
  %v262 = vadd.f32 %v191, %v218
  %v263 = vadd.f32 %v192, %v218
  %v264 = vadd.f32 %v193, %v218
  %v265 = vadd.f32 %v194, %v218
  %v266 = vadd.f32 %v195, %v218
  %v267 = vadd.f32 %v196, %v218
  %v268 = vadd.f32 %v197, %v218
  %v269 = vadd.f32 %v198, %v218
  %v270 = vadd.f32 %v199, %v218
  %v271 = vadd.f32 %v200, %v218
  %v272 = vadd.f32 %v201, %v218
  %v273 = vadd.f32 %v202, %v218
  %v274 = vadd.f32 %v203, %v218
  %v275 = vadd.f32 %v204, %v218
  %v276 = vadd.f32 %v205, %v218
  %v277 = vadd.f32 %v206, %v218
  %v278 = vadd.f32 %v207, %v218
  %v279 = vadd.f32 %v208, %v218
  %v280 = vadd.f32 %v209, %v218
  %v281 = vadd.f32 %v210, %v218
  %v282 = vadd.f32 %v211, %v218
  %v283 = vadd.f32 %v212, %v218
  %v284 = vmax.f32 %v220, 0.0
  %v285 = vmax.f32 %v221, 0.0
  %v286 = vmax.f32 %v222, 0.0
  %v287 = vmax.f32 %v223, 0.0
  %v288 = vmax.f32 %v224, 0.0
  %v289 = vmax.f32 %v225, 0.0
  %v290 = vmax.f32 %v226, 0.0
  %v291 = vmax.f32 %v227, 0.0
  %v292 = vmax.f32 %v228, 0.0
  %v293 = vmax.f32 %v229, 0.0
  %v294 = vmax.f32 %v230, 0.0
  %v295 = vmax.f32 %v231, 0.0
  %v296 = vmax.f32 %v232, 0.0
  %v297 = vmax.f32 %v233, 0.0
  %v298 = vmax.f32 %v234, 0.0
  %v299 = vmax.f32 %v235, 0.0
  %v300 = vmax.f32 %v236, 0.0
  %v301 = vmax.f32 %v237, 0.0
  %v302 = vmax.f32 %v238, 0.0
  %v303 = vmax.f32 %v239, 0.0
  %v304 = vmax.f32 %v240, 0.0
  %v305 = vmax.f32 %v241, 0.0
  %v306 = vmax.f32 %v242, 0.0
  %v307 = vmax.f32 %v243, 0.0
  %v308 = vmax.f32 %v244, 0.0
  %v309 = vmax.f32 %v245, 0.0
  %v310 = vmax.f32 %v246, 0.0
  %v311 = vmax.f32 %v247, 0.0
  %v312 = vmax.f32 %v248, 0.0
  %v313 = vmax.f32 %v249, 0.0
  %v314 = vmax.f32 %v250, 0.0
  %v315 = vmax.f32 %v251, 0.0
  %v316 = vmax.f32 %v252, 0.0
  %v317 = vmax.f32 %v253, 0.0
  %v318 = vmax.f32 %v254, 0.0
  %v319 = vmax.f32 %v255, 0.0
  %v320 = vmax.f32 %v256, 0.0
  %v321 = vmax.f32 %v257, 0.0
  %v322 = vmax.f32 %v258, 0.0
  %v323 = vmax.f32 %v259, 0.0
  %v324 = vmax.f32 %v260, 0.0
  %v325 = vmax.f32 %v261, 0.0
  %v326 = vmax.f32 %v262, 0.0
  %v327 = vmax.f32 %v263, 0.0
  %v328 = vmax.f32 %v264, 0.0
  %v329 = vmax.f32 %v265, 0.0
  %v330 = vmax.f32 %v266, 0.0
  %v331 = vmax.f32 %v267, 0.0
  %v332 = vmax.f32 %v268, 0.0
  %v333 = vmax.f32 %v269, 0.0
  %v334 = vmax.f32 %v270, 0.0
  %v335 = vmax.f32 %v271, 0.0
  %v336 = vmax.f32 %v272, 0.0
  %v337 = vmax.f32 %v273, 0.0
  %v338 = vmax.f32 %v274, 0.0
  %v339 = vmax.f32 %v275, 0.0
  %v340 = vmax.f32 %v276, 0.0
  %v341 = vmax.f32 %v277, 0.0
  %v342 = vmax.f32 %v278, 0.0
  %v343 = vmax.f32 %v279, 0.0
  %v344 = vmax.f32 %v280, 0.0
  %v345 = vmax.f32 %v281, 0.0
  %v346 = vmax.f32 %v282, 0.0
  %v347 = vmax.f32 %v283, 0.0
  %v348 = vpack.c.bf16 %v285, %v284
  %v349 = vpack.c.bf16 %v287, %v286
  %v350 = vpack.c.bf16 %v289, %v288
  %v351 = vpack.c.bf16 %v291, %v290
  %v352 = vpack.c.bf16 %v293, %v292
  %v353 = vpack.c.bf16 %v295, %v294
  %v354 = vpack.c.bf16 %v297, %v296
  %v355 = vpack.c.bf16 %v299, %v298
  %v356 = vpack.c.bf16 %v301, %v300
  %v357 = vpack.c.bf16 %v303, %v302
  %v358 = vpack.c.bf16 %v305, %v304
  %v359 = vpack.c.bf16 %v307, %v306
  %v360 = vpack.c.bf16 %v309, %v308
  %v361 = vpack.c.bf16 %v311, %v310
  %v362 = vpack.c.bf16 %v313, %v312
  %v363 = vpack.c.bf16 %v315, %v314
  %v364 = vpack.c.bf16 %v317, %v316
  %v365 = vpack.c.bf16 %v319, %v318
  %v366 = vpack.c.bf16 %v321, %v320
  %v367 = vpack.c.bf16 %v323, %v322
  %v368 = vpack.c.bf16 %v325, %v324
  %v369 = vpack.c.bf16 %v327, %v326
  %v370 = vpack.c.bf16 %v329, %v328
  %v371 = vpack.c.bf16 %v331, %v330
  %v372 = vpack.c.bf16 %v333, %v332
  %v373 = vpack.c.bf16 %v335, %v334
  %v374 = vpack.c.bf16 %v337, %v336
  %v375 = vpack.c.bf16 %v339, %v338
  %v376 = vpack.c.bf16 %v341, %v340
  %v377 = vpack.c.bf16 %v343, %v342
  %v378 = vpack.c.bf16 %v345, %v344
  %v379 = vpack.c.bf16 %v347, %v346
  %v412 = vunpack.c.l.b16 %v348
  %v413 = vunpack.c.h.b16 %v348
  %v414 = vunpack.c.l.b16 %v349
  %v415 = vunpack.c.h.b16 %v349
  %v416 = vunpack.c.l.b16 %v350
  %v417 = vunpack.c.h.b16 %v350
  %v418 = vunpack.c.l.b16 %v351
  %v419 = vunpack.c.h.b16 %v351
  %v420 = vunpack.c.l.b16 %v352
  %v421 = vunpack.c.h.b16 %v352
  %v422 = vunpack.c.l.b16 %v353
  %v423 = vunpack.c.h.b16 %v353
  %v424 = vunpack.c.l.b16 %v354
  %v425 = vunpack.c.h.b16 %v354
  %v426 = vunpack.c.l.b16 %v355
  %v427 = vunpack.c.h.b16 %v355
  %v428 = vunpack.c.l.b16 %v356
  %v429 = vunpack.c.h.b16 %v356
  %v430 = vunpack.c.l.b16 %v357
  %v431 = vunpack.c.h.b16 %v357
  %v432 = vunpack.c.l.b16 %v358
  %v433 = vunpack.c.h.b16 %v358
  %v434 = vunpack.c.l.b16 %v359
  %v435 = vunpack.c.h.b16 %v359
  %v436 = vunpack.c.l.b16 %v360
  %v437 = vunpack.c.h.b16 %v360
  %v438 = vunpack.c.l.b16 %v361
  %v439 = vunpack.c.h.b16 %v361
  %v440 = vunpack.c.l.b16 %v362
  %v441 = vunpack.c.h.b16 %v362
  %v442 = vunpack.c.l.b16 %v363
  %v443 = vunpack.c.h.b16 %v363
  %v444 = vunpack.c.l.b16 %v364
  %v445 = vunpack.c.h.b16 %v364
  %v446 = vunpack.c.l.b16 %v365
  %v447 = vunpack.c.h.b16 %v365
  %v448 = vunpack.c.l.b16 %v366
  %v449 = vunpack.c.h.b16 %v366
  %v450 = vunpack.c.l.b16 %v367
  %v451 = vunpack.c.h.b16 %v367
  %v452 = vunpack.c.l.b16 %v368
  %v453 = vunpack.c.h.b16 %v368
  %v454 = vunpack.c.l.b16 %v369
  %v455 = vunpack.c.h.b16 %v369
  %v456 = vunpack.c.l.b16 %v370
  %v457 = vunpack.c.h.b16 %v370
  %v458 = vunpack.c.l.b16 %v371
  %v459 = vunpack.c.h.b16 %v371
  %v460 = vunpack.c.l.b16 %v372
  %v461 = vunpack.c.h.b16 %v372
  %v462 = vunpack.c.l.b16 %v373
  %v463 = vunpack.c.h.b16 %v373
  %v464 = vunpack.c.l.b16 %v374
  %v465 = vunpack.c.h.b16 %v374
  %v466 = vunpack.c.l.b16 %v375
  %v467 = vunpack.c.h.b16 %v375
  %v468 = vunpack.c.l.b16 %v376
  %v469 = vunpack.c.h.b16 %v376
  %v470 = vunpack.c.l.b16 %v377
  %v471 = vunpack.c.h.b16 %v377
  %v472 = vunpack.c.l.b16 %v378
  %v473 = vunpack.c.h.b16 %v378
  %v474 = vunpack.c.l.b16 %v379
  %v475 = vunpack.c.h.b16 %v379
  %v476 = vpack.c.b16 %v412, %v412
  %v477 = vpack.c.b16 %v413, %v413
  %v478 = vpack.c.b16 %v414, %v414
  %v479 = vpack.c.b16 %v415, %v415
  %v480 = vpack.c.b16 %v416, %v416
  %v481 = vpack.c.b16 %v417, %v417
  %v482 = vpack.c.b16 %v418, %v418
  %v483 = vpack.c.b16 %v419, %v419
  %v484 = vpack.c.b16 %v420, %v420
  %v485 = vpack.c.b16 %v421, %v421
  %v486 = vpack.c.b16 %v422, %v422
  %v487 = vpack.c.b16 %v423, %v423
  %v488 = vpack.c.b16 %v424, %v424
  %v489 = vpack.c.b16 %v425, %v425
  %v490 = vpack.c.b16 %v426, %v426
  %v491 = vpack.c.b16 %v427, %v427
  %v492 = vpack.c.b16 %v428, %v428
  %v493 = vpack.c.b16 %v429, %v429
  %v494 = vpack.c.b16 %v430, %v430
  %v495 = vpack.c.b16 %v431, %v431
  %v496 = vpack.c.b16 %v432, %v432
  %v497 = vpack.c.b16 %v433, %v433
  %v498 = vpack.c.b16 %v434, %v434
  %v499 = vpack.c.b16 %v435, %v435
  %v500 = vpack.c.b16 %v436, %v436
  %v501 = vpack.c.b16 %v437, %v437
  %v502 = vpack.c.b16 %v438, %v438
  %v503 = vpack.c.b16 %v439, %v439
  %v504 = vpack.c.b16 %v440, %v440
  %v505 = vpack.c.b16 %v441, %v441
  %v506 = vpack.c.b16 %v442, %v442
  %v507 = vpack.c.b16 %v443, %v443
  %v508 = vpack.c.b16 %v444, %v444
  %v509 = vpack.c.b16 %v445, %v445
  %v510 = vpack.c.b16 %v446, %v446
  %v511 = vpack.c.b16 %v447, %v447
  %v512 = vpack.c.b16 %v448, %v448
  %v513 = vpack.c.b16 %v449, %v449
  %v514 = vpack.c.b16 %v450, %v450
  %v515 = vpack.c.b16 %v451, %v451
  %v516 = vpack.c.b16 %v452, %v452
  %v517 = vpack.c.b16 %v453, %v453
  %v518 = vpack.c.b16 %v454, %v454
  %v519 = vpack.c.b16 %v455, %v455
  %v520 = vpack.c.b16 %v456, %v456
  %v521 = vpack.c.b16 %v457, %v457
  %v522 = vpack.c.b16 %v458, %v458
  %v523 = vpack.c.b16 %v459, %v459
  %v524 = vpack.c.b16 %v460, %v460
  %v525 = vpack.c.b16 %v461, %v461
  %v526 = vpack.c.b16 %v462, %v462
  %v527 = vpack.c.b16 %v463, %v463
  %v528 = vpack.c.b16 %v464, %v464
  %v529 = vpack.c.b16 %v465, %v465
  %v530 = vpack.c.b16 %v466, %v466
  %v531 = vpack.c.b16 %v467, %v467
  %v532 = vpack.c.b16 %v468, %v468
  %v533 = vpack.c.b16 %v469, %v469
  %v534 = vpack.c.b16 %v470, %v470
  %v535 = vpack.c.b16 %v471, %v471
  %v536 = vpack.c.b16 %v472, %v472
  %v537 = vpack.c.b16 %v473, %v473
  %v538 = vpack.c.b16 %v474, %v474
  %v539 = vpack.c.b16 %v475, %v475
  %604 = vst [vmem:[%s3] sm:$0xf] %v476
  %605 = vst [vmem:[%s3 + $0x4] sm:$0xf] %v477
  %606 = vst [vmem:[%s3 + $0x8] sm:$0xf] %v478
  %607 = vst [vmem:[%s3 + $0xc] sm:$0xf] %v479
  %608 = vst [vmem:[%s3 + $0x10] sm:$0xf] %v480
  %609 = vst [vmem:[%s3 + $0x14] sm:$0xf] %v481
  %610 = vst [vmem:[%s3 + $0x18] sm:$0xf] %v482
  %611 = vst [vmem:[%s3 + $0x1c] sm:$0xf] %v483
  %612 = vst [vmem:[%s3 + $0x20] sm:$0xf] %v484
  %613 = vst [vmem:[%s3 + $0x24] sm:$0xf] %v485
  %614 = vst [vmem:[%s3 + $0x28] sm:$0xf] %v486
  %615 = vst [vmem:[%s3 + $0x2c] sm:$0xf] %v487
  %616 = vst [vmem:[%s3 + $0x30] sm:$0xf] %v488
  %617 = vst [vmem:[%s3 + $0x34] sm:$0xf] %v489
  %618 = vst [vmem:[%s3 + $0x38] sm:$0xf] %v490
  %619 = vst [vmem:[%s3 + $0x3c] sm:$0xf] %v491
  %620 = vst [vmem:[%s3 + $0x40] sm:$0xf] %v492
  %621 = vst [vmem:[%s3 + $0x44] sm:$0xf] %v493
  %622 = vst [vmem:[%s3 + $0x48] sm:$0xf] %v494
  %623 = vst [vmem:[%s3 + $0x4c] sm:$0xf] %v495
  %624 = vst [vmem:[%s3 + $0x50] sm:$0xf] %v496
  %625 = vst [vmem:[%s3 + $0x54] sm:$0xf] %v497
  %626 = vst [vmem:[%s3 + $0x58] sm:$0xf] %v498
  %627 = vst [vmem:[%s3 + $0x5c] sm:$0xf] %v499
  %628 = vst [vmem:[%s3 + $0x60] sm:$0xf] %v500
  %629 = vst [vmem:[%s3 + $0x64] sm:$0xf] %v501
  %630 = vst [vmem:[%s3 + $0x68] sm:$0xf] %v502
  %631 = vst [vmem:[%s3 + $0x6c] sm:$0xf] %v503
  %632 = vst [vmem:[%s3 + $0x70] sm:$0xf] %v504
  %633 = vst [vmem:[%s3 + $0x74] sm:$0xf] %v505
  %634 = vst [vmem:[%s3 + $0x78] sm:$0xf] %v506
  %635 = vst [vmem:[%s3 + $0x7c] sm:$0xf] %v507
  %636 = vst [vmem:[%s3 + $0x80] sm:$0xf] %v508
  %637 = vst [vmem:[%s3 + $0x84] sm:$0xf] %v509
  %638 = vst [vmem:[%s3 + $0x88] sm:$0xf] %v510
  %639 = vst [vmem:[%s3 + $0x8c] sm:$0xf] %v511
  %640 = vst [vmem:[%s3 + $0x90] sm:$0xf] %v512
  %641 = vst [vmem:[%s3 + $0x94] sm:$0xf] %v513
  %642 = vst [vmem:[%s3 + $0x98] sm:$0xf] %v514
  %643 = vst [vmem:[%s3 + $0x9c] sm:$0xf] %v515
  %644 = vst [vmem:[%s3 + $0xa0] sm:$0xf] %v516
  %645 = vst [vmem:[%s3 + $0xa4] sm:$0xf] %v517
  %646 = vst [vmem:[%s3 + $0xa8] sm:$0xf] %v518
  %647 = vst [vmem:[%s3 + $0xac] sm:$0xf] %v519
  %648 = vst [vmem:[%s3 + $0xb0] sm:$0xf] %v520
  %649 = vst [vmem:[%s3 + $0xb4] sm:$0xf] %v521
  %650 = vst [vmem:[%s3 + $0xb8] sm:$0xf] %v522
  %651 = vst [vmem:[%s3 + $0xbc] sm:$0xf] %v523
  %652 = vst [vmem:[%s3 + $0xc0] sm:$0xf] %v524
  %653 = vst [vmem:[%s3 + $0xc4] sm:$0xf] %v525
  %654 = vst [vmem:[%s3 + $0xc8] sm:$0xf] %v526
  %655 = vst [vmem:[%s3 + $0xcc] sm:$0xf] %v527
  %656 = vst [vmem:[%s3 + $0xd0] sm:$0xf] %v528
  %657 = vst [vmem:[%s3 + $0xd4] sm:$0xf] %v529
  %658 = vst [vmem:[%s3 + $0xd8] sm:$0xf] %v530
  %659 = vst [vmem:[%s3 + $0xdc] sm:$0xf] %v531
  %660 = vst [vmem:[%s3 + $0xe0] sm:$0xf] %v532
  %661 = vst [vmem:[%s3 + $0xe4] sm:$0xf] %v533
  %662 = vst [vmem:[%s3 + $0xe8] sm:$0xf] %v534
  %663 = vst [vmem:[%s3 + $0xec] sm:$0xf] %v535
  %664 = vst [vmem:[%s3 + $0xf0] sm:$0xf] %v536
  %665 = vst [vmem:[%s3 + $0xf4] sm:$0xf] %v537
  %666 = vst [vmem:[%s3 + $0xf8] sm:$0xf] %v538
  %667 = vst [vmem:[%s3 + $0xfc] sm:$0xf] %v539
  // Predicated region
  $region14: #{generator_forward.10} parent=0 // pred_check
    _
  $region15: #{generator_forward.10} parent=0 // pred_check_branch
    %669 = sbr.rel (0) target = $region17
  $region16: #{generator_forward.10} parent=0 // pred_region
    _
  $region17: #{generator_forward.10} parent=0 // pred_fallthru
    _
  // Predicated region
  $region18: #{generator_forward.10} parent=0 // pred_check
    _
  $region19: #{generator_forward.10} parent=0 // pred_check_branch
    %671 = sbr.rel (0) target = $region21
  $region20: #{generator_forward.10} parent=0 // pred_region
    _
  $region21: #{generator_forward.10} parent=0 // pred_fallthru
    _

// kernel: squeeze.154
$region0: #{squeeze.154}
  %s0 = inlined_call_operand.vmem [shape: f32[48], index: 0, kind: input, shape index: {}]
  %s1 = inlined_call_operand.vmem [shape: f32[4,12], index: 1, kind: output, shape index: {}]
  $region1: #{squeeze.154} parent=0
    #allocation0 [shape = 'u8[4096]{0}', space=vmem, size = 0x1000, scoped, tag = 'scoped mem for output reshape']
    #allocation1 [shape = 'u8[4096]{0}', space=vmem, size = 0x1000, scoped, tag = 'scoped mem for input reshape']
    %s3 = sshll.u32 1, 1
    %s4 = ssub.s32 %s3, 1
    %v5 = vld [vmem:[%s0] sm:%s4]
    %6 = vst [vmem:[#allocation1] sm:%s4] %v5
    %v7 = vld [vmem:[#allocation1] sm:$0x1]
    %vm8 = vcmask 97280
    %9 = vst.msk [vmem:[#allocation0] sm:$0x1] %vm8, %v7
    %v10 = vld [vmem:[#allocation1] sm:$0x1]
    %11 = vrot.lane.b32.xlu0 %v10, 116
    %v12 = vpop.permute.xlu0 %11
    %vm13 = vcmask 97280
    %s14 = scalar_lea.vmem [#allocation0], 1
    %15 = vst.msk [vmem:[%s14] sm:$0x1] %vm13, %v12
    %v16 = vld [vmem:[#allocation1] sm:$0x1]
    %17 = vrot.lane.b32.xlu0 %v16, 104
    %v18 = vpop.permute.xlu0 %17
    %vm19 = vcmask 97280
    %s20 = scalar_lea.vmem [#allocation0], 2
    %21 = vst.msk [vmem:[%s20] sm:$0x1] %vm19, %v18
    %v22 = vld [vmem:[#allocation1] sm:$0x1]
    %23 = vrot.lane.b32.xlu0 %v22, 92
    %v24 = vpop.permute.xlu0 %23
    %vm25 = vcmask 97280
    %s26 = scalar_lea.vmem [#allocation0], 3
    %27 = vst.msk [vmem:[%s26] sm:$0x1] %vm25, %v24
    %s29 = sshll.u32 1, 4
    %s30 = ssub.s32 %s29, 1
    %v32 = vld [vmem:[#allocation0] sm:%s30]
    %s33 = sshll.u32 1, 4
    %s34 = ssub.s32 %s33, 1
    %35 = vst [vmem:[%s1] sm:%s34] %v32

// kernel: tile.78
$region0: #{tile.78}
  #allocation0 [shape = 's32[1]{0}', space=sflag, size = 0x4, scoped, tag = 'scoped memory for tile.78']
  %s0 = inlined_call_operand.vmem [shape: f32[12], index: 0, kind: input, shape index: {}]
  %s1 = inlined_call_operand.vmem [shape: f32[4,12], index: 1, kind: output, shape index: {}]
  // Predicated region
  $region2: #{tile.78} parent=0 // pred_check
    _
  $region3: #{tile.78} parent=0 // pred_check_branch
    %3 = sbr.rel (0) target = $region5
  $region4: #{tile.78} parent=0 // pred_region
    _
  $region5: #{tile.78} parent=0 // pred_fallthru
    _
  %v4 = vld [vmem:[%s0] ss:$0 sm:$0xff]
  %5 = vst [vmem:[%s1] sm:$0xf] %v4

// kernel: tile.79
$region0: #{tile.79}
  %s0 = inlined_call_operand.vmem [shape: f32[4,12], index: 0, kind: input, shape index: {}]
  %s1 = inlined_call_operand.vmem [shape: f32[48], index: 1, kind: output, shape index: {}]
  $region1: #{tile.79} parent=0
    #allocation0 [shape = 'u8[4096]{0}', space=vmem, size = 0x1000, scoped, tag = 'scoped mem for output reshape']
    #allocation1 [shape = 'u8[4096]{0}', space=vmem, size = 0x1000, scoped, tag = 'scoped mem for input reshape']
    %s3 = sshll.u32 1, 4
    %s4 = ssub.s32 %s3, 1
    %v5 = vld [vmem:[%s0] sm:%s4]
    %6 = vst [vmem:[#allocation1] sm:%s4] %v5
    %v7 = vld [vmem:[#allocation1] sm:$0x1]
    %vm8 = vcmask 97280
    %9 = vst.msk [vmem:[#allocation0] sm:$0x1] %vm8, %v7
    %s10 = scalar_lea.vmem [#allocation1], 3
    %v11 = vld [vmem:[%s10] sm:$0x1]
    %12 = vrot.lane.b32.xlu0 %v11, 36
    %v13 = vpop.permute.xlu0 %12
    %vm14 = vcmask 392480
    %15 = vst.msk [vmem:[#allocation0] sm:$0x1] %vm14, %v13
    %s16 = scalar_lea.vmem [#allocation1], 2
    %v17 = vld [vmem:[%s16] sm:$0x1]
    %18 = vrot.lane.b32.xlu0 %v17, 24
    %v19 = vpop.permute.xlu0 %18
    %vm20 = vcmask 294080
    %21 = vst.msk [vmem:[#allocation0] sm:$0x1] %vm20, %v19
    %s22 = scalar_lea.vmem [#allocation1], 1
    %v23 = vld [vmem:[%s22] sm:$0x1]
    %24 = vrot.lane.b32.xlu0 %v23, 12
    %v25 = vpop.permute.xlu0 %24
    %vm26 = vcmask 195680
    %27 = vst.msk [vmem:[#allocation0] sm:$0x1] %vm26, %v25
    %s29 = sshll.u32 1, 1
    %s30 = ssub.s32 %s29, 1
    %v32 = vld [vmem:[#allocation0] sm:%s30]
    %s33 = sshll.u32 1, 1
    %s34 = ssub.s32 %s33, 1
    %35 = vst [vmem:[%s1] sm:%s34] %v32

// kernel: generator_forward.11
$region0: #{generator_forward.11}
  #allocation0 [shape = 'u32[]', space=smem, size = 0x4, offset = 0x4, fixed_abs, tag = 'smem constant byte address 0x4 - core index']
  #allocation1 [shape = 'u32[144,128]{1,0:T(1,128)}', space=vmem, size = 0x12000, scoped, tag = 'internal scratch']
  %s0 = inlined_call_operand.vmem [shape: bf16[2048,256], index: 0, kind: input, shape index: {}]
  %s1 = inlined_call_operand.vmem [shape: bf16[256,128], index: 1, kind: input, shape index: {}]
  %s2 = inlined_call_operand.vmem [shape: bf16[2048,128], index: 2, kind: output, shape index: {0}]
  %s3 = inlined_call_operand.vmem [shape: f32[1,128], index: 3, kind: output, shape index: {1}]
  %s4 = inlined_call_operand.vmem [shape: f32[1,128], index: 4, kind: output, shape index: {2}]
  %5 = xla_tuple %s2, %s3, %s4
  %s6 = sld [smem:[#allocation0]]
  $region61: #{generator_forward.11} parent=0
    _
  %s8 = ssub.s32 1, %s6
  %s9 = scalar_select 0, %s8, %s6
  loop: start=0, step=1, limit=6
  $region2: #{generator_forward.11} parent=0 // loop_pre_header
    _
  $region3: #{generator_forward.11} parent=0 // loop_header
    %s11 = sphi 0, %s15
    %p12 = scmp.ge.s32.totalorder %s11, 6
    %s21 = sphi 0, %s23
    %s24 = sphi 0, %s21
    %s25 = sphi 0, %s24
    %s41 = sphi 0, %s25
    %s45 = sphi 0, %s45
    %s47 = sphi 0, %s45
    %s48 = sphi 0, %s47
    %s62 = sphi 0, %s48
    %s68 = sphi 0, %s70
    %s71 = sphi 0, %s68
    %s72 = sphi 0, %s71
    %s88 = sphi 0, %s72
    %s92 = sphi 0, %s92
    %s94 = sphi 0, %s92
    %s95 = sphi 0, %s94
    %s109 = sphi 0, %s95
    %s113 = sphi 0, %s113
    %s115 = sphi 0, %s113
    %s116 = sphi 0, %s115
    %s130 = sphi 0, %s116
  $region4: #{generator_forward.11} parent=0 // loop_header_branch
    %14 = sbr.rel (%p12) target = $region8
  $region5: #{generator_forward.11} parent=0 // loop_body
    %s16 = ssub.s32 %s11, 1
    %s17 = ssub.s32 %s11, 2
    %s18 = sadd.s32 %s11, 1
    %s19 = ssub.s32 %s11, %s18
    %p20 = scmp.eq.s32.totalorder %s19, 0
    %s22 = sadd.s32 %s21, 1
    %s23 = scalar_select %p20, %s21, %s22
    %p26 = pneg %p20
    %p27 = scmp.eq.s32.totalorder %s11, 3
    %p28 = por %p26, %p27
    %p29 = scmp.ne.s32.totalorder %s21, %s24
    %p30 = scmp.eq.s32.totalorder %s11, 0
    %p31 = por %p29, %p30
    %p32 = scmp.ne.s32.totalorder %s21, %s24
    %p33 = scmp.eq.s32.totalorder %s16, 3
    %p34 = por %p32, %p33
    %p35 = scmp.ne.s32.totalorder %s24, %s25
    %p36 = scmp.eq.s32.totalorder %s16, 0
    %p37 = por %p35, %p36
    %p38 = scmp.ne.s32.totalorder %s24, %s25
    %p39 = scmp.eq.s32.totalorder %s17, 3
    %p40 = por %p38, %p39
    %p42 = scmp.ne.s32.totalorder %s25, %s41
    %p43 = scmp.eq.s32.totalorder %s17, 0
    %p44 = por %p42, %p43
    %s46 = sadd.s32 %s45, 1
    %p49 = scmp.eq.s32.totalorder %s11, 3
    %p50 = scmp.ne.s32.totalorder %s45, %s47
    %p51 = scmp.eq.s32.totalorder %s11, 0
    %p52 = por %p50, %p51
    %p53 = scmp.ne.s32.totalorder %s45, %s47
    %p54 = scmp.eq.s32.totalorder %s16, 3
    %p55 = por %p53, %p54
    %p56 = scmp.ne.s32.totalorder %s47, %s48
    %p57 = scmp.eq.s32.totalorder %s16, 0
    %p58 = por %p56, %p57
    %p59 = scmp.ne.s32.totalorder %s47, %s48
    %p60 = scmp.eq.s32.totalorder %s17, 3
    %p61 = por %p59, %p60
    %p63 = scmp.ne.s32.totalorder %s48, %s62
    %p64 = scmp.eq.s32.totalorder %s17, 0
    %p65 = por %p63, %p64
    %s66 = ssub.s32 %s11, %s18
    %p67 = scmp.eq.s32.totalorder %s66, 0
    %s69 = sadd.s32 %s68, 1
    %s70 = scalar_select %p67, %s68, %s69
    %p73 = pneg %p67
    %p74 = scmp.eq.s32.totalorder %s11, 3
    %p75 = por %p73, %p74
    %p76 = scmp.ne.s32.totalorder %s68, %s71
    %p77 = scmp.eq.s32.totalorder %s11, 0
    %p78 = por %p76, %p77
    %p79 = scmp.ne.s32.totalorder %s68, %s71
    %p80 = scmp.eq.s32.totalorder %s16, 3
    %p81 = por %p79, %p80
    %p82 = scmp.ne.s32.totalorder %s71, %s72
    %p83 = scmp.eq.s32.totalorder %s16, 0
    %p84 = por %p82, %p83
    %p85 = scmp.ne.s32.totalorder %s71, %s72
    %p86 = scmp.eq.s32.totalorder %s17, 3
    %p87 = por %p85, %p86
    %p89 = scmp.ne.s32.totalorder %s72, %s88
    %p90 = scmp.eq.s32.totalorder %s17, 0
    %p91 = por %p89, %p90
    %s93 = sadd.s32 %s92, 1
    %p96 = scmp.eq.s32.totalorder %s11, 3
    %p97 = scmp.ne.s32.totalorder %s92, %s94
    %p98 = scmp.eq.s32.totalorder %s11, 0
    %p99 = por %p97, %p98
    %p100 = scmp.ne.s32.totalorder %s92, %s94
    %p101 = scmp.eq.s32.totalorder %s16, 3
    %p102 = por %p100, %p101
    %p103 = scmp.ne.s32.totalorder %s94, %s95
    %p104 = scmp.eq.s32.totalorder %s16, 0
    %p105 = por %p103, %p104
    %p106 = scmp.ne.s32.totalorder %s94, %s95
    %p107 = scmp.eq.s32.totalorder %s17, 3
    %p108 = por %p106, %p107
    %p110 = scmp.ne.s32.totalorder %s95, %s109
    %p111 = scmp.eq.s32.totalorder %s17, 0
    %p112 = por %p110, %p111
    %s114 = sadd.s32 %s113, 1
    %p117 = scmp.eq.s32.totalorder %s11, 3
    %p118 = scmp.ne.s32.totalorder %s113, %s115
    %p119 = scmp.eq.s32.totalorder %s11, 0
    %p120 = por %p118, %p119
    %p121 = scmp.ne.s32.totalorder %s113, %s115
    %p122 = scmp.eq.s32.totalorder %s16, 3
    %p123 = por %p121, %p122
    %p124 = scmp.ne.s32.totalorder %s115, %s116
    %p125 = scmp.eq.s32.totalorder %s16, 0
    %p126 = por %p124, %p125
    %p127 = scmp.ne.s32.totalorder %s115, %s116
    %p128 = scmp.eq.s32.totalorder %s17, 3
    %p129 = por %p127, %p128
    %p131 = scmp.ne.s32.totalorder %s116, %s130
    %p132 = scmp.eq.s32.totalorder %s17, 0
    %p133 = por %p131, %p132
    %p134 = scmp.le.s32.totalorder 1, %s11
    %p135 = scmp.lt.s32.totalorder %s11, 5
    %p136 = pnand %p134, %p135
    %p137 = pneg %p136
    // Predicated region
    $region9: #{generator_forward.11} parent=5 // pred_check
      _
    $region10: #{generator_forward.11} parent=5 // pred_check_branch
      %139 = sbr.rel (%p136) target = $region12
    $region11: #{generator_forward.11} parent=5 // pred_region
      %s140 = ssub.s32 %s11, 1
      // Predicated region
      $region13: #{generator_forward.11} parent=11 // pred_check
        %p141 = pneg %p58
      $region14: #{generator_forward.11} parent=11 // pred_check_branch
        %143 = sbr.rel (%p141) target = $region16
      $region15: #{generator_forward.11} parent=11 // pred_region
        _
      $region16: #{generator_forward.11} parent=11 // pred_fallthru
        _
    $region12: #{generator_forward.11} parent=5 // pred_fallthru
      _
    %p144 = scmp.lt.s32.totalorder %s11, 4
    // Predicated region
    $region17: #{generator_forward.11} parent=5 // pred_check
      %p145 = pneg %p144
    $region18: #{generator_forward.11} parent=5 // pred_check_branch
      %147 = sbr.rel (%p145) target = $region20
    $region19: #{generator_forward.11} parent=5 // pred_region
      // Predicated region
      $region21: #{generator_forward.11} parent=19 // pred_check
        %p148 = pneg %p31
      $region22: #{generator_forward.11} parent=19 // pred_check_branch
        %150 = sbr.rel (%p148) target = $region24
      $region23: #{generator_forward.11} parent=19 // pred_region
        %s151 = smul.u32 64, %s11
        %p152 = scmp.lt.s32.totalorder %s151, 255
        %s153 = scalar_select %p152, %s151, 255
        %s154 = smul.addr %s153, 2
        %s155 = smul.addr %s154, 4
        %s156 = scalar_lea.vmem %s0, %s155
        %s157 = smul.u32 64, %s11
      $region24: #{generator_forward.11} parent=19 // pred_fallthru
        _
    $region20: #{generator_forward.11} parent=5 // pred_fallthru
      _
    %p158 = scmp.le.s32.totalorder 1, %s11
    %p159 = scmp.lt.s32.totalorder %s11, 5
    %p160 = pnand %p158, %p159
    %p161 = pneg %p160
    // Predicated region
    $region25: #{generator_forward.11} parent=5 // pred_check
      _
    $region26: #{generator_forward.11} parent=5 // pred_check_branch
      %163 = sbr.rel (%p160) target = $region28
    $region27: #{generator_forward.11} parent=5 // pred_region
      %s164 = ssub.s32 %s11, 1
      %s165 = smul.u32 64, %s16
      %p166 = scmp.lt.s32.totalorder %s165, 255
      %s167 = scalar_select %p166, %s165, 255
      %s168 = smul.addr %s167, 2
      %s169 = smul.addr %s168, 4
      %s170 = scalar_lea.vmem %s0, %s169
      %p171 = pneg %p37
      %p172 = pneg %p34
      %p173 = pneg %p58
      %p174 = pneg %p55
      %p175 = pneg %p84
      %p176 = pneg %p81
      %s177 = smul.u32 64, %s16
      %p178 = scmp.lt.s32.totalorder %s177, 255
      %s179 = scalar_select %p178, %s177, 255
      %s180 = smul.addr %s179, 4
      %s181 = scalar_lea.vmem %s2, %s180
      %p182 = pneg %p105
      %p183 = pneg %p102
      %p184 = pneg %p126
      %p185 = pneg %p123
      %s186 = smul.u32 64, %s16
      %p187 = scmp.lt.s32.totalorder %s186, 255
      %s188 = scalar_select %p187, %s186, 255
      %s189 = smul.addr %s188, 2
      %s190 = smul.addr %s189, 4
      %s191 = scalar_lea.vmem %s0, %s190
      %s192 = smul.u32 64, %s16
      %s193 = smul.u32 64, %s16
      %p194 = scmp.lt.s32.totalorder %s193, 255
      %s195 = scalar_select %p194, %s193, 255
      %s196 = smul.addr %s195, 4
      %s197 = scalar_lea.vmem %s2, %s196
      %s198 = smul.u32 64, %s16
      %p200 = scmp.eq.s32.totalorder %s16, 0
      // Predicated region
      $region29: #{generator_forward.11} parent=27 // pred_check
        %p201 = pneg %p200
      $region30: #{generator_forward.11} parent=27 // pred_check_branch
        %203 = sbr.rel (%p201) target = $region32
      $region31: #{generator_forward.11} parent=27 // pred_region
        %204 = vst [vmem:[%s3] sm:$0x1] 0.0
        %205 = vst [vmem:[%s4] sm:$0x1] 0.0
      $region32: #{generator_forward.11} parent=27 // pred_fallthru
        _
      %v206 = vld [vmem:[%s191] sm:$0xff]
      %v207 = vld [vmem:[%s191 + $0x8] sm:$0xff]
      %v208 = vld [vmem:[%s191 + $0x10] sm:$0xff]
      %v209 = vld [vmem:[%s191 + $0x18] sm:$0xff]
      %v210 = vld [vmem:[%s191 + $0x20] sm:$0xff]
      %v211 = vld [vmem:[%s191 + $0x28] sm:$0xff]
      %v212 = vld [vmem:[%s191 + $0x30] sm:$0xff]
      %v213 = vld [vmem:[%s191 + $0x38] sm:$0xff]
      %v214 = vld [vmem:[%s191 + $0x40] sm:$0xff]
      %v215 = vld [vmem:[%s191 + $0x48] sm:$0xff]
      %v216 = vld [vmem:[%s191 + $0x50] sm:$0xff]
      %v217 = vld [vmem:[%s191 + $0x58] sm:$0xff]
      %v218 = vld [vmem:[%s191 + $0x60] sm:$0xff]
      %v219 = vld [vmem:[%s191 + $0x68] sm:$0xff]
      %v220 = vld [vmem:[%s191 + $0x70] sm:$0xff]
      %v221 = vld [vmem:[%s191 + $0x78] sm:$0xff]
      %v222 = vld [vmem:[%s191 + $0x80] sm:$0xff]
      %v223 = vld [vmem:[%s191 + $0x88] sm:$0xff]
      %v224 = vld [vmem:[%s191 + $0x90] sm:$0xff]
      %v225 = vld [vmem:[%s191 + $0x98] sm:$0xff]
      %v226 = vld [vmem:[%s191 + $0xa0] sm:$0xff]
      %v227 = vld [vmem:[%s191 + $0xa8] sm:$0xff]
      %v228 = vld [vmem:[%s191 + $0xb0] sm:$0xff]
      %v229 = vld [vmem:[%s191 + $0xb8] sm:$0xff]
      %v230 = vld [vmem:[%s191 + $0xc0] sm:$0xff]
      %v231 = vld [vmem:[%s191 + $0xc8] sm:$0xff]
      %v232 = vld [vmem:[%s191 + $0xd0] sm:$0xff]
      %v233 = vld [vmem:[%s191 + $0xd8] sm:$0xff]
      %v234 = vld [vmem:[%s191 + $0xe0] sm:$0xff]
      %v235 = vld [vmem:[%s191 + $0xe8] sm:$0xff]
      %v236 = vld [vmem:[%s191 + $0xf0] sm:$0xff]
      %v237 = vld [vmem:[%s191 + $0xf8] sm:$0xff]
      %v238 = vld [vmem:[%s191 + $0x100] sm:$0xff]
      %v239 = vld [vmem:[%s191 + $0x108] sm:$0xff]
      %v240 = vld [vmem:[%s191 + $0x110] sm:$0xff]
      %v241 = vld [vmem:[%s191 + $0x118] sm:$0xff]
      %v242 = vld [vmem:[%s191 + $0x120] sm:$0xff]
      %v243 = vld [vmem:[%s191 + $0x128] sm:$0xff]
      %v244 = vld [vmem:[%s191 + $0x130] sm:$0xff]
      %v245 = vld [vmem:[%s191 + $0x138] sm:$0xff]
      %v246 = vld [vmem:[%s191 + $0x140] sm:$0xff]
      %v247 = vld [vmem:[%s191 + $0x148] sm:$0xff]
      %v248 = vld [vmem:[%s191 + $0x150] sm:$0xff]
      %v249 = vld [vmem:[%s191 + $0x158] sm:$0xff]
      %v250 = vld [vmem:[%s191 + $0x160] sm:$0xff]
      %v251 = vld [vmem:[%s191 + $0x168] sm:$0xff]
      %v252 = vld [vmem:[%s191 + $0x170] sm:$0xff]
      %v253 = vld [vmem:[%s191 + $0x178] sm:$0xff]
      %v254 = vld [vmem:[%s191 + $0x180] sm:$0xff]
      %v255 = vld [vmem:[%s191 + $0x188] sm:$0xff]
      %v256 = vld [vmem:[%s191 + $0x190] sm:$0xff]
      %v257 = vld [vmem:[%s191 + $0x198] sm:$0xff]
      %v258 = vld [vmem:[%s191 + $0x1a0] sm:$0xff]
      %v259 = vld [vmem:[%s191 + $0x1a8] sm:$0xff]
      %v260 = vld [vmem:[%s191 + $0x1b0] sm:$0xff]
      %v261 = vld [vmem:[%s191 + $0x1b8] sm:$0xff]
      %v262 = vld [vmem:[%s191 + $0x1c0] sm:$0xff]
      %v263 = vld [vmem:[%s191 + $0x1c8] sm:$0xff]
      %v264 = vld [vmem:[%s191 + $0x1d0] sm:$0xff]
      %v265 = vld [vmem:[%s191 + $0x1d8] sm:$0xff]
      %v266 = vld [vmem:[%s191 + $0x1e0] sm:$0xff]
      %v267 = vld [vmem:[%s191 + $0x1e8] sm:$0xff]
      %v268 = vld [vmem:[%s191 + $0x1f0] sm:$0xff]
      %v269 = vld [vmem:[%s191 + $0x1f8] sm:$0xff]
      %v270 = vld [vmem:[%s1] sm:$0xf]
      %v271 = vld [vmem:[%s1 + $0x4] sm:$0xf]
      %v272 = vld [vmem:[%s1 + $0x8] sm:$0xf]
      %v273 = vld [vmem:[%s1 + $0xc] sm:$0xf]
      %v274 = vld [vmem:[%s1 + $0x10] sm:$0xf]
      %v275 = vld [vmem:[%s1 + $0x14] sm:$0xf]
      %v276 = vld [vmem:[%s1 + $0x18] sm:$0xf]
      %v277 = vld [vmem:[%s1 + $0x1c] sm:$0xf]
      %v278 = vld [vmem:[%s1 + $0x20] sm:$0xf]
      %v279 = vld [vmem:[%s1 + $0x24] sm:$0xf]
      %v280 = vld [vmem:[%s1 + $0x28] sm:$0xf]
      %v281 = vld [vmem:[%s1 + $0x2c] sm:$0xf]
      %v282 = vld [vmem:[%s1 + $0x30] sm:$0xf]
      %v283 = vld [vmem:[%s1 + $0x34] sm:$0xf]
      %v284 = vld [vmem:[%s1 + $0x38] sm:$0xf]
      %v285 = vld [vmem:[%s1 + $0x3c] sm:$0xf]
      %v286 = vld [vmem:[%s1 + $0x40] sm:$0xf]
      %v287 = vld [vmem:[%s1 + $0x44] sm:$0xf]
      %v288 = vld [vmem:[%s1 + $0x48] sm:$0xf]
      %v289 = vld [vmem:[%s1 + $0x4c] sm:$0xf]
      %v290 = vld [vmem:[%s1 + $0x50] sm:$0xf]
      %v291 = vld [vmem:[%s1 + $0x54] sm:$0xf]
      %v292 = vld [vmem:[%s1 + $0x58] sm:$0xf]
      %v293 = vld [vmem:[%s1 + $0x5c] sm:$0xf]
      %v294 = vld [vmem:[%s1 + $0x60] sm:$0xf]
      %v295 = vld [vmem:[%s1 + $0x64] sm:$0xf]
      %v296 = vld [vmem:[%s1 + $0x68] sm:$0xf]
      %v297 = vld [vmem:[%s1 + $0x6c] sm:$0xf]
      %v298 = vld [vmem:[%s1 + $0x70] sm:$0xf]
      %v299 = vld [vmem:[%s1 + $0x74] sm:$0xf]
      %v300 = vld [vmem:[%s1 + $0x78] sm:$0xf]
      %v301 = vld [vmem:[%s1 + $0x7c] sm:$0xf]
      %v366 = vunpack.c.l.b16 %v206
      %v367 = vunpack.c.h.b16 %v206
      %v368 = vunpack.c.l.b16 %v207
      %v369 = vunpack.c.h.b16 %v207
      %v370 = vunpack.c.l.b16 %v208
      %v371 = vunpack.c.h.b16 %v208
      %v372 = vunpack.c.l.b16 %v209
      %v373 = vunpack.c.h.b16 %v209
      %v374 = vunpack.c.l.b16 %v210
      %v375 = vunpack.c.h.b16 %v210
      %v376 = vunpack.c.l.b16 %v211
      %v377 = vunpack.c.h.b16 %v211
      %v378 = vunpack.c.l.b16 %v212
      %v379 = vunpack.c.h.b16 %v212
      %v380 = vunpack.c.l.b16 %v213
      %v381 = vunpack.c.h.b16 %v213
      %v382 = vunpack.c.l.b16 %v214
      %v383 = vunpack.c.h.b16 %v214
      %v384 = vunpack.c.l.b16 %v215
      %v385 = vunpack.c.h.b16 %v215
      %v386 = vunpack.c.l.b16 %v216
      %v387 = vunpack.c.h.b16 %v216
      %v388 = vunpack.c.l.b16 %v217
      %v389 = vunpack.c.h.b16 %v217
      %v390 = vunpack.c.l.b16 %v218
      %v391 = vunpack.c.h.b16 %v218
      %v392 = vunpack.c.l.b16 %v219
      %v393 = vunpack.c.h.b16 %v219
      %v394 = vunpack.c.l.b16 %v220
      %v395 = vunpack.c.h.b16 %v220
      %v396 = vunpack.c.l.b16 %v221
      %v397 = vunpack.c.h.b16 %v221
      %v398 = vunpack.c.l.b16 %v222
      %v399 = vunpack.c.h.b16 %v222
      %v400 = vunpack.c.l.b16 %v223
      %v401 = vunpack.c.h.b16 %v223
      %v402 = vunpack.c.l.b16 %v224
      %v403 = vunpack.c.h.b16 %v224
      %v404 = vunpack.c.l.b16 %v225
      %v405 = vunpack.c.h.b16 %v225
      %v406 = vunpack.c.l.b16 %v226
      %v407 = vunpack.c.h.b16 %v226
      %v408 = vunpack.c.l.b16 %v227
      %v409 = vunpack.c.h.b16 %v227
      %v410 = vunpack.c.l.b16 %v228
      %v411 = vunpack.c.h.b16 %v228
      %v412 = vunpack.c.l.b16 %v229
      %v413 = vunpack.c.h.b16 %v229
      %v414 = vunpack.c.l.b16 %v230
      %v415 = vunpack.c.h.b16 %v230
      %v416 = vunpack.c.l.b16 %v231
      %v417 = vunpack.c.h.b16 %v231
      %v418 = vunpack.c.l.b16 %v232
      %v419 = vunpack.c.h.b16 %v232
      %v420 = vunpack.c.l.b16 %v233
      %v421 = vunpack.c.h.b16 %v233
      %v422 = vunpack.c.l.b16 %v234
      %v423 = vunpack.c.h.b16 %v234
      %v424 = vunpack.c.l.b16 %v235
      %v425 = vunpack.c.h.b16 %v235
      %v426 = vunpack.c.l.b16 %v236
      %v427 = vunpack.c.h.b16 %v236
      %v428 = vunpack.c.l.b16 %v237
      %v429 = vunpack.c.h.b16 %v237
      %v430 = vunpack.c.l.b16 %v238
      %v431 = vunpack.c.h.b16 %v238
      %v432 = vunpack.c.l.b16 %v239
      %v433 = vunpack.c.h.b16 %v239
      %v434 = vunpack.c.l.b16 %v240
      %v435 = vunpack.c.h.b16 %v240
      %v436 = vunpack.c.l.b16 %v241
      %v437 = vunpack.c.h.b16 %v241
      %v438 = vunpack.c.l.b16 %v242
      %v439 = vunpack.c.h.b16 %v242
      %v440 = vunpack.c.l.b16 %v243
      %v441 = vunpack.c.h.b16 %v243
      %v442 = vunpack.c.l.b16 %v244
      %v443 = vunpack.c.h.b16 %v244
      %v444 = vunpack.c.l.b16 %v245
      %v445 = vunpack.c.h.b16 %v245
      %v446 = vunpack.c.l.b16 %v246
      %v447 = vunpack.c.h.b16 %v246
      %v448 = vunpack.c.l.b16 %v247
      %v449 = vunpack.c.h.b16 %v247
      %v450 = vunpack.c.l.b16 %v248
      %v451 = vunpack.c.h.b16 %v248
      %v452 = vunpack.c.l.b16 %v249
      %v453 = vunpack.c.h.b16 %v249
      %v454 = vunpack.c.l.b16 %v250
      %v455 = vunpack.c.h.b16 %v250
      %v456 = vunpack.c.l.b16 %v251
      %v457 = vunpack.c.h.b16 %v251
      %v458 = vunpack.c.l.b16 %v252
      %v459 = vunpack.c.h.b16 %v252
      %v460 = vunpack.c.l.b16 %v253
      %v461 = vunpack.c.h.b16 %v253
      %v462 = vunpack.c.l.b16 %v254
      %v463 = vunpack.c.h.b16 %v254
      %v464 = vunpack.c.l.b16 %v255
      %v465 = vunpack.c.h.b16 %v255
      %v466 = vunpack.c.l.b16 %v256
      %v467 = vunpack.c.h.b16 %v256
      %v468 = vunpack.c.l.b16 %v257
      %v469 = vunpack.c.h.b16 %v257
      %v470 = vunpack.c.l.b16 %v258
      %v471 = vunpack.c.h.b16 %v258
      %v472 = vunpack.c.l.b16 %v259
      %v473 = vunpack.c.h.b16 %v259
      %v474 = vunpack.c.l.b16 %v260
      %v475 = vunpack.c.h.b16 %v260
      %v476 = vunpack.c.l.b16 %v261
      %v477 = vunpack.c.h.b16 %v261
      %v478 = vunpack.c.l.b16 %v262
      %v479 = vunpack.c.h.b16 %v262
      %v480 = vunpack.c.l.b16 %v263
      %v481 = vunpack.c.h.b16 %v263
      %v482 = vunpack.c.l.b16 %v264
      %v483 = vunpack.c.h.b16 %v264
      %v484 = vunpack.c.l.b16 %v265
      %v485 = vunpack.c.h.b16 %v265
      %v486 = vunpack.c.l.b16 %v266
      %v487 = vunpack.c.h.b16 %v266
      %v488 = vunpack.c.l.b16 %v267
      %v489 = vunpack.c.h.b16 %v267
      %v490 = vunpack.c.l.b16 %v268
      %v491 = vunpack.c.h.b16 %v268
      %v492 = vunpack.c.l.b16 %v269
      %v493 = vunpack.c.h.b16 %v269
      %v494 = vpack.c.b16 %v368, %v366
      %v495 = vpack.c.b16 %v369, %v367
      %v496 = vpack.c.b16 %v372, %v370
      %v497 = vpack.c.b16 %v373, %v371
      %v498 = vpack.c.b16 %v376, %v374
      %v499 = vpack.c.b16 %v377, %v375
      %v500 = vpack.c.b16 %v380, %v378
      %v501 = vpack.c.b16 %v381, %v379
      %v502 = vpack.c.b16 %v384, %v382
      %v503 = vpack.c.b16 %v385, %v383
      %v504 = vpack.c.b16 %v388, %v386
      %v505 = vpack.c.b16 %v389, %v387
      %v506 = vpack.c.b16 %v392, %v390
      %v507 = vpack.c.b16 %v393, %v391
      %v508 = vpack.c.b16 %v396, %v394
      %v509 = vpack.c.b16 %v397, %v395
      %v510 = vpack.c.b16 %v400, %v398
      %v511 = vpack.c.b16 %v401, %v399
      %v512 = vpack.c.b16 %v404, %v402
      %v513 = vpack.c.b16 %v405, %v403
      %v514 = vpack.c.b16 %v408, %v406
      %v515 = vpack.c.b16 %v409, %v407
      %v516 = vpack.c.b16 %v412, %v410
      %v517 = vpack.c.b16 %v413, %v411
      %v518 = vpack.c.b16 %v416, %v414
      %v519 = vpack.c.b16 %v417, %v415
      %v520 = vpack.c.b16 %v420, %v418
      %v521 = vpack.c.b16 %v421, %v419
      %v522 = vpack.c.b16 %v424, %v422
      %v523 = vpack.c.b16 %v425, %v423
      %v524 = vpack.c.b16 %v428, %v426
      %v525 = vpack.c.b16 %v429, %v427
      %v526 = vpack.c.b16 %v432, %v430
      %v527 = vpack.c.b16 %v433, %v431
      %v528 = vpack.c.b16 %v436, %v434
      %v529 = vpack.c.b16 %v437, %v435
      %v530 = vpack.c.b16 %v440, %v438
      %v531 = vpack.c.b16 %v441, %v439
      %v532 = vpack.c.b16 %v444, %v442
      %v533 = vpack.c.b16 %v445, %v443
      %v534 = vpack.c.b16 %v448, %v446
      %v535 = vpack.c.b16 %v449, %v447
      %v536 = vpack.c.b16 %v452, %v450
      %v537 = vpack.c.b16 %v453, %v451
      %v538 = vpack.c.b16 %v456, %v454
      %v539 = vpack.c.b16 %v457, %v455
      %v540 = vpack.c.b16 %v460, %v458
      %v541 = vpack.c.b16 %v461, %v459
      %v542 = vpack.c.b16 %v464, %v462
      %v543 = vpack.c.b16 %v465, %v463
      %v544 = vpack.c.b16 %v468, %v466
      %v545 = vpack.c.b16 %v469, %v467
      %v546 = vpack.c.b16 %v472, %v470
      %v547 = vpack.c.b16 %v473, %v471
      %v548 = vpack.c.b16 %v476, %v474
      %v549 = vpack.c.b16 %v477, %v475
      %v550 = vpack.c.b16 %v480, %v478
      %v551 = vpack.c.b16 %v481, %v479
      %v552 = vpack.c.b16 %v484, %v482
      %v553 = vpack.c.b16 %v485, %v483
      %v554 = vpack.c.b16 %v488, %v486
      %v555 = vpack.c.b16 %v489, %v487
      %v556 = vpack.c.b16 %v492, %v490
      %v557 = vpack.c.b16 %v493, %v491
      %v654 = vunpack.c.l.b16 %v270
      %v655 = vunpack.c.l.b16 %v271
      %v656 = vunpack.c.l.b16 %v272
      %v657 = vunpack.c.l.b16 %v273
      %v658 = vunpack.c.l.b16 %v274
      %v659 = vunpack.c.l.b16 %v275
      %v660 = vunpack.c.l.b16 %v276
      %v661 = vunpack.c.l.b16 %v277
      %v662 = vunpack.c.l.b16 %v278
      %v663 = vunpack.c.l.b16 %v279
      %v664 = vunpack.c.l.b16 %v280
      %v665 = vunpack.c.l.b16 %v281
      %v666 = vunpack.c.l.b16 %v282
      %v667 = vunpack.c.l.b16 %v283
      %v668 = vunpack.c.l.b16 %v284
      %v669 = vunpack.c.l.b16 %v285
      %v670 = vunpack.c.l.b16 %v286
      %v671 = vunpack.c.l.b16 %v287
      %v672 = vunpack.c.l.b16 %v288
      %v673 = vunpack.c.l.b16 %v289
      %v674 = vunpack.c.l.b16 %v290
      %v675 = vunpack.c.l.b16 %v291
      %v676 = vunpack.c.l.b16 %v292
      %v677 = vunpack.c.l.b16 %v293
      %v678 = vunpack.c.l.b16 %v294
      %v679 = vunpack.c.l.b16 %v295
      %v680 = vunpack.c.l.b16 %v296
      %v681 = vunpack.c.l.b16 %v297
      %v682 = vunpack.c.l.b16 %v298
      %v683 = vunpack.c.l.b16 %v299
      %v684 = vunpack.c.l.b16 %v300
      %v685 = vunpack.c.l.b16 %v301
      %v686 = vpack.c.b16 %v655, %v654
      %v687 = vpack.c.b16 %v657, %v656
      %v688 = vpack.c.b16 %v659, %v658
      %v689 = vpack.c.b16 %v661, %v660
      %v690 = vpack.c.b16 %v663, %v662
      %v691 = vpack.c.b16 %v665, %v664
      %v692 = vpack.c.b16 %v667, %v666
      %v693 = vpack.c.b16 %v669, %v668
      %v694 = vpack.c.b16 %v671, %v670
      %v695 = vpack.c.b16 %v673, %v672
      %v696 = vpack.c.b16 %v675, %v674
      %v697 = vpack.c.b16 %v677, %v676
      %v698 = vpack.c.b16 %v679, %v678
      %v699 = vpack.c.b16 %v681, %v680
      %v700 = vpack.c.b16 %v683, %v682
      %v701 = vpack.c.b16 %v685, %v684
      %718 = vmatprep.subr.bf16.mxu0 0
      %719 = vmatpush1.bf16.msra.mxu0 %v693
      %720 = vmatprep.subr.bf16.mxu0 0
      %721 = vmatpush1.bf16.msra.mxu0 %v692
      %722 = vmatprep.subr.bf16.mxu0 0
      %723 = vmatpush1.bf16.msra.mxu0 %v691
      %724 = vmatprep.subr.bf16.mxu0 0
      %725 = vmatpush1.bf16.msra.mxu0 %v690
      %726 = vmatprep.subr.bf16.mxu0 0
      %727 = vmatpush1.bf16.msra.mxu0 %v689
      %728 = vmatprep.subr.bf16.mxu0 0
      %729 = vmatpush1.bf16.msra.mxu0 %v688
      %730 = vmatprep.subr.bf16.mxu0 0
      %731 = vmatpush1.bf16.msra.mxu0 %v687
      %732 = vmatprep.subr.bf16.mxu0 0
      %733 = vmatpush1.bf16.msra.mxu0 %v686
      %734 = vmatprep.subr.bf16.mxu0 0
      %735 = vmatpush2.bf16.msra.mxu0 %v701
      %736 = vmatprep.subr.bf16.mxu0 0
      %737 = vmatpush2.bf16.msra.mxu0 %v700
      %738 = vmatprep.subr.bf16.mxu0 0
      %739 = vmatpush2.bf16.msra.mxu0 %v699
      %740 = vmatprep.subr.bf16.mxu0 0
      %741 = vmatpush2.bf16.msra.mxu0 %v698
      %742 = vmatprep.subr.bf16.mxu0 0
      %743 = vmatpush2.bf16.msra.mxu0 %v697
      %744 = vmatprep.subr.bf16.mxu0 0
      %745 = vmatpush2.bf16.msra.mxu0 %v696
      %746 = vmatprep.subr.bf16.mxu0 0
      %747 = vmatpush2.bf16.msra.mxu0 %v695
      %748 = vmatprep.subr.bf16.mxu0 0
      %749 = vmatpush2.bf16.msra.mxu0 %v694
      %750 = vmatprep.mubr.bf16.mxu0 %v495
      %751 = vmatmul.mubr.bf16.gmra.mxu0 %v494
      %v752 = vpop.f32.mrf.mxu0
      %v753 = vadd.f32 0.0, %v752
      %v754 = vpop.f32.mrf.mxu0
      %v755 = vpop.f32.mrf.mxu0
      %v756 = vadd.f32 0.0, %v755
      %v757 = vpop.f32.mrf.mxu0
      %758 = vmatprep.mubr.bf16.mxu0 %v497
      %759 = vmatmul.mubr.bf16.gmra.mxu0 %v496
      %v760 = vpop.f32.mrf.mxu0
      %v761 = vadd.f32 0.0, %v760
      %v762 = vpop.f32.mrf.mxu0
      %v763 = vpop.f32.mrf.mxu0
      %v764 = vadd.f32 0.0, %v763
      %v765 = vpop.f32.mrf.mxu0
      %766 = vmatprep.mubr.bf16.mxu0 %v499
      %767 = vmatmul.mubr.bf16.gmra.mxu0 %v498
      %v768 = vpop.f32.mrf.mxu0
      %v769 = vadd.f32 0.0, %v768
      %v770 = vpop.f32.mrf.mxu0
      %v771 = vpop.f32.mrf.mxu0
      %v772 = vadd.f32 0.0, %v771
      %v773 = vpop.f32.mrf.mxu0
      %774 = vmatprep.mubr.bf16.mxu0 %v501
      %775 = vmatmul.mubr.bf16.gmra.mxu0 %v500
      %v776 = vpop.f32.mrf.mxu0
      %v777 = vadd.f32 0.0, %v776
      %v778 = vpop.f32.mrf.mxu0
      %v779 = vpop.f32.mrf.mxu0
      %v780 = vadd.f32 0.0, %v779
      %v781 = vpop.f32.mrf.mxu0
      %782 = vmatprep.mubr.bf16.mxu0 %v503
      %783 = vmatmul.mubr.bf16.gmra.mxu0 %v502
      %v784 = vpop.f32.mrf.mxu0
      %v785 = vadd.f32 0.0, %v784
      %v786 = vpop.f32.mrf.mxu0
      %v787 = vpop.f32.mrf.mxu0
      %v788 = vadd.f32 0.0, %v787
      %v789 = vpop.f32.mrf.mxu0
      %790 = vmatprep.mubr.bf16.mxu0 %v505
      %791 = vmatmul.mubr.bf16.gmra.mxu0 %v504
      %v792 = vpop.f32.mrf.mxu0
      %v793 = vadd.f32 0.0, %v792
      %v794 = vpop.f32.mrf.mxu0
      %v795 = vpop.f32.mrf.mxu0
      %v796 = vadd.f32 0.0, %v795
      %v797 = vpop.f32.mrf.mxu0
      %798 = vmatprep.mubr.bf16.mxu0 %v507
      %799 = vmatmul.mubr.bf16.gmra.mxu0 %v506
      %v800 = vpop.f32.mrf.mxu0
      %v801 = vadd.f32 0.0, %v800
      %v802 = vpop.f32.mrf.mxu0
      %v803 = vpop.f32.mrf.mxu0
      %v804 = vadd.f32 0.0, %v803
      %v805 = vpop.f32.mrf.mxu0
      %806 = vmatprep.mubr.bf16.mxu0 %v509
      %807 = vmatmul.mubr.bf16.gmra.mxu0 %v508
      %v808 = vpop.f32.mrf.mxu0
      %v809 = vadd.f32 0.0, %v808
      %v810 = vpop.f32.mrf.mxu0
      %v811 = vpop.f32.mrf.mxu0
      %v812 = vadd.f32 0.0, %v811
      %v813 = vpop.f32.mrf.mxu0
      %814 = vmatprep.mubr.bf16.mxu0 %v511
      %815 = vmatmul.mubr.bf16.gmra.mxu0 %v510
      %v816 = vpop.f32.mrf.mxu0
      %v817 = vadd.f32 0.0, %v816
      %v818 = vpop.f32.mrf.mxu0
      %v819 = vpop.f32.mrf.mxu0
      %v820 = vadd.f32 0.0, %v819
      %v821 = vpop.f32.mrf.mxu0
      %822 = vmatprep.mubr.bf16.mxu0 %v513
      %823 = vmatmul.mubr.bf16.gmra.mxu0 %v512
      %v824 = vpop.f32.mrf.mxu0
      %v825 = vadd.f32 0.0, %v824
      %v826 = vpop.f32.mrf.mxu0
      %v827 = vpop.f32.mrf.mxu0
      %v828 = vadd.f32 0.0, %v827
      %v829 = vpop.f32.mrf.mxu0
      %830 = vmatprep.mubr.bf16.mxu0 %v515
      %831 = vmatmul.mubr.bf16.gmra.mxu0 %v514
      %v832 = vpop.f32.mrf.mxu0
      %v833 = vadd.f32 0.0, %v832
      %v834 = vpop.f32.mrf.mxu0
      %v835 = vpop.f32.mrf.mxu0
      %v836 = vadd.f32 0.0, %v835
      %v837 = vpop.f32.mrf.mxu0
      %838 = vmatprep.mubr.bf16.mxu0 %v517
      %839 = vmatmul.mubr.bf16.gmra.mxu0 %v516
      %v840 = vpop.f32.mrf.mxu0
      %v841 = vadd.f32 0.0, %v840
      %v842 = vpop.f32.mrf.mxu0
      %v843 = vpop.f32.mrf.mxu0
      %v844 = vadd.f32 0.0, %v843
      %v845 = vpop.f32.mrf.mxu0
      %846 = vmatprep.mubr.bf16.mxu0 %v519
      %847 = vmatmul.mubr.bf16.gmra.mxu0 %v518
      %v848 = vpop.f32.mrf.mxu0
      %v849 = vadd.f32 0.0, %v848
      %v850 = vpop.f32.mrf.mxu0
      %v851 = vpop.f32.mrf.mxu0
      %v852 = vadd.f32 0.0, %v851
      %v853 = vpop.f32.mrf.mxu0
      %854 = vmatprep.mubr.bf16.mxu0 %v521
      %855 = vmatmul.mubr.bf16.gmra.mxu0 %v520
      %v856 = vpop.f32.mrf.mxu0
      %v857 = vadd.f32 0.0, %v856
      %v858 = vpop.f32.mrf.mxu0
      %v859 = vpop.f32.mrf.mxu0
      %v860 = vadd.f32 0.0, %v859
      %v861 = vpop.f32.mrf.mxu0
      %862 = vmatprep.mubr.bf16.mxu0 %v523
      %863 = vmatmul.mubr.bf16.gmra.mxu0 %v522
      %v864 = vpop.f32.mrf.mxu0
      %v865 = vadd.f32 0.0, %v864
      %v866 = vpop.f32.mrf.mxu0
      %v867 = vpop.f32.mrf.mxu0
      %v868 = vadd.f32 0.0, %v867
      %v869 = vpop.f32.mrf.mxu0
      %870 = vmatprep.mubr.bf16.mxu0 %v525
      %871 = vmatmul.mubr.bf16.gmra.mxu0 %v524
      %v872 = vpop.f32.mrf.mxu0
      %v873 = vadd.f32 0.0, %v872
      %v874 = vpop.f32.mrf.mxu0
      %v875 = vpop.f32.mrf.mxu0
      %v876 = vadd.f32 0.0, %v875
      %v877 = vpop.f32.mrf.mxu0
      %878 = vmatprep.mubr.bf16.mxu0 %v527
      %879 = vmatmul.mubr.bf16.gmra.mxu0 %v526
      %v880 = vpop.f32.mrf.mxu0
      %v881 = vadd.f32 0.0, %v880
      %v882 = vpop.f32.mrf.mxu0
      %v883 = vpop.f32.mrf.mxu0
      %v884 = vadd.f32 0.0, %v883
      %v885 = vpop.f32.mrf.mxu0
      %886 = vmatprep.mubr.bf16.mxu0 %v529
      %887 = vmatmul.mubr.bf16.gmra.mxu0 %v528
      %v888 = vpop.f32.mrf.mxu0
      %v889 = vadd.f32 0.0, %v888
      %v890 = vpop.f32.mrf.mxu0
      %v891 = vpop.f32.mrf.mxu0
      %v892 = vadd.f32 0.0, %v891
      %v893 = vpop.f32.mrf.mxu0
      %894 = vmatprep.mubr.bf16.mxu0 %v531
      %895 = vmatmul.mubr.bf16.gmra.mxu0 %v530
      %v896 = vpop.f32.mrf.mxu0
      %v897 = vadd.f32 0.0, %v896
      %v898 = vpop.f32.mrf.mxu0
      %v899 = vpop.f32.mrf.mxu0
      %v900 = vadd.f32 0.0, %v899
      %v901 = vpop.f32.mrf.mxu0
      %902 = vmatprep.mubr.bf16.mxu0 %v533
      %903 = vmatmul.mubr.bf16.gmra.mxu0 %v532
      %v904 = vpop.f32.mrf.mxu0
      %v905 = vadd.f32 0.0, %v904
      %v906 = vpop.f32.mrf.mxu0
      %v907 = vpop.f32.mrf.mxu0
      %v908 = vadd.f32 0.0, %v907
      %v909 = vpop.f32.mrf.mxu0
      %910 = vmatprep.mubr.bf16.mxu0 %v535
      %911 = vmatmul.mubr.bf16.gmra.mxu0 %v534
      %v912 = vpop.f32.mrf.mxu0
      %v913 = vadd.f32 0.0, %v912
      %v914 = vpop.f32.mrf.mxu0
      %v915 = vpop.f32.mrf.mxu0
      %v916 = vadd.f32 0.0, %v915
      %v917 = vpop.f32.mrf.mxu0
      %918 = vmatprep.mubr.bf16.mxu0 %v537
      %919 = vmatmul.mubr.bf16.gmra.mxu0 %v536
      %v920 = vpop.f32.mrf.mxu0
      %v921 = vadd.f32 0.0, %v920
      %v922 = vpop.f32.mrf.mxu0
      %v923 = vpop.f32.mrf.mxu0
      %v924 = vadd.f32 0.0, %v923
      %v925 = vpop.f32.mrf.mxu0
      %926 = vmatprep.mubr.bf16.mxu0 %v539
      %927 = vmatmul.mubr.bf16.gmra.mxu0 %v538
      %v928 = vpop.f32.mrf.mxu0
      %v929 = vadd.f32 0.0, %v928
      %v930 = vpop.f32.mrf.mxu0
      %v931 = vpop.f32.mrf.mxu0
      %v932 = vadd.f32 0.0, %v931
      %v933 = vpop.f32.mrf.mxu0
      %934 = vmatprep.mubr.bf16.mxu0 %v541
      %935 = vmatmul.mubr.bf16.gmra.mxu0 %v540
      %v936 = vpop.f32.mrf.mxu0
      %v937 = vadd.f32 0.0, %v936
      %v938 = vpop.f32.mrf.mxu0
      %v939 = vpop.f32.mrf.mxu0
      %v940 = vadd.f32 0.0, %v939
      %v941 = vpop.f32.mrf.mxu0
      %942 = vmatprep.mubr.bf16.mxu0 %v543
      %943 = vmatmul.mubr.bf16.gmra.mxu0 %v542
      %v944 = vpop.f32.mrf.mxu0
      %v945 = vadd.f32 0.0, %v944
      %v946 = vpop.f32.mrf.mxu0
      %v947 = vpop.f32.mrf.mxu0
      %v948 = vadd.f32 0.0, %v947
      %v949 = vpop.f32.mrf.mxu0
      %950 = vmatprep.mubr.bf16.mxu0 %v545
      %951 = vmatmul.mubr.bf16.gmra.mxu0 %v544
      %v952 = vpop.f32.mrf.mxu0
      %v953 = vadd.f32 0.0, %v952
      %v954 = vpop.f32.mrf.mxu0
      %v955 = vpop.f32.mrf.mxu0
      %v956 = vadd.f32 0.0, %v955
      %v957 = vpop.f32.mrf.mxu0
      %958 = vmatprep.mubr.bf16.mxu0 %v547
      %959 = vmatmul.mubr.bf16.gmra.mxu0 %v546
      %v960 = vpop.f32.mrf.mxu0
      %v961 = vadd.f32 0.0, %v960
      %v962 = vpop.f32.mrf.mxu0
      %v963 = vpop.f32.mrf.mxu0
      %v964 = vadd.f32 0.0, %v963
      %v965 = vpop.f32.mrf.mxu0
      %966 = vmatprep.mubr.bf16.mxu0 %v549
      %967 = vmatmul.mubr.bf16.gmra.mxu0 %v548
      %v968 = vpop.f32.mrf.mxu0
      %v969 = vadd.f32 0.0, %v968
      %v970 = vpop.f32.mrf.mxu0
      %v971 = vpop.f32.mrf.mxu0
      %v972 = vadd.f32 0.0, %v971
      %v973 = vpop.f32.mrf.mxu0
      %974 = vmatprep.mubr.bf16.mxu0 %v551
      %975 = vmatmul.mubr.bf16.gmra.mxu0 %v550
      %v976 = vpop.f32.mrf.mxu0
      %v977 = vadd.f32 0.0, %v976
      %v978 = vpop.f32.mrf.mxu0
      %v979 = vpop.f32.mrf.mxu0
      %v980 = vadd.f32 0.0, %v979
      %v981 = vpop.f32.mrf.mxu0
      %982 = vmatprep.mubr.bf16.mxu0 %v553
      %983 = vmatmul.mubr.bf16.gmra.mxu0 %v552
      %v984 = vpop.f32.mrf.mxu0
      %v985 = vadd.f32 0.0, %v984
      %v986 = vpop.f32.mrf.mxu0
      %v987 = vpop.f32.mrf.mxu0
      %v988 = vadd.f32 0.0, %v987
      %v989 = vpop.f32.mrf.mxu0
      %990 = vmatprep.mubr.bf16.mxu0 %v555
      %991 = vmatmul.mubr.bf16.gmra.mxu0 %v554
      %v992 = vpop.f32.mrf.mxu0
      %v993 = vadd.f32 0.0, %v992
      %v994 = vpop.f32.mrf.mxu0
      %v995 = vpop.f32.mrf.mxu0
      %v996 = vadd.f32 0.0, %v995
      %v997 = vpop.f32.mrf.mxu0
      %998 = vmatprep.mubr.bf16.mxu0 %v557
      %999 = vmatmul.mubr.bf16.gmra.mxu0 %v556
      %v1000 = vpop.f32.mrf.mxu0
      %v1001 = vadd.f32 0.0, %v1000
      %v1002 = vpop.f32.mrf.mxu0
      %v1003 = vpop.f32.mrf.mxu0
      %v1004 = vadd.f32 0.0, %v1003
      %v1005 = vpop.f32.mrf.mxu0
      %1006 = vdwg.mxu0
      %v1007 = vpack.c.bf16 %v756, %v753
      %v1008 = vpack.c.bf16 %v764, %v761
      %v1009 = vpack.c.bf16 %v772, %v769
      %v1010 = vpack.c.bf16 %v780, %v777
      %v1011 = vpack.c.bf16 %v788, %v785
      %v1012 = vpack.c.bf16 %v796, %v793
      %v1013 = vpack.c.bf16 %v804, %v801
      %v1014 = vpack.c.bf16 %v812, %v809
      %v1015 = vpack.c.bf16 %v820, %v817
      %v1016 = vpack.c.bf16 %v828, %v825
      %v1017 = vpack.c.bf16 %v836, %v833
      %v1018 = vpack.c.bf16 %v844, %v841
      %v1019 = vpack.c.bf16 %v852, %v849
      %v1020 = vpack.c.bf16 %v860, %v857
      %v1021 = vpack.c.bf16 %v868, %v865
      %v1022 = vpack.c.bf16 %v876, %v873
      %v1023 = vpack.c.bf16 %v884, %v881
      %v1024 = vpack.c.bf16 %v892, %v889
      %v1025 = vpack.c.bf16 %v900, %v897
      %v1026 = vpack.c.bf16 %v908, %v905
      %v1027 = vpack.c.bf16 %v916, %v913
      %v1028 = vpack.c.bf16 %v924, %v921
      %v1029 = vpack.c.bf16 %v932, %v929
      %v1030 = vpack.c.bf16 %v940, %v937
      %v1031 = vpack.c.bf16 %v948, %v945
      %v1032 = vpack.c.bf16 %v956, %v953
      %v1033 = vpack.c.bf16 %v964, %v961
      %v1034 = vpack.c.bf16 %v972, %v969
      %v1035 = vpack.c.bf16 %v980, %v977
      %v1036 = vpack.c.bf16 %v988, %v985
      %v1037 = vpack.c.bf16 %v996, %v993
      %v1038 = vpack.c.bf16 %v1004, %v1001
      %v1071 = vunpack.c.l.b16 %v1007
      %v1072 = vunpack.c.h.b16 %v1007
      %v1073 = vunpack.c.l.b16 %v1008
      %v1074 = vunpack.c.h.b16 %v1008
      %v1075 = vunpack.c.l.b16 %v1009
      %v1076 = vunpack.c.h.b16 %v1009
      %v1077 = vunpack.c.l.b16 %v1010
      %v1078 = vunpack.c.h.b16 %v1010
      %v1079 = vunpack.c.l.b16 %v1011
      %v1080 = vunpack.c.h.b16 %v1011
      %v1081 = vunpack.c.l.b16 %v1012
      %v1082 = vunpack.c.h.b16 %v1012
      %v1083 = vunpack.c.l.b16 %v1013
      %v1084 = vunpack.c.h.b16 %v1013
      %v1085 = vunpack.c.l.b16 %v1014
      %v1086 = vunpack.c.h.b16 %v1014
      %v1087 = vunpack.c.l.b16 %v1015
      %v1088 = vunpack.c.h.b16 %v1015
      %v1089 = vunpack.c.l.b16 %v1016
      %v1090 = vunpack.c.h.b16 %v1016
      %v1091 = vunpack.c.l.b16 %v1017
      %v1092 = vunpack.c.h.b16 %v1017
      %v1093 = vunpack.c.l.b16 %v1018
      %v1094 = vunpack.c.h.b16 %v1018
      %v1095 = vunpack.c.l.b16 %v1019
      %v1096 = vunpack.c.h.b16 %v1019
      %v1097 = vunpack.c.l.b16 %v1020
      %v1098 = vunpack.c.h.b16 %v1020
      %v1099 = vunpack.c.l.b16 %v1021
      %v1100 = vunpack.c.h.b16 %v1021
      %v1101 = vunpack.c.l.b16 %v1022
      %v1102 = vunpack.c.h.b16 %v1022
      %v1103 = vunpack.c.l.b16 %v1023
      %v1104 = vunpack.c.h.b16 %v1023
      %v1105 = vunpack.c.l.b16 %v1024
      %v1106 = vunpack.c.h.b16 %v1024
      %v1107 = vunpack.c.l.b16 %v1025
      %v1108 = vunpack.c.h.b16 %v1025
      %v1109 = vunpack.c.l.b16 %v1026
      %v1110 = vunpack.c.h.b16 %v1026
      %v1111 = vunpack.c.l.b16 %v1027
      %v1112 = vunpack.c.h.b16 %v1027
      %v1113 = vunpack.c.l.b16 %v1028
      %v1114 = vunpack.c.h.b16 %v1028
      %v1115 = vunpack.c.l.b16 %v1029
      %v1116 = vunpack.c.h.b16 %v1029
      %v1117 = vunpack.c.l.b16 %v1030
      %v1118 = vunpack.c.h.b16 %v1030
      %v1119 = vunpack.c.l.b16 %v1031
      %v1120 = vunpack.c.h.b16 %v1031
      %v1121 = vunpack.c.l.b16 %v1032
      %v1122 = vunpack.c.h.b16 %v1032
      %v1123 = vunpack.c.l.b16 %v1033
      %v1124 = vunpack.c.h.b16 %v1033
      %v1125 = vunpack.c.l.b16 %v1034
      %v1126 = vunpack.c.h.b16 %v1034
      %v1127 = vunpack.c.l.b16 %v1035
      %v1128 = vunpack.c.h.b16 %v1035
      %v1129 = vunpack.c.l.b16 %v1036
      %v1130 = vunpack.c.h.b16 %v1036
      %v1131 = vunpack.c.l.b16 %v1037
      %v1132 = vunpack.c.h.b16 %v1037
      %v1133 = vunpack.c.l.b16 %v1038
      %v1134 = vunpack.c.h.b16 %v1038
      %v1135 = vpack.c.b16 %v1071, %v1071
      %v1136 = vpack.c.b16 %v1072, %v1072
      %v1137 = vpack.c.b16 %v1073, %v1073
      %v1138 = vpack.c.b16 %v1074, %v1074
      %v1139 = vpack.c.b16 %v1075, %v1075
      %v1140 = vpack.c.b16 %v1076, %v1076
      %v1141 = vpack.c.b16 %v1077, %v1077
      %v1142 = vpack.c.b16 %v1078, %v1078
      %v1143 = vpack.c.b16 %v1079, %v1079
      %v1144 = vpack.c.b16 %v1080, %v1080
      %v1145 = vpack.c.b16 %v1081, %v1081
      %v1146 = vpack.c.b16 %v1082, %v1082
      %v1147 = vpack.c.b16 %v1083, %v1083
      %v1148 = vpack.c.b16 %v1084, %v1084
      %v1149 = vpack.c.b16 %v1085, %v1085
      %v1150 = vpack.c.b16 %v1086, %v1086
      %v1151 = vpack.c.b16 %v1087, %v1087
      %v1152 = vpack.c.b16 %v1088, %v1088
      %v1153 = vpack.c.b16 %v1089, %v1089
      %v1154 = vpack.c.b16 %v1090, %v1090
      %v1155 = vpack.c.b16 %v1091, %v1091
      %v1156 = vpack.c.b16 %v1092, %v1092
      %v1157 = vpack.c.b16 %v1093, %v1093
      %v1158 = vpack.c.b16 %v1094, %v1094
      %v1159 = vpack.c.b16 %v1095, %v1095
      %v1160 = vpack.c.b16 %v1096, %v1096
      %v1161 = vpack.c.b16 %v1097, %v1097
      %v1162 = vpack.c.b16 %v1098, %v1098
      %v1163 = vpack.c.b16 %v1099, %v1099
      %v1164 = vpack.c.b16 %v1100, %v1100
      %v1165 = vpack.c.b16 %v1101, %v1101
      %v1166 = vpack.c.b16 %v1102, %v1102
      %v1167 = vpack.c.b16 %v1103, %v1103
      %v1168 = vpack.c.b16 %v1104, %v1104
      %v1169 = vpack.c.b16 %v1105, %v1105
      %v1170 = vpack.c.b16 %v1106, %v1106
      %v1171 = vpack.c.b16 %v1107, %v1107
      %v1172 = vpack.c.b16 %v1108, %v1108
      %v1173 = vpack.c.b16 %v1109, %v1109
      %v1174 = vpack.c.b16 %v1110, %v1110
      %v1175 = vpack.c.b16 %v1111, %v1111
      %v1176 = vpack.c.b16 %v1112, %v1112
      %v1177 = vpack.c.b16 %v1113, %v1113
      %v1178 = vpack.c.b16 %v1114, %v1114
      %v1179 = vpack.c.b16 %v1115, %v1115
      %v1180 = vpack.c.b16 %v1116, %v1116
      %v1181 = vpack.c.b16 %v1117, %v1117
      %v1182 = vpack.c.b16 %v1118, %v1118
      %v1183 = vpack.c.b16 %v1119, %v1119
      %v1184 = vpack.c.b16 %v1120, %v1120
      %v1185 = vpack.c.b16 %v1121, %v1121
      %v1186 = vpack.c.b16 %v1122, %v1122
      %v1187 = vpack.c.b16 %v1123, %v1123
      %v1188 = vpack.c.b16 %v1124, %v1124
      %v1189 = vpack.c.b16 %v1125, %v1125
      %v1190 = vpack.c.b16 %v1126, %v1126
      %v1191 = vpack.c.b16 %v1127, %v1127
      %v1192 = vpack.c.b16 %v1128, %v1128
      %v1193 = vpack.c.b16 %v1129, %v1129
      %v1194 = vpack.c.b16 %v1130, %v1130
      %v1195 = vpack.c.b16 %v1131, %v1131
      %v1196 = vpack.c.b16 %v1132, %v1132
      %v1197 = vpack.c.b16 %v1133, %v1133
      %v1198 = vpack.c.b16 %v1134, %v1134
      %1263 = vst [vmem:[%s197] sm:$0xf] %v1135
      %1264 = vst [vmem:[%s197 + $0x4] sm:$0xf] %v1136
      %1265 = vst [vmem:[%s197 + $0x8] sm:$0xf] %v1137
      %1266 = vst [vmem:[%s197 + $0xc] sm:$0xf] %v1138
      %1267 = vst [vmem:[%s197 + $0x10] sm:$0xf] %v1139
      %1268 = vst [vmem:[%s197 + $0x14] sm:$0xf] %v1140
      %1269 = vst [vmem:[%s197 + $0x18] sm:$0xf] %v1141
      %1270 = vst [vmem:[%s197 + $0x1c] sm:$0xf] %v1142
      %1271 = vst [vmem:[%s197 + $0x20] sm:$0xf] %v1143
      %1272 = vst [vmem:[%s197 + $0x24] sm:$0xf] %v1144
      %1273 = vst [vmem:[%s197 + $0x28] sm:$0xf] %v1145
      %1274 = vst [vmem:[%s197 + $0x2c] sm:$0xf] %v1146
      %1275 = vst [vmem:[%s197 + $0x30] sm:$0xf] %v1147
      %1276 = vst [vmem:[%s197 + $0x34] sm:$0xf] %v1148
      %1277 = vst [vmem:[%s197 + $0x38] sm:$0xf] %v1149
      %1278 = vst [vmem:[%s197 + $0x3c] sm:$0xf] %v1150
      %1279 = vst [vmem:[%s197 + $0x40] sm:$0xf] %v1151
      %1280 = vst [vmem:[%s197 + $0x44] sm:$0xf] %v1152
      %1281 = vst [vmem:[%s197 + $0x48] sm:$0xf] %v1153
      %1282 = vst [vmem:[%s197 + $0x4c] sm:$0xf] %v1154
      %1283 = vst [vmem:[%s197 + $0x50] sm:$0xf] %v1155
      %1284 = vst [vmem:[%s197 + $0x54] sm:$0xf] %v1156
      %1285 = vst [vmem:[%s197 + $0x58] sm:$0xf] %v1157
      %1286 = vst [vmem:[%s197 + $0x5c] sm:$0xf] %v1158
      %1287 = vst [vmem:[%s197 + $0x60] sm:$0xf] %v1159
      %1288 = vst [vmem:[%s197 + $0x64] sm:$0xf] %v1160
      %1289 = vst [vmem:[%s197 + $0x68] sm:$0xf] %v1161
      %1290 = vst [vmem:[%s197 + $0x6c] sm:$0xf] %v1162
      %1291 = vst [vmem:[%s197 + $0x70] sm:$0xf] %v1163
      %1292 = vst [vmem:[%s197 + $0x74] sm:$0xf] %v1164
      %1293 = vst [vmem:[%s197 + $0x78] sm:$0xf] %v1165
      %1294 = vst [vmem:[%s197 + $0x7c] sm:$0xf] %v1166
      %1295 = vst [vmem:[%s197 + $0x80] sm:$0xf] %v1167
      %1296 = vst [vmem:[%s197 + $0x84] sm:$0xf] %v1168
      %1297 = vst [vmem:[%s197 + $0x88] sm:$0xf] %v1169
      %1298 = vst [vmem:[%s197 + $0x8c] sm:$0xf] %v1170
      %1299 = vst [vmem:[%s197 + $0x90] sm:$0xf] %v1171
      %1300 = vst [vmem:[%s197 + $0x94] sm:$0xf] %v1172
      %1301 = vst [vmem:[%s197 + $0x98] sm:$0xf] %v1173
      %1302 = vst [vmem:[%s197 + $0x9c] sm:$0xf] %v1174
      %1303 = vst [vmem:[%s197 + $0xa0] sm:$0xf] %v1175
      %1304 = vst [vmem:[%s197 + $0xa4] sm:$0xf] %v1176
      %1305 = vst [vmem:[%s197 + $0xa8] sm:$0xf] %v1177
      %1306 = vst [vmem:[%s197 + $0xac] sm:$0xf] %v1178
      %1307 = vst [vmem:[%s197 + $0xb0] sm:$0xf] %v1179
      %1308 = vst [vmem:[%s197 + $0xb4] sm:$0xf] %v1180
      %1309 = vst [vmem:[%s197 + $0xb8] sm:$0xf] %v1181
      %1310 = vst [vmem:[%s197 + $0xbc] sm:$0xf] %v1182
      %1311 = vst [vmem:[%s197 + $0xc0] sm:$0xf] %v1183
      %1312 = vst [vmem:[%s197 + $0xc4] sm:$0xf] %v1184
      %1313 = vst [vmem:[%s197 + $0xc8] sm:$0xf] %v1185
      %1314 = vst [vmem:[%s197 + $0xcc] sm:$0xf] %v1186
      %1315 = vst [vmem:[%s197 + $0xd0] sm:$0xf] %v1187
      %1316 = vst [vmem:[%s197 + $0xd4] sm:$0xf] %v1188
      %1317 = vst [vmem:[%s197 + $0xd8] sm:$0xf] %v1189
      %1318 = vst [vmem:[%s197 + $0xdc] sm:$0xf] %v1190
      %1319 = vst [vmem:[%s197 + $0xe0] sm:$0xf] %v1191
      %1320 = vst [vmem:[%s197 + $0xe4] sm:$0xf] %v1192
      %1321 = vst [vmem:[%s197 + $0xe8] sm:$0xf] %v1193
      %1322 = vst [vmem:[%s197 + $0xec] sm:$0xf] %v1194
      %1323 = vst [vmem:[%s197 + $0xf0] sm:$0xf] %v1195
      %1324 = vst [vmem:[%s197 + $0xf4] sm:$0xf] %v1196
      %1325 = vst [vmem:[%s197 + $0xf8] sm:$0xf] %v1197
      %1326 = vst [vmem:[%s197 + $0xfc] sm:$0xf] %v1198
      %v1327 = vld [vmem:[%s3] sm:$0x1]
      %v1328 = vadd.f32 %v753, %v756
      %v1329 = vadd.f32 %v1328, %v761
      %v1330 = vadd.f32 %v1329, %v764
      %v1331 = vadd.f32 %v1330, %v769
      %v1332 = vadd.f32 %v1331, %v772
      %v1333 = vadd.f32 %v1332, %v777
      %v1334 = vadd.f32 %v1333, %v780
      %v1335 = vadd.f32 %v1334, %v785
      %v1336 = vadd.f32 %v1335, %v788
      %v1337 = vadd.f32 %v1336, %v793
      %v1338 = vadd.f32 %v1337, %v796
      %v1339 = vadd.f32 %v1338, %v801
      %v1340 = vadd.f32 %v1339, %v804
      %v1341 = vadd.f32 %v1340, %v809
      %v1342 = vadd.f32 %v1341, %v812
      %v1343 = vadd.f32 %v1342, %v817
      %v1344 = vadd.f32 %v1343, %v820
      %v1345 = vadd.f32 %v1344, %v825
      %v1346 = vadd.f32 %v1345, %v828
      %v1347 = vadd.f32 %v1346, %v833
      %v1348 = vadd.f32 %v1347, %v836
      %v1349 = vadd.f32 %v1348, %v841
      %v1350 = vadd.f32 %v1349, %v844
      %v1351 = vadd.f32 %v1350, %v849
      %v1352 = vadd.f32 %v1351, %v852
      %v1353 = vadd.f32 %v1352, %v857
      %v1354 = vadd.f32 %v1353, %v860
      %v1355 = vadd.f32 %v1354, %v865
      %v1356 = vadd.f32 %v1355, %v868
      %v1357 = vadd.f32 %v1356, %v873
      %v1358 = vadd.f32 %v1357, %v876
      %v1359 = vadd.f32 %v1358, %v881
      %v1360 = vadd.f32 %v1359, %v884
      %v1361 = vadd.f32 %v1360, %v889
      %v1362 = vadd.f32 %v1361, %v892
      %v1363 = vadd.f32 %v1362, %v897
      %v1364 = vadd.f32 %v1363, %v900
      %v1365 = vadd.f32 %v1364, %v905
      %v1366 = vadd.f32 %v1365, %v908
      %v1367 = vadd.f32 %v1366, %v913
      %v1368 = vadd.f32 %v1367, %v916
      %v1369 = vadd.f32 %v1368, %v921
      %v1370 = vadd.f32 %v1369, %v924
      %v1371 = vadd.f32 %v1370, %v929
      %v1372 = vadd.f32 %v1371, %v932
      %v1373 = vadd.f32 %v1372, %v937
      %v1374 = vadd.f32 %v1373, %v940
      %v1375 = vadd.f32 %v1374, %v945
      %v1376 = vadd.f32 %v1375, %v948
      %v1377 = vadd.f32 %v1376, %v953
      %v1378 = vadd.f32 %v1377, %v956
      %v1379 = vadd.f32 %v1378, %v961
      %v1380 = vadd.f32 %v1379, %v964
      %v1381 = vadd.f32 %v1380, %v969
      %v1382 = vadd.f32 %v1381, %v972
      %v1383 = vadd.f32 %v1382, %v977
      %v1384 = vadd.f32 %v1383, %v980
      %v1385 = vadd.f32 %v1384, %v985
      %v1386 = vadd.f32 %v1385, %v988
      %v1387 = vadd.f32 %v1386, %v993
      %v1388 = vadd.f32 %v1387, %v996
      %v1389 = vadd.f32 %v1388, %v1001
      %v1390 = vadd.f32 %v1389, %v1004
      %v1391 = vrot.slane %v1390, 4
      %v1392 = vadd.f32 %v1390, %v1391
      %v1393 = vrot.slane %v1392, 2
      %v1394 = vadd.f32 %v1392, %v1393
      %v1395 = vrot.slane %v1394, 1
      %v1396 = vadd.f32 %v1394, %v1395
      %v1397 = vadd.f32 %v1327, %v1396
      %1398 = vst [vmem:[%s3] sm:$0x1] %v1397
      %v1399 = vld [vmem:[%s4] sm:$0x1]
      %v1400 = vmul.f32 %v753, %v753
      %v1401 = vmul.f32 %v756, %v756
      %v1402 = vmul.f32 %v761, %v761
      %v1403 = vmul.f32 %v764, %v764
      %v1404 = vmul.f32 %v769, %v769
      %v1405 = vmul.f32 %v772, %v772
      %v1406 = vmul.f32 %v777, %v777
      %v1407 = vmul.f32 %v780, %v780
      %v1408 = vmul.f32 %v785, %v785
      %v1409 = vmul.f32 %v788, %v788
      %v1410 = vmul.f32 %v793, %v793
      %v1411 = vmul.f32 %v796, %v796
      %v1412 = vmul.f32 %v801, %v801
      %v1413 = vmul.f32 %v804, %v804
      %v1414 = vmul.f32 %v809, %v809
      %v1415 = vmul.f32 %v812, %v812
      %v1416 = vmul.f32 %v817, %v817
      %v1417 = vmul.f32 %v820, %v820
      %v1418 = vmul.f32 %v825, %v825
      %v1419 = vmul.f32 %v828, %v828
      %v1420 = vmul.f32 %v833, %v833
      %v1421 = vmul.f32 %v836, %v836
      %v1422 = vmul.f32 %v841, %v841
      %v1423 = vmul.f32 %v844, %v844
      %v1424 = vmul.f32 %v849, %v849
      %v1425 = vmul.f32 %v852, %v852
      %v1426 = vmul.f32 %v857, %v857
      %v1427 = vmul.f32 %v860, %v860
      %v1428 = vmul.f32 %v865, %v865
      %v1429 = vmul.f32 %v868, %v868
      %v1430 = vmul.f32 %v873, %v873
      %v1431 = vmul.f32 %v876, %v876
      %v1432 = vmul.f32 %v881, %v881
      %v1433 = vmul.f32 %v884, %v884
      %v1434 = vmul.f32 %v889, %v889
      %v1435 = vmul.f32 %v892, %v892
      %v1436 = vmul.f32 %v897, %v897
      %v1437 = vmul.f32 %v900, %v900
      %v1438 = vmul.f32 %v905, %v905
      %v1439 = vmul.f32 %v908, %v908
      %v1440 = vmul.f32 %v913, %v913
      %v1441 = vmul.f32 %v916, %v916
      %v1442 = vmul.f32 %v921, %v921
      %v1443 = vmul.f32 %v924, %v924
      %v1444 = vmul.f32 %v929, %v929
      %v1445 = vmul.f32 %v932, %v932
      %v1446 = vmul.f32 %v937, %v937
      %v1447 = vmul.f32 %v940, %v940
      %v1448 = vmul.f32 %v945, %v945
      %v1449 = vmul.f32 %v948, %v948
      %v1450 = vmul.f32 %v953, %v953
      %v1451 = vmul.f32 %v956, %v956
      %v1452 = vmul.f32 %v961, %v961
      %v1453 = vmul.f32 %v964, %v964
      %v1454 = vmul.f32 %v969, %v969
      %v1455 = vmul.f32 %v972, %v972
      %v1456 = vmul.f32 %v977, %v977
      %v1457 = vmul.f32 %v980, %v980
      %v1458 = vmul.f32 %v985, %v985
      %v1459 = vmul.f32 %v988, %v988
      %v1460 = vmul.f32 %v993, %v993
      %v1461 = vmul.f32 %v996, %v996
      %v1462 = vmul.f32 %v1001, %v1001
      %v1463 = vmul.f32 %v1004, %v1004
      %v1464 = vadd.f32 %v1400, %v1401
      %v1465 = vadd.f32 %v1464, %v1402
      %v1466 = vadd.f32 %v1465, %v1403
      %v1467 = vadd.f32 %v1466, %v1404
      %v1468 = vadd.f32 %v1467, %v1405
      %v1469 = vadd.f32 %v1468, %v1406
      %v1470 = vadd.f32 %v1469, %v1407
      %v1471 = vadd.f32 %v1470, %v1408
      %v1472 = vadd.f32 %v1471, %v1409
      %v1473 = vadd.f32 %v1472, %v1410
      %v1474 = vadd.f32 %v1473, %v1411
      %v1475 = vadd.f32 %v1474, %v1412
      %v1476 = vadd.f32 %v1475, %v1413
      %v1477 = vadd.f32 %v1476, %v1414
      %v1478 = vadd.f32 %v1477, %v1415
      %v1479 = vadd.f32 %v1478, %v1416
      %v1480 = vadd.f32 %v1479, %v1417
      %v1481 = vadd.f32 %v1480, %v1418
      %v1482 = vadd.f32 %v1481, %v1419
      %v1483 = vadd.f32 %v1482, %v1420
      %v1484 = vadd.f32 %v1483, %v1421
      %v1485 = vadd.f32 %v1484, %v1422
      %v1486 = vadd.f32 %v1485, %v1423
      %v1487 = vadd.f32 %v1486, %v1424
      %v1488 = vadd.f32 %v1487, %v1425
      %v1489 = vadd.f32 %v1488, %v1426
      %v1490 = vadd.f32 %v1489, %v1427
      %v1491 = vadd.f32 %v1490, %v1428
      %v1492 = vadd.f32 %v1491, %v1429
      %v1493 = vadd.f32 %v1492, %v1430
      %v1494 = vadd.f32 %v1493, %v1431
      %v1495 = vadd.f32 %v1494, %v1432
      %v1496 = vadd.f32 %v1495, %v1433
      %v1497 = vadd.f32 %v1496, %v1434
      %v1498 = vadd.f32 %v1497, %v1435
      %v1499 = vadd.f32 %v1498, %v1436
      %v1500 = vadd.f32 %v1499, %v1437
      %v1501 = vadd.f32 %v1500, %v1438
      %v1502 = vadd.f32 %v1501, %v1439
      %v1503 = vadd.f32 %v1502, %v1440
      %v1504 = vadd.f32 %v1503, %v1441
      %v1505 = vadd.f32 %v1504, %v1442
      %v1506 = vadd.f32 %v1505, %v1443
      %v1507 = vadd.f32 %v1506, %v1444
      %v1508 = vadd.f32 %v1507, %v1445
      %v1509 = vadd.f32 %v1508, %v1446
      %v1510 = vadd.f32 %v1509, %v1447
      %v1511 = vadd.f32 %v1510, %v1448
      %v1512 = vadd.f32 %v1511, %v1449
      %v1513 = vadd.f32 %v1512, %v1450
      %v1514 = vadd.f32 %v1513, %v1451
      %v1515 = vadd.f32 %v1514, %v1452
      %v1516 = vadd.f32 %v1515, %v1453
      %v1517 = vadd.f32 %v1516, %v1454
      %v1518 = vadd.f32 %v1517, %v1455
      %v1519 = vadd.f32 %v1518, %v1456
      %v1520 = vadd.f32 %v1519, %v1457
      %v1521 = vadd.f32 %v1520, %v1458
      %v1522 = vadd.f32 %v1521, %v1459
      %v1523 = vadd.f32 %v1522, %v1460
      %v1524 = vadd.f32 %v1523, %v1461
      %v1525 = vadd.f32 %v1524, %v1462
      %v1526 = vadd.f32 %v1525, %v1463
      %v1527 = vrot.slane %v1526, 4
      %v1528 = vadd.f32 %v1526, %v1527
      %v1529 = vrot.slane %v1528, 2
      %v1530 = vadd.f32 %v1528, %v1529
      %v1531 = vrot.slane %v1530, 1
      %v1532 = vadd.f32 %v1530, %v1531
      %v1533 = vadd.f32 %v1399, %v1532
      %1534 = vst [vmem:[%s4] sm:$0x1] %v1533
      %s1535 = smul.u32 64, %s16
      %p1536 = scmp.lt.s32.totalorder %s1535, 255
      %s1537 = scalar_select %p1536, %s1535, 255
      %s1538 = smul.addr %s1537, 4
      %s1539 = scalar_lea.vmem %s2, %s1538
      // Predicated region
      $region33: #{generator_forward.11} parent=27 // pred_check
        %p1540 = pneg %p81
      $region34: #{generator_forward.11} parent=27 // pred_check_branch
        %1542 = sbr.rel (%p1540) target = $region36
      $region35: #{generator_forward.11} parent=27 // pred_region
        %s1543 = smul.u32 64, %s16
      $region36: #{generator_forward.11} parent=27 // pred_fallthru
        _
      // Predicated region
      $region37: #{generator_forward.11} parent=27 // pred_check
        %p1544 = pneg %p102
      $region38: #{generator_forward.11} parent=27 // pred_check_branch
        %1546 = sbr.rel (%p1544) target = $region40
      $region39: #{generator_forward.11} parent=27 // pred_region
        _
      $region40: #{generator_forward.11} parent=27 // pred_fallthru
        _
      // Predicated region
      $region41: #{generator_forward.11} parent=27 // pred_check
        %p1547 = pneg %p123
      $region42: #{generator_forward.11} parent=27 // pred_check_branch
        %1549 = sbr.rel (%p1547) target = $region44
      $region43: #{generator_forward.11} parent=27 // pred_region
        _
      $region44: #{generator_forward.11} parent=27 // pred_fallthru
        _
      // Predicated region
      $region45: #{generator_forward.11} parent=27 // pred_check
        %p1550 = pneg %p102
      $region46: #{generator_forward.11} parent=27 // pred_check_branch
        %1552 = sbr.rel (%p1550) target = $region48
      $region47: #{generator_forward.11} parent=27 // pred_region
        _
      $region48: #{generator_forward.11} parent=27 // pred_fallthru
        _
      // Predicated region
      $region49: #{generator_forward.11} parent=27 // pred_check
        %p1553 = pneg %p123
      $region50: #{generator_forward.11} parent=27 // pred_check_branch
        %1555 = sbr.rel (%p1553) target = $region52
      $region51: #{generator_forward.11} parent=27 // pred_region
        _
      $region52: #{generator_forward.11} parent=27 // pred_fallthru
        _
    $region28: #{generator_forward.11} parent=5 // pred_fallthru
      _
    %p1556 = scmp.le.s32.totalorder 2, %s11
    // Predicated region
    $region53: #{generator_forward.11} parent=5 // pred_check
      %p1557 = pneg %p1556
    $region54: #{generator_forward.11} parent=5 // pred_check_branch
      %1559 = sbr.rel (%p1557) target = $region56
    $region55: #{generator_forward.11} parent=5 // pred_region
      %s1560 = ssub.s32 %s11, 2
      // Predicated region
      $region57: #{generator_forward.11} parent=55 // pred_check
        %p1561 = pneg %p87
      $region58: #{generator_forward.11} parent=55 // pred_check_branch
        %1563 = sbr.rel (%p1561) target = $region60
      $region59: #{generator_forward.11} parent=55 // pred_region
        %s1564 = smul.u32 64, %s17
        %p1565 = scmp.lt.s32.totalorder %s1564, 255
        %s1566 = scalar_select %p1565, %s1564, 255
        %s1567 = smul.addr %s1566, 4
        %s1568 = scalar_lea.vmem %s2, %s1567
      $region60: #{generator_forward.11} parent=55 // pred_fallthru
        _
    $region56: #{generator_forward.11} parent=5 // pred_fallthru
      _
  $region6: #{generator_forward.11} parent=0 // loop_footer
    %s15 = sadd.s32 1, %s11
  $region7: #{generator_forward.11} parent=0 // loop_footer_branch
    %10 = sbr.rel target = $region3
  $region8: #{generator_forward.11} parent=0 // loop_exit
    _

// kernel: generator_forward.12
$region0: #{generator_forward.12}
  #allocation0 [shape = 'u32[]', space=smem, size = 0x4, offset = 0x4, fixed_abs, tag = 'smem constant byte address 0x4 - core index']
  #allocation1 [shape = 'u32[144,128]{1,0:T(1,128)}', space=vmem, size = 0x12000, scoped, tag = 'internal scratch']
  %s0 = inlined_call_operand.vmem [shape: bf16[2048,128], index: 0, kind: input, shape index: {}]
  %s1 = inlined_call_operand.vmem [shape: f32[1,128], index: 1, kind: input, shape index: {}]
  %s2 = inlined_call_operand.vmem [shape: f32[1,128], index: 2, kind: input, shape index: {}]
  %s3 = inlined_call_operand.vmem [shape: bf16[2048,128], index: 3, kind: output, shape index: {}]
  %s4 = sld [smem:[#allocation0]]
  $region22: #{generator_forward.12} parent=0
    _
  %s6 = ssub.s32 1, %s4
  %s7 = scalar_select 0, %s6, %s4
  // Predicated region
  $region2: #{generator_forward.12} parent=0 // pred_check
    _
  $region3: #{generator_forward.12} parent=0 // pred_check_branch
    %9 = sbr.rel (0) target = $region5
  $region4: #{generator_forward.12} parent=0 // pred_region
    _
  $region5: #{generator_forward.12} parent=0 // pred_fallthru
    _
  // Predicated region
  $region6: #{generator_forward.12} parent=0 // pred_check
    _
  $region7: #{generator_forward.12} parent=0 // pred_check_branch
    %11 = sbr.rel (0) target = $region9
  $region8: #{generator_forward.12} parent=0 // pred_region
    _
  $region9: #{generator_forward.12} parent=0 // pred_fallthru
    _
  // Predicated region
  $region10: #{generator_forward.12} parent=0 // pred_check
    _
  $region11: #{generator_forward.12} parent=0 // pred_check_branch
    %13 = sbr.rel (0) target = $region13
  $region12: #{generator_forward.12} parent=0 // pred_region
    _
  $region13: #{generator_forward.12} parent=0 // pred_fallthru
    _
  %v14 = vld [vmem:[%s0] sm:$0xf]
  %v15 = vld [vmem:[%s0 + $0x4] sm:$0xf]
  %v16 = vld [vmem:[%s0 + $0x8] sm:$0xf]
  %v17 = vld [vmem:[%s0 + $0xc] sm:$0xf]
  %v18 = vld [vmem:[%s0 + $0x10] sm:$0xf]
  %v19 = vld [vmem:[%s0 + $0x14] sm:$0xf]
  %v20 = vld [vmem:[%s0 + $0x18] sm:$0xf]
  %v21 = vld [vmem:[%s0 + $0x1c] sm:$0xf]
  %v22 = vld [vmem:[%s0 + $0x20] sm:$0xf]
  %v23 = vld [vmem:[%s0 + $0x24] sm:$0xf]
  %v24 = vld [vmem:[%s0 + $0x28] sm:$0xf]
  %v25 = vld [vmem:[%s0 + $0x2c] sm:$0xf]
  %v26 = vld [vmem:[%s0 + $0x30] sm:$0xf]
  %v27 = vld [vmem:[%s0 + $0x34] sm:$0xf]
  %v28 = vld [vmem:[%s0 + $0x38] sm:$0xf]
  %v29 = vld [vmem:[%s0 + $0x3c] sm:$0xf]
  %v30 = vld [vmem:[%s0 + $0x40] sm:$0xf]
  %v31 = vld [vmem:[%s0 + $0x44] sm:$0xf]
  %v32 = vld [vmem:[%s0 + $0x48] sm:$0xf]
  %v33 = vld [vmem:[%s0 + $0x4c] sm:$0xf]
  %v34 = vld [vmem:[%s0 + $0x50] sm:$0xf]
  %v35 = vld [vmem:[%s0 + $0x54] sm:$0xf]
  %v36 = vld [vmem:[%s0 + $0x58] sm:$0xf]
  %v37 = vld [vmem:[%s0 + $0x5c] sm:$0xf]
  %v38 = vld [vmem:[%s0 + $0x60] sm:$0xf]
  %v39 = vld [vmem:[%s0 + $0x64] sm:$0xf]
  %v40 = vld [vmem:[%s0 + $0x68] sm:$0xf]
  %v41 = vld [vmem:[%s0 + $0x6c] sm:$0xf]
  %v42 = vld [vmem:[%s0 + $0x70] sm:$0xf]
  %v43 = vld [vmem:[%s0 + $0x74] sm:$0xf]
  %v44 = vld [vmem:[%s0 + $0x78] sm:$0xf]
  %v45 = vld [vmem:[%s0 + $0x7c] sm:$0xf]
  %v46 = vld [vmem:[%s0 + $0x80] sm:$0xf]
  %v47 = vld [vmem:[%s0 + $0x84] sm:$0xf]
  %v48 = vld [vmem:[%s0 + $0x88] sm:$0xf]
  %v49 = vld [vmem:[%s0 + $0x8c] sm:$0xf]
  %v50 = vld [vmem:[%s0 + $0x90] sm:$0xf]
  %v51 = vld [vmem:[%s0 + $0x94] sm:$0xf]
  %v52 = vld [vmem:[%s0 + $0x98] sm:$0xf]
  %v53 = vld [vmem:[%s0 + $0x9c] sm:$0xf]
  %v54 = vld [vmem:[%s0 + $0xa0] sm:$0xf]
  %v55 = vld [vmem:[%s0 + $0xa4] sm:$0xf]
  %v56 = vld [vmem:[%s0 + $0xa8] sm:$0xf]
  %v57 = vld [vmem:[%s0 + $0xac] sm:$0xf]
  %v58 = vld [vmem:[%s0 + $0xb0] sm:$0xf]
  %v59 = vld [vmem:[%s0 + $0xb4] sm:$0xf]
  %v60 = vld [vmem:[%s0 + $0xb8] sm:$0xf]
  %v61 = vld [vmem:[%s0 + $0xbc] sm:$0xf]
  %v62 = vld [vmem:[%s0 + $0xc0] sm:$0xf]
  %v63 = vld [vmem:[%s0 + $0xc4] sm:$0xf]
  %v64 = vld [vmem:[%s0 + $0xc8] sm:$0xf]
  %v65 = vld [vmem:[%s0 + $0xcc] sm:$0xf]
  %v66 = vld [vmem:[%s0 + $0xd0] sm:$0xf]
  %v67 = vld [vmem:[%s0 + $0xd4] sm:$0xf]
  %v68 = vld [vmem:[%s0 + $0xd8] sm:$0xf]
  %v69 = vld [vmem:[%s0 + $0xdc] sm:$0xf]
  %v70 = vld [vmem:[%s0 + $0xe0] sm:$0xf]
  %v71 = vld [vmem:[%s0 + $0xe4] sm:$0xf]
  %v72 = vld [vmem:[%s0 + $0xe8] sm:$0xf]
  %v73 = vld [vmem:[%s0 + $0xec] sm:$0xf]
  %v74 = vld [vmem:[%s0 + $0xf0] sm:$0xf]
  %v75 = vld [vmem:[%s0 + $0xf4] sm:$0xf]
  %v76 = vld [vmem:[%s0 + $0xf8] sm:$0xf]
  %v77 = vld [vmem:[%s0 + $0xfc] sm:$0xf]
  %v78 = vld [vmem:[%s0 + $0x100] sm:$0xf]
  %v79 = vld [vmem:[%s0 + $0x104] sm:$0xf]
  %v80 = vld [vmem:[%s0 + $0x108] sm:$0xf]
  %v81 = vld [vmem:[%s0 + $0x10c] sm:$0xf]
  %v82 = vld [vmem:[%s0 + $0x110] sm:$0xf]
  %v83 = vld [vmem:[%s0 + $0x114] sm:$0xf]
  %v84 = vld [vmem:[%s0 + $0x118] sm:$0xf]
  %v85 = vld [vmem:[%s0 + $0x11c] sm:$0xf]
  %v86 = vld [vmem:[%s0 + $0x120] sm:$0xf]
  %v87 = vld [vmem:[%s0 + $0x124] sm:$0xf]
  %v88 = vld [vmem:[%s0 + $0x128] sm:$0xf]
  %v89 = vld [vmem:[%s0 + $0x12c] sm:$0xf]
  %v90 = vld [vmem:[%s0 + $0x130] sm:$0xf]
  %v91 = vld [vmem:[%s0 + $0x134] sm:$0xf]
  %v92 = vld [vmem:[%s0 + $0x138] sm:$0xf]
  %v93 = vld [vmem:[%s0 + $0x13c] sm:$0xf]
  %v94 = vld [vmem:[%s0 + $0x140] sm:$0xf]
  %v95 = vld [vmem:[%s0 + $0x144] sm:$0xf]
  %v96 = vld [vmem:[%s0 + $0x148] sm:$0xf]
  %v97 = vld [vmem:[%s0 + $0x14c] sm:$0xf]
  %v98 = vld [vmem:[%s0 + $0x150] sm:$0xf]
  %v99 = vld [vmem:[%s0 + $0x154] sm:$0xf]
  %v100 = vld [vmem:[%s0 + $0x158] sm:$0xf]
  %v101 = vld [vmem:[%s0 + $0x15c] sm:$0xf]
  %v102 = vld [vmem:[%s0 + $0x160] sm:$0xf]
  %v103 = vld [vmem:[%s0 + $0x164] sm:$0xf]
  %v104 = vld [vmem:[%s0 + $0x168] sm:$0xf]
  %v105 = vld [vmem:[%s0 + $0x16c] sm:$0xf]
  %v106 = vld [vmem:[%s0 + $0x170] sm:$0xf]
  %v107 = vld [vmem:[%s0 + $0x174] sm:$0xf]
  %v108 = vld [vmem:[%s0 + $0x178] sm:$0xf]
  %v109 = vld [vmem:[%s0 + $0x17c] sm:$0xf]
  %v110 = vld [vmem:[%s0 + $0x180] sm:$0xf]
  %v111 = vld [vmem:[%s0 + $0x184] sm:$0xf]
  %v112 = vld [vmem:[%s0 + $0x188] sm:$0xf]
  %v113 = vld [vmem:[%s0 + $0x18c] sm:$0xf]
  %v114 = vld [vmem:[%s0 + $0x190] sm:$0xf]
  %v115 = vld [vmem:[%s0 + $0x194] sm:$0xf]
  %v116 = vld [vmem:[%s0 + $0x198] sm:$0xf]
  %v117 = vld [vmem:[%s0 + $0x19c] sm:$0xf]
  %v118 = vld [vmem:[%s0 + $0x1a0] sm:$0xf]
  %v119 = vld [vmem:[%s0 + $0x1a4] sm:$0xf]
  %v120 = vld [vmem:[%s0 + $0x1a8] sm:$0xf]
  %v121 = vld [vmem:[%s0 + $0x1ac] sm:$0xf]
  %v122 = vld [vmem:[%s0 + $0x1b0] sm:$0xf]
  %v123 = vld [vmem:[%s0 + $0x1b4] sm:$0xf]
  %v124 = vld [vmem:[%s0 + $0x1b8] sm:$0xf]
  %v125 = vld [vmem:[%s0 + $0x1bc] sm:$0xf]
  %v126 = vld [vmem:[%s0 + $0x1c0] sm:$0xf]
  %v127 = vld [vmem:[%s0 + $0x1c4] sm:$0xf]
  %v128 = vld [vmem:[%s0 + $0x1c8] sm:$0xf]
  %v129 = vld [vmem:[%s0 + $0x1cc] sm:$0xf]
  %v130 = vld [vmem:[%s0 + $0x1d0] sm:$0xf]
  %v131 = vld [vmem:[%s0 + $0x1d4] sm:$0xf]
  %v132 = vld [vmem:[%s0 + $0x1d8] sm:$0xf]
  %v133 = vld [vmem:[%s0 + $0x1dc] sm:$0xf]
  %v134 = vld [vmem:[%s0 + $0x1e0] sm:$0xf]
  %v135 = vld [vmem:[%s0 + $0x1e4] sm:$0xf]
  %v136 = vld [vmem:[%s0 + $0x1e8] sm:$0xf]
  %v137 = vld [vmem:[%s0 + $0x1ec] sm:$0xf]
  %v138 = vld [vmem:[%s0 + $0x1f0] sm:$0xf]
  %v139 = vld [vmem:[%s0 + $0x1f4] sm:$0xf]
  %v140 = vld [vmem:[%s0 + $0x1f8] sm:$0xf]
  %v141 = vld [vmem:[%s0 + $0x1fc] sm:$0xf]
  %v142 = vld [vmem:[%s0 + $0x200] sm:$0xf]
  %v143 = vld [vmem:[%s0 + $0x204] sm:$0xf]
  %v144 = vld [vmem:[%s0 + $0x208] sm:$0xf]
  %v145 = vld [vmem:[%s0 + $0x20c] sm:$0xf]
  %v146 = vld [vmem:[%s0 + $0x210] sm:$0xf]
  %v147 = vld [vmem:[%s0 + $0x214] sm:$0xf]
  %v148 = vld [vmem:[%s0 + $0x218] sm:$0xf]
  %v149 = vld [vmem:[%s0 + $0x21c] sm:$0xf]
  %v150 = vld [vmem:[%s0 + $0x220] sm:$0xf]
  %v151 = vld [vmem:[%s0 + $0x224] sm:$0xf]
  %v152 = vld [vmem:[%s0 + $0x228] sm:$0xf]
  %v153 = vld [vmem:[%s0 + $0x22c] sm:$0xf]
  %v154 = vld [vmem:[%s0 + $0x230] sm:$0xf]
  %v155 = vld [vmem:[%s0 + $0x234] sm:$0xf]
  %v156 = vld [vmem:[%s0 + $0x238] sm:$0xf]
  %v157 = vld [vmem:[%s0 + $0x23c] sm:$0xf]
  %v158 = vld [vmem:[%s0 + $0x240] sm:$0xf]
  %v159 = vld [vmem:[%s0 + $0x244] sm:$0xf]
  %v160 = vld [vmem:[%s0 + $0x248] sm:$0xf]
  %v161 = vld [vmem:[%s0 + $0x24c] sm:$0xf]
  %v162 = vld [vmem:[%s0 + $0x250] sm:$0xf]
  %v163 = vld [vmem:[%s0 + $0x254] sm:$0xf]
  %v164 = vld [vmem:[%s0 + $0x258] sm:$0xf]
  %v165 = vld [vmem:[%s0 + $0x25c] sm:$0xf]
  %v166 = vld [vmem:[%s0 + $0x260] sm:$0xf]
  %v167 = vld [vmem:[%s0 + $0x264] sm:$0xf]
  %v168 = vld [vmem:[%s0 + $0x268] sm:$0xf]
  %v169 = vld [vmem:[%s0 + $0x26c] sm:$0xf]
  %v170 = vld [vmem:[%s0 + $0x270] sm:$0xf]
  %v171 = vld [vmem:[%s0 + $0x274] sm:$0xf]
  %v172 = vld [vmem:[%s0 + $0x278] sm:$0xf]
  %v173 = vld [vmem:[%s0 + $0x27c] sm:$0xf]
  %v174 = vld [vmem:[%s0 + $0x280] sm:$0xf]
  %v175 = vld [vmem:[%s0 + $0x284] sm:$0xf]
  %v176 = vld [vmem:[%s0 + $0x288] sm:$0xf]
  %v177 = vld [vmem:[%s0 + $0x28c] sm:$0xf]
  %v178 = vld [vmem:[%s0 + $0x290] sm:$0xf]
  %v179 = vld [vmem:[%s0 + $0x294] sm:$0xf]
  %v180 = vld [vmem:[%s0 + $0x298] sm:$0xf]
  %v181 = vld [vmem:[%s0 + $0x29c] sm:$0xf]
  %v182 = vld [vmem:[%s0 + $0x2a0] sm:$0xf]
  %v183 = vld [vmem:[%s0 + $0x2a4] sm:$0xf]
  %v184 = vld [vmem:[%s0 + $0x2a8] sm:$0xf]
  %v185 = vld [vmem:[%s0 + $0x2ac] sm:$0xf]
  %v186 = vld [vmem:[%s0 + $0x2b0] sm:$0xf]
  %v187 = vld [vmem:[%s0 + $0x2b4] sm:$0xf]
  %v188 = vld [vmem:[%s0 + $0x2b8] sm:$0xf]
  %v189 = vld [vmem:[%s0 + $0x2bc] sm:$0xf]
  %v190 = vld [vmem:[%s0 + $0x2c0] sm:$0xf]
  %v191 = vld [vmem:[%s0 + $0x2c4] sm:$0xf]
  %v192 = vld [vmem:[%s0 + $0x2c8] sm:$0xf]
  %v193 = vld [vmem:[%s0 + $0x2cc] sm:$0xf]
  %v194 = vld [vmem:[%s0 + $0x2d0] sm:$0xf]
  %v195 = vld [vmem:[%s0 + $0x2d4] sm:$0xf]
  %v196 = vld [vmem:[%s0 + $0x2d8] sm:$0xf]
  %v197 = vld [vmem:[%s0 + $0x2dc] sm:$0xf]
  %v198 = vld [vmem:[%s0 + $0x2e0] sm:$0xf]
  %v199 = vld [vmem:[%s0 + $0x2e4] sm:$0xf]
  %v200 = vld [vmem:[%s0 + $0x2e8] sm:$0xf]
  %v201 = vld [vmem:[%s0 + $0x2ec] sm:$0xf]
  %v202 = vld [vmem:[%s0 + $0x2f0] sm:$0xf]
  %v203 = vld [vmem:[%s0 + $0x2f4] sm:$0xf]
  %v204 = vld [vmem:[%s0 + $0x2f8] sm:$0xf]
  %v205 = vld [vmem:[%s0 + $0x2fc] sm:$0xf]
  %v206 = vld [vmem:[%s0 + $0x300] sm:$0xf]
  %v207 = vld [vmem:[%s0 + $0x304] sm:$0xf]
  %v208 = vld [vmem:[%s0 + $0x308] sm:$0xf]
  %v209 = vld [vmem:[%s0 + $0x30c] sm:$0xf]
  %v210 = vld [vmem:[%s0 + $0x310] sm:$0xf]
  %v211 = vld [vmem:[%s0 + $0x314] sm:$0xf]
  %v212 = vld [vmem:[%s0 + $0x318] sm:$0xf]
  %v213 = vld [vmem:[%s0 + $0x31c] sm:$0xf]
  %v214 = vld [vmem:[%s0 + $0x320] sm:$0xf]
  %v215 = vld [vmem:[%s0 + $0x324] sm:$0xf]
  %v216 = vld [vmem:[%s0 + $0x328] sm:$0xf]
  %v217 = vld [vmem:[%s0 + $0x32c] sm:$0xf]
  %v218 = vld [vmem:[%s0 + $0x330] sm:$0xf]
  %v219 = vld [vmem:[%s0 + $0x334] sm:$0xf]
  %v220 = vld [vmem:[%s0 + $0x338] sm:$0xf]
  %v221 = vld [vmem:[%s0 + $0x33c] sm:$0xf]
  %v222 = vld [vmem:[%s0 + $0x340] sm:$0xf]
  %v223 = vld [vmem:[%s0 + $0x344] sm:$0xf]
  %v224 = vld [vmem:[%s0 + $0x348] sm:$0xf]
  %v225 = vld [vmem:[%s0 + $0x34c] sm:$0xf]
  %v226 = vld [vmem:[%s0 + $0x350] sm:$0xf]
  %v227 = vld [vmem:[%s0 + $0x354] sm:$0xf]
  %v228 = vld [vmem:[%s0 + $0x358] sm:$0xf]
  %v229 = vld [vmem:[%s0 + $0x35c] sm:$0xf]
  %v230 = vld [vmem:[%s0 + $0x360] sm:$0xf]
  %v231 = vld [vmem:[%s0 + $0x364] sm:$0xf]
  %v232 = vld [vmem:[%s0 + $0x368] sm:$0xf]
  %v233 = vld [vmem:[%s0 + $0x36c] sm:$0xf]
  %v234 = vld [vmem:[%s0 + $0x370] sm:$0xf]
  %v235 = vld [vmem:[%s0 + $0x374] sm:$0xf]
  %v236 = vld [vmem:[%s0 + $0x378] sm:$0xf]
  %v237 = vld [vmem:[%s0 + $0x37c] sm:$0xf]
  %v238 = vld [vmem:[%s0 + $0x380] sm:$0xf]
  %v239 = vld [vmem:[%s0 + $0x384] sm:$0xf]
  %v240 = vld [vmem:[%s0 + $0x388] sm:$0xf]
  %v241 = vld [vmem:[%s0 + $0x38c] sm:$0xf]
  %v242 = vld [vmem:[%s0 + $0x390] sm:$0xf]
  %v243 = vld [vmem:[%s0 + $0x394] sm:$0xf]
  %v244 = vld [vmem:[%s0 + $0x398] sm:$0xf]
  %v245 = vld [vmem:[%s0 + $0x39c] sm:$0xf]
  %v246 = vld [vmem:[%s0 + $0x3a0] sm:$0xf]
  %v247 = vld [vmem:[%s0 + $0x3a4] sm:$0xf]
  %v248 = vld [vmem:[%s0 + $0x3a8] sm:$0xf]
  %v249 = vld [vmem:[%s0 + $0x3ac] sm:$0xf]
  %v250 = vld [vmem:[%s0 + $0x3b0] sm:$0xf]
  %v251 = vld [vmem:[%s0 + $0x3b4] sm:$0xf]
  %v252 = vld [vmem:[%s0 + $0x3b8] sm:$0xf]
  %v253 = vld [vmem:[%s0 + $0x3bc] sm:$0xf]
  %v254 = vld [vmem:[%s0 + $0x3c0] sm:$0xf]
  %v255 = vld [vmem:[%s0 + $0x3c4] sm:$0xf]
  %v256 = vld [vmem:[%s0 + $0x3c8] sm:$0xf]
  %v257 = vld [vmem:[%s0 + $0x3cc] sm:$0xf]
  %v258 = vld [vmem:[%s0 + $0x3d0] sm:$0xf]
  %v259 = vld [vmem:[%s0 + $0x3d4] sm:$0xf]
  %v260 = vld [vmem:[%s0 + $0x3d8] sm:$0xf]
  %v261 = vld [vmem:[%s0 + $0x3dc] sm:$0xf]
  %v262 = vld [vmem:[%s0 + $0x3e0] sm:$0xf]
  %v263 = vld [vmem:[%s0 + $0x3e4] sm:$0xf]
  %v264 = vld [vmem:[%s0 + $0x3e8] sm:$0xf]
  %v265 = vld [vmem:[%s0 + $0x3ec] sm:$0xf]
  %v266 = vld [vmem:[%s0 + $0x3f0] sm:$0xf]
  %v267 = vld [vmem:[%s0 + $0x3f4] sm:$0xf]
  %v268 = vld [vmem:[%s0 + $0x3f8] sm:$0xf]
  %v269 = vld [vmem:[%s0 + $0x3fc] sm:$0xf]
  %v270 = vunpack.c.l.bf16 %v14
  %v271 = vunpack.c.l.bf16 %v15
  %v272 = vunpack.c.l.bf16 %v16
  %v273 = vunpack.c.l.bf16 %v17
  %v274 = vunpack.c.l.bf16 %v18
  %v275 = vunpack.c.l.bf16 %v19
  %v276 = vunpack.c.l.bf16 %v20
  %v277 = vunpack.c.l.bf16 %v21
  %v278 = vunpack.c.l.bf16 %v22
  %v279 = vunpack.c.l.bf16 %v23
  %v280 = vunpack.c.l.bf16 %v24
  %v281 = vunpack.c.l.bf16 %v25
  %v282 = vunpack.c.l.bf16 %v26
  %v283 = vunpack.c.l.bf16 %v27
  %v284 = vunpack.c.l.bf16 %v28
  %v285 = vunpack.c.l.bf16 %v29
  %v286 = vunpack.c.l.bf16 %v30
  %v287 = vunpack.c.l.bf16 %v31
  %v288 = vunpack.c.l.bf16 %v32
  %v289 = vunpack.c.l.bf16 %v33
  %v290 = vunpack.c.l.bf16 %v34
  %v291 = vunpack.c.l.bf16 %v35
  %v292 = vunpack.c.l.bf16 %v36
  %v293 = vunpack.c.l.bf16 %v37
  %v294 = vunpack.c.l.bf16 %v38
  %v295 = vunpack.c.l.bf16 %v39
  %v296 = vunpack.c.l.bf16 %v40
  %v297 = vunpack.c.l.bf16 %v41
  %v298 = vunpack.c.l.bf16 %v42
  %v299 = vunpack.c.l.bf16 %v43
  %v300 = vunpack.c.l.bf16 %v44
  %v301 = vunpack.c.l.bf16 %v45
  %v302 = vunpack.c.l.bf16 %v46
  %v303 = vunpack.c.l.bf16 %v47
  %v304 = vunpack.c.l.bf16 %v48
  %v305 = vunpack.c.l.bf16 %v49
  %v306 = vunpack.c.l.bf16 %v50
  %v307 = vunpack.c.l.bf16 %v51
  %v308 = vunpack.c.l.bf16 %v52
  %v309 = vunpack.c.l.bf16 %v53
  %v310 = vunpack.c.l.bf16 %v54
  %v311 = vunpack.c.l.bf16 %v55
  %v312 = vunpack.c.l.bf16 %v56
  %v313 = vunpack.c.l.bf16 %v57
  %v314 = vunpack.c.l.bf16 %v58
  %v315 = vunpack.c.l.bf16 %v59
  %v316 = vunpack.c.l.bf16 %v60
  %v317 = vunpack.c.l.bf16 %v61
  %v318 = vunpack.c.l.bf16 %v62
  %v319 = vunpack.c.l.bf16 %v63
  %v320 = vunpack.c.l.bf16 %v64
  %v321 = vunpack.c.l.bf16 %v65
  %v322 = vunpack.c.l.bf16 %v66
  %v323 = vunpack.c.l.bf16 %v67
  %v324 = vunpack.c.l.bf16 %v68
  %v325 = vunpack.c.l.bf16 %v69
  %v326 = vunpack.c.l.bf16 %v70
  %v327 = vunpack.c.l.bf16 %v71
  %v328 = vunpack.c.l.bf16 %v72
  %v329 = vunpack.c.l.bf16 %v73
  %v330 = vunpack.c.l.bf16 %v74
  %v331 = vunpack.c.l.bf16 %v75
  %v332 = vunpack.c.l.bf16 %v76
  %v333 = vunpack.c.l.bf16 %v77
  %v334 = vunpack.c.l.bf16 %v78
  %v335 = vunpack.c.l.bf16 %v79
  %v336 = vunpack.c.l.bf16 %v80
  %v337 = vunpack.c.l.bf16 %v81
  %v338 = vunpack.c.l.bf16 %v82
  %v339 = vunpack.c.l.bf16 %v83
  %v340 = vunpack.c.l.bf16 %v84
  %v341 = vunpack.c.l.bf16 %v85
  %v342 = vunpack.c.l.bf16 %v86
  %v343 = vunpack.c.l.bf16 %v87
  %v344 = vunpack.c.l.bf16 %v88
  %v345 = vunpack.c.l.bf16 %v89
  %v346 = vunpack.c.l.bf16 %v90
  %v347 = vunpack.c.l.bf16 %v91
  %v348 = vunpack.c.l.bf16 %v92
  %v349 = vunpack.c.l.bf16 %v93
  %v350 = vunpack.c.l.bf16 %v94
  %v351 = vunpack.c.l.bf16 %v95
  %v352 = vunpack.c.l.bf16 %v96
  %v353 = vunpack.c.l.bf16 %v97
  %v354 = vunpack.c.l.bf16 %v98
  %v355 = vunpack.c.l.bf16 %v99
  %v356 = vunpack.c.l.bf16 %v100
  %v357 = vunpack.c.l.bf16 %v101
  %v358 = vunpack.c.l.bf16 %v102
  %v359 = vunpack.c.l.bf16 %v103
  %v360 = vunpack.c.l.bf16 %v104
  %v361 = vunpack.c.l.bf16 %v105
  %v362 = vunpack.c.l.bf16 %v106
  %v363 = vunpack.c.l.bf16 %v107
  %v364 = vunpack.c.l.bf16 %v108
  %v365 = vunpack.c.l.bf16 %v109
  %v366 = vunpack.c.l.bf16 %v110
  %v367 = vunpack.c.l.bf16 %v111
  %v368 = vunpack.c.l.bf16 %v112
  %v369 = vunpack.c.l.bf16 %v113
  %v370 = vunpack.c.l.bf16 %v114
  %v371 = vunpack.c.l.bf16 %v115
  %v372 = vunpack.c.l.bf16 %v116
  %v373 = vunpack.c.l.bf16 %v117
  %v374 = vunpack.c.l.bf16 %v118
  %v375 = vunpack.c.l.bf16 %v119
  %v376 = vunpack.c.l.bf16 %v120
  %v377 = vunpack.c.l.bf16 %v121
  %v378 = vunpack.c.l.bf16 %v122
  %v379 = vunpack.c.l.bf16 %v123
  %v380 = vunpack.c.l.bf16 %v124
  %v381 = vunpack.c.l.bf16 %v125
  %v382 = vunpack.c.l.bf16 %v126
  %v383 = vunpack.c.l.bf16 %v127
  %v384 = vunpack.c.l.bf16 %v128
  %v385 = vunpack.c.l.bf16 %v129
  %v386 = vunpack.c.l.bf16 %v130
  %v387 = vunpack.c.l.bf16 %v131
  %v388 = vunpack.c.l.bf16 %v132
  %v389 = vunpack.c.l.bf16 %v133
  %v390 = vunpack.c.l.bf16 %v134
  %v391 = vunpack.c.l.bf16 %v135
  %v392 = vunpack.c.l.bf16 %v136
  %v393 = vunpack.c.l.bf16 %v137
  %v394 = vunpack.c.l.bf16 %v138
  %v395 = vunpack.c.l.bf16 %v139
  %v396 = vunpack.c.l.bf16 %v140
  %v397 = vunpack.c.l.bf16 %v141
  %v398 = vunpack.c.l.bf16 %v142
  %v399 = vunpack.c.l.bf16 %v143
  %v400 = vunpack.c.l.bf16 %v144
  %v401 = vunpack.c.l.bf16 %v145
  %v402 = vunpack.c.l.bf16 %v146
  %v403 = vunpack.c.l.bf16 %v147
  %v404 = vunpack.c.l.bf16 %v148
  %v405 = vunpack.c.l.bf16 %v149
  %v406 = vunpack.c.l.bf16 %v150
  %v407 = vunpack.c.l.bf16 %v151
  %v408 = vunpack.c.l.bf16 %v152
  %v409 = vunpack.c.l.bf16 %v153
  %v410 = vunpack.c.l.bf16 %v154
  %v411 = vunpack.c.l.bf16 %v155
  %v412 = vunpack.c.l.bf16 %v156
  %v413 = vunpack.c.l.bf16 %v157
  %v414 = vunpack.c.l.bf16 %v158
  %v415 = vunpack.c.l.bf16 %v159
  %v416 = vunpack.c.l.bf16 %v160
  %v417 = vunpack.c.l.bf16 %v161
  %v418 = vunpack.c.l.bf16 %v162
  %v419 = vunpack.c.l.bf16 %v163
  %v420 = vunpack.c.l.bf16 %v164
  %v421 = vunpack.c.l.bf16 %v165
  %v422 = vunpack.c.l.bf16 %v166
  %v423 = vunpack.c.l.bf16 %v167
  %v424 = vunpack.c.l.bf16 %v168
  %v425 = vunpack.c.l.bf16 %v169
  %v426 = vunpack.c.l.bf16 %v170
  %v427 = vunpack.c.l.bf16 %v171
  %v428 = vunpack.c.l.bf16 %v172
  %v429 = vunpack.c.l.bf16 %v173
  %v430 = vunpack.c.l.bf16 %v174
  %v431 = vunpack.c.l.bf16 %v175
  %v432 = vunpack.c.l.bf16 %v176
  %v433 = vunpack.c.l.bf16 %v177
  %v434 = vunpack.c.l.bf16 %v178
  %v435 = vunpack.c.l.bf16 %v179
  %v436 = vunpack.c.l.bf16 %v180
  %v437 = vunpack.c.l.bf16 %v181
  %v438 = vunpack.c.l.bf16 %v182
  %v439 = vunpack.c.l.bf16 %v183
  %v440 = vunpack.c.l.bf16 %v184
  %v441 = vunpack.c.l.bf16 %v185
  %v442 = vunpack.c.l.bf16 %v186
  %v443 = vunpack.c.l.bf16 %v187
  %v444 = vunpack.c.l.bf16 %v188
  %v445 = vunpack.c.l.bf16 %v189
  %v446 = vunpack.c.l.bf16 %v190
  %v447 = vunpack.c.l.bf16 %v191
  %v448 = vunpack.c.l.bf16 %v192
  %v449 = vunpack.c.l.bf16 %v193
  %v450 = vunpack.c.l.bf16 %v194
  %v451 = vunpack.c.l.bf16 %v195
  %v452 = vunpack.c.l.bf16 %v196
  %v453 = vunpack.c.l.bf16 %v197
  %v454 = vunpack.c.l.bf16 %v198
  %v455 = vunpack.c.l.bf16 %v199
  %v456 = vunpack.c.l.bf16 %v200
  %v457 = vunpack.c.l.bf16 %v201
  %v458 = vunpack.c.l.bf16 %v202
  %v459 = vunpack.c.l.bf16 %v203
  %v460 = vunpack.c.l.bf16 %v204
  %v461 = vunpack.c.l.bf16 %v205
  %v462 = vunpack.c.l.bf16 %v206
  %v463 = vunpack.c.l.bf16 %v207
  %v464 = vunpack.c.l.bf16 %v208
  %v465 = vunpack.c.l.bf16 %v209
  %v466 = vunpack.c.l.bf16 %v210
  %v467 = vunpack.c.l.bf16 %v211
  %v468 = vunpack.c.l.bf16 %v212
  %v469 = vunpack.c.l.bf16 %v213
  %v470 = vunpack.c.l.bf16 %v214
  %v471 = vunpack.c.l.bf16 %v215
  %v472 = vunpack.c.l.bf16 %v216
  %v473 = vunpack.c.l.bf16 %v217
  %v474 = vunpack.c.l.bf16 %v218
  %v475 = vunpack.c.l.bf16 %v219
  %v476 = vunpack.c.l.bf16 %v220
  %v477 = vunpack.c.l.bf16 %v221
  %v478 = vunpack.c.l.bf16 %v222
  %v479 = vunpack.c.l.bf16 %v223
  %v480 = vunpack.c.l.bf16 %v224
  %v481 = vunpack.c.l.bf16 %v225
  %v482 = vunpack.c.l.bf16 %v226
  %v483 = vunpack.c.l.bf16 %v227
  %v484 = vunpack.c.l.bf16 %v228
  %v485 = vunpack.c.l.bf16 %v229
  %v486 = vunpack.c.l.bf16 %v230
  %v487 = vunpack.c.l.bf16 %v231
  %v488 = vunpack.c.l.bf16 %v232
  %v489 = vunpack.c.l.bf16 %v233
  %v490 = vunpack.c.l.bf16 %v234
  %v491 = vunpack.c.l.bf16 %v235
  %v492 = vunpack.c.l.bf16 %v236
  %v493 = vunpack.c.l.bf16 %v237
  %v494 = vunpack.c.l.bf16 %v238
  %v495 = vunpack.c.l.bf16 %v239
  %v496 = vunpack.c.l.bf16 %v240
  %v497 = vunpack.c.l.bf16 %v241
  %v498 = vunpack.c.l.bf16 %v242
  %v499 = vunpack.c.l.bf16 %v243
  %v500 = vunpack.c.l.bf16 %v244
  %v501 = vunpack.c.l.bf16 %v245
  %v502 = vunpack.c.l.bf16 %v246
  %v503 = vunpack.c.l.bf16 %v247
  %v504 = vunpack.c.l.bf16 %v248
  %v505 = vunpack.c.l.bf16 %v249
  %v506 = vunpack.c.l.bf16 %v250
  %v507 = vunpack.c.l.bf16 %v251
  %v508 = vunpack.c.l.bf16 %v252
  %v509 = vunpack.c.l.bf16 %v253
  %v510 = vunpack.c.l.bf16 %v254
  %v511 = vunpack.c.l.bf16 %v255
  %v512 = vunpack.c.l.bf16 %v256
  %v513 = vunpack.c.l.bf16 %v257
  %v514 = vunpack.c.l.bf16 %v258
  %v515 = vunpack.c.l.bf16 %v259
  %v516 = vunpack.c.l.bf16 %v260
  %v517 = vunpack.c.l.bf16 %v261
  %v518 = vunpack.c.l.bf16 %v262
  %v519 = vunpack.c.l.bf16 %v263
  %v520 = vunpack.c.l.bf16 %v264
  %v521 = vunpack.c.l.bf16 %v265
  %v522 = vunpack.c.l.bf16 %v266
  %v523 = vunpack.c.l.bf16 %v267
  %v524 = vunpack.c.l.bf16 %v268
  %v525 = vunpack.c.l.bf16 %v269
  %v526 = vld [vmem:[%s1] sm:$0x1]
  %v528 = vlaneseq
  %v529 = vshrl.u32 %v528, 7
  %v530 = vsub.s32 0, %v529
  %v531 = vrot.slane %v526, %v530
  %v533 = vmul.f32 %v270, %v531
  %v534 = vmul.f32 %v271, %v531
  %v535 = vmul.f32 %v272, %v531
  %v536 = vmul.f32 %v273, %v531
  %v537 = vmul.f32 %v274, %v531
  %v538 = vmul.f32 %v275, %v531
  %v539 = vmul.f32 %v276, %v531
  %v540 = vmul.f32 %v277, %v531
  %v541 = vmul.f32 %v278, %v531
  %v542 = vmul.f32 %v279, %v531
  %v543 = vmul.f32 %v280, %v531
  %v544 = vmul.f32 %v281, %v531
  %v545 = vmul.f32 %v282, %v531
  %v546 = vmul.f32 %v283, %v531
  %v547 = vmul.f32 %v284, %v531
  %v548 = vmul.f32 %v285, %v531
  %v549 = vmul.f32 %v286, %v531
  %v550 = vmul.f32 %v287, %v531
  %v551 = vmul.f32 %v288, %v531
  %v552 = vmul.f32 %v289, %v531
  %v553 = vmul.f32 %v290, %v531
  %v554 = vmul.f32 %v291, %v531
  %v555 = vmul.f32 %v292, %v531
  %v556 = vmul.f32 %v293, %v531
  %v557 = vmul.f32 %v294, %v531
  %v558 = vmul.f32 %v295, %v531
  %v559 = vmul.f32 %v296, %v531
  %v560 = vmul.f32 %v297, %v531
  %v561 = vmul.f32 %v298, %v531
  %v562 = vmul.f32 %v299, %v531
  %v563 = vmul.f32 %v300, %v531
  %v564 = vmul.f32 %v301, %v531
  %v565 = vmul.f32 %v302, %v531
  %v566 = vmul.f32 %v303, %v531
  %v567 = vmul.f32 %v304, %v531
  %v568 = vmul.f32 %v305, %v531
  %v569 = vmul.f32 %v306, %v531
  %v570 = vmul.f32 %v307, %v531
  %v571 = vmul.f32 %v308, %v531
  %v572 = vmul.f32 %v309, %v531
  %v573 = vmul.f32 %v310, %v531
  %v574 = vmul.f32 %v311, %v531
  %v575 = vmul.f32 %v312, %v531
  %v576 = vmul.f32 %v313, %v531
  %v577 = vmul.f32 %v314, %v531
  %v578 = vmul.f32 %v315, %v531
  %v579 = vmul.f32 %v316, %v531
  %v580 = vmul.f32 %v317, %v531
  %v581 = vmul.f32 %v318, %v531
  %v582 = vmul.f32 %v319, %v531
  %v583 = vmul.f32 %v320, %v531
  %v584 = vmul.f32 %v321, %v531
  %v585 = vmul.f32 %v322, %v531
  %v586 = vmul.f32 %v323, %v531
  %v587 = vmul.f32 %v324, %v531
  %v588 = vmul.f32 %v325, %v531
  %v589 = vmul.f32 %v326, %v531
  %v590 = vmul.f32 %v327, %v531
  %v591 = vmul.f32 %v328, %v531
  %v592 = vmul.f32 %v329, %v531
  %v593 = vmul.f32 %v330, %v531
  %v594 = vmul.f32 %v331, %v531
  %v595 = vmul.f32 %v332, %v531
  %v596 = vmul.f32 %v333, %v531
  %v597 = vmul.f32 %v334, %v531
  %v598 = vmul.f32 %v335, %v531
  %v599 = vmul.f32 %v336, %v531
  %v600 = vmul.f32 %v337, %v531
  %v601 = vmul.f32 %v338, %v531
  %v602 = vmul.f32 %v339, %v531
  %v603 = vmul.f32 %v340, %v531
  %v604 = vmul.f32 %v341, %v531
  %v605 = vmul.f32 %v342, %v531
  %v606 = vmul.f32 %v343, %v531
  %v607 = vmul.f32 %v344, %v531
  %v608 = vmul.f32 %v345, %v531
  %v609 = vmul.f32 %v346, %v531
  %v610 = vmul.f32 %v347, %v531
  %v611 = vmul.f32 %v348, %v531
  %v612 = vmul.f32 %v349, %v531
  %v613 = vmul.f32 %v350, %v531
  %v614 = vmul.f32 %v351, %v531
  %v615 = vmul.f32 %v352, %v531
  %v616 = vmul.f32 %v353, %v531
  %v617 = vmul.f32 %v354, %v531
  %v618 = vmul.f32 %v355, %v531
  %v619 = vmul.f32 %v356, %v531
  %v620 = vmul.f32 %v357, %v531
  %v621 = vmul.f32 %v358, %v531
  %v622 = vmul.f32 %v359, %v531
  %v623 = vmul.f32 %v360, %v531
  %v624 = vmul.f32 %v361, %v531
  %v625 = vmul.f32 %v362, %v531
  %v626 = vmul.f32 %v363, %v531
  %v627 = vmul.f32 %v364, %v531
  %v628 = vmul.f32 %v365, %v531
  %v629 = vmul.f32 %v366, %v531
  %v630 = vmul.f32 %v367, %v531
  %v631 = vmul.f32 %v368, %v531
  %v632 = vmul.f32 %v369, %v531
  %v633 = vmul.f32 %v370, %v531
  %v634 = vmul.f32 %v371, %v531
  %v635 = vmul.f32 %v372, %v531
  %v636 = vmul.f32 %v373, %v531
  %v637 = vmul.f32 %v374, %v531
  %v638 = vmul.f32 %v375, %v531
  %v639 = vmul.f32 %v376, %v531
  %v640 = vmul.f32 %v377, %v531
  %v641 = vmul.f32 %v378, %v531
  %v642 = vmul.f32 %v379, %v531
  %v643 = vmul.f32 %v380, %v531
  %v644 = vmul.f32 %v381, %v531
  %v645 = vmul.f32 %v382, %v531
  %v646 = vmul.f32 %v383, %v531
  %v647 = vmul.f32 %v384, %v531
  %v648 = vmul.f32 %v385, %v531
  %v649 = vmul.f32 %v386, %v531
  %v650 = vmul.f32 %v387, %v531
  %v651 = vmul.f32 %v388, %v531
  %v652 = vmul.f32 %v389, %v531
  %v653 = vmul.f32 %v390, %v531
  %v654 = vmul.f32 %v391, %v531
  %v655 = vmul.f32 %v392, %v531
  %v656 = vmul.f32 %v393, %v531
  %v657 = vmul.f32 %v394, %v531
  %v658 = vmul.f32 %v395, %v531
  %v659 = vmul.f32 %v396, %v531
  %v660 = vmul.f32 %v397, %v531
  %v661 = vmul.f32 %v398, %v531
  %v662 = vmul.f32 %v399, %v531
  %v663 = vmul.f32 %v400, %v531
  %v664 = vmul.f32 %v401, %v531
  %v665 = vmul.f32 %v402, %v531
  %v666 = vmul.f32 %v403, %v531
  %v667 = vmul.f32 %v404, %v531
  %v668 = vmul.f32 %v405, %v531
  %v669 = vmul.f32 %v406, %v531
  %v670 = vmul.f32 %v407, %v531
  %v671 = vmul.f32 %v408, %v531
  %v672 = vmul.f32 %v409, %v531
  %v673 = vmul.f32 %v410, %v531
  %v674 = vmul.f32 %v411, %v531
  %v675 = vmul.f32 %v412, %v531
  %v676 = vmul.f32 %v413, %v531
  %v677 = vmul.f32 %v414, %v531
  %v678 = vmul.f32 %v415, %v531
  %v679 = vmul.f32 %v416, %v531
  %v680 = vmul.f32 %v417, %v531
  %v681 = vmul.f32 %v418, %v531
  %v682 = vmul.f32 %v419, %v531
  %v683 = vmul.f32 %v420, %v531
  %v684 = vmul.f32 %v421, %v531
  %v685 = vmul.f32 %v422, %v531
  %v686 = vmul.f32 %v423, %v531
  %v687 = vmul.f32 %v424, %v531
  %v688 = vmul.f32 %v425, %v531
  %v689 = vmul.f32 %v426, %v531
  %v690 = vmul.f32 %v427, %v531
  %v691 = vmul.f32 %v428, %v531
  %v692 = vmul.f32 %v429, %v531
  %v693 = vmul.f32 %v430, %v531
  %v694 = vmul.f32 %v431, %v531
  %v695 = vmul.f32 %v432, %v531
  %v696 = vmul.f32 %v433, %v531
  %v697 = vmul.f32 %v434, %v531
  %v698 = vmul.f32 %v435, %v531
  %v699 = vmul.f32 %v436, %v531
  %v700 = vmul.f32 %v437, %v531
  %v701 = vmul.f32 %v438, %v531
  %v702 = vmul.f32 %v439, %v531
  %v703 = vmul.f32 %v440, %v531
  %v704 = vmul.f32 %v441, %v531
  %v705 = vmul.f32 %v442, %v531
  %v706 = vmul.f32 %v443, %v531
  %v707 = vmul.f32 %v444, %v531
  %v708 = vmul.f32 %v445, %v531
  %v709 = vmul.f32 %v446, %v531
  %v710 = vmul.f32 %v447, %v531
  %v711 = vmul.f32 %v448, %v531
  %v712 = vmul.f32 %v449, %v531
  %v713 = vmul.f32 %v450, %v531
  %v714 = vmul.f32 %v451, %v531
  %v715 = vmul.f32 %v452, %v531
  %v716 = vmul.f32 %v453, %v531
  %v717 = vmul.f32 %v454, %v531
  %v718 = vmul.f32 %v455, %v531
  %v719 = vmul.f32 %v456, %v531
  %v720 = vmul.f32 %v457, %v531
  %v721 = vmul.f32 %v458, %v531
  %v722 = vmul.f32 %v459, %v531
  %v723 = vmul.f32 %v460, %v531
  %v724 = vmul.f32 %v461, %v531
  %v725 = vmul.f32 %v462, %v531
  %v726 = vmul.f32 %v463, %v531
  %v727 = vmul.f32 %v464, %v531
  %v728 = vmul.f32 %v465, %v531
  %v729 = vmul.f32 %v466, %v531
  %v730 = vmul.f32 %v467, %v531
  %v731 = vmul.f32 %v468, %v531
  %v732 = vmul.f32 %v469, %v531
  %v733 = vmul.f32 %v470, %v531
  %v734 = vmul.f32 %v471, %v531
  %v735 = vmul.f32 %v472, %v531
  %v736 = vmul.f32 %v473, %v531
  %v737 = vmul.f32 %v474, %v531
  %v738 = vmul.f32 %v475, %v531
  %v739 = vmul.f32 %v476, %v531
  %v740 = vmul.f32 %v477, %v531
  %v741 = vmul.f32 %v478, %v531
  %v742 = vmul.f32 %v479, %v531
  %v743 = vmul.f32 %v480, %v531
  %v744 = vmul.f32 %v481, %v531
  %v745 = vmul.f32 %v482, %v531
  %v746 = vmul.f32 %v483, %v531
  %v747 = vmul.f32 %v484, %v531
  %v748 = vmul.f32 %v485, %v531
  %v749 = vmul.f32 %v486, %v531
  %v750 = vmul.f32 %v487, %v531
  %v751 = vmul.f32 %v488, %v531
  %v752 = vmul.f32 %v489, %v531
  %v753 = vmul.f32 %v490, %v531
  %v754 = vmul.f32 %v491, %v531
  %v755 = vmul.f32 %v492, %v531
  %v756 = vmul.f32 %v493, %v531
  %v757 = vmul.f32 %v494, %v531
  %v758 = vmul.f32 %v495, %v531
  %v759 = vmul.f32 %v496, %v531
  %v760 = vmul.f32 %v497, %v531
  %v761 = vmul.f32 %v498, %v531
  %v762 = vmul.f32 %v499, %v531
  %v763 = vmul.f32 %v500, %v531
  %v764 = vmul.f32 %v501, %v531
  %v765 = vmul.f32 %v502, %v531
  %v766 = vmul.f32 %v503, %v531
  %v767 = vmul.f32 %v504, %v531
  %v768 = vmul.f32 %v505, %v531
  %v769 = vmul.f32 %v506, %v531
  %v770 = vmul.f32 %v507, %v531
  %v771 = vmul.f32 %v508, %v531
  %v772 = vmul.f32 %v509, %v531
  %v773 = vmul.f32 %v510, %v531
  %v774 = vmul.f32 %v511, %v531
  %v775 = vmul.f32 %v512, %v531
  %v776 = vmul.f32 %v513, %v531
  %v777 = vmul.f32 %v514, %v531
  %v778 = vmul.f32 %v515, %v531
  %v779 = vmul.f32 %v516, %v531
  %v780 = vmul.f32 %v517, %v531
  %v781 = vmul.f32 %v518, %v531
  %v782 = vmul.f32 %v519, %v531
  %v783 = vmul.f32 %v520, %v531
  %v784 = vmul.f32 %v521, %v531
  %v785 = vmul.f32 %v522, %v531
  %v786 = vmul.f32 %v523, %v531
  %v787 = vmul.f32 %v524, %v531
  %v788 = vmul.f32 %v525, %v531
  %v789 = vld [vmem:[%s2] sm:$0x1]
  %v791 = vlaneseq
  %v792 = vshrl.u32 %v791, 7
  %v793 = vsub.s32 0, %v792
  %v794 = vrot.slane %v789, %v793
  %v796 = vadd.f32 %v533, %v794
  %v797 = vadd.f32 %v534, %v794
  %v798 = vadd.f32 %v535, %v794
  %v799 = vadd.f32 %v536, %v794
  %v800 = vadd.f32 %v537, %v794
  %v801 = vadd.f32 %v538, %v794
  %v802 = vadd.f32 %v539, %v794
  %v803 = vadd.f32 %v540, %v794
  %v804 = vadd.f32 %v541, %v794
  %v805 = vadd.f32 %v542, %v794
  %v806 = vadd.f32 %v543, %v794
  %v807 = vadd.f32 %v544, %v794
  %v808 = vadd.f32 %v545, %v794
  %v809 = vadd.f32 %v546, %v794
  %v810 = vadd.f32 %v547, %v794
  %v811 = vadd.f32 %v548, %v794
  %v812 = vadd.f32 %v549, %v794
  %v813 = vadd.f32 %v550, %v794
  %v814 = vadd.f32 %v551, %v794
  %v815 = vadd.f32 %v552, %v794
  %v816 = vadd.f32 %v553, %v794
  %v817 = vadd.f32 %v554, %v794
  %v818 = vadd.f32 %v555, %v794
  %v819 = vadd.f32 %v556, %v794
  %v820 = vadd.f32 %v557, %v794
  %v821 = vadd.f32 %v558, %v794
  %v822 = vadd.f32 %v559, %v794
  %v823 = vadd.f32 %v560, %v794
  %v824 = vadd.f32 %v561, %v794
  %v825 = vadd.f32 %v562, %v794
  %v826 = vadd.f32 %v563, %v794
  %v827 = vadd.f32 %v564, %v794
  %v828 = vadd.f32 %v565, %v794
  %v829 = vadd.f32 %v566, %v794
  %v830 = vadd.f32 %v567, %v794
  %v831 = vadd.f32 %v568, %v794
  %v832 = vadd.f32 %v569, %v794
  %v833 = vadd.f32 %v570, %v794
  %v834 = vadd.f32 %v571, %v794
  %v835 = vadd.f32 %v572, %v794
  %v836 = vadd.f32 %v573, %v794
  %v837 = vadd.f32 %v574, %v794
  %v838 = vadd.f32 %v575, %v794
  %v839 = vadd.f32 %v576, %v794
  %v840 = vadd.f32 %v577, %v794
  %v841 = vadd.f32 %v578, %v794
  %v842 = vadd.f32 %v579, %v794
  %v843 = vadd.f32 %v580, %v794
  %v844 = vadd.f32 %v581, %v794
  %v845 = vadd.f32 %v582, %v794
  %v846 = vadd.f32 %v583, %v794
  %v847 = vadd.f32 %v584, %v794
  %v848 = vadd.f32 %v585, %v794
  %v849 = vadd.f32 %v586, %v794
  %v850 = vadd.f32 %v587, %v794
  %v851 = vadd.f32 %v588, %v794
  %v852 = vadd.f32 %v589, %v794
  %v853 = vadd.f32 %v590, %v794
  %v854 = vadd.f32 %v591, %v794
  %v855 = vadd.f32 %v592, %v794
  %v856 = vadd.f32 %v593, %v794
  %v857 = vadd.f32 %v594, %v794
  %v858 = vadd.f32 %v595, %v794
  %v859 = vadd.f32 %v596, %v794
  %v860 = vadd.f32 %v597, %v794
  %v861 = vadd.f32 %v598, %v794
  %v862 = vadd.f32 %v599, %v794
  %v863 = vadd.f32 %v600, %v794
  %v864 = vadd.f32 %v601, %v794
  %v865 = vadd.f32 %v602, %v794
  %v866 = vadd.f32 %v603, %v794
  %v867 = vadd.f32 %v604, %v794
  %v868 = vadd.f32 %v605, %v794
  %v869 = vadd.f32 %v606, %v794
  %v870 = vadd.f32 %v607, %v794
  %v871 = vadd.f32 %v608, %v794
  %v872 = vadd.f32 %v609, %v794
  %v873 = vadd.f32 %v610, %v794
  %v874 = vadd.f32 %v611, %v794
  %v875 = vadd.f32 %v612, %v794
  %v876 = vadd.f32 %v613, %v794
  %v877 = vadd.f32 %v614, %v794
  %v878 = vadd.f32 %v615, %v794
  %v879 = vadd.f32 %v616, %v794
  %v880 = vadd.f32 %v617, %v794
  %v881 = vadd.f32 %v618, %v794
  %v882 = vadd.f32 %v619, %v794
  %v883 = vadd.f32 %v620, %v794
  %v884 = vadd.f32 %v621, %v794
  %v885 = vadd.f32 %v622, %v794
  %v886 = vadd.f32 %v623, %v794
  %v887 = vadd.f32 %v624, %v794
  %v888 = vadd.f32 %v625, %v794
  %v889 = vadd.f32 %v626, %v794
  %v890 = vadd.f32 %v627, %v794
  %v891 = vadd.f32 %v628, %v794
  %v892 = vadd.f32 %v629, %v794
  %v893 = vadd.f32 %v630, %v794
  %v894 = vadd.f32 %v631, %v794
  %v895 = vadd.f32 %v632, %v794
  %v896 = vadd.f32 %v633, %v794
  %v897 = vadd.f32 %v634, %v794
  %v898 = vadd.f32 %v635, %v794
  %v899 = vadd.f32 %v636, %v794
  %v900 = vadd.f32 %v637, %v794
  %v901 = vadd.f32 %v638, %v794
  %v902 = vadd.f32 %v639, %v794
  %v903 = vadd.f32 %v640, %v794
  %v904 = vadd.f32 %v641, %v794
  %v905 = vadd.f32 %v642, %v794
  %v906 = vadd.f32 %v643, %v794
  %v907 = vadd.f32 %v644, %v794
  %v908 = vadd.f32 %v645, %v794
  %v909 = vadd.f32 %v646, %v794
  %v910 = vadd.f32 %v647, %v794
  %v911 = vadd.f32 %v648, %v794
  %v912 = vadd.f32 %v649, %v794
  %v913 = vadd.f32 %v650, %v794
  %v914 = vadd.f32 %v651, %v794
  %v915 = vadd.f32 %v652, %v794
  %v916 = vadd.f32 %v653, %v794
  %v917 = vadd.f32 %v654, %v794
  %v918 = vadd.f32 %v655, %v794
  %v919 = vadd.f32 %v656, %v794
  %v920 = vadd.f32 %v657, %v794
  %v921 = vadd.f32 %v658, %v794
  %v922 = vadd.f32 %v659, %v794
  %v923 = vadd.f32 %v660, %v794
  %v924 = vadd.f32 %v661, %v794
  %v925 = vadd.f32 %v662, %v794
  %v926 = vadd.f32 %v663, %v794
  %v927 = vadd.f32 %v664, %v794
  %v928 = vadd.f32 %v665, %v794
  %v929 = vadd.f32 %v666, %v794
  %v930 = vadd.f32 %v667, %v794
  %v931 = vadd.f32 %v668, %v794
  %v932 = vadd.f32 %v669, %v794
  %v933 = vadd.f32 %v670, %v794
  %v934 = vadd.f32 %v671, %v794
  %v935 = vadd.f32 %v672, %v794
  %v936 = vadd.f32 %v673, %v794
  %v937 = vadd.f32 %v674, %v794
  %v938 = vadd.f32 %v675, %v794
  %v939 = vadd.f32 %v676, %v794
  %v940 = vadd.f32 %v677, %v794
  %v941 = vadd.f32 %v678, %v794
  %v942 = vadd.f32 %v679, %v794
  %v943 = vadd.f32 %v680, %v794
  %v944 = vadd.f32 %v681, %v794
  %v945 = vadd.f32 %v682, %v794
  %v946 = vadd.f32 %v683, %v794
  %v947 = vadd.f32 %v684, %v794
  %v948 = vadd.f32 %v685, %v794
  %v949 = vadd.f32 %v686, %v794
  %v950 = vadd.f32 %v687, %v794
  %v951 = vadd.f32 %v688, %v794
  %v952 = vadd.f32 %v689, %v794
  %v953 = vadd.f32 %v690, %v794
  %v954 = vadd.f32 %v691, %v794
  %v955 = vadd.f32 %v692, %v794
  %v956 = vadd.f32 %v693, %v794
  %v957 = vadd.f32 %v694, %v794
  %v958 = vadd.f32 %v695, %v794
  %v959 = vadd.f32 %v696, %v794
  %v960 = vadd.f32 %v697, %v794
  %v961 = vadd.f32 %v698, %v794
  %v962 = vadd.f32 %v699, %v794
  %v963 = vadd.f32 %v700, %v794
  %v964 = vadd.f32 %v701, %v794
  %v965 = vadd.f32 %v702, %v794
  %v966 = vadd.f32 %v703, %v794
  %v967 = vadd.f32 %v704, %v794
  %v968 = vadd.f32 %v705, %v794
  %v969 = vadd.f32 %v706, %v794
  %v970 = vadd.f32 %v707, %v794
  %v971 = vadd.f32 %v708, %v794
  %v972 = vadd.f32 %v709, %v794
  %v973 = vadd.f32 %v710, %v794
  %v974 = vadd.f32 %v711, %v794
  %v975 = vadd.f32 %v712, %v794
  %v976 = vadd.f32 %v713, %v794
  %v977 = vadd.f32 %v714, %v794
  %v978 = vadd.f32 %v715, %v794
  %v979 = vadd.f32 %v716, %v794
  %v980 = vadd.f32 %v717, %v794
  %v981 = vadd.f32 %v718, %v794
  %v982 = vadd.f32 %v719, %v794
  %v983 = vadd.f32 %v720, %v794
  %v984 = vadd.f32 %v721, %v794
  %v985 = vadd.f32 %v722, %v794
  %v986 = vadd.f32 %v723, %v794
  %v987 = vadd.f32 %v724, %v794
  %v988 = vadd.f32 %v725, %v794
  %v989 = vadd.f32 %v726, %v794
  %v990 = vadd.f32 %v727, %v794
  %v991 = vadd.f32 %v728, %v794
  %v992 = vadd.f32 %v729, %v794
  %v993 = vadd.f32 %v730, %v794
  %v994 = vadd.f32 %v731, %v794
  %v995 = vadd.f32 %v732, %v794
  %v996 = vadd.f32 %v733, %v794
  %v997 = vadd.f32 %v734, %v794
  %v998 = vadd.f32 %v735, %v794
  %v999 = vadd.f32 %v736, %v794
  %v1000 = vadd.f32 %v737, %v794
  %v1001 = vadd.f32 %v738, %v794
  %v1002 = vadd.f32 %v739, %v794
  %v1003 = vadd.f32 %v740, %v794
  %v1004 = vadd.f32 %v741, %v794
  %v1005 = vadd.f32 %v742, %v794
  %v1006 = vadd.f32 %v743, %v794
  %v1007 = vadd.f32 %v744, %v794
  %v1008 = vadd.f32 %v745, %v794
  %v1009 = vadd.f32 %v746, %v794
  %v1010 = vadd.f32 %v747, %v794
  %v1011 = vadd.f32 %v748, %v794
  %v1012 = vadd.f32 %v749, %v794
  %v1013 = vadd.f32 %v750, %v794
  %v1014 = vadd.f32 %v751, %v794
  %v1015 = vadd.f32 %v752, %v794
  %v1016 = vadd.f32 %v753, %v794
  %v1017 = vadd.f32 %v754, %v794
  %v1018 = vadd.f32 %v755, %v794
  %v1019 = vadd.f32 %v756, %v794
  %v1020 = vadd.f32 %v757, %v794
  %v1021 = vadd.f32 %v758, %v794
  %v1022 = vadd.f32 %v759, %v794
  %v1023 = vadd.f32 %v760, %v794
  %v1024 = vadd.f32 %v761, %v794
  %v1025 = vadd.f32 %v762, %v794
  %v1026 = vadd.f32 %v763, %v794
  %v1027 = vadd.f32 %v764, %v794
  %v1028 = vadd.f32 %v765, %v794
  %v1029 = vadd.f32 %v766, %v794
  %v1030 = vadd.f32 %v767, %v794
  %v1031 = vadd.f32 %v768, %v794
  %v1032 = vadd.f32 %v769, %v794
  %v1033 = vadd.f32 %v770, %v794
  %v1034 = vadd.f32 %v771, %v794
  %v1035 = vadd.f32 %v772, %v794
  %v1036 = vadd.f32 %v773, %v794
  %v1037 = vadd.f32 %v774, %v794
  %v1038 = vadd.f32 %v775, %v794
  %v1039 = vadd.f32 %v776, %v794
  %v1040 = vadd.f32 %v777, %v794
  %v1041 = vadd.f32 %v778, %v794
  %v1042 = vadd.f32 %v779, %v794
  %v1043 = vadd.f32 %v780, %v794
  %v1044 = vadd.f32 %v781, %v794
  %v1045 = vadd.f32 %v782, %v794
  %v1046 = vadd.f32 %v783, %v794
  %v1047 = vadd.f32 %v784, %v794
  %v1048 = vadd.f32 %v785, %v794
  %v1049 = vadd.f32 %v786, %v794
  %v1050 = vadd.f32 %v787, %v794
  %v1051 = vadd.f32 %v788, %v794
  %v1052 = vmax.f32 %v796, 0.0
  %v1053 = vmax.f32 %v797, 0.0
  %v1054 = vmax.f32 %v798, 0.0
  %v1055 = vmax.f32 %v799, 0.0
  %v1056 = vmax.f32 %v800, 0.0
  %v1057 = vmax.f32 %v801, 0.0
  %v1058 = vmax.f32 %v802, 0.0
  %v1059 = vmax.f32 %v803, 0.0
  %v1060 = vmax.f32 %v804, 0.0
  %v1061 = vmax.f32 %v805, 0.0
  %v1062 = vmax.f32 %v806, 0.0
  %v1063 = vmax.f32 %v807, 0.0
  %v1064 = vmax.f32 %v808, 0.0
  %v1065 = vmax.f32 %v809, 0.0
  %v1066 = vmax.f32 %v810, 0.0
  %v1067 = vmax.f32 %v811, 0.0
  %v1068 = vmax.f32 %v812, 0.0
  %v1069 = vmax.f32 %v813, 0.0
  %v1070 = vmax.f32 %v814, 0.0
  %v1071 = vmax.f32 %v815, 0.0
  %v1072 = vmax.f32 %v816, 0.0
  %v1073 = vmax.f32 %v817, 0.0
  %v1074 = vmax.f32 %v818, 0.0
  %v1075 = vmax.f32 %v819, 0.0
  %v1076 = vmax.f32 %v820, 0.0
  %v1077 = vmax.f32 %v821, 0.0
  %v1078 = vmax.f32 %v822, 0.0
  %v1079 = vmax.f32 %v823, 0.0
  %v1080 = vmax.f32 %v824, 0.0
  %v1081 = vmax.f32 %v825, 0.0
  %v1082 = vmax.f32 %v826, 0.0
  %v1083 = vmax.f32 %v827, 0.0
  %v1084 = vmax.f32 %v828, 0.0
  %v1085 = vmax.f32 %v829, 0.0
  %v1086 = vmax.f32 %v830, 0.0
  %v1087 = vmax.f32 %v831, 0.0
  %v1088 = vmax.f32 %v832, 0.0
  %v1089 = vmax.f32 %v833, 0.0
  %v1090 = vmax.f32 %v834, 0.0
  %v1091 = vmax.f32 %v835, 0.0
  %v1092 = vmax.f32 %v836, 0.0
  %v1093 = vmax.f32 %v837, 0.0
  %v1094 = vmax.f32 %v838, 0.0
  %v1095 = vmax.f32 %v839, 0.0
  %v1096 = vmax.f32 %v840, 0.0
  %v1097 = vmax.f32 %v841, 0.0
  %v1098 = vmax.f32 %v842, 0.0
  %v1099 = vmax.f32 %v843, 0.0
  %v1100 = vmax.f32 %v844, 0.0
  %v1101 = vmax.f32 %v845, 0.0
  %v1102 = vmax.f32 %v846, 0.0
  %v1103 = vmax.f32 %v847, 0.0
  %v1104 = vmax.f32 %v848, 0.0
  %v1105 = vmax.f32 %v849, 0.0
  %v1106 = vmax.f32 %v850, 0.0
  %v1107 = vmax.f32 %v851, 0.0
  %v1108 = vmax.f32 %v852, 0.0
  %v1109 = vmax.f32 %v853, 0.0
  %v1110 = vmax.f32 %v854, 0.0
  %v1111 = vmax.f32 %v855, 0.0
  %v1112 = vmax.f32 %v856, 0.0
  %v1113 = vmax.f32 %v857, 0.0
  %v1114 = vmax.f32 %v858, 0.0
  %v1115 = vmax.f32 %v859, 0.0
  %v1116 = vmax.f32 %v860, 0.0
  %v1117 = vmax.f32 %v861, 0.0
  %v1118 = vmax.f32 %v862, 0.0
  %v1119 = vmax.f32 %v863, 0.0
  %v1120 = vmax.f32 %v864, 0.0
  %v1121 = vmax.f32 %v865, 0.0
  %v1122 = vmax.f32 %v866, 0.0
  %v1123 = vmax.f32 %v867, 0.0
  %v1124 = vmax.f32 %v868, 0.0
  %v1125 = vmax.f32 %v869, 0.0
  %v1126 = vmax.f32 %v870, 0.0
  %v1127 = vmax.f32 %v871, 0.0
  %v1128 = vmax.f32 %v872, 0.0
  %v1129 = vmax.f32 %v873, 0.0
  %v1130 = vmax.f32 %v874, 0.0
  %v1131 = vmax.f32 %v875, 0.0
  %v1132 = vmax.f32 %v876, 0.0
  %v1133 = vmax.f32 %v877, 0.0
  %v1134 = vmax.f32 %v878, 0.0
  %v1135 = vmax.f32 %v879, 0.0
  %v1136 = vmax.f32 %v880, 0.0
  %v1137 = vmax.f32 %v881, 0.0
  %v1138 = vmax.f32 %v882, 0.0
  %v1139 = vmax.f32 %v883, 0.0
  %v1140 = vmax.f32 %v884, 0.0
  %v1141 = vmax.f32 %v885, 0.0
  %v1142 = vmax.f32 %v886, 0.0
  %v1143 = vmax.f32 %v887, 0.0
  %v1144 = vmax.f32 %v888, 0.0
  %v1145 = vmax.f32 %v889, 0.0
  %v1146 = vmax.f32 %v890, 0.0
  %v1147 = vmax.f32 %v891, 0.0
  %v1148 = vmax.f32 %v892, 0.0
  %v1149 = vmax.f32 %v893, 0.0
  %v1150 = vmax.f32 %v894, 0.0
  %v1151 = vmax.f32 %v895, 0.0
  %v1152 = vmax.f32 %v896, 0.0
  %v1153 = vmax.f32 %v897, 0.0
  %v1154 = vmax.f32 %v898, 0.0
  %v1155 = vmax.f32 %v899, 0.0
  %v1156 = vmax.f32 %v900, 0.0
  %v1157 = vmax.f32 %v901, 0.0
  %v1158 = vmax.f32 %v902, 0.0
  %v1159 = vmax.f32 %v903, 0.0
  %v1160 = vmax.f32 %v904, 0.0
  %v1161 = vmax.f32 %v905, 0.0
  %v1162 = vmax.f32 %v906, 0.0
  %v1163 = vmax.f32 %v907, 0.0
  %v1164 = vmax.f32 %v908, 0.0
  %v1165 = vmax.f32 %v909, 0.0
  %v1166 = vmax.f32 %v910, 0.0
  %v1167 = vmax.f32 %v911, 0.0
  %v1168 = vmax.f32 %v912, 0.0
  %v1169 = vmax.f32 %v913, 0.0
  %v1170 = vmax.f32 %v914, 0.0
  %v1171 = vmax.f32 %v915, 0.0
  %v1172 = vmax.f32 %v916, 0.0
  %v1173 = vmax.f32 %v917, 0.0
  %v1174 = vmax.f32 %v918, 0.0
  %v1175 = vmax.f32 %v919, 0.0
  %v1176 = vmax.f32 %v920, 0.0
  %v1177 = vmax.f32 %v921, 0.0
  %v1178 = vmax.f32 %v922, 0.0
  %v1179 = vmax.f32 %v923, 0.0
  %v1180 = vmax.f32 %v924, 0.0
  %v1181 = vmax.f32 %v925, 0.0
  %v1182 = vmax.f32 %v926, 0.0
  %v1183 = vmax.f32 %v927, 0.0
  %v1184 = vmax.f32 %v928, 0.0
  %v1185 = vmax.f32 %v929, 0.0
  %v1186 = vmax.f32 %v930, 0.0
  %v1187 = vmax.f32 %v931, 0.0
  %v1188 = vmax.f32 %v932, 0.0
  %v1189 = vmax.f32 %v933, 0.0
  %v1190 = vmax.f32 %v934, 0.0
  %v1191 = vmax.f32 %v935, 0.0
  %v1192 = vmax.f32 %v936, 0.0
  %v1193 = vmax.f32 %v937, 0.0
  %v1194 = vmax.f32 %v938, 0.0
  %v1195 = vmax.f32 %v939, 0.0
  %v1196 = vmax.f32 %v940, 0.0
  %v1197 = vmax.f32 %v941, 0.0
  %v1198 = vmax.f32 %v942, 0.0
  %v1199 = vmax.f32 %v943, 0.0
  %v1200 = vmax.f32 %v944, 0.0
  %v1201 = vmax.f32 %v945, 0.0
  %v1202 = vmax.f32 %v946, 0.0
  %v1203 = vmax.f32 %v947, 0.0
  %v1204 = vmax.f32 %v948, 0.0
  %v1205 = vmax.f32 %v949, 0.0
  %v1206 = vmax.f32 %v950, 0.0
  %v1207 = vmax.f32 %v951, 0.0
  %v1208 = vmax.f32 %v952, 0.0
  %v1209 = vmax.f32 %v953, 0.0
  %v1210 = vmax.f32 %v954, 0.0
  %v1211 = vmax.f32 %v955, 0.0
  %v1212 = vmax.f32 %v956, 0.0
  %v1213 = vmax.f32 %v957, 0.0
  %v1214 = vmax.f32 %v958, 0.0
  %v1215 = vmax.f32 %v959, 0.0
  %v1216 = vmax.f32 %v960, 0.0
  %v1217 = vmax.f32 %v961, 0.0
  %v1218 = vmax.f32 %v962, 0.0
  %v1219 = vmax.f32 %v963, 0.0
  %v1220 = vmax.f32 %v964, 0.0
  %v1221 = vmax.f32 %v965, 0.0
  %v1222 = vmax.f32 %v966, 0.0
  %v1223 = vmax.f32 %v967, 0.0
  %v1224 = vmax.f32 %v968, 0.0
  %v1225 = vmax.f32 %v969, 0.0
  %v1226 = vmax.f32 %v970, 0.0
  %v1227 = vmax.f32 %v971, 0.0
  %v1228 = vmax.f32 %v972, 0.0
  %v1229 = vmax.f32 %v973, 0.0
  %v1230 = vmax.f32 %v974, 0.0
  %v1231 = vmax.f32 %v975, 0.0
  %v1232 = vmax.f32 %v976, 0.0
  %v1233 = vmax.f32 %v977, 0.0
  %v1234 = vmax.f32 %v978, 0.0
  %v1235 = vmax.f32 %v979, 0.0
  %v1236 = vmax.f32 %v980, 0.0
  %v1237 = vmax.f32 %v981, 0.0
  %v1238 = vmax.f32 %v982, 0.0
  %v1239 = vmax.f32 %v983, 0.0
  %v1240 = vmax.f32 %v984, 0.0
  %v1241 = vmax.f32 %v985, 0.0
  %v1242 = vmax.f32 %v986, 0.0
  %v1243 = vmax.f32 %v987, 0.0
  %v1244 = vmax.f32 %v988, 0.0
  %v1245 = vmax.f32 %v989, 0.0
  %v1246 = vmax.f32 %v990, 0.0
  %v1247 = vmax.f32 %v991, 0.0
  %v1248 = vmax.f32 %v992, 0.0
  %v1249 = vmax.f32 %v993, 0.0
  %v1250 = vmax.f32 %v994, 0.0
  %v1251 = vmax.f32 %v995, 0.0
  %v1252 = vmax.f32 %v996, 0.0
  %v1253 = vmax.f32 %v997, 0.0
  %v1254 = vmax.f32 %v998, 0.0
  %v1255 = vmax.f32 %v999, 0.0
  %v1256 = vmax.f32 %v1000, 0.0
  %v1257 = vmax.f32 %v1001, 0.0
  %v1258 = vmax.f32 %v1002, 0.0
  %v1259 = vmax.f32 %v1003, 0.0
  %v1260 = vmax.f32 %v1004, 0.0
  %v1261 = vmax.f32 %v1005, 0.0
  %v1262 = vmax.f32 %v1006, 0.0
  %v1263 = vmax.f32 %v1007, 0.0
  %v1264 = vmax.f32 %v1008, 0.0
  %v1265 = vmax.f32 %v1009, 0.0
  %v1266 = vmax.f32 %v1010, 0.0
  %v1267 = vmax.f32 %v1011, 0.0
  %v1268 = vmax.f32 %v1012, 0.0
  %v1269 = vmax.f32 %v1013, 0.0
  %v1270 = vmax.f32 %v1014, 0.0
  %v1271 = vmax.f32 %v1015, 0.0
  %v1272 = vmax.f32 %v1016, 0.0
  %v1273 = vmax.f32 %v1017, 0.0
  %v1274 = vmax.f32 %v1018, 0.0
  %v1275 = vmax.f32 %v1019, 0.0
  %v1276 = vmax.f32 %v1020, 0.0
  %v1277 = vmax.f32 %v1021, 0.0
  %v1278 = vmax.f32 %v1022, 0.0
  %v1279 = vmax.f32 %v1023, 0.0
  %v1280 = vmax.f32 %v1024, 0.0
  %v1281 = vmax.f32 %v1025, 0.0
  %v1282 = vmax.f32 %v1026, 0.0
  %v1283 = vmax.f32 %v1027, 0.0
  %v1284 = vmax.f32 %v1028, 0.0
  %v1285 = vmax.f32 %v1029, 0.0
  %v1286 = vmax.f32 %v1030, 0.0
  %v1287 = vmax.f32 %v1031, 0.0
  %v1288 = vmax.f32 %v1032, 0.0
  %v1289 = vmax.f32 %v1033, 0.0
  %v1290 = vmax.f32 %v1034, 0.0
  %v1291 = vmax.f32 %v1035, 0.0
  %v1292 = vmax.f32 %v1036, 0.0
  %v1293 = vmax.f32 %v1037, 0.0
  %v1294 = vmax.f32 %v1038, 0.0
  %v1295 = vmax.f32 %v1039, 0.0
  %v1296 = vmax.f32 %v1040, 0.0
  %v1297 = vmax.f32 %v1041, 0.0
  %v1298 = vmax.f32 %v1042, 0.0
  %v1299 = vmax.f32 %v1043, 0.0
  %v1300 = vmax.f32 %v1044, 0.0
  %v1301 = vmax.f32 %v1045, 0.0
  %v1302 = vmax.f32 %v1046, 0.0
  %v1303 = vmax.f32 %v1047, 0.0
  %v1304 = vmax.f32 %v1048, 0.0
  %v1305 = vmax.f32 %v1049, 0.0
  %v1306 = vmax.f32 %v1050, 0.0
  %v1307 = vmax.f32 %v1051, 0.0
  %v1308 = vpack.c.bf16 %v1053, %v1052
  %v1309 = vpack.c.bf16 %v1055, %v1054
  %v1310 = vpack.c.bf16 %v1057, %v1056
  %v1311 = vpack.c.bf16 %v1059, %v1058
  %v1312 = vpack.c.bf16 %v1061, %v1060
  %v1313 = vpack.c.bf16 %v1063, %v1062
  %v1314 = vpack.c.bf16 %v1065, %v1064
  %v1315 = vpack.c.bf16 %v1067, %v1066
  %v1316 = vpack.c.bf16 %v1069, %v1068
  %v1317 = vpack.c.bf16 %v1071, %v1070
  %v1318 = vpack.c.bf16 %v1073, %v1072
  %v1319 = vpack.c.bf16 %v1075, %v1074
  %v1320 = vpack.c.bf16 %v1077, %v1076
  %v1321 = vpack.c.bf16 %v1079, %v1078
  %v1322 = vpack.c.bf16 %v1081, %v1080
  %v1323 = vpack.c.bf16 %v1083, %v1082
  %v1324 = vpack.c.bf16 %v1085, %v1084
  %v1325 = vpack.c.bf16 %v1087, %v1086
  %v1326 = vpack.c.bf16 %v1089, %v1088
  %v1327 = vpack.c.bf16 %v1091, %v1090
  %v1328 = vpack.c.bf16 %v1093, %v1092
  %v1329 = vpack.c.bf16 %v1095, %v1094
  %v1330 = vpack.c.bf16 %v1097, %v1096
  %v1331 = vpack.c.bf16 %v1099, %v1098
  %v1332 = vpack.c.bf16 %v1101, %v1100
  %v1333 = vpack.c.bf16 %v1103, %v1102
  %v1334 = vpack.c.bf16 %v1105, %v1104
  %v1335 = vpack.c.bf16 %v1107, %v1106
  %v1336 = vpack.c.bf16 %v1109, %v1108
  %v1337 = vpack.c.bf16 %v1111, %v1110
  %v1338 = vpack.c.bf16 %v1113, %v1112
  %v1339 = vpack.c.bf16 %v1115, %v1114
  %v1340 = vpack.c.bf16 %v1117, %v1116
  %v1341 = vpack.c.bf16 %v1119, %v1118
  %v1342 = vpack.c.bf16 %v1121, %v1120
  %v1343 = vpack.c.bf16 %v1123, %v1122
  %v1344 = vpack.c.bf16 %v1125, %v1124
  %v1345 = vpack.c.bf16 %v1127, %v1126
  %v1346 = vpack.c.bf16 %v1129, %v1128
  %v1347 = vpack.c.bf16 %v1131, %v1130
  %v1348 = vpack.c.bf16 %v1133, %v1132
  %v1349 = vpack.c.bf16 %v1135, %v1134
  %v1350 = vpack.c.bf16 %v1137, %v1136
  %v1351 = vpack.c.bf16 %v1139, %v1138
  %v1352 = vpack.c.bf16 %v1141, %v1140
  %v1353 = vpack.c.bf16 %v1143, %v1142
  %v1354 = vpack.c.bf16 %v1145, %v1144
  %v1355 = vpack.c.bf16 %v1147, %v1146
  %v1356 = vpack.c.bf16 %v1149, %v1148
  %v1357 = vpack.c.bf16 %v1151, %v1150
  %v1358 = vpack.c.bf16 %v1153, %v1152
  %v1359 = vpack.c.bf16 %v1155, %v1154
  %v1360 = vpack.c.bf16 %v1157, %v1156
  %v1361 = vpack.c.bf16 %v1159, %v1158
  %v1362 = vpack.c.bf16 %v1161, %v1160
  %v1363 = vpack.c.bf16 %v1163, %v1162
  %v1364 = vpack.c.bf16 %v1165, %v1164
  %v1365 = vpack.c.bf16 %v1167, %v1166
  %v1366 = vpack.c.bf16 %v1169, %v1168
  %v1367 = vpack.c.bf16 %v1171, %v1170
  %v1368 = vpack.c.bf16 %v1173, %v1172
  %v1369 = vpack.c.bf16 %v1175, %v1174
  %v1370 = vpack.c.bf16 %v1177, %v1176
  %v1371 = vpack.c.bf16 %v1179, %v1178
  %v1372 = vpack.c.bf16 %v1181, %v1180
  %v1373 = vpack.c.bf16 %v1183, %v1182
  %v1374 = vpack.c.bf16 %v1185, %v1184
  %v1375 = vpack.c.bf16 %v1187, %v1186
  %v1376 = vpack.c.bf16 %v1189, %v1188
  %v1377 = vpack.c.bf16 %v1191, %v1190
  %v1378 = vpack.c.bf16 %v1193, %v1192
  %v1379 = vpack.c.bf16 %v1195, %v1194
  %v1380 = vpack.c.bf16 %v1197, %v1196
  %v1381 = vpack.c.bf16 %v1199, %v1198
  %v1382 = vpack.c.bf16 %v1201, %v1200
  %v1383 = vpack.c.bf16 %v1203, %v1202
  %v1384 = vpack.c.bf16 %v1205, %v1204
  %v1385 = vpack.c.bf16 %v1207, %v1206
  %v1386 = vpack.c.bf16 %v1209, %v1208
  %v1387 = vpack.c.bf16 %v1211, %v1210
  %v1388 = vpack.c.bf16 %v1213, %v1212
  %v1389 = vpack.c.bf16 %v1215, %v1214
  %v1390 = vpack.c.bf16 %v1217, %v1216
  %v1391 = vpack.c.bf16 %v1219, %v1218
  %v1392 = vpack.c.bf16 %v1221, %v1220
  %v1393 = vpack.c.bf16 %v1223, %v1222
  %v1394 = vpack.c.bf16 %v1225, %v1224
  %v1395 = vpack.c.bf16 %v1227, %v1226
  %v1396 = vpack.c.bf16 %v1229, %v1228
  %v1397 = vpack.c.bf16 %v1231, %v1230
  %v1398 = vpack.c.bf16 %v1233, %v1232
  %v1399 = vpack.c.bf16 %v1235, %v1234
  %v1400 = vpack.c.bf16 %v1237, %v1236
  %v1401 = vpack.c.bf16 %v1239, %v1238
  %v1402 = vpack.c.bf16 %v1241, %v1240
  %v1403 = vpack.c.bf16 %v1243, %v1242
  %v1404 = vpack.c.bf16 %v1245, %v1244
  %v1405 = vpack.c.bf16 %v1247, %v1246
  %v1406 = vpack.c.bf16 %v1249, %v1248
  %v1407 = vpack.c.bf16 %v1251, %v1250
  %v1408 = vpack.c.bf16 %v1253, %v1252
  %v1409 = vpack.c.bf16 %v1255, %v1254
  %v1410 = vpack.c.bf16 %v1257, %v1256
  %v1411 = vpack.c.bf16 %v1259, %v1258
  %v1412 = vpack.c.bf16 %v1261, %v1260
  %v1413 = vpack.c.bf16 %v1263, %v1262
  %v1414 = vpack.c.bf16 %v1265, %v1264
  %v1415 = vpack.c.bf16 %v1267, %v1266
  %v1416 = vpack.c.bf16 %v1269, %v1268
  %v1417 = vpack.c.bf16 %v1271, %v1270
  %v1418 = vpack.c.bf16 %v1273, %v1272
  %v1419 = vpack.c.bf16 %v1275, %v1274
  %v1420 = vpack.c.bf16 %v1277, %v1276
  %v1421 = vpack.c.bf16 %v1279, %v1278
  %v1422 = vpack.c.bf16 %v1281, %v1280
  %v1423 = vpack.c.bf16 %v1283, %v1282
  %v1424 = vpack.c.bf16 %v1285, %v1284
  %v1425 = vpack.c.bf16 %v1287, %v1286
  %v1426 = vpack.c.bf16 %v1289, %v1288
  %v1427 = vpack.c.bf16 %v1291, %v1290
  %v1428 = vpack.c.bf16 %v1293, %v1292
  %v1429 = vpack.c.bf16 %v1295, %v1294
  %v1430 = vpack.c.bf16 %v1297, %v1296
  %v1431 = vpack.c.bf16 %v1299, %v1298
  %v1432 = vpack.c.bf16 %v1301, %v1300
  %v1433 = vpack.c.bf16 %v1303, %v1302
  %v1434 = vpack.c.bf16 %v1305, %v1304
  %v1435 = vpack.c.bf16 %v1307, %v1306
  %v1564 = vunpack.c.l.b16 %v1308
  %v1565 = vunpack.c.h.b16 %v1308
  %v1566 = vunpack.c.l.b16 %v1309
  %v1567 = vunpack.c.h.b16 %v1309
  %v1568 = vunpack.c.l.b16 %v1310
  %v1569 = vunpack.c.h.b16 %v1310
  %v1570 = vunpack.c.l.b16 %v1311
  %v1571 = vunpack.c.h.b16 %v1311
  %v1572 = vunpack.c.l.b16 %v1312
  %v1573 = vunpack.c.h.b16 %v1312
  %v1574 = vunpack.c.l.b16 %v1313
  %v1575 = vunpack.c.h.b16 %v1313
  %v1576 = vunpack.c.l.b16 %v1314
  %v1577 = vunpack.c.h.b16 %v1314
  %v1578 = vunpack.c.l.b16 %v1315
  %v1579 = vunpack.c.h.b16 %v1315
  %v1580 = vunpack.c.l.b16 %v1316
  %v1581 = vunpack.c.h.b16 %v1316
  %v1582 = vunpack.c.l.b16 %v1317
  %v1583 = vunpack.c.h.b16 %v1317
  %v1584 = vunpack.c.l.b16 %v1318
  %v1585 = vunpack.c.h.b16 %v1318
  %v1586 = vunpack.c.l.b16 %v1319
  %v1587 = vunpack.c.h.b16 %v1319
  %v1588 = vunpack.c.l.b16 %v1320
  %v1589 = vunpack.c.h.b16 %v1320
  %v1590 = vunpack.c.l.b16 %v1321
  %v1591 = vunpack.c.h.b16 %v1321
  %v1592 = vunpack.c.l.b16 %v1322
  %v1593 = vunpack.c.h.b16 %v1322
  %v1594 = vunpack.c.l.b16 %v1323
  %v1595 = vunpack.c.h.b16 %v1323
  %v1596 = vunpack.c.l.b16 %v1324
  %v1597 = vunpack.c.h.b16 %v1324
  %v1598 = vunpack.c.l.b16 %v1325
  %v1599 = vunpack.c.h.b16 %v1325
  %v1600 = vunpack.c.l.b16 %v1326
  %v1601 = vunpack.c.h.b16 %v1326
  %v1602 = vunpack.c.l.b16 %v1327
  %v1603 = vunpack.c.h.b16 %v1327
  %v1604 = vunpack.c.l.b16 %v1328
  %v1605 = vunpack.c.h.b16 %v1328
  %v1606 = vunpack.c.l.b16 %v1329
  %v1607 = vunpack.c.h.b16 %v1329
  %v1608 = vunpack.c.l.b16 %v1330
  %v1609 = vunpack.c.h.b16 %v1330
  %v1610 = vunpack.c.l.b16 %v1331
  %v1611 = vunpack.c.h.b16 %v1331
  %v1612 = vunpack.c.l.b16 %v1332
  %v1613 = vunpack.c.h.b16 %v1332
  %v1614 = vunpack.c.l.b16 %v1333
  %v1615 = vunpack.c.h.b16 %v1333
  %v1616 = vunpack.c.l.b16 %v1334
  %v1617 = vunpack.c.h.b16 %v1334
  %v1618 = vunpack.c.l.b16 %v1335
  %v1619 = vunpack.c.h.b16 %v1335
  %v1620 = vunpack.c.l.b16 %v1336
  %v1621 = vunpack.c.h.b16 %v1336
  %v1622 = vunpack.c.l.b16 %v1337
  %v1623 = vunpack.c.h.b16 %v1337
  %v1624 = vunpack.c.l.b16 %v1338
  %v1625 = vunpack.c.h.b16 %v1338
  %v1626 = vunpack.c.l.b16 %v1339
  %v1627 = vunpack.c.h.b16 %v1339
  %v1628 = vunpack.c.l.b16 %v1340
  %v1629 = vunpack.c.h.b16 %v1340
  %v1630 = vunpack.c.l.b16 %v1341
  %v1631 = vunpack.c.h.b16 %v1341
  %v1632 = vunpack.c.l.b16 %v1342
  %v1633 = vunpack.c.h.b16 %v1342
  %v1634 = vunpack.c.l.b16 %v1343
  %v1635 = vunpack.c.h.b16 %v1343
  %v1636 = vunpack.c.l.b16 %v1344
  %v1637 = vunpack.c.h.b16 %v1344
  %v1638 = vunpack.c.l.b16 %v1345
  %v1639 = vunpack.c.h.b16 %v1345
  %v1640 = vunpack.c.l.b16 %v1346
  %v1641 = vunpack.c.h.b16 %v1346
  %v1642 = vunpack.c.l.b16 %v1347
  %v1643 = vunpack.c.h.b16 %v1347
  %v1644 = vunpack.c.l.b16 %v1348
  %v1645 = vunpack.c.h.b16 %v1348
  %v1646 = vunpack.c.l.b16 %v1349
  %v1647 = vunpack.c.h.b16 %v1349
  %v1648 = vunpack.c.l.b16 %v1350
  %v1649 = vunpack.c.h.b16 %v1350
  %v1650 = vunpack.c.l.b16 %v1351
  %v1651 = vunpack.c.h.b16 %v1351
  %v1652 = vunpack.c.l.b16 %v1352
  %v1653 = vunpack.c.h.b16 %v1352
  %v1654 = vunpack.c.l.b16 %v1353
  %v1655 = vunpack.c.h.b16 %v1353
  %v1656 = vunpack.c.l.b16 %v1354
  %v1657 = vunpack.c.h.b16 %v1354
  %v1658 = vunpack.c.l.b16 %v1355
  %v1659 = vunpack.c.h.b16 %v1355
  %v1660 = vunpack.c.l.b16 %v1356
  %v1661 = vunpack.c.h.b16 %v1356
  %v1662 = vunpack.c.l.b16 %v1357
  %v1663 = vunpack.c.h.b16 %v1357
  %v1664 = vunpack.c.l.b16 %v1358
  %v1665 = vunpack.c.h.b16 %v1358
  %v1666 = vunpack.c.l.b16 %v1359
  %v1667 = vunpack.c.h.b16 %v1359
  %v1668 = vunpack.c.l.b16 %v1360
  %v1669 = vunpack.c.h.b16 %v1360
  %v1670 = vunpack.c.l.b16 %v1361
  %v1671 = vunpack.c.h.b16 %v1361
  %v1672 = vunpack.c.l.b16 %v1362
  %v1673 = vunpack.c.h.b16 %v1362
  %v1674 = vunpack.c.l.b16 %v1363
  %v1675 = vunpack.c.h.b16 %v1363
  %v1676 = vunpack.c.l.b16 %v1364
  %v1677 = vunpack.c.h.b16 %v1364
  %v1678 = vunpack.c.l.b16 %v1365
  %v1679 = vunpack.c.h.b16 %v1365
  %v1680 = vunpack.c.l.b16 %v1366
  %v1681 = vunpack.c.h.b16 %v1366
  %v1682 = vunpack.c.l.b16 %v1367
  %v1683 = vunpack.c.h.b16 %v1367
  %v1684 = vunpack.c.l.b16 %v1368
  %v1685 = vunpack.c.h.b16 %v1368
  %v1686 = vunpack.c.l.b16 %v1369
  %v1687 = vunpack.c.h.b16 %v1369
  %v1688 = vunpack.c.l.b16 %v1370
  %v1689 = vunpack.c.h.b16 %v1370
  %v1690 = vunpack.c.l.b16 %v1371
  %v1691 = vunpack.c.h.b16 %v1371
  %v1692 = vunpack.c.l.b16 %v1372
  %v1693 = vunpack.c.h.b16 %v1372
  %v1694 = vunpack.c.l.b16 %v1373
  %v1695 = vunpack.c.h.b16 %v1373
  %v1696 = vunpack.c.l.b16 %v1374
  %v1697 = vunpack.c.h.b16 %v1374
  %v1698 = vunpack.c.l.b16 %v1375
  %v1699 = vunpack.c.h.b16 %v1375
  %v1700 = vunpack.c.l.b16 %v1376
  %v1701 = vunpack.c.h.b16 %v1376
  %v1702 = vunpack.c.l.b16 %v1377
  %v1703 = vunpack.c.h.b16 %v1377
  %v1704 = vunpack.c.l.b16 %v1378
  %v1705 = vunpack.c.h.b16 %v1378
  %v1706 = vunpack.c.l.b16 %v1379
  %v1707 = vunpack.c.h.b16 %v1379
  %v1708 = vunpack.c.l.b16 %v1380
  %v1709 = vunpack.c.h.b16 %v1380
  %v1710 = vunpack.c.l.b16 %v1381
  %v1711 = vunpack.c.h.b16 %v1381
  %v1712 = vunpack.c.l.b16 %v1382
  %v1713 = vunpack.c.h.b16 %v1382
  %v1714 = vunpack.c.l.b16 %v1383
  %v1715 = vunpack.c.h.b16 %v1383
  %v1716 = vunpack.c.l.b16 %v1384
  %v1717 = vunpack.c.h.b16 %v1384
  %v1718 = vunpack.c.l.b16 %v1385
  %v1719 = vunpack.c.h.b16 %v1385
  %v1720 = vunpack.c.l.b16 %v1386
  %v1721 = vunpack.c.h.b16 %v1386
  %v1722 = vunpack.c.l.b16 %v1387
  %v1723 = vunpack.c.h.b16 %v1387
  %v1724 = vunpack.c.l.b16 %v1388
  %v1725 = vunpack.c.h.b16 %v1388
  %v1726 = vunpack.c.l.b16 %v1389
  %v1727 = vunpack.c.h.b16 %v1389
  %v1728 = vunpack.c.l.b16 %v1390
  %v1729 = vunpack.c.h.b16 %v1390
  %v1730 = vunpack.c.l.b16 %v1391
  %v1731 = vunpack.c.h.b16 %v1391
  %v1732 = vunpack.c.l.b16 %v1392
  %v1733 = vunpack.c.h.b16 %v1392
  %v1734 = vunpack.c.l.b16 %v1393
  %v1735 = vunpack.c.h.b16 %v1393
  %v1736 = vunpack.c.l.b16 %v1394
  %v1737 = vunpack.c.h.b16 %v1394
  %v1738 = vunpack.c.l.b16 %v1395
  %v1739 = vunpack.c.h.b16 %v1395
  %v1740 = vunpack.c.l.b16 %v1396
  %v1741 = vunpack.c.h.b16 %v1396
  %v1742 = vunpack.c.l.b16 %v1397
  %v1743 = vunpack.c.h.b16 %v1397
  %v1744 = vunpack.c.l.b16 %v1398
  %v1745 = vunpack.c.h.b16 %v1398
  %v1746 = vunpack.c.l.b16 %v1399
  %v1747 = vunpack.c.h.b16 %v1399
  %v1748 = vunpack.c.l.b16 %v1400
  %v1749 = vunpack.c.h.b16 %v1400
  %v1750 = vunpack.c.l.b16 %v1401
  %v1751 = vunpack.c.h.b16 %v1401
  %v1752 = vunpack.c.l.b16 %v1402
  %v1753 = vunpack.c.h.b16 %v1402
  %v1754 = vunpack.c.l.b16 %v1403
  %v1755 = vunpack.c.h.b16 %v1403
  %v1756 = vunpack.c.l.b16 %v1404
  %v1757 = vunpack.c.h.b16 %v1404
  %v1758 = vunpack.c.l.b16 %v1405
  %v1759 = vunpack.c.h.b16 %v1405
  %v1760 = vunpack.c.l.b16 %v1406
  %v1761 = vunpack.c.h.b16 %v1406
  %v1762 = vunpack.c.l.b16 %v1407
  %v1763 = vunpack.c.h.b16 %v1407
  %v1764 = vunpack.c.l.b16 %v1408
  %v1765 = vunpack.c.h.b16 %v1408
  %v1766 = vunpack.c.l.b16 %v1409
  %v1767 = vunpack.c.h.b16 %v1409
  %v1768 = vunpack.c.l.b16 %v1410
  %v1769 = vunpack.c.h.b16 %v1410
  %v1770 = vunpack.c.l.b16 %v1411
  %v1771 = vunpack.c.h.b16 %v1411
  %v1772 = vunpack.c.l.b16 %v1412
  %v1773 = vunpack.c.h.b16 %v1412
  %v1774 = vunpack.c.l.b16 %v1413
  %v1775 = vunpack.c.h.b16 %v1413
  %v1776 = vunpack.c.l.b16 %v1414
  %v1777 = vunpack.c.h.b16 %v1414
  %v1778 = vunpack.c.l.b16 %v1415
  %v1779 = vunpack.c.h.b16 %v1415
  %v1780 = vunpack.c.l.b16 %v1416
  %v1781 = vunpack.c.h.b16 %v1416
  %v1782 = vunpack.c.l.b16 %v1417
  %v1783 = vunpack.c.h.b16 %v1417
  %v1784 = vunpack.c.l.b16 %v1418
  %v1785 = vunpack.c.h.b16 %v1418
  %v1786 = vunpack.c.l.b16 %v1419
  %v1787 = vunpack.c.h.b16 %v1419
  %v1788 = vunpack.c.l.b16 %v1420
  %v1789 = vunpack.c.h.b16 %v1420
  %v1790 = vunpack.c.l.b16 %v1421
  %v1791 = vunpack.c.h.b16 %v1421
  %v1792 = vunpack.c.l.b16 %v1422
  %v1793 = vunpack.c.h.b16 %v1422
  %v1794 = vunpack.c.l.b16 %v1423
  %v1795 = vunpack.c.h.b16 %v1423
  %v1796 = vunpack.c.l.b16 %v1424
  %v1797 = vunpack.c.h.b16 %v1424
  %v1798 = vunpack.c.l.b16 %v1425
  %v1799 = vunpack.c.h.b16 %v1425
  %v1800 = vunpack.c.l.b16 %v1426
  %v1801 = vunpack.c.h.b16 %v1426
  %v1802 = vunpack.c.l.b16 %v1427
  %v1803 = vunpack.c.h.b16 %v1427
  %v1804 = vunpack.c.l.b16 %v1428
  %v1805 = vunpack.c.h.b16 %v1428
  %v1806 = vunpack.c.l.b16 %v1429
  %v1807 = vunpack.c.h.b16 %v1429
  %v1808 = vunpack.c.l.b16 %v1430
  %v1809 = vunpack.c.h.b16 %v1430
  %v1810 = vunpack.c.l.b16 %v1431
  %v1811 = vunpack.c.h.b16 %v1431
  %v1812 = vunpack.c.l.b16 %v1432
  %v1813 = vunpack.c.h.b16 %v1432
  %v1814 = vunpack.c.l.b16 %v1433
  %v1815 = vunpack.c.h.b16 %v1433
  %v1816 = vunpack.c.l.b16 %v1434
  %v1817 = vunpack.c.h.b16 %v1434
  %v1818 = vunpack.c.l.b16 %v1435
  %v1819 = vunpack.c.h.b16 %v1435
  %v1820 = vpack.c.b16 %v1564, %v1564
  %v1821 = vpack.c.b16 %v1565, %v1565
  %v1822 = vpack.c.b16 %v1566, %v1566
  %v1823 = vpack.c.b16 %v1567, %v1567
  %v1824 = vpack.c.b16 %v1568, %v1568
  %v1825 = vpack.c.b16 %v1569, %v1569
  %v1826 = vpack.c.b16 %v1570, %v1570
  %v1827 = vpack.c.b16 %v1571, %v1571
  %v1828 = vpack.c.b16 %v1572, %v1572
  %v1829 = vpack.c.b16 %v1573, %v1573
  %v1830 = vpack.c.b16 %v1574, %v1574
  %v1831 = vpack.c.b16 %v1575, %v1575
  %v1832 = vpack.c.b16 %v1576, %v1576
  %v1833 = vpack.c.b16 %v1577, %v1577
  %v1834 = vpack.c.b16 %v1578, %v1578
  %v1835 = vpack.c.b16 %v1579, %v1579
  %v1836 = vpack.c.b16 %v1580, %v1580
  %v1837 = vpack.c.b16 %v1581, %v1581
  %v1838 = vpack.c.b16 %v1582, %v1582
  %v1839 = vpack.c.b16 %v1583, %v1583
  %v1840 = vpack.c.b16 %v1584, %v1584
  %v1841 = vpack.c.b16 %v1585, %v1585
  %v1842 = vpack.c.b16 %v1586, %v1586
  %v1843 = vpack.c.b16 %v1587, %v1587
  %v1844 = vpack.c.b16 %v1588, %v1588
  %v1845 = vpack.c.b16 %v1589, %v1589
  %v1846 = vpack.c.b16 %v1590, %v1590
  %v1847 = vpack.c.b16 %v1591, %v1591
  %v1848 = vpack.c.b16 %v1592, %v1592
  %v1849 = vpack.c.b16 %v1593, %v1593
  %v1850 = vpack.c.b16 %v1594, %v1594
  %v1851 = vpack.c.b16 %v1595, %v1595
  %v1852 = vpack.c.b16 %v1596, %v1596
  %v1853 = vpack.c.b16 %v1597, %v1597
  %v1854 = vpack.c.b16 %v1598, %v1598
  %v1855 = vpack.c.b16 %v1599, %v1599
  %v1856 = vpack.c.b16 %v1600, %v1600
  %v1857 = vpack.c.b16 %v1601, %v1601
  %v1858 = vpack.c.b16 %v1602, %v1602
  %v1859 = vpack.c.b16 %v1603, %v1603
  %v1860 = vpack.c.b16 %v1604, %v1604
  %v1861 = vpack.c.b16 %v1605, %v1605
  %v1862 = vpack.c.b16 %v1606, %v1606
  %v1863 = vpack.c.b16 %v1607, %v1607
  %v1864 = vpack.c.b16 %v1608, %v1608
  %v1865 = vpack.c.b16 %v1609, %v1609
  %v1866 = vpack.c.b16 %v1610, %v1610
  %v1867 = vpack.c.b16 %v1611, %v1611
  %v1868 = vpack.c.b16 %v1612, %v1612
  %v1869 = vpack.c.b16 %v1613, %v1613
  %v1870 = vpack.c.b16 %v1614, %v1614
  %v1871 = vpack.c.b16 %v1615, %v1615
  %v1872 = vpack.c.b16 %v1616, %v1616
  %v1873 = vpack.c.b16 %v1617, %v1617
  %v1874 = vpack.c.b16 %v1618, %v1618
  %v1875 = vpack.c.b16 %v1619, %v1619
  %v1876 = vpack.c.b16 %v1620, %v1620
  %v1877 = vpack.c.b16 %v1621, %v1621
  %v1878 = vpack.c.b16 %v1622, %v1622
  %v1879 = vpack.c.b16 %v1623, %v1623
  %v1880 = vpack.c.b16 %v1624, %v1624
  %v1881 = vpack.c.b16 %v1625, %v1625
  %v1882 = vpack.c.b16 %v1626, %v1626
  %v1883 = vpack.c.b16 %v1627, %v1627
  %v1884 = vpack.c.b16 %v1628, %v1628
  %v1885 = vpack.c.b16 %v1629, %v1629
  %v1886 = vpack.c.b16 %v1630, %v1630
  %v1887 = vpack.c.b16 %v1631, %v1631
  %v1888 = vpack.c.b16 %v1632, %v1632
  %v1889 = vpack.c.b16 %v1633, %v1633
  %v1890 = vpack.c.b16 %v1634, %v1634
  %v1891 = vpack.c.b16 %v1635, %v1635
  %v1892 = vpack.c.b16 %v1636, %v1636
  %v1893 = vpack.c.b16 %v1637, %v1637
  %v1894 = vpack.c.b16 %v1638, %v1638
  %v1895 = vpack.c.b16 %v1639, %v1639
  %v1896 = vpack.c.b16 %v1640, %v1640
  %v1897 = vpack.c.b16 %v1641, %v1641
  %v1898 = vpack.c.b16 %v1642, %v1642
  %v1899 = vpack.c.b16 %v1643, %v1643
  %v1900 = vpack.c.b16 %v1644, %v1644
  %v1901 = vpack.c.b16 %v1645, %v1645
  %v1902 = vpack.c.b16 %v1646, %v1646
  %v1903 = vpack.c.b16 %v1647, %v1647
  %v1904 = vpack.c.b16 %v1648, %v1648
  %v1905 = vpack.c.b16 %v1649, %v1649
  %v1906 = vpack.c.b16 %v1650, %v1650
  %v1907 = vpack.c.b16 %v1651, %v1651
  %v1908 = vpack.c.b16 %v1652, %v1652
  %v1909 = vpack.c.b16 %v1653, %v1653
  %v1910 = vpack.c.b16 %v1654, %v1654
  %v1911 = vpack.c.b16 %v1655, %v1655
  %v1912 = vpack.c.b16 %v1656, %v1656
  %v1913 = vpack.c.b16 %v1657, %v1657
  %v1914 = vpack.c.b16 %v1658, %v1658
  %v1915 = vpack.c.b16 %v1659, %v1659
  %v1916 = vpack.c.b16 %v1660, %v1660
  %v1917 = vpack.c.b16 %v1661, %v1661
  %v1918 = vpack.c.b16 %v1662, %v1662
  %v1919 = vpack.c.b16 %v1663, %v1663
  %v1920 = vpack.c.b16 %v1664, %v1664
  %v1921 = vpack.c.b16 %v1665, %v1665
  %v1922 = vpack.c.b16 %v1666, %v1666
  %v1923 = vpack.c.b16 %v1667, %v1667
  %v1924 = vpack.c.b16 %v1668, %v1668
  %v1925 = vpack.c.b16 %v1669, %v1669
  %v1926 = vpack.c.b16 %v1670, %v1670
  %v1927 = vpack.c.b16 %v1671, %v1671
  %v1928 = vpack.c.b16 %v1672, %v1672
  %v1929 = vpack.c.b16 %v1673, %v1673
  %v1930 = vpack.c.b16 %v1674, %v1674
  %v1931 = vpack.c.b16 %v1675, %v1675
  %v1932 = vpack.c.b16 %v1676, %v1676
  %v1933 = vpack.c.b16 %v1677, %v1677
  %v1934 = vpack.c.b16 %v1678, %v1678
  %v1935 = vpack.c.b16 %v1679, %v1679
  %v1936 = vpack.c.b16 %v1680, %v1680
  %v1937 = vpack.c.b16 %v1681, %v1681
  %v1938 = vpack.c.b16 %v1682, %v1682
  %v1939 = vpack.c.b16 %v1683, %v1683
  %v1940 = vpack.c.b16 %v1684, %v1684
  %v1941 = vpack.c.b16 %v1685, %v1685
  %v1942 = vpack.c.b16 %v1686, %v1686
  %v1943 = vpack.c.b16 %v1687, %v1687
  %v1944 = vpack.c.b16 %v1688, %v1688
  %v1945 = vpack.c.b16 %v1689, %v1689
  %v1946 = vpack.c.b16 %v1690, %v1690
  %v1947 = vpack.c.b16 %v1691, %v1691
  %v1948 = vpack.c.b16 %v1692, %v1692
  %v1949 = vpack.c.b16 %v1693, %v1693
  %v1950 = vpack.c.b16 %v1694, %v1694
  %v1951 = vpack.c.b16 %v1695, %v1695
  %v1952 = vpack.c.b16 %v1696, %v1696
  %v1953 = vpack.c.b16 %v1697, %v1697
  %v1954 = vpack.c.b16 %v1698, %v1698
  %v1955 = vpack.c.b16 %v1699, %v1699
  %v1956 = vpack.c.b16 %v1700, %v1700
  %v1957 = vpack.c.b16 %v1701, %v1701
  %v1958 = vpack.c.b16 %v1702, %v1702
  %v1959 = vpack.c.b16 %v1703, %v1703
  %v1960 = vpack.c.b16 %v1704, %v1704
  %v1961 = vpack.c.b16 %v1705, %v1705
  %v1962 = vpack.c.b16 %v1706, %v1706
  %v1963 = vpack.c.b16 %v1707, %v1707
  %v1964 = vpack.c.b16 %v1708, %v1708
  %v1965 = vpack.c.b16 %v1709, %v1709
  %v1966 = vpack.c.b16 %v1710, %v1710
  %v1967 = vpack.c.b16 %v1711, %v1711
  %v1968 = vpack.c.b16 %v1712, %v1712
  %v1969 = vpack.c.b16 %v1713, %v1713
  %v1970 = vpack.c.b16 %v1714, %v1714
  %v1971 = vpack.c.b16 %v1715, %v1715
  %v1972 = vpack.c.b16 %v1716, %v1716
  %v1973 = vpack.c.b16 %v1717, %v1717
  %v1974 = vpack.c.b16 %v1718, %v1718
  %v1975 = vpack.c.b16 %v1719, %v1719
  %v1976 = vpack.c.b16 %v1720, %v1720
  %v1977 = vpack.c.b16 %v1721, %v1721
  %v1978 = vpack.c.b16 %v1722, %v1722
  %v1979 = vpack.c.b16 %v1723, %v1723
  %v1980 = vpack.c.b16 %v1724, %v1724
  %v1981 = vpack.c.b16 %v1725, %v1725
  %v1982 = vpack.c.b16 %v1726, %v1726
  %v1983 = vpack.c.b16 %v1727, %v1727
  %v1984 = vpack.c.b16 %v1728, %v1728
  %v1985 = vpack.c.b16 %v1729, %v1729
  %v1986 = vpack.c.b16 %v1730, %v1730
  %v1987 = vpack.c.b16 %v1731, %v1731
  %v1988 = vpack.c.b16 %v1732, %v1732
  %v1989 = vpack.c.b16 %v1733, %v1733
  %v1990 = vpack.c.b16 %v1734, %v1734
  %v1991 = vpack.c.b16 %v1735, %v1735
  %v1992 = vpack.c.b16 %v1736, %v1736
  %v1993 = vpack.c.b16 %v1737, %v1737
  %v1994 = vpack.c.b16 %v1738, %v1738
  %v1995 = vpack.c.b16 %v1739, %v1739
  %v1996 = vpack.c.b16 %v1740, %v1740
  %v1997 = vpack.c.b16 %v1741, %v1741
  %v1998 = vpack.c.b16 %v1742, %v1742
  %v1999 = vpack.c.b16 %v1743, %v1743
  %v2000 = vpack.c.b16 %v1744, %v1744
  %v2001 = vpack.c.b16 %v1745, %v1745
  %v2002 = vpack.c.b16 %v1746, %v1746
  %v2003 = vpack.c.b16 %v1747, %v1747
  %v2004 = vpack.c.b16 %v1748, %v1748
  %v2005 = vpack.c.b16 %v1749, %v1749
  %v2006 = vpack.c.b16 %v1750, %v1750
  %v2007 = vpack.c.b16 %v1751, %v1751
  %v2008 = vpack.c.b16 %v1752, %v1752
  %v2009 = vpack.c.b16 %v1753, %v1753
  %v2010 = vpack.c.b16 %v1754, %v1754
  %v2011 = vpack.c.b16 %v1755, %v1755
  %v2012 = vpack.c.b16 %v1756, %v1756
  %v2013 = vpack.c.b16 %v1757, %v1757
  %v2014 = vpack.c.b16 %v1758, %v1758
  %v2015 = vpack.c.b16 %v1759, %v1759
  %v2016 = vpack.c.b16 %v1760, %v1760
  %v2017 = vpack.c.b16 %v1761, %v1761
  %v2018 = vpack.c.b16 %v1762, %v1762
  %v2019 = vpack.c.b16 %v1763, %v1763
  %v2020 = vpack.c.b16 %v1764, %v1764
  %v2021 = vpack.c.b16 %v1765, %v1765
  %v2022 = vpack.c.b16 %v1766, %v1766
  %v2023 = vpack.c.b16 %v1767, %v1767
  %v2024 = vpack.c.b16 %v1768, %v1768
  %v2025 = vpack.c.b16 %v1769, %v1769
  %v2026 = vpack.c.b16 %v1770, %v1770
  %v2027 = vpack.c.b16 %v1771, %v1771
  %v2028 = vpack.c.b16 %v1772, %v1772
  %v2029 = vpack.c.b16 %v1773, %v1773
  %v2030 = vpack.c.b16 %v1774, %v1774
  %v2031 = vpack.c.b16 %v1775, %v1775
  %v2032 = vpack.c.b16 %v1776, %v1776
  %v2033 = vpack.c.b16 %v1777, %v1777
  %v2034 = vpack.c.b16 %v1778, %v1778
  %v2035 = vpack.c.b16 %v1779, %v1779
  %v2036 = vpack.c.b16 %v1780, %v1780
  %v2037 = vpack.c.b16 %v1781, %v1781
  %v2038 = vpack.c.b16 %v1782, %v1782
  %v2039 = vpack.c.b16 %v1783, %v1783
  %v2040 = vpack.c.b16 %v1784, %v1784
  %v2041 = vpack.c.b16 %v1785, %v1785
  %v2042 = vpack.c.b16 %v1786, %v1786
  %v2043 = vpack.c.b16 %v1787, %v1787
  %v2044 = vpack.c.b16 %v1788, %v1788
  %v2045 = vpack.c.b16 %v1789, %v1789
  %v2046 = vpack.c.b16 %v1790, %v1790
  %v2047 = vpack.c.b16 %v1791, %v1791
  %v2048 = vpack.c.b16 %v1792, %v1792
  %v2049 = vpack.c.b16 %v1793, %v1793
  %v2050 = vpack.c.b16 %v1794, %v1794
  %v2051 = vpack.c.b16 %v1795, %v1795
  %v2052 = vpack.c.b16 %v1796, %v1796
  %v2053 = vpack.c.b16 %v1797, %v1797
  %v2054 = vpack.c.b16 %v1798, %v1798
  %v2055 = vpack.c.b16 %v1799, %v1799
  %v2056 = vpack.c.b16 %v1800, %v1800
  %v2057 = vpack.c.b16 %v1801, %v1801
  %v2058 = vpack.c.b16 %v1802, %v1802
  %v2059 = vpack.c.b16 %v1803, %v1803
  %v2060 = vpack.c.b16 %v1804, %v1804
  %v2061 = vpack.c.b16 %v1805, %v1805
  %v2062 = vpack.c.b16 %v1806, %v1806
  %v2063 = vpack.c.b16 %v1807, %v1807
  %v2064 = vpack.c.b16 %v1808, %v1808
  %v2065 = vpack.c.b16 %v1809, %v1809
  %v2066 = vpack.c.b16 %v1810, %v1810
  %v2067 = vpack.c.b16 %v1811, %v1811
  %v2068 = vpack.c.b16 %v1812, %v1812
  %v2069 = vpack.c.b16 %v1813, %v1813
  %v2070 = vpack.c.b16 %v1814, %v1814
  %v2071 = vpack.c.b16 %v1815, %v1815
  %v2072 = vpack.c.b16 %v1816, %v1816
  %v2073 = vpack.c.b16 %v1817, %v1817
  %v2074 = vpack.c.b16 %v1818, %v1818
  %v2075 = vpack.c.b16 %v1819, %v1819
  %2332 = vst [vmem:[%s3] sm:$0xf] %v1820
  %2333 = vst [vmem:[%s3 + $0x4] sm:$0xf] %v1821
  %2334 = vst [vmem:[%s3 + $0x8] sm:$0xf] %v1822
  %2335 = vst [vmem:[%s3 + $0xc] sm:$0xf] %v1823
  %2336 = vst [vmem:[%s3 + $0x10] sm:$0xf] %v1824
  %2337 = vst [vmem:[%s3 + $0x14] sm:$0xf] %v1825
  %2338 = vst [vmem:[%s3 + $0x18] sm:$0xf] %v1826
  %2339 = vst [vmem:[%s3 + $0x1c] sm:$0xf] %v1827
  %2340 = vst [vmem:[%s3 + $0x20] sm:$0xf] %v1828
  %2341 = vst [vmem:[%s3 + $0x24] sm:$0xf] %v1829
  %2342 = vst [vmem:[%s3 + $0x28] sm:$0xf] %v1830
  %2343 = vst [vmem:[%s3 + $0x2c] sm:$0xf] %v1831
  %2344 = vst [vmem:[%s3 + $0x30] sm:$0xf] %v1832
  %2345 = vst [vmem:[%s3 + $0x34] sm:$0xf] %v1833
  %2346 = vst [vmem:[%s3 + $0x38] sm:$0xf] %v1834
  %2347 = vst [vmem:[%s3 + $0x3c] sm:$0xf] %v1835
  %2348 = vst [vmem:[%s3 + $0x40] sm:$0xf] %v1836
  %2349 = vst [vmem:[%s3 + $0x44] sm:$0xf] %v1837
  %2350 = vst [vmem:[%s3 + $0x48] sm:$0xf] %v1838
  %2351 = vst [vmem:[%s3 + $0x4c] sm:$0xf] %v1839
  %2352 = vst [vmem:[%s3 + $0x50] sm:$0xf] %v1840
  %2353 = vst [vmem:[%s3 + $0x54] sm:$0xf] %v1841
  %2354 = vst [vmem:[%s3 + $0x58] sm:$0xf] %v1842
  %2355 = vst [vmem:[%s3 + $0x5c] sm:$0xf] %v1843
  %2356 = vst [vmem:[%s3 + $0x60] sm:$0xf] %v1844
  %2357 = vst [vmem:[%s3 + $0x64] sm:$0xf] %v1845
  %2358 = vst [vmem:[%s3 + $0x68] sm:$0xf] %v1846
  %2359 = vst [vmem:[%s3 + $0x6c] sm:$0xf] %v1847
  %2360 = vst [vmem:[%s3 + $0x70] sm:$0xf] %v1848
  %2361 = vst [vmem:[%s3 + $0x74] sm:$0xf] %v1849
  %2362 = vst [vmem:[%s3 + $0x78] sm:$0xf] %v1850
  %2363 = vst [vmem:[%s3 + $0x7c] sm:$0xf] %v1851
  %2364 = vst [vmem:[%s3 + $0x80] sm:$0xf] %v1852
  %2365 = vst [vmem:[%s3 + $0x84] sm:$0xf] %v1853
  %2366 = vst [vmem:[%s3 + $0x88] sm:$0xf] %v1854
  %2367 = vst [vmem:[%s3 + $0x8c] sm:$0xf] %v1855
  %2368 = vst [vmem:[%s3 + $0x90] sm:$0xf] %v1856
  %2369 = vst [vmem:[%s3 + $0x94] sm:$0xf] %v1857
  %2370 = vst [vmem:[%s3 + $0x98] sm:$0xf] %v1858
  %2371 = vst [vmem:[%s3 + $0x9c] sm:$0xf] %v1859
  %2372 = vst [vmem:[%s3 + $0xa0] sm:$0xf] %v1860
  %2373 = vst [vmem:[%s3 + $0xa4] sm:$0xf] %v1861
  %2374 = vst [vmem:[%s3 + $0xa8] sm:$0xf] %v1862
  %2375 = vst [vmem:[%s3 + $0xac] sm:$0xf] %v1863
  %2376 = vst [vmem:[%s3 + $0xb0] sm:$0xf] %v1864
  %2377 = vst [vmem:[%s3 + $0xb4] sm:$0xf] %v1865
  %2378 = vst [vmem:[%s3 + $0xb8] sm:$0xf] %v1866
  %2379 = vst [vmem:[%s3 + $0xbc] sm:$0xf] %v1867
  %2380 = vst [vmem:[%s3 + $0xc0] sm:$0xf] %v1868
  %2381 = vst [vmem:[%s3 + $0xc4] sm:$0xf] %v1869
  %2382 = vst [vmem:[%s3 + $0xc8] sm:$0xf] %v1870
  %2383 = vst [vmem:[%s3 + $0xcc] sm:$0xf] %v1871
  %2384 = vst [vmem:[%s3 + $0xd0] sm:$0xf] %v1872
  %2385 = vst [vmem:[%s3 + $0xd4] sm:$0xf] %v1873
  %2386 = vst [vmem:[%s3 + $0xd8] sm:$0xf] %v1874
  %2387 = vst [vmem:[%s3 + $0xdc] sm:$0xf] %v1875
  %2388 = vst [vmem:[%s3 + $0xe0] sm:$0xf] %v1876
  %2389 = vst [vmem:[%s3 + $0xe4] sm:$0xf] %v1877
  %2390 = vst [vmem:[%s3 + $0xe8] sm:$0xf] %v1878
  %2391 = vst [vmem:[%s3 + $0xec] sm:$0xf] %v1879
  %2392 = vst [vmem:[%s3 + $0xf0] sm:$0xf] %v1880
  %2393 = vst [vmem:[%s3 + $0xf4] sm:$0xf] %v1881
  %2394 = vst [vmem:[%s3 + $0xf8] sm:$0xf] %v1882
  %2395 = vst [vmem:[%s3 + $0xfc] sm:$0xf] %v1883
  %2396 = vst [vmem:[%s3 + $0x100] sm:$0xf] %v1884
  %2397 = vst [vmem:[%s3 + $0x104] sm:$0xf] %v1885
  %2398 = vst [vmem:[%s3 + $0x108] sm:$0xf] %v1886
  %2399 = vst [vmem:[%s3 + $0x10c] sm:$0xf] %v1887
  %2400 = vst [vmem:[%s3 + $0x110] sm:$0xf] %v1888
  %2401 = vst [vmem:[%s3 + $0x114] sm:$0xf] %v1889
  %2402 = vst [vmem:[%s3 + $0x118] sm:$0xf] %v1890
  %2403 = vst [vmem:[%s3 + $0x11c] sm:$0xf] %v1891
  %2404 = vst [vmem:[%s3 + $0x120] sm:$0xf] %v1892
  %2405 = vst [vmem:[%s3 + $0x124] sm:$0xf] %v1893
  %2406 = vst [vmem:[%s3 + $0x128] sm:$0xf] %v1894
  %2407 = vst [vmem:[%s3 + $0x12c] sm:$0xf] %v1895
  %2408 = vst [vmem:[%s3 + $0x130] sm:$0xf] %v1896
  %2409 = vst [vmem:[%s3 + $0x134] sm:$0xf] %v1897
  %2410 = vst [vmem:[%s3 + $0x138] sm:$0xf] %v1898
  %2411 = vst [vmem:[%s3 + $0x13c] sm:$0xf] %v1899
  %2412 = vst [vmem:[%s3 + $0x140] sm:$0xf] %v1900
  %2413 = vst [vmem:[%s3 + $0x144] sm:$0xf] %v1901
  %2414 = vst [vmem:[%s3 + $0x148] sm:$0xf] %v1902
  %2415 = vst [vmem:[%s3 + $0x14c] sm:$0xf] %v1903
  %2416 = vst [vmem:[%s3 + $0x150] sm:$0xf] %v1904
  %2417 = vst [vmem:[%s3 + $0x154] sm:$0xf] %v1905
  %2418 = vst [vmem:[%s3 + $0x158] sm:$0xf] %v1906
  %2419 = vst [vmem:[%s3 + $0x15c] sm:$0xf] %v1907
  %2420 = vst [vmem:[%s3 + $0x160] sm:$0xf] %v1908
  %2421 = vst [vmem:[%s3 + $0x164] sm:$0xf] %v1909
  %2422 = vst [vmem:[%s3 + $0x168] sm:$0xf] %v1910
  %2423 = vst [vmem:[%s3 + $0x16c] sm:$0xf] %v1911
  %2424 = vst [vmem:[%s3 + $0x170] sm:$0xf] %v1912
  %2425 = vst [vmem:[%s3 + $0x174] sm:$0xf] %v1913
  %2426 = vst [vmem:[%s3 + $0x178] sm:$0xf] %v1914
  %2427 = vst [vmem:[%s3 + $0x17c] sm:$0xf] %v1915
  %2428 = vst [vmem:[%s3 + $0x180] sm:$0xf] %v1916
  %2429 = vst [vmem:[%s3 + $0x184] sm:$0xf] %v1917
  %2430 = vst [vmem:[%s3 + $0x188] sm:$0xf] %v1918
  %2431 = vst [vmem:[%s3 + $0x18c] sm:$0xf] %v1919
  %2432 = vst [vmem:[%s3 + $0x190] sm:$0xf] %v1920
  %2433 = vst [vmem:[%s3 + $0x194] sm:$0xf] %v1921
  %2434 = vst [vmem:[%s3 + $0x198] sm:$0xf] %v1922
  %2435 = vst [vmem:[%s3 + $0x19c] sm:$0xf] %v1923
  %2436 = vst [vmem:[%s3 + $0x1a0] sm:$0xf] %v1924
  %2437 = vst [vmem:[%s3 + $0x1a4] sm:$0xf] %v1925
  %2438 = vst [vmem:[%s3 + $0x1a8] sm:$0xf] %v1926
  %2439 = vst [vmem:[%s3 + $0x1ac] sm:$0xf] %v1927
  %2440 = vst [vmem:[%s3 + $0x1b0] sm:$0xf] %v1928
  %2441 = vst [vmem:[%s3 + $0x1b4] sm:$0xf] %v1929
  %2442 = vst [vmem:[%s3 + $0x1b8] sm:$0xf] %v1930
  %2443 = vst [vmem:[%s3 + $0x1bc] sm:$0xf] %v1931
  %2444 = vst [vmem:[%s3 + $0x1c0] sm:$0xf] %v1932
  %2445 = vst [vmem:[%s3 + $0x1c4] sm:$0xf] %v1933
  %2446 = vst [vmem:[%s3 + $0x1c8] sm:$0xf] %v1934
  %2447 = vst [vmem:[%s3 + $0x1cc] sm:$0xf] %v1935
  %2448 = vst [vmem:[%s3 + $0x1d0] sm:$0xf] %v1936
  %2449 = vst [vmem:[%s3 + $0x1d4] sm:$0xf] %v1937
  %2450 = vst [vmem:[%s3 + $0x1d8] sm:$0xf] %v1938
  %2451 = vst [vmem:[%s3 + $0x1dc] sm:$0xf] %v1939
  %2452 = vst [vmem:[%s3 + $0x1e0] sm:$0xf] %v1940
  %2453 = vst [vmem:[%s3 + $0x1e4] sm:$0xf] %v1941
  %2454 = vst [vmem:[%s3 + $0x1e8] sm:$0xf] %v1942
  %2455 = vst [vmem:[%s3 + $0x1ec] sm:$0xf] %v1943
  %2456 = vst [vmem:[%s3 + $0x1f0] sm:$0xf] %v1944
  %2457 = vst [vmem:[%s3 + $0x1f4] sm:$0xf] %v1945
  %2458 = vst [vmem:[%s3 + $0x1f8] sm:$0xf] %v1946
  %2459 = vst [vmem:[%s3 + $0x1fc] sm:$0xf] %v1947
  %2460 = vst [vmem:[%s3 + $0x200] sm:$0xf] %v1948
  %2461 = vst [vmem:[%s3 + $0x204] sm:$0xf] %v1949
  %2462 = vst [vmem:[%s3 + $0x208] sm:$0xf] %v1950
  %2463 = vst [vmem:[%s3 + $0x20c] sm:$0xf] %v1951
  %2464 = vst [vmem:[%s3 + $0x210] sm:$0xf] %v1952
  %2465 = vst [vmem:[%s3 + $0x214] sm:$0xf] %v1953
  %2466 = vst [vmem:[%s3 + $0x218] sm:$0xf] %v1954
  %2467 = vst [vmem:[%s3 + $0x21c] sm:$0xf] %v1955
  %2468 = vst [vmem:[%s3 + $0x220] sm:$0xf] %v1956
  %2469 = vst [vmem:[%s3 + $0x224] sm:$0xf] %v1957
  %2470 = vst [vmem:[%s3 + $0x228] sm:$0xf] %v1958
  %2471 = vst [vmem:[%s3 + $0x22c] sm:$0xf] %v1959
  %2472 = vst [vmem:[%s3 + $0x230] sm:$0xf] %v1960
  %2473 = vst [vmem:[%s3 + $0x234] sm:$0xf] %v1961
  %2474 = vst [vmem:[%s3 + $0x238] sm:$0xf] %v1962
  %2475 = vst [vmem:[%s3 + $0x23c] sm:$0xf] %v1963
  %2476 = vst [vmem:[%s3 + $0x240] sm:$0xf] %v1964
  %2477 = vst [vmem:[%s3 + $0x244] sm:$0xf] %v1965
  %2478 = vst [vmem:[%s3 + $0x248] sm:$0xf] %v1966
  %2479 = vst [vmem:[%s3 + $0x24c] sm:$0xf] %v1967
  %2480 = vst [vmem:[%s3 + $0x250] sm:$0xf] %v1968
  %2481 = vst [vmem:[%s3 + $0x254] sm:$0xf] %v1969
  %2482 = vst [vmem:[%s3 + $0x258] sm:$0xf] %v1970
  %2483 = vst [vmem:[%s3 + $0x25c] sm:$0xf] %v1971
  %2484 = vst [vmem:[%s3 + $0x260] sm:$0xf] %v1972
  %2485 = vst [vmem:[%s3 + $0x264] sm:$0xf] %v1973
  %2486 = vst [vmem:[%s3 + $0x268] sm:$0xf] %v1974
  %2487 = vst [vmem:[%s3 + $0x26c] sm:$0xf] %v1975
  %2488 = vst [vmem:[%s3 + $0x270] sm:$0xf] %v1976
  %2489 = vst [vmem:[%s3 + $0x274] sm:$0xf] %v1977
  %2490 = vst [vmem:[%s3 + $0x278] sm:$0xf] %v1978
  %2491 = vst [vmem:[%s3 + $0x27c] sm:$0xf] %v1979
  %2492 = vst [vmem:[%s3 + $0x280] sm:$0xf] %v1980
  %2493 = vst [vmem:[%s3 + $0x284] sm:$0xf] %v1981
  %2494 = vst [vmem:[%s3 + $0x288] sm:$0xf] %v1982
  %2495 = vst [vmem:[%s3 + $0x28c] sm:$0xf] %v1983
  %2496 = vst [vmem:[%s3 + $0x290] sm:$0xf] %v1984
  %2497 = vst [vmem:[%s3 + $0x294] sm:$0xf] %v1985
  %2498 = vst [vmem:[%s3 + $0x298] sm:$0xf] %v1986
  %2499 = vst [vmem:[%s3 + $0x29c] sm:$0xf] %v1987
  %2500 = vst [vmem:[%s3 + $0x2a0] sm:$0xf] %v1988
  %2501 = vst [vmem:[%s3 + $0x2a4] sm:$0xf] %v1989
  %2502 = vst [vmem:[%s3 + $0x2a8] sm:$0xf] %v1990
  %2503 = vst [vmem:[%s3 + $0x2ac] sm:$0xf] %v1991
  %2504 = vst [vmem:[%s3 + $0x2b0] sm:$0xf] %v1992
  %2505 = vst [vmem:[%s3 + $0x2b4] sm:$0xf] %v1993
  %2506 = vst [vmem:[%s3 + $0x2b8] sm:$0xf] %v1994
  %2507 = vst [vmem:[%s3 + $0x2bc] sm:$0xf] %v1995
  %2508 = vst [vmem:[%s3 + $0x2c0] sm:$0xf] %v1996
  %2509 = vst [vmem:[%s3 + $0x2c4] sm:$0xf] %v1997
  %2510 = vst [vmem:[%s3 + $0x2c8] sm:$0xf] %v1998
  %2511 = vst [vmem:[%s3 + $0x2cc] sm:$0xf] %v1999
  %2512 = vst [vmem:[%s3 + $0x2d0] sm:$0xf] %v2000
  %2513 = vst [vmem:[%s3 + $0x2d4] sm:$0xf] %v2001
  %2514 = vst [vmem:[%s3 + $0x2d8] sm:$0xf] %v2002
  %2515 = vst [vmem:[%s3 + $0x2dc] sm:$0xf] %v2003
  %2516 = vst [vmem:[%s3 + $0x2e0] sm:$0xf] %v2004
  %2517 = vst [vmem:[%s3 + $0x2e4] sm:$0xf] %v2005
  %2518 = vst [vmem:[%s3 + $0x2e8] sm:$0xf] %v2006
  %2519 = vst [vmem:[%s3 + $0x2ec] sm:$0xf] %v2007
  %2520 = vst [vmem:[%s3 + $0x2f0] sm:$0xf] %v2008
  %2521 = vst [vmem:[%s3 + $0x2f4] sm:$0xf] %v2009
  %2522 = vst [vmem:[%s3 + $0x2f8] sm:$0xf] %v2010
  %2523 = vst [vmem:[%s3 + $0x2fc] sm:$0xf] %v2011
  %2524 = vst [vmem:[%s3 + $0x300] sm:$0xf] %v2012
  %2525 = vst [vmem:[%s3 + $0x304] sm:$0xf] %v2013
  %2526 = vst [vmem:[%s3 + $0x308] sm:$0xf] %v2014
  %2527 = vst [vmem:[%s3 + $0x30c] sm:$0xf] %v2015
  %2528 = vst [vmem:[%s3 + $0x310] sm:$0xf] %v2016
  %2529 = vst [vmem:[%s3 + $0x314] sm:$0xf] %v2017
  %2530 = vst [vmem:[%s3 + $0x318] sm:$0xf] %v2018
  %2531 = vst [vmem:[%s3 + $0x31c] sm:$0xf] %v2019
  %2532 = vst [vmem:[%s3 + $0x320] sm:$0xf] %v2020
  %2533 = vst [vmem:[%s3 + $0x324] sm:$0xf] %v2021
  %2534 = vst [vmem:[%s3 + $0x328] sm:$0xf] %v2022
  %2535 = vst [vmem:[%s3 + $0x32c] sm:$0xf] %v2023
  %2536 = vst [vmem:[%s3 + $0x330] sm:$0xf] %v2024
  %2537 = vst [vmem:[%s3 + $0x334] sm:$0xf] %v2025
  %2538 = vst [vmem:[%s3 + $0x338] sm:$0xf] %v2026
  %2539 = vst [vmem:[%s3 + $0x33c] sm:$0xf] %v2027
  %2540 = vst [vmem:[%s3 + $0x340] sm:$0xf] %v2028
  %2541 = vst [vmem:[%s3 + $0x344] sm:$0xf] %v2029
  %2542 = vst [vmem:[%s3 + $0x348] sm:$0xf] %v2030
  %2543 = vst [vmem:[%s3 + $0x34c] sm:$0xf] %v2031
  %2544 = vst [vmem:[%s3 + $0x350] sm:$0xf] %v2032
  %2545 = vst [vmem:[%s3 + $0x354] sm:$0xf] %v2033
  %2546 = vst [vmem:[%s3 + $0x358] sm:$0xf] %v2034
  %2547 = vst [vmem:[%s3 + $0x35c] sm:$0xf] %v2035
  %2548 = vst [vmem:[%s3 + $0x360] sm:$0xf] %v2036
  %2549 = vst [vmem:[%s3 + $0x364] sm:$0xf] %v2037
  %2550 = vst [vmem:[%s3 + $0x368] sm:$0xf] %v2038
  %2551 = vst [vmem:[%s3 + $0x36c] sm:$0xf] %v2039
  %2552 = vst [vmem:[%s3 + $0x370] sm:$0xf] %v2040
  %2553 = vst [vmem:[%s3 + $0x374] sm:$0xf] %v2041
  %2554 = vst [vmem:[%s3 + $0x378] sm:$0xf] %v2042
  %2555 = vst [vmem:[%s3 + $0x37c] sm:$0xf] %v2043
  %2556 = vst [vmem:[%s3 + $0x380] sm:$0xf] %v2044
  %2557 = vst [vmem:[%s3 + $0x384] sm:$0xf] %v2045
  %2558 = vst [vmem:[%s3 + $0x388] sm:$0xf] %v2046
  %2559 = vst [vmem:[%s3 + $0x38c] sm:$0xf] %v2047
  %2560 = vst [vmem:[%s3 + $0x390] sm:$0xf] %v2048
  %2561 = vst [vmem:[%s3 + $0x394] sm:$0xf] %v2049
  %2562 = vst [vmem:[%s3 + $0x398] sm:$0xf] %v2050
  %2563 = vst [vmem:[%s3 + $0x39c] sm:$0xf] %v2051
  %2564 = vst [vmem:[%s3 + $0x3a0] sm:$0xf] %v2052
  %2565 = vst [vmem:[%s3 + $0x3a4] sm:$0xf] %v2053
  %2566 = vst [vmem:[%s3 + $0x3a8] sm:$0xf] %v2054
  %2567 = vst [vmem:[%s3 + $0x3ac] sm:$0xf] %v2055
  %2568 = vst [vmem:[%s3 + $0x3b0] sm:$0xf] %v2056
  %2569 = vst [vmem:[%s3 + $0x3b4] sm:$0xf] %v2057
  %2570 = vst [vmem:[%s3 + $0x3b8] sm:$0xf] %v2058
  %2571 = vst [vmem:[%s3 + $0x3bc] sm:$0xf] %v2059
  %2572 = vst [vmem:[%s3 + $0x3c0] sm:$0xf] %v2060
  %2573 = vst [vmem:[%s3 + $0x3c4] sm:$0xf] %v2061
  %2574 = vst [vmem:[%s3 + $0x3c8] sm:$0xf] %v2062
  %2575 = vst [vmem:[%s3 + $0x3cc] sm:$0xf] %v2063
  %2576 = vst [vmem:[%s3 + $0x3d0] sm:$0xf] %v2064
  %2577 = vst [vmem:[%s3 + $0x3d4] sm:$0xf] %v2065
  %2578 = vst [vmem:[%s3 + $0x3d8] sm:$0xf] %v2066
  %2579 = vst [vmem:[%s3 + $0x3dc] sm:$0xf] %v2067
  %2580 = vst [vmem:[%s3 + $0x3e0] sm:$0xf] %v2068
  %2581 = vst [vmem:[%s3 + $0x3e4] sm:$0xf] %v2069
  %2582 = vst [vmem:[%s3 + $0x3e8] sm:$0xf] %v2070
  %2583 = vst [vmem:[%s3 + $0x3ec] sm:$0xf] %v2071
  %2584 = vst [vmem:[%s3 + $0x3f0] sm:$0xf] %v2072
  %2585 = vst [vmem:[%s3 + $0x3f4] sm:$0xf] %v2073
  %2586 = vst [vmem:[%s3 + $0x3f8] sm:$0xf] %v2074
  %2587 = vst [vmem:[%s3 + $0x3fc] sm:$0xf] %v2075
  // Predicated region
  $region14: #{generator_forward.12} parent=0 // pred_check
    _
  $region15: #{generator_forward.12} parent=0 // pred_check_branch
    %2589 = sbr.rel (0) target = $region17
  $region16: #{generator_forward.12} parent=0 // pred_region
    _
  $region17: #{generator_forward.12} parent=0 // pred_fallthru
    _
  // Predicated region
  $region18: #{generator_forward.12} parent=0 // pred_check
    _
  $region19: #{generator_forward.12} parent=0 // pred_check_branch
    %2591 = sbr.rel (0) target = $region21
  $region20: #{generator_forward.12} parent=0 // pred_region
    _
  $region21: #{generator_forward.12} parent=0 // pred_fallthru
    _

// kernel: generator_forward.13
$region0: #{generator_forward.13}
  #allocation0 [shape = 'u32[]', space=smem, size = 0x4, offset = 0x4, fixed_abs, tag = 'smem constant byte address 0x4 - core index']
  #allocation1 [shape = 'u32[144,128]{1,0:T(1,128)}', space=vmem, size = 0x12000, scoped, tag = 'internal scratch']
  %s0 = inlined_call_operand.vmem [shape: bf16[8192,128], index: 0, kind: input, shape index: {}]
  %s1 = inlined_call_operand.vmem [shape: bf16[128,128], index: 1, kind: input, shape index: {}]
  %s2 = inlined_call_operand.vmem [shape: bf16[8192,128], index: 2, kind: output, shape index: {}]
  %s3 = sld [smem:[#allocation0]]
  $region41: #{generator_forward.13} parent=0
    _
  %s5 = ssub.s32 1, %s3
  %s6 = scalar_select 0, %s5, %s3
  loop: start=0, step=1, limit=18
  $region2: #{generator_forward.13} parent=0 // loop_pre_header
    _
  $region3: #{generator_forward.13} parent=0 // loop_header
    %s8 = sphi 0, %s12
    %p9 = scmp.ge.s32.totalorder %s8, 18
    %s18 = sphi 0, %s20
    %s21 = sphi 0, %s18
    %s22 = sphi 0, %s21
    %s38 = sphi 0, %s22
    %s42 = sphi 0, %s42
    %s44 = sphi 0, %s42
    %s45 = sphi 0, %s44
    %s59 = sphi 0, %s45
    %s65 = sphi 0, %s67
    %s68 = sphi 0, %s65
    %s69 = sphi 0, %s68
    %s85 = sphi 0, %s69
  $region4: #{generator_forward.13} parent=0 // loop_header_branch
    %11 = sbr.rel (%p9) target = $region8
  $region5: #{generator_forward.13} parent=0 // loop_body
    %s13 = ssub.s32 %s8, 1
    %s14 = ssub.s32 %s8, 2
    %s15 = sadd.s32 %s8, 1
    %s16 = ssub.s32 %s8, %s15
    %p17 = scmp.eq.s32.totalorder %s16, 0
    %s19 = sadd.s32 %s18, 1
    %s20 = scalar_select %p17, %s18, %s19
    %p23 = pneg %p17
    %p24 = scmp.eq.s32.totalorder %s8, 15
    %p25 = por %p23, %p24
    %p26 = scmp.ne.s32.totalorder %s18, %s21
    %p27 = scmp.eq.s32.totalorder %s8, 0
    %p28 = por %p26, %p27
    %p29 = scmp.ne.s32.totalorder %s18, %s21
    %p30 = scmp.eq.s32.totalorder %s13, 15
    %p31 = por %p29, %p30
    %p32 = scmp.ne.s32.totalorder %s21, %s22
    %p33 = scmp.eq.s32.totalorder %s13, 0
    %p34 = por %p32, %p33
    %p35 = scmp.ne.s32.totalorder %s21, %s22
    %p36 = scmp.eq.s32.totalorder %s14, 15
    %p37 = por %p35, %p36
    %p39 = scmp.ne.s32.totalorder %s22, %s38
    %p40 = scmp.eq.s32.totalorder %s14, 0
    %p41 = por %p39, %p40
    %s43 = sadd.s32 %s42, 1
    %p46 = scmp.eq.s32.totalorder %s8, 15
    %p47 = scmp.ne.s32.totalorder %s42, %s44
    %p48 = scmp.eq.s32.totalorder %s8, 0
    %p49 = por %p47, %p48
    %p50 = scmp.ne.s32.totalorder %s42, %s44
    %p51 = scmp.eq.s32.totalorder %s13, 15
    %p52 = por %p50, %p51
    %p53 = scmp.ne.s32.totalorder %s44, %s45
    %p54 = scmp.eq.s32.totalorder %s13, 0
    %p55 = por %p53, %p54
    %p56 = scmp.ne.s32.totalorder %s44, %s45
    %p57 = scmp.eq.s32.totalorder %s14, 15
    %p58 = por %p56, %p57
    %p60 = scmp.ne.s32.totalorder %s45, %s59
    %p61 = scmp.eq.s32.totalorder %s14, 0
    %p62 = por %p60, %p61
    %s63 = ssub.s32 %s8, %s15
    %p64 = scmp.eq.s32.totalorder %s63, 0
    %s66 = sadd.s32 %s65, 1
    %s67 = scalar_select %p64, %s65, %s66
    %p70 = pneg %p64
    %p71 = scmp.eq.s32.totalorder %s8, 15
    %p72 = por %p70, %p71
    %p73 = scmp.ne.s32.totalorder %s65, %s68
    %p74 = scmp.eq.s32.totalorder %s8, 0
    %p75 = por %p73, %p74
    %p76 = scmp.ne.s32.totalorder %s65, %s68
    %p77 = scmp.eq.s32.totalorder %s13, 15
    %p78 = por %p76, %p77
    %p79 = scmp.ne.s32.totalorder %s68, %s69
    %p80 = scmp.eq.s32.totalorder %s13, 0
    %p81 = por %p79, %p80
    %p82 = scmp.ne.s32.totalorder %s68, %s69
    %p83 = scmp.eq.s32.totalorder %s14, 15
    %p84 = por %p82, %p83
    %p86 = scmp.ne.s32.totalorder %s69, %s85
    %p87 = scmp.eq.s32.totalorder %s14, 0
    %p88 = por %p86, %p87
    %p89 = scmp.le.s32.totalorder 1, %s8
    %p90 = scmp.lt.s32.totalorder %s8, 17
    %p91 = pnand %p89, %p90
    %p92 = pneg %p91
    // Predicated region
    $region9: #{generator_forward.13} parent=5 // pred_check
      _
    $region10: #{generator_forward.13} parent=5 // pred_check_branch
      %94 = sbr.rel (%p91) target = $region12
    $region11: #{generator_forward.13} parent=5 // pred_region
      %s95 = ssub.s32 %s8, 1
      // Predicated region
      $region13: #{generator_forward.13} parent=11 // pred_check
        %p96 = pneg %p55
      $region14: #{generator_forward.13} parent=11 // pred_check_branch
        %98 = sbr.rel (%p96) target = $region16
      $region15: #{generator_forward.13} parent=11 // pred_region
        _
      $region16: #{generator_forward.13} parent=11 // pred_fallthru
        _
    $region12: #{generator_forward.13} parent=5 // pred_fallthru
      _
    %p99 = scmp.lt.s32.totalorder %s8, 16
    // Predicated region
    $region17: #{generator_forward.13} parent=5 // pred_check
      %p100 = pneg %p99
    $region18: #{generator_forward.13} parent=5 // pred_check_branch
      %102 = sbr.rel (%p100) target = $region20
    $region19: #{generator_forward.13} parent=5 // pred_region
      // Predicated region
      $region21: #{generator_forward.13} parent=19 // pred_check
        %p103 = pneg %p28
      $region22: #{generator_forward.13} parent=19 // pred_check_branch
        %105 = sbr.rel (%p103) target = $region24
      $region23: #{generator_forward.13} parent=19 // pred_region
        %s106 = smul.u32 64, %s8
        %p107 = scmp.lt.s32.totalorder %s106, 1023
        %s108 = scalar_select %p107, %s106, 1023
        %s109 = smul.addr %s108, 4
        %s110 = scalar_lea.vmem %s0, %s109
        %s111 = smul.u32 64, %s8
      $region24: #{generator_forward.13} parent=19 // pred_fallthru
        _
    $region20: #{generator_forward.13} parent=5 // pred_fallthru
      _
    %p112 = scmp.le.s32.totalorder 1, %s8
    %p113 = scmp.lt.s32.totalorder %s8, 17
    %p114 = pnand %p112, %p113
    %p115 = pneg %p114
    // Predicated region
    $region25: #{generator_forward.13} parent=5 // pred_check
      _
    $region26: #{generator_forward.13} parent=5 // pred_check_branch
      %117 = sbr.rel (%p114) target = $region28
    $region27: #{generator_forward.13} parent=5 // pred_region
      %s118 = ssub.s32 %s8, 1
      %s119 = smul.u32 64, %s13
      %p120 = scmp.lt.s32.totalorder %s119, 1023
      %s121 = scalar_select %p120, %s119, 1023
      %s122 = smul.addr %s121, 4
      %s123 = scalar_lea.vmem %s0, %s122
      %p124 = pneg %p34
      %p125 = pneg %p31
      %p126 = pneg %p55
      %p127 = pneg %p52
      %p128 = pneg %p81
      %p129 = pneg %p78
      %s130 = smul.u32 64, %s13
      %p131 = scmp.lt.s32.totalorder %s130, 1023
      %s132 = scalar_select %p131, %s130, 1023
      %s133 = smul.addr %s132, 4
      %s134 = scalar_lea.vmem %s2, %s133
      %s135 = smul.u32 64, %s13
      %p136 = scmp.lt.s32.totalorder %s135, 1023
      %s137 = scalar_select %p136, %s135, 1023
      %s138 = smul.addr %s137, 4
      %s139 = scalar_lea.vmem %s0, %s138
      %s140 = smul.u32 64, %s13
      %s141 = smul.u32 64, %s13
      %p142 = scmp.lt.s32.totalorder %s141, 1023
      %s143 = scalar_select %p142, %s141, 1023
      %s144 = smul.addr %s143, 4
      %s145 = scalar_lea.vmem %s2, %s144
      %s146 = smul.u32 64, %s13
      %v148 = vld [vmem:[%s139] sm:$0xf]
      %v149 = vld [vmem:[%s139 + $0x4] sm:$0xf]
      %v150 = vld [vmem:[%s139 + $0x8] sm:$0xf]
      %v151 = vld [vmem:[%s139 + $0xc] sm:$0xf]
      %v152 = vld [vmem:[%s139 + $0x10] sm:$0xf]
      %v153 = vld [vmem:[%s139 + $0x14] sm:$0xf]
      %v154 = vld [vmem:[%s139 + $0x18] sm:$0xf]
      %v155 = vld [vmem:[%s139 + $0x1c] sm:$0xf]
      %v156 = vld [vmem:[%s139 + $0x20] sm:$0xf]
      %v157 = vld [vmem:[%s139 + $0x24] sm:$0xf]
      %v158 = vld [vmem:[%s139 + $0x28] sm:$0xf]
      %v159 = vld [vmem:[%s139 + $0x2c] sm:$0xf]
      %v160 = vld [vmem:[%s139 + $0x30] sm:$0xf]
      %v161 = vld [vmem:[%s139 + $0x34] sm:$0xf]
      %v162 = vld [vmem:[%s139 + $0x38] sm:$0xf]
      %v163 = vld [vmem:[%s139 + $0x3c] sm:$0xf]
      %v164 = vld [vmem:[%s139 + $0x40] sm:$0xf]
      %v165 = vld [vmem:[%s139 + $0x44] sm:$0xf]
      %v166 = vld [vmem:[%s139 + $0x48] sm:$0xf]
      %v167 = vld [vmem:[%s139 + $0x4c] sm:$0xf]
      %v168 = vld [vmem:[%s139 + $0x50] sm:$0xf]
      %v169 = vld [vmem:[%s139 + $0x54] sm:$0xf]
      %v170 = vld [vmem:[%s139 + $0x58] sm:$0xf]
      %v171 = vld [vmem:[%s139 + $0x5c] sm:$0xf]
      %v172 = vld [vmem:[%s139 + $0x60] sm:$0xf]
      %v173 = vld [vmem:[%s139 + $0x64] sm:$0xf]
      %v174 = vld [vmem:[%s139 + $0x68] sm:$0xf]
      %v175 = vld [vmem:[%s139 + $0x6c] sm:$0xf]
      %v176 = vld [vmem:[%s139 + $0x70] sm:$0xf]
      %v177 = vld [vmem:[%s139 + $0x74] sm:$0xf]
      %v178 = vld [vmem:[%s139 + $0x78] sm:$0xf]
      %v179 = vld [vmem:[%s139 + $0x7c] sm:$0xf]
      %v180 = vld [vmem:[%s139 + $0x80] sm:$0xf]
      %v181 = vld [vmem:[%s139 + $0x84] sm:$0xf]
      %v182 = vld [vmem:[%s139 + $0x88] sm:$0xf]
      %v183 = vld [vmem:[%s139 + $0x8c] sm:$0xf]
      %v184 = vld [vmem:[%s139 + $0x90] sm:$0xf]
      %v185 = vld [vmem:[%s139 + $0x94] sm:$0xf]
      %v186 = vld [vmem:[%s139 + $0x98] sm:$0xf]
      %v187 = vld [vmem:[%s139 + $0x9c] sm:$0xf]
      %v188 = vld [vmem:[%s139 + $0xa0] sm:$0xf]
      %v189 = vld [vmem:[%s139 + $0xa4] sm:$0xf]
      %v190 = vld [vmem:[%s139 + $0xa8] sm:$0xf]
      %v191 = vld [vmem:[%s139 + $0xac] sm:$0xf]
      %v192 = vld [vmem:[%s139 + $0xb0] sm:$0xf]
      %v193 = vld [vmem:[%s139 + $0xb4] sm:$0xf]
      %v194 = vld [vmem:[%s139 + $0xb8] sm:$0xf]
      %v195 = vld [vmem:[%s139 + $0xbc] sm:$0xf]
      %v196 = vld [vmem:[%s139 + $0xc0] sm:$0xf]
      %v197 = vld [vmem:[%s139 + $0xc4] sm:$0xf]
      %v198 = vld [vmem:[%s139 + $0xc8] sm:$0xf]
      %v199 = vld [vmem:[%s139 + $0xcc] sm:$0xf]
      %v200 = vld [vmem:[%s139 + $0xd0] sm:$0xf]
      %v201 = vld [vmem:[%s139 + $0xd4] sm:$0xf]
      %v202 = vld [vmem:[%s139 + $0xd8] sm:$0xf]
      %v203 = vld [vmem:[%s139 + $0xdc] sm:$0xf]
      %v204 = vld [vmem:[%s139 + $0xe0] sm:$0xf]
      %v205 = vld [vmem:[%s139 + $0xe4] sm:$0xf]
      %v206 = vld [vmem:[%s139 + $0xe8] sm:$0xf]
      %v207 = vld [vmem:[%s139 + $0xec] sm:$0xf]
      %v208 = vld [vmem:[%s139 + $0xf0] sm:$0xf]
      %v209 = vld [vmem:[%s139 + $0xf4] sm:$0xf]
      %v210 = vld [vmem:[%s139 + $0xf8] sm:$0xf]
      %v211 = vld [vmem:[%s139 + $0xfc] sm:$0xf]
      %v212 = vld [vmem:[%s1] sm:$0xf]
      %v213 = vld [vmem:[%s1 + $0x4] sm:$0xf]
      %v214 = vld [vmem:[%s1 + $0x8] sm:$0xf]
      %v215 = vld [vmem:[%s1 + $0xc] sm:$0xf]
      %v216 = vld [vmem:[%s1 + $0x10] sm:$0xf]
      %v217 = vld [vmem:[%s1 + $0x14] sm:$0xf]
      %v218 = vld [vmem:[%s1 + $0x18] sm:$0xf]
      %v219 = vld [vmem:[%s1 + $0x1c] sm:$0xf]
      %v220 = vld [vmem:[%s1 + $0x20] sm:$0xf]
      %v221 = vld [vmem:[%s1 + $0x24] sm:$0xf]
      %v222 = vld [vmem:[%s1 + $0x28] sm:$0xf]
      %v223 = vld [vmem:[%s1 + $0x2c] sm:$0xf]
      %v224 = vld [vmem:[%s1 + $0x30] sm:$0xf]
      %v225 = vld [vmem:[%s1 + $0x34] sm:$0xf]
      %v226 = vld [vmem:[%s1 + $0x38] sm:$0xf]
      %v227 = vld [vmem:[%s1 + $0x3c] sm:$0xf]
      %v292 = vunpack.c.l.b16 %v148
      %v293 = vunpack.c.l.b16 %v149
      %v294 = vunpack.c.l.b16 %v150
      %v295 = vunpack.c.l.b16 %v151
      %v296 = vunpack.c.l.b16 %v152
      %v297 = vunpack.c.l.b16 %v153
      %v298 = vunpack.c.l.b16 %v154
      %v299 = vunpack.c.l.b16 %v155
      %v300 = vunpack.c.l.b16 %v156
      %v301 = vunpack.c.l.b16 %v157
      %v302 = vunpack.c.l.b16 %v158
      %v303 = vunpack.c.l.b16 %v159
      %v304 = vunpack.c.l.b16 %v160
      %v305 = vunpack.c.l.b16 %v161
      %v306 = vunpack.c.l.b16 %v162
      %v307 = vunpack.c.l.b16 %v163
      %v308 = vunpack.c.l.b16 %v164
      %v309 = vunpack.c.l.b16 %v165
      %v310 = vunpack.c.l.b16 %v166
      %v311 = vunpack.c.l.b16 %v167
      %v312 = vunpack.c.l.b16 %v168
      %v313 = vunpack.c.l.b16 %v169
      %v314 = vunpack.c.l.b16 %v170
      %v315 = vunpack.c.l.b16 %v171
      %v316 = vunpack.c.l.b16 %v172
      %v317 = vunpack.c.l.b16 %v173
      %v318 = vunpack.c.l.b16 %v174
      %v319 = vunpack.c.l.b16 %v175
      %v320 = vunpack.c.l.b16 %v176
      %v321 = vunpack.c.l.b16 %v177
      %v322 = vunpack.c.l.b16 %v178
      %v323 = vunpack.c.l.b16 %v179
      %v324 = vunpack.c.l.b16 %v180
      %v325 = vunpack.c.l.b16 %v181
      %v326 = vunpack.c.l.b16 %v182
      %v327 = vunpack.c.l.b16 %v183
      %v328 = vunpack.c.l.b16 %v184
      %v329 = vunpack.c.l.b16 %v185
      %v330 = vunpack.c.l.b16 %v186
      %v331 = vunpack.c.l.b16 %v187
      %v332 = vunpack.c.l.b16 %v188
      %v333 = vunpack.c.l.b16 %v189
      %v334 = vunpack.c.l.b16 %v190
      %v335 = vunpack.c.l.b16 %v191
      %v336 = vunpack.c.l.b16 %v192
      %v337 = vunpack.c.l.b16 %v193
      %v338 = vunpack.c.l.b16 %v194
      %v339 = vunpack.c.l.b16 %v195
      %v340 = vunpack.c.l.b16 %v196
      %v341 = vunpack.c.l.b16 %v197
      %v342 = vunpack.c.l.b16 %v198
      %v343 = vunpack.c.l.b16 %v199
      %v344 = vunpack.c.l.b16 %v200
      %v345 = vunpack.c.l.b16 %v201
      %v346 = vunpack.c.l.b16 %v202
      %v347 = vunpack.c.l.b16 %v203
      %v348 = vunpack.c.l.b16 %v204
      %v349 = vunpack.c.l.b16 %v205
      %v350 = vunpack.c.l.b16 %v206
      %v351 = vunpack.c.l.b16 %v207
      %v352 = vunpack.c.l.b16 %v208
      %v353 = vunpack.c.l.b16 %v209
      %v354 = vunpack.c.l.b16 %v210
      %v355 = vunpack.c.l.b16 %v211
      %v356 = vpack.c.b16 %v293, %v292
      %v357 = vpack.c.b16 %v295, %v294
      %v358 = vpack.c.b16 %v297, %v296
      %v359 = vpack.c.b16 %v299, %v298
      %v360 = vpack.c.b16 %v301, %v300
      %v361 = vpack.c.b16 %v303, %v302
      %v362 = vpack.c.b16 %v305, %v304
      %v363 = vpack.c.b16 %v307, %v306
      %v364 = vpack.c.b16 %v309, %v308
      %v365 = vpack.c.b16 %v311, %v310
      %v366 = vpack.c.b16 %v313, %v312
      %v367 = vpack.c.b16 %v315, %v314
      %v368 = vpack.c.b16 %v317, %v316
      %v369 = vpack.c.b16 %v319, %v318
      %v370 = vpack.c.b16 %v321, %v320
      %v371 = vpack.c.b16 %v323, %v322
      %v372 = vpack.c.b16 %v325, %v324
      %v373 = vpack.c.b16 %v327, %v326
      %v374 = vpack.c.b16 %v329, %v328
      %v375 = vpack.c.b16 %v331, %v330
      %v376 = vpack.c.b16 %v333, %v332
      %v377 = vpack.c.b16 %v335, %v334
      %v378 = vpack.c.b16 %v337, %v336
      %v379 = vpack.c.b16 %v339, %v338
      %v380 = vpack.c.b16 %v341, %v340
      %v381 = vpack.c.b16 %v343, %v342
      %v382 = vpack.c.b16 %v345, %v344
      %v383 = vpack.c.b16 %v347, %v346
      %v384 = vpack.c.b16 %v349, %v348
      %v385 = vpack.c.b16 %v351, %v350
      %v386 = vpack.c.b16 %v353, %v352
      %v387 = vpack.c.b16 %v355, %v354
      %v436 = vunpack.c.l.b16 %v212
      %v437 = vunpack.c.l.b16 %v213
      %v438 = vunpack.c.l.b16 %v214
      %v439 = vunpack.c.l.b16 %v215
      %v440 = vunpack.c.l.b16 %v216
      %v441 = vunpack.c.l.b16 %v217
      %v442 = vunpack.c.l.b16 %v218
      %v443 = vunpack.c.l.b16 %v219
      %v444 = vunpack.c.l.b16 %v220
      %v445 = vunpack.c.l.b16 %v221
      %v446 = vunpack.c.l.b16 %v222
      %v447 = vunpack.c.l.b16 %v223
      %v448 = vunpack.c.l.b16 %v224
      %v449 = vunpack.c.l.b16 %v225
      %v450 = vunpack.c.l.b16 %v226
      %v451 = vunpack.c.l.b16 %v227
      %v452 = vpack.c.b16 %v437, %v436
      %v453 = vpack.c.b16 %v439, %v438
      %v454 = vpack.c.b16 %v441, %v440
      %v455 = vpack.c.b16 %v443, %v442
      %v456 = vpack.c.b16 %v445, %v444
      %v457 = vpack.c.b16 %v447, %v446
      %v458 = vpack.c.b16 %v449, %v448
      %v459 = vpack.c.b16 %v451, %v450
      %468 = vmatprep.subr.bf16.mxu0 0
      %469 = vmatpush1.bf16.msra.mxu0 %v459
      %470 = vmatprep.subr.bf16.mxu0 0
      %471 = vmatpush1.bf16.msra.mxu0 %v458
      %472 = vmatprep.subr.bf16.mxu0 0
      %473 = vmatpush1.bf16.msra.mxu0 %v457
      %474 = vmatprep.subr.bf16.mxu0 0
      %475 = vmatpush1.bf16.msra.mxu0 %v456
      %476 = vmatprep.subr.bf16.mxu0 0
      %477 = vmatpush1.bf16.msra.mxu0 %v455
      %478 = vmatprep.subr.bf16.mxu0 0
      %479 = vmatpush1.bf16.msra.mxu0 %v454
      %480 = vmatprep.subr.bf16.mxu0 0
      %481 = vmatpush1.bf16.msra.mxu0 %v453
      %482 = vmatprep.subr.bf16.mxu0 0
      %483 = vmatpush1.bf16.msra.mxu0 %v452
      %484 = vmatprep.subr.bf16.mxu0 0
      %485 = vmatpush2.bf16.msra.mxu0 0
      %486 = vmatprep.subr.bf16.mxu0 0
      %487 = vmatpush2.bf16.msra.mxu0 0
      %488 = vmatprep.subr.bf16.mxu0 0
      %489 = vmatpush2.bf16.msra.mxu0 0
      %490 = vmatprep.subr.bf16.mxu0 0
      %491 = vmatpush2.bf16.msra.mxu0 0
      %492 = vmatprep.subr.bf16.mxu0 0
      %493 = vmatpush2.bf16.msra.mxu0 0
      %494 = vmatprep.subr.bf16.mxu0 0
      %495 = vmatpush2.bf16.msra.mxu0 0
      %496 = vmatprep.subr.bf16.mxu0 0
      %497 = vmatpush2.bf16.msra.mxu0 0
      %498 = vmatprep.subr.bf16.mxu0 0
      %499 = vmatpush2.bf16.msra.mxu0 0
      %500 = vmatprep.mubr.bf16.mxu0 0
      %501 = vmatmul.mubr.bf16.gmra.mxu0 %v356
      %v502 = vpop.f32.mrf.mxu0
      %v503 = vadd.f32 0.0, %v502
      %v504 = vpop.f32.mrf.mxu0
      %v505 = vpop.f32.mrf.mxu0
      %v506 = vadd.f32 0.0, %v505
      %v507 = vpop.f32.mrf.mxu0
      %508 = vmatprep.mubr.bf16.mxu0 0
      %509 = vmatmul.mubr.bf16.gmra.mxu0 %v357
      %v510 = vpop.f32.mrf.mxu0
      %v511 = vadd.f32 0.0, %v510
      %v512 = vpop.f32.mrf.mxu0
      %v513 = vpop.f32.mrf.mxu0
      %v514 = vadd.f32 0.0, %v513
      %v515 = vpop.f32.mrf.mxu0
      %516 = vmatprep.mubr.bf16.mxu0 0
      %517 = vmatmul.mubr.bf16.gmra.mxu0 %v358
      %v518 = vpop.f32.mrf.mxu0
      %v519 = vadd.f32 0.0, %v518
      %v520 = vpop.f32.mrf.mxu0
      %v521 = vpop.f32.mrf.mxu0
      %v522 = vadd.f32 0.0, %v521
      %v523 = vpop.f32.mrf.mxu0
      %524 = vmatprep.mubr.bf16.mxu0 0
      %525 = vmatmul.mubr.bf16.gmra.mxu0 %v359
      %v526 = vpop.f32.mrf.mxu0
      %v527 = vadd.f32 0.0, %v526
      %v528 = vpop.f32.mrf.mxu0
      %v529 = vpop.f32.mrf.mxu0
      %v530 = vadd.f32 0.0, %v529
      %v531 = vpop.f32.mrf.mxu0
      %532 = vmatprep.mubr.bf16.mxu0 0
      %533 = vmatmul.mubr.bf16.gmra.mxu0 %v360
      %v534 = vpop.f32.mrf.mxu0
      %v535 = vadd.f32 0.0, %v534
      %v536 = vpop.f32.mrf.mxu0
      %v537 = vpop.f32.mrf.mxu0
      %v538 = vadd.f32 0.0, %v537
      %v539 = vpop.f32.mrf.mxu0
      %540 = vmatprep.mubr.bf16.mxu0 0
      %541 = vmatmul.mubr.bf16.gmra.mxu0 %v361
      %v542 = vpop.f32.mrf.mxu0
      %v543 = vadd.f32 0.0, %v542
      %v544 = vpop.f32.mrf.mxu0
      %v545 = vpop.f32.mrf.mxu0
      %v546 = vadd.f32 0.0, %v545
      %v547 = vpop.f32.mrf.mxu0
      %548 = vmatprep.mubr.bf16.mxu0 0
      %549 = vmatmul.mubr.bf16.gmra.mxu0 %v362
      %v550 = vpop.f32.mrf.mxu0
      %v551 = vadd.f32 0.0, %v550
      %v552 = vpop.f32.mrf.mxu0
      %v553 = vpop.f32.mrf.mxu0
      %v554 = vadd.f32 0.0, %v553
      %v555 = vpop.f32.mrf.mxu0
      %556 = vmatprep.mubr.bf16.mxu0 0
      %557 = vmatmul.mubr.bf16.gmra.mxu0 %v363
      %v558 = vpop.f32.mrf.mxu0
      %v559 = vadd.f32 0.0, %v558
      %v560 = vpop.f32.mrf.mxu0
      %v561 = vpop.f32.mrf.mxu0
      %v562 = vadd.f32 0.0, %v561
      %v563 = vpop.f32.mrf.mxu0
      %564 = vmatprep.mubr.bf16.mxu0 0
      %565 = vmatmul.mubr.bf16.gmra.mxu0 %v364
      %v566 = vpop.f32.mrf.mxu0
      %v567 = vadd.f32 0.0, %v566
      %v568 = vpop.f32.mrf.mxu0
      %v569 = vpop.f32.mrf.mxu0
      %v570 = vadd.f32 0.0, %v569
      %v571 = vpop.f32.mrf.mxu0
      %572 = vmatprep.mubr.bf16.mxu0 0
      %573 = vmatmul.mubr.bf16.gmra.mxu0 %v365
      %v574 = vpop.f32.mrf.mxu0
      %v575 = vadd.f32 0.0, %v574
      %v576 = vpop.f32.mrf.mxu0
      %v577 = vpop.f32.mrf.mxu0
      %v578 = vadd.f32 0.0, %v577
      %v579 = vpop.f32.mrf.mxu0
      %580 = vmatprep.mubr.bf16.mxu0 0
      %581 = vmatmul.mubr.bf16.gmra.mxu0 %v366
      %v582 = vpop.f32.mrf.mxu0
      %v583 = vadd.f32 0.0, %v582
      %v584 = vpop.f32.mrf.mxu0
      %v585 = vpop.f32.mrf.mxu0
      %v586 = vadd.f32 0.0, %v585
      %v587 = vpop.f32.mrf.mxu0
      %588 = vmatprep.mubr.bf16.mxu0 0
      %589 = vmatmul.mubr.bf16.gmra.mxu0 %v367
      %v590 = vpop.f32.mrf.mxu0
      %v591 = vadd.f32 0.0, %v590
      %v592 = vpop.f32.mrf.mxu0
      %v593 = vpop.f32.mrf.mxu0
      %v594 = vadd.f32 0.0, %v593
      %v595 = vpop.f32.mrf.mxu0
      %596 = vmatprep.mubr.bf16.mxu0 0
      %597 = vmatmul.mubr.bf16.gmra.mxu0 %v368
      %v598 = vpop.f32.mrf.mxu0
      %v599 = vadd.f32 0.0, %v598
      %v600 = vpop.f32.mrf.mxu0
      %v601 = vpop.f32.mrf.mxu0
      %v602 = vadd.f32 0.0, %v601
      %v603 = vpop.f32.mrf.mxu0
      %604 = vmatprep.mubr.bf16.mxu0 0
      %605 = vmatmul.mubr.bf16.gmra.mxu0 %v369
      %v606 = vpop.f32.mrf.mxu0
      %v607 = vadd.f32 0.0, %v606
      %v608 = vpop.f32.mrf.mxu0
      %v609 = vpop.f32.mrf.mxu0
      %v610 = vadd.f32 0.0, %v609
      %v611 = vpop.f32.mrf.mxu0
      %612 = vmatprep.mubr.bf16.mxu0 0
      %613 = vmatmul.mubr.bf16.gmra.mxu0 %v370
      %v614 = vpop.f32.mrf.mxu0
      %v615 = vadd.f32 0.0, %v614
      %v616 = vpop.f32.mrf.mxu0
      %v617 = vpop.f32.mrf.mxu0
      %v618 = vadd.f32 0.0, %v617
      %v619 = vpop.f32.mrf.mxu0
      %620 = vmatprep.mubr.bf16.mxu0 0
      %621 = vmatmul.mubr.bf16.gmra.mxu0 %v371
      %v622 = vpop.f32.mrf.mxu0
      %v623 = vadd.f32 0.0, %v622
      %v624 = vpop.f32.mrf.mxu0
      %v625 = vpop.f32.mrf.mxu0
      %v626 = vadd.f32 0.0, %v625
      %v627 = vpop.f32.mrf.mxu0
      %628 = vmatprep.mubr.bf16.mxu0 0
      %629 = vmatmul.mubr.bf16.gmra.mxu0 %v372
      %v630 = vpop.f32.mrf.mxu0
      %v631 = vadd.f32 0.0, %v630
      %v632 = vpop.f32.mrf.mxu0
      %v633 = vpop.f32.mrf.mxu0
      %v634 = vadd.f32 0.0, %v633
      %v635 = vpop.f32.mrf.mxu0
      %636 = vmatprep.mubr.bf16.mxu0 0
      %637 = vmatmul.mubr.bf16.gmra.mxu0 %v373
      %v638 = vpop.f32.mrf.mxu0
      %v639 = vadd.f32 0.0, %v638
      %v640 = vpop.f32.mrf.mxu0
      %v641 = vpop.f32.mrf.mxu0
      %v642 = vadd.f32 0.0, %v641
      %v643 = vpop.f32.mrf.mxu0
      %644 = vmatprep.mubr.bf16.mxu0 0
      %645 = vmatmul.mubr.bf16.gmra.mxu0 %v374
      %v646 = vpop.f32.mrf.mxu0
      %v647 = vadd.f32 0.0, %v646
      %v648 = vpop.f32.mrf.mxu0
      %v649 = vpop.f32.mrf.mxu0
      %v650 = vadd.f32 0.0, %v649
      %v651 = vpop.f32.mrf.mxu0
      %652 = vmatprep.mubr.bf16.mxu0 0
      %653 = vmatmul.mubr.bf16.gmra.mxu0 %v375
      %v654 = vpop.f32.mrf.mxu0
      %v655 = vadd.f32 0.0, %v654
      %v656 = vpop.f32.mrf.mxu0
      %v657 = vpop.f32.mrf.mxu0
      %v658 = vadd.f32 0.0, %v657
      %v659 = vpop.f32.mrf.mxu0
      %660 = vmatprep.mubr.bf16.mxu0 0
      %661 = vmatmul.mubr.bf16.gmra.mxu0 %v376
      %v662 = vpop.f32.mrf.mxu0
      %v663 = vadd.f32 0.0, %v662
      %v664 = vpop.f32.mrf.mxu0
      %v665 = vpop.f32.mrf.mxu0
      %v666 = vadd.f32 0.0, %v665
      %v667 = vpop.f32.mrf.mxu0
      %668 = vmatprep.mubr.bf16.mxu0 0
      %669 = vmatmul.mubr.bf16.gmra.mxu0 %v377
      %v670 = vpop.f32.mrf.mxu0
      %v671 = vadd.f32 0.0, %v670
      %v672 = vpop.f32.mrf.mxu0
      %v673 = vpop.f32.mrf.mxu0
      %v674 = vadd.f32 0.0, %v673
      %v675 = vpop.f32.mrf.mxu0
      %676 = vmatprep.mubr.bf16.mxu0 0
      %677 = vmatmul.mubr.bf16.gmra.mxu0 %v378
      %v678 = vpop.f32.mrf.mxu0
      %v679 = vadd.f32 0.0, %v678
      %v680 = vpop.f32.mrf.mxu0
      %v681 = vpop.f32.mrf.mxu0
      %v682 = vadd.f32 0.0, %v681
      %v683 = vpop.f32.mrf.mxu0
      %684 = vmatprep.mubr.bf16.mxu0 0
      %685 = vmatmul.mubr.bf16.gmra.mxu0 %v379
      %v686 = vpop.f32.mrf.mxu0
      %v687 = vadd.f32 0.0, %v686
      %v688 = vpop.f32.mrf.mxu0
      %v689 = vpop.f32.mrf.mxu0
      %v690 = vadd.f32 0.0, %v689
      %v691 = vpop.f32.mrf.mxu0
      %692 = vmatprep.mubr.bf16.mxu0 0
      %693 = vmatmul.mubr.bf16.gmra.mxu0 %v380
      %v694 = vpop.f32.mrf.mxu0
      %v695 = vadd.f32 0.0, %v694
      %v696 = vpop.f32.mrf.mxu0
      %v697 = vpop.f32.mrf.mxu0
      %v698 = vadd.f32 0.0, %v697
      %v699 = vpop.f32.mrf.mxu0
      %700 = vmatprep.mubr.bf16.mxu0 0
      %701 = vmatmul.mubr.bf16.gmra.mxu0 %v381
      %v702 = vpop.f32.mrf.mxu0
      %v703 = vadd.f32 0.0, %v702
      %v704 = vpop.f32.mrf.mxu0
      %v705 = vpop.f32.mrf.mxu0
      %v706 = vadd.f32 0.0, %v705
      %v707 = vpop.f32.mrf.mxu0
      %708 = vmatprep.mubr.bf16.mxu0 0
      %709 = vmatmul.mubr.bf16.gmra.mxu0 %v382
      %v710 = vpop.f32.mrf.mxu0
      %v711 = vadd.f32 0.0, %v710
      %v712 = vpop.f32.mrf.mxu0
      %v713 = vpop.f32.mrf.mxu0
      %v714 = vadd.f32 0.0, %v713
      %v715 = vpop.f32.mrf.mxu0
      %716 = vmatprep.mubr.bf16.mxu0 0
      %717 = vmatmul.mubr.bf16.gmra.mxu0 %v383
      %v718 = vpop.f32.mrf.mxu0
      %v719 = vadd.f32 0.0, %v718
      %v720 = vpop.f32.mrf.mxu0
      %v721 = vpop.f32.mrf.mxu0
      %v722 = vadd.f32 0.0, %v721
      %v723 = vpop.f32.mrf.mxu0
      %724 = vmatprep.mubr.bf16.mxu0 0
      %725 = vmatmul.mubr.bf16.gmra.mxu0 %v384
      %v726 = vpop.f32.mrf.mxu0
      %v727 = vadd.f32 0.0, %v726
      %v728 = vpop.f32.mrf.mxu0
      %v729 = vpop.f32.mrf.mxu0
      %v730 = vadd.f32 0.0, %v729
      %v731 = vpop.f32.mrf.mxu0
      %732 = vmatprep.mubr.bf16.mxu0 0
      %733 = vmatmul.mubr.bf16.gmra.mxu0 %v385
      %v734 = vpop.f32.mrf.mxu0
      %v735 = vadd.f32 0.0, %v734
      %v736 = vpop.f32.mrf.mxu0
      %v737 = vpop.f32.mrf.mxu0
      %v738 = vadd.f32 0.0, %v737
      %v739 = vpop.f32.mrf.mxu0
      %740 = vmatprep.mubr.bf16.mxu0 0
      %741 = vmatmul.mubr.bf16.gmra.mxu0 %v386
      %v742 = vpop.f32.mrf.mxu0
      %v743 = vadd.f32 0.0, %v742
      %v744 = vpop.f32.mrf.mxu0
      %v745 = vpop.f32.mrf.mxu0
      %v746 = vadd.f32 0.0, %v745
      %v747 = vpop.f32.mrf.mxu0
      %748 = vmatprep.mubr.bf16.mxu0 0
      %749 = vmatmul.mubr.bf16.gmra.mxu0 %v387
      %v750 = vpop.f32.mrf.mxu0
      %v751 = vadd.f32 0.0, %v750
      %v752 = vpop.f32.mrf.mxu0
      %v753 = vpop.f32.mrf.mxu0
      %v754 = vadd.f32 0.0, %v753
      %v755 = vpop.f32.mrf.mxu0
      %756 = vdwg.mxu0
      %v757 = vtanh.pop %v503
      %v758 = vtanh.pop %v506
      %v759 = vtanh.pop %v511
      %v760 = vtanh.pop %v514
      %v761 = vtanh.pop %v519
      %v762 = vtanh.pop %v522
      %v763 = vtanh.pop %v527
      %v764 = vtanh.pop %v530
      %v765 = vtanh.pop %v535
      %v766 = vtanh.pop %v538
      %v767 = vtanh.pop %v543
      %v768 = vtanh.pop %v546
      %v769 = vtanh.pop %v551
      %v770 = vtanh.pop %v554
      %v771 = vtanh.pop %v559
      %v772 = vtanh.pop %v562
      %v773 = vtanh.pop %v567
      %v774 = vtanh.pop %v570
      %v775 = vtanh.pop %v575
      %v776 = vtanh.pop %v578
      %v777 = vtanh.pop %v583
      %v778 = vtanh.pop %v586
      %v779 = vtanh.pop %v591
      %v780 = vtanh.pop %v594
      %v781 = vtanh.pop %v599
      %v782 = vtanh.pop %v602
      %v783 = vtanh.pop %v607
      %v784 = vtanh.pop %v610
      %v785 = vtanh.pop %v615
      %v786 = vtanh.pop %v618
      %v787 = vtanh.pop %v623
      %v788 = vtanh.pop %v626
      %v789 = vtanh.pop %v631
      %v790 = vtanh.pop %v634
      %v791 = vtanh.pop %v639
      %v792 = vtanh.pop %v642
      %v793 = vtanh.pop %v647
      %v794 = vtanh.pop %v650
      %v795 = vtanh.pop %v655
      %v796 = vtanh.pop %v658
      %v797 = vtanh.pop %v663
      %v798 = vtanh.pop %v666
      %v799 = vtanh.pop %v671
      %v800 = vtanh.pop %v674
      %v801 = vtanh.pop %v679
      %v802 = vtanh.pop %v682
      %v803 = vtanh.pop %v687
      %v804 = vtanh.pop %v690
      %v805 = vtanh.pop %v695
      %v806 = vtanh.pop %v698
      %v807 = vtanh.pop %v703
      %v808 = vtanh.pop %v706
      %v809 = vtanh.pop %v711
      %v810 = vtanh.pop %v714
      %v811 = vtanh.pop %v719
      %v812 = vtanh.pop %v722
      %v813 = vtanh.pop %v727
      %v814 = vtanh.pop %v730
      %v815 = vtanh.pop %v735
      %v816 = vtanh.pop %v738
      %v817 = vtanh.pop %v743
      %v818 = vtanh.pop %v746
      %v819 = vtanh.pop %v751
      %v820 = vtanh.pop %v754
      %v821 = vpack.c.bf16 %v758, %v757
      %v822 = vpack.c.bf16 %v760, %v759
      %v823 = vpack.c.bf16 %v762, %v761
      %v824 = vpack.c.bf16 %v764, %v763
      %v825 = vpack.c.bf16 %v766, %v765
      %v826 = vpack.c.bf16 %v768, %v767
      %v827 = vpack.c.bf16 %v770, %v769
      %v828 = vpack.c.bf16 %v772, %v771
      %v829 = vpack.c.bf16 %v774, %v773
      %v830 = vpack.c.bf16 %v776, %v775
      %v831 = vpack.c.bf16 %v778, %v777
      %v832 = vpack.c.bf16 %v780, %v779
      %v833 = vpack.c.bf16 %v782, %v781
      %v834 = vpack.c.bf16 %v784, %v783
      %v835 = vpack.c.bf16 %v786, %v785
      %v836 = vpack.c.bf16 %v788, %v787
      %v837 = vpack.c.bf16 %v790, %v789
      %v838 = vpack.c.bf16 %v792, %v791
      %v839 = vpack.c.bf16 %v794, %v793
      %v840 = vpack.c.bf16 %v796, %v795
      %v841 = vpack.c.bf16 %v798, %v797
      %v842 = vpack.c.bf16 %v800, %v799
      %v843 = vpack.c.bf16 %v802, %v801
      %v844 = vpack.c.bf16 %v804, %v803
      %v845 = vpack.c.bf16 %v806, %v805
      %v846 = vpack.c.bf16 %v808, %v807
      %v847 = vpack.c.bf16 %v810, %v809
      %v848 = vpack.c.bf16 %v812, %v811
      %v849 = vpack.c.bf16 %v814, %v813
      %v850 = vpack.c.bf16 %v816, %v815
      %v851 = vpack.c.bf16 %v818, %v817
      %v852 = vpack.c.bf16 %v820, %v819
      %v885 = vunpack.c.l.b16 %v821
      %v886 = vunpack.c.h.b16 %v821
      %v887 = vunpack.c.l.b16 %v822
      %v888 = vunpack.c.h.b16 %v822
      %v889 = vunpack.c.l.b16 %v823
      %v890 = vunpack.c.h.b16 %v823
      %v891 = vunpack.c.l.b16 %v824
      %v892 = vunpack.c.h.b16 %v824
      %v893 = vunpack.c.l.b16 %v825
      %v894 = vunpack.c.h.b16 %v825
      %v895 = vunpack.c.l.b16 %v826
      %v896 = vunpack.c.h.b16 %v826
      %v897 = vunpack.c.l.b16 %v827
      %v898 = vunpack.c.h.b16 %v827
      %v899 = vunpack.c.l.b16 %v828
      %v900 = vunpack.c.h.b16 %v828
      %v901 = vunpack.c.l.b16 %v829
      %v902 = vunpack.c.h.b16 %v829
      %v903 = vunpack.c.l.b16 %v830
      %v904 = vunpack.c.h.b16 %v830
      %v905 = vunpack.c.l.b16 %v831
      %v906 = vunpack.c.h.b16 %v831
      %v907 = vunpack.c.l.b16 %v832
      %v908 = vunpack.c.h.b16 %v832
      %v909 = vunpack.c.l.b16 %v833
      %v910 = vunpack.c.h.b16 %v833
      %v911 = vunpack.c.l.b16 %v834
      %v912 = vunpack.c.h.b16 %v834
      %v913 = vunpack.c.l.b16 %v835
      %v914 = vunpack.c.h.b16 %v835
      %v915 = vunpack.c.l.b16 %v836
      %v916 = vunpack.c.h.b16 %v836
      %v917 = vunpack.c.l.b16 %v837
      %v918 = vunpack.c.h.b16 %v837
      %v919 = vunpack.c.l.b16 %v838
      %v920 = vunpack.c.h.b16 %v838
      %v921 = vunpack.c.l.b16 %v839
      %v922 = vunpack.c.h.b16 %v839
      %v923 = vunpack.c.l.b16 %v840
      %v924 = vunpack.c.h.b16 %v840
      %v925 = vunpack.c.l.b16 %v841
      %v926 = vunpack.c.h.b16 %v841
      %v927 = vunpack.c.l.b16 %v842
      %v928 = vunpack.c.h.b16 %v842
      %v929 = vunpack.c.l.b16 %v843
      %v930 = vunpack.c.h.b16 %v843
      %v931 = vunpack.c.l.b16 %v844
      %v932 = vunpack.c.h.b16 %v844
      %v933 = vunpack.c.l.b16 %v845
      %v934 = vunpack.c.h.b16 %v845
      %v935 = vunpack.c.l.b16 %v846
      %v936 = vunpack.c.h.b16 %v846
      %v937 = vunpack.c.l.b16 %v847
      %v938 = vunpack.c.h.b16 %v847
      %v939 = vunpack.c.l.b16 %v848
      %v940 = vunpack.c.h.b16 %v848
      %v941 = vunpack.c.l.b16 %v849
      %v942 = vunpack.c.h.b16 %v849
      %v943 = vunpack.c.l.b16 %v850
      %v944 = vunpack.c.h.b16 %v850
      %v945 = vunpack.c.l.b16 %v851
      %v946 = vunpack.c.h.b16 %v851
      %v947 = vunpack.c.l.b16 %v852
      %v948 = vunpack.c.h.b16 %v852
      %v949 = vpack.c.b16 %v885, %v885
      %v950 = vpack.c.b16 %v886, %v886
      %v951 = vpack.c.b16 %v887, %v887
      %v952 = vpack.c.b16 %v888, %v888
      %v953 = vpack.c.b16 %v889, %v889
      %v954 = vpack.c.b16 %v890, %v890
      %v955 = vpack.c.b16 %v891, %v891
      %v956 = vpack.c.b16 %v892, %v892
      %v957 = vpack.c.b16 %v893, %v893
      %v958 = vpack.c.b16 %v894, %v894
      %v959 = vpack.c.b16 %v895, %v895
      %v960 = vpack.c.b16 %v896, %v896
      %v961 = vpack.c.b16 %v897, %v897
      %v962 = vpack.c.b16 %v898, %v898
      %v963 = vpack.c.b16 %v899, %v899
      %v964 = vpack.c.b16 %v900, %v900
      %v965 = vpack.c.b16 %v901, %v901
      %v966 = vpack.c.b16 %v902, %v902
      %v967 = vpack.c.b16 %v903, %v903
      %v968 = vpack.c.b16 %v904, %v904
      %v969 = vpack.c.b16 %v905, %v905
      %v970 = vpack.c.b16 %v906, %v906
      %v971 = vpack.c.b16 %v907, %v907
      %v972 = vpack.c.b16 %v908, %v908
      %v973 = vpack.c.b16 %v909, %v909
      %v974 = vpack.c.b16 %v910, %v910
      %v975 = vpack.c.b16 %v911, %v911
      %v976 = vpack.c.b16 %v912, %v912
      %v977 = vpack.c.b16 %v913, %v913
      %v978 = vpack.c.b16 %v914, %v914
      %v979 = vpack.c.b16 %v915, %v915
      %v980 = vpack.c.b16 %v916, %v916
      %v981 = vpack.c.b16 %v917, %v917
      %v982 = vpack.c.b16 %v918, %v918
      %v983 = vpack.c.b16 %v919, %v919
      %v984 = vpack.c.b16 %v920, %v920
      %v985 = vpack.c.b16 %v921, %v921
      %v986 = vpack.c.b16 %v922, %v922
      %v987 = vpack.c.b16 %v923, %v923
      %v988 = vpack.c.b16 %v924, %v924
      %v989 = vpack.c.b16 %v925, %v925
      %v990 = vpack.c.b16 %v926, %v926
      %v991 = vpack.c.b16 %v927, %v927
      %v992 = vpack.c.b16 %v928, %v928
      %v993 = vpack.c.b16 %v929, %v929
      %v994 = vpack.c.b16 %v930, %v930
      %v995 = vpack.c.b16 %v931, %v931
      %v996 = vpack.c.b16 %v932, %v932
      %v997 = vpack.c.b16 %v933, %v933
      %v998 = vpack.c.b16 %v934, %v934
      %v999 = vpack.c.b16 %v935, %v935
      %v1000 = vpack.c.b16 %v936, %v936
      %v1001 = vpack.c.b16 %v937, %v937
      %v1002 = vpack.c.b16 %v938, %v938
      %v1003 = vpack.c.b16 %v939, %v939
      %v1004 = vpack.c.b16 %v940, %v940
      %v1005 = vpack.c.b16 %v941, %v941
      %v1006 = vpack.c.b16 %v942, %v942
      %v1007 = vpack.c.b16 %v943, %v943
      %v1008 = vpack.c.b16 %v944, %v944
      %v1009 = vpack.c.b16 %v945, %v945
      %v1010 = vpack.c.b16 %v946, %v946
      %v1011 = vpack.c.b16 %v947, %v947
      %v1012 = vpack.c.b16 %v948, %v948
      %1077 = vst [vmem:[%s145] sm:$0xf] %v949
      %1078 = vst [vmem:[%s145 + $0x4] sm:$0xf] %v950
      %1079 = vst [vmem:[%s145 + $0x8] sm:$0xf] %v951
      %1080 = vst [vmem:[%s145 + $0xc] sm:$0xf] %v952
      %1081 = vst [vmem:[%s145 + $0x10] sm:$0xf] %v953
      %1082 = vst [vmem:[%s145 + $0x14] sm:$0xf] %v954
      %1083 = vst [vmem:[%s145 + $0x18] sm:$0xf] %v955
      %1084 = vst [vmem:[%s145 + $0x1c] sm:$0xf] %v956
      %1085 = vst [vmem:[%s145 + $0x20] sm:$0xf] %v957
      %1086 = vst [vmem:[%s145 + $0x24] sm:$0xf] %v958
      %1087 = vst [vmem:[%s145 + $0x28] sm:$0xf] %v959
      %1088 = vst [vmem:[%s145 + $0x2c] sm:$0xf] %v960
      %1089 = vst [vmem:[%s145 + $0x30] sm:$0xf] %v961
      %1090 = vst [vmem:[%s145 + $0x34] sm:$0xf] %v962
      %1091 = vst [vmem:[%s145 + $0x38] sm:$0xf] %v963
      %1092 = vst [vmem:[%s145 + $0x3c] sm:$0xf] %v964
      %1093 = vst [vmem:[%s145 + $0x40] sm:$0xf] %v965
      %1094 = vst [vmem:[%s145 + $0x44] sm:$0xf] %v966
      %1095 = vst [vmem:[%s145 + $0x48] sm:$0xf] %v967
      %1096 = vst [vmem:[%s145 + $0x4c] sm:$0xf] %v968
      %1097 = vst [vmem:[%s145 + $0x50] sm:$0xf] %v969
      %1098 = vst [vmem:[%s145 + $0x54] sm:$0xf] %v970
      %1099 = vst [vmem:[%s145 + $0x58] sm:$0xf] %v971
      %1100 = vst [vmem:[%s145 + $0x5c] sm:$0xf] %v972
      %1101 = vst [vmem:[%s145 + $0x60] sm:$0xf] %v973
      %1102 = vst [vmem:[%s145 + $0x64] sm:$0xf] %v974
      %1103 = vst [vmem:[%s145 + $0x68] sm:$0xf] %v975
      %1104 = vst [vmem:[%s145 + $0x6c] sm:$0xf] %v976
      %1105 = vst [vmem:[%s145 + $0x70] sm:$0xf] %v977
      %1106 = vst [vmem:[%s145 + $0x74] sm:$0xf] %v978
      %1107 = vst [vmem:[%s145 + $0x78] sm:$0xf] %v979
      %1108 = vst [vmem:[%s145 + $0x7c] sm:$0xf] %v980
      %1109 = vst [vmem:[%s145 + $0x80] sm:$0xf] %v981
      %1110 = vst [vmem:[%s145 + $0x84] sm:$0xf] %v982
      %1111 = vst [vmem:[%s145 + $0x88] sm:$0xf] %v983
      %1112 = vst [vmem:[%s145 + $0x8c] sm:$0xf] %v984
      %1113 = vst [vmem:[%s145 + $0x90] sm:$0xf] %v985
      %1114 = vst [vmem:[%s145 + $0x94] sm:$0xf] %v986
      %1115 = vst [vmem:[%s145 + $0x98] sm:$0xf] %v987
      %1116 = vst [vmem:[%s145 + $0x9c] sm:$0xf] %v988
      %1117 = vst [vmem:[%s145 + $0xa0] sm:$0xf] %v989
      %1118 = vst [vmem:[%s145 + $0xa4] sm:$0xf] %v990
      %1119 = vst [vmem:[%s145 + $0xa8] sm:$0xf] %v991
      %1120 = vst [vmem:[%s145 + $0xac] sm:$0xf] %v992
      %1121 = vst [vmem:[%s145 + $0xb0] sm:$0xf] %v993
      %1122 = vst [vmem:[%s145 + $0xb4] sm:$0xf] %v994
      %1123 = vst [vmem:[%s145 + $0xb8] sm:$0xf] %v995
      %1124 = vst [vmem:[%s145 + $0xbc] sm:$0xf] %v996
      %1125 = vst [vmem:[%s145 + $0xc0] sm:$0xf] %v997
      %1126 = vst [vmem:[%s145 + $0xc4] sm:$0xf] %v998
      %1127 = vst [vmem:[%s145 + $0xc8] sm:$0xf] %v999
      %1128 = vst [vmem:[%s145 + $0xcc] sm:$0xf] %v1000
      %1129 = vst [vmem:[%s145 + $0xd0] sm:$0xf] %v1001
      %1130 = vst [vmem:[%s145 + $0xd4] sm:$0xf] %v1002
      %1131 = vst [vmem:[%s145 + $0xd8] sm:$0xf] %v1003
      %1132 = vst [vmem:[%s145 + $0xdc] sm:$0xf] %v1004
      %1133 = vst [vmem:[%s145 + $0xe0] sm:$0xf] %v1005
      %1134 = vst [vmem:[%s145 + $0xe4] sm:$0xf] %v1006
      %1135 = vst [vmem:[%s145 + $0xe8] sm:$0xf] %v1007
      %1136 = vst [vmem:[%s145 + $0xec] sm:$0xf] %v1008
      %1137 = vst [vmem:[%s145 + $0xf0] sm:$0xf] %v1009
      %1138 = vst [vmem:[%s145 + $0xf4] sm:$0xf] %v1010
      %1139 = vst [vmem:[%s145 + $0xf8] sm:$0xf] %v1011
      %1140 = vst [vmem:[%s145 + $0xfc] sm:$0xf] %v1012
      %s1141 = smul.u32 64, %s13
      %p1142 = scmp.lt.s32.totalorder %s1141, 1023
      %s1143 = scalar_select %p1142, %s1141, 1023
      %s1144 = smul.addr %s1143, 4
      %s1145 = scalar_lea.vmem %s2, %s1144
      // Predicated region
      $region29: #{generator_forward.13} parent=27 // pred_check
        %p1146 = pneg %p78
      $region30: #{generator_forward.13} parent=27 // pred_check_branch
        %1148 = sbr.rel (%p1146) target = $region32
      $region31: #{generator_forward.13} parent=27 // pred_region
        %s1149 = smul.u32 64, %s13
      $region32: #{generator_forward.13} parent=27 // pred_fallthru
        _
    $region28: #{generator_forward.13} parent=5 // pred_fallthru
      _
    %p1150 = scmp.le.s32.totalorder 2, %s8
    // Predicated region
    $region33: #{generator_forward.13} parent=5 // pred_check
      %p1151 = pneg %p1150
    $region34: #{generator_forward.13} parent=5 // pred_check_branch
      %1153 = sbr.rel (%p1151) target = $region36
    $region35: #{generator_forward.13} parent=5 // pred_region
      %s1154 = ssub.s32 %s8, 2
      // Predicated region
      $region37: #{generator_forward.13} parent=35 // pred_check
        %p1155 = pneg %p84
      $region38: #{generator_forward.13} parent=35 // pred_check_branch
        %1157 = sbr.rel (%p1155) target = $region40
      $region39: #{generator_forward.13} parent=35 // pred_region
        %s1158 = smul.u32 64, %s14
        %p1159 = scmp.lt.s32.totalorder %s1158, 1023
        %s1160 = scalar_select %p1159, %s1158, 1023
        %s1161 = smul.addr %s1160, 4
        %s1162 = scalar_lea.vmem %s2, %s1161
      $region40: #{generator_forward.13} parent=35 // pred_fallthru
        _
    $region36: #{generator_forward.13} parent=5 // pred_fallthru
      _
  $region6: #{generator_forward.13} parent=0 // loop_footer
    %s12 = sadd.s32 1, %s8
  $region7: #{generator_forward.13} parent=0 // loop_footer_branch
    %7 = sbr.rel target = $region3
  $region8: #{generator_forward.13} parent=0 // loop_exit
    _

</llo_original>
